<compile_context>
chip_gen: v7x
topology: tpu7x:2x2x1
jax: 0.10.0
libtpu: 0.0.40
codegen_flags: <defaults>
</compile_context>

<pallas_src>
import functools

import numpy as np

import jax
import jax.numpy as jnp
from jax.experimental import pallas as pl
from jax.experimental.pallas import tpu as pltpu


# ----------------------------------------------------------------------------
# Fused forward kernel (conv trunk + dueling head), one grid step per sample.
# ----------------------------------------------------------------------------
def _make_fused_kernel(kh1, h1, kh2, s2, h2, kh3, h3, row3, actions):
    """Static config (python ints):
       kh*: kernel rows per conv layer (conv1 already space-to-depth'd to 2x2)
       h*:  output rows per conv layer, s2: conv2 row stride
       row3: lane width of one conv3 output row (= W3 * 64)."""

    def kernel(x_ref, d1_ref, b1_ref, d2_ref, b2_ref, d3_ref, b3_ref,
               w1_ref, c1_ref, w2_ref, c2_ref, out_ref,
               a1_ref, a2_ref, flat_ref):
        f32 = jnp.float32
        cd = d1_ref.dtype                       # MXU compute dtype (f32 or bf16)

        def accum_dot(load_lhs, d_ref, kh):
            acc = jnp.dot(load_lhs(0), d_ref[0], preferred_element_type=f32)
            for i in range(1, kh):
                acc = acc + jnp.dot(load_lhs(i), d_ref[i],
                                    preferred_element_type=f32)
            return acc

        # conv1 (space-to-depth'd: 2x2, stride 1): all h1 output rows in one GEMM.
        acc = accum_dot(lambda i: x_ref[pl.ds(i, h1), :].astype(cd), d1_ref, kh1)
        a1_ref[...] = jnp.maximum(acc + b1_ref[...], 0.0)          # (h1, W1*32)

        # conv2 (4x4, stride 2): one output row at a time (unit-stride row reads).
        for oh in range(h2):
            acc = accum_dot(
                lambda i, oh=oh: a1_ref[pl.ds(s2 * oh + i, 1), :].astype(cd),
                d2_ref, kh2)
            a2_ref[pl.ds(oh, 1), :] = jnp.maximum(acc + b2_ref[...], 0.0)

        # conv3 (3x3, stride 1): both output rows in one GEMM, then write the rows
        # into lane-contiguous NHWC-flatten order (128-lane aligned writes).
        acc = accum_dot(lambda i: a2_ref[pl.ds(i, h3), :].astype(cd), d3_ref, kh3)
        a3 = jnp.maximum(acc + b3_ref[...], 0.0)                   # (h3, row3)
        for r in range(h3):
            flat_ref[:, r * row3:(r + 1) * row3] = a3[r:r + 1, :]

        # Fused dueling head: [adv | val] branches share one pair of GEMMs.
        flat = flat_ref[...].astype(cd)                            # (1, conv_out)
        hid = jnp.maximum(
            jnp.dot(flat, w1_ref[...], preferred_element_type=f32) + c1_ref[...],
            0.0)                                                   # (1, 1024)
        qp = jnp.dot(hid.astype(cd), w2_ref[...],
                     preferred_element_type=f32) + c2_ref[...]     # (1, 128)
        adv = qp[:, 0:actions]
        val = qp[:, actions:actions + 1]
        adv_mean = jnp.sum(adv, axis=1, keepdims=True) * (1.0 / actions)
        # Columns [0, actions) hold q; padded lanes hold junk and are sliced in the
        # wrapper -- the HBM store stays a full 128-lane unmasked vst.
        out_ref[...] = qp + (val - adv_mean)

    return kernel


# ----------------------------------------------------------------------------
# Parameter preprocessing (done once, host-side).
# ----------------------------------------------------------------------------
def _space_to_depth_weights(w_hwio, block):
    """(kh, kw, cin, cout) -> (kh//b, kw//b, b*b*cin, cout): weights of the
    equivalent stride-1 conv on the space-to-depth'd input."""
    kh, kw, cin, cout = w_hwio.shape
    w = np.asarray(w_hwio, np.float32).reshape(
        kh // block, block, kw // block, block, cin, cout)
    w = np.transpose(w, (0, 2, 1, 3, 4, 5))          # (i, j, rh, rw, cin, cout)
    return w.reshape(kh // block, kw // block, block * block * cin, cout)


def _dense_row_matmuls(w_hwio, w_in, stride):
    """Width-densified per-kernel-row matrices D: (kh, W_in*Cin, W_out*Cout) with
    out_row(oh) = sum_i in_row(stride*oh + i) @ D[i]; rows are (W, C) lane-major."""
    w = np.asarray(w_hwio, np.float32)
    kh, kw, cin, cout = w.shape
    w_out = (w_in - kw) // stride + 1
    d = np.zeros((kh, w_in * cin, w_out * cout), np.float32)
    for i in range(kh):
        for wo in range(w_out):
            for q in range(kw):
                wi = stride * wo + q
                d[i, wi * cin:(wi + 1) * cin, wo * cout:(wo + 1) * cout] = w[i, q]
    return d


def prepare_params(params, input_hw, compute_dtype=jnp.float32, q_pad=128):
    """One-time parameter preprocessing for the fused kernel."""
    h, w = input_hw
    assert h % 4 == 0 and w % 4 == 0
    w0 = w // 4
    w1s2d = _space_to_depth_weights(params["w_c1"], 4)            # (2, 2, 16C, 32)
    d1 = _dense_row_matmuls(w1s2d, w0, 1)
    w1o = w0 - w1s2d.shape[1] + 1                                  # conv1 out width
    d2 = _dense_row_matmuls(params["w_c2"], w1o, 2)
    w2o = (w1o - params["w_c2"].shape[1]) // 2 + 1
    d3 = _dense_row_matmuls(params["w_c3"], w2o, 1)
    w3o = w2o - params["w_c3"].shape[1] + 1

    b1r = np.tile(np.asarray(params["b_c1"], np.float32), w1o)[None, :]
    b2r = np.tile(np.asarray(params["b_c2"], np.float32), w2o)[None, :]
    b3r = np.tile(np.asarray(params["b_c3"], np.float32), w3o)[None, :]

    # Fused dueling head: one (conv_out, 1024) first layer, one (1024, 128) second
    # layer with [adv | val | zero-pad] columns (lane-dense output).
    a = params["w2a"].shape[1]
    assert a + 1 <= q_pad
    w1cat = np.concatenate([np.asarray(params["w1a"], np.float32),
                            np.asarray(params["w1v"], np.float32)], axis=1)
    c1cat = np.concatenate([np.asarray(params["b1a"], np.float32),
                            np.asarray(params["b1v"], np.float32)])[None, :]
    hdim = params["w2a"].shape[0]
    w2cat = np.zeros((2 * hdim, q_pad), np.float32)
    w2cat[:hdim, :a] = np.asarray(params["w2a"], np.float32)
    w2cat[hdim:, a] = np.asarray(params["w2v"], np.float32)[:, 0]
    c2cat = np.zeros((1, q_pad), np.float32)
    c2cat[0, :a] = np.asarray(params["b2a"], np.float32)
    c2cat[0, a] = float(np.asarray(params["b2v"], np.float32)[0])

    cd = compute_dtype
    return {
        "d1": jnp.asarray(d1, cd), "b1r": jnp.asarray(b1r, jnp.float32),
        "d2": jnp.asarray(d2, cd), "b2r": jnp.asarray(b2r, jnp.float32),
        "d3": jnp.asarray(d3, cd), "b3r": jnp.asarray(b3r, jnp.float32),
        "w1cat": jnp.asarray(w1cat, cd), "c1cat": jnp.asarray(c1cat, jnp.float32),
        "w2cat": jnp.asarray(w2cat, cd), "c2cat": jnp.asarray(c2cat, jnp.float32),
    }


# ----------------------------------------------------------------------------
# Forward pass: one transpose in XLA, then a single fused pallas_call.
# ----------------------------------------------------------------------------
@functools.partial(jax.jit, static_argnames=("actions",))
def forward(prep, state_nchw, *, actions):
    """state_nchw: (N, C, H, W) float32 -> q_values (N, actions)."""
    n, c, h, w = state_nchw.shape
    s = 4                                   # conv1 stride == space-to-depth block
    assert h % s == 0 and w % s == 0

    d1, d2, d3 = prep["d1"], prep["d2"], prep["d3"]
    kh1, kh2, kh3 = d1.shape[0], d2.shape[0], d3.shape[0]
    h0 = h // s
    h1 = h0 - kh1 + 1                       # conv1 output rows (== (h-8)//4 + 1)
    h2 = (h1 - kh2) // 2 + 1                # conv2 output rows
    h3 = h2 - kh3 + 1                       # conv3 output rows
    row3 = d3.shape[2]                      # lanes per conv3 output row (W3 * 64)
    qpad = prep["w2cat"].shape[1]           # lane-padded head width (128)
    cd = d1.dtype

    # NCHW -> space-to-depth rows (N, H/4, (W/4)*16*C): one transpose, no blow-up.
    xs = state_nchw.reshape(n, c, h0, s, w // s, s)
    xs = jnp.transpose(xs, (0, 2, 4, 3, 5, 1))          # (n, hb, wb, rh, rw, c)
    xs = xs.reshape(n, h0, (w // s) * s * s * c).astype(cd)

    kernel = _make_fused_kernel(kh1, h1, kh2, 2, h2, kh3, h3, row3, actions)

    def whole(arr):
        zeros = (0,) * arr.ndim
        return pl.BlockSpec(arr.shape, lambda i, z=zeros: z)

    in_specs = [pl.BlockSpec((None, h0, xs.shape[2]), lambda i: (i, 0, 0))]
    in_specs += [whole(prep[k]) for k in
                 ("d1", "b1r", "d2", "b2r", "d3", "b3r",
                  "w1cat", "c1cat", "w2cat", "c2cat")]
    out_spec = pl.BlockSpec((None, 1, qpad), lambda i: (i, 0, 0))

    scratch = [pltpu.VMEM((h1, d1.shape[2]), jnp.float32),   # conv1 activations
               pltpu.VMEM((h2, d2.shape[2]), jnp.float32),   # conv2 activations
               pltpu.VMEM((1, h3 * row3), jnp.float32)]      # NHWC-flattened conv3

    q = pl.pallas_call(
        kernel,
        out_shape=jax.ShapeDtypeStruct((n, 1, qpad), jnp.float32),
        grid_spec=pltpu.PrefetchScalarGridSpec(
            num_scalar_prefetch=0, grid=(n,),
            in_specs=in_specs, out_specs=out_spec, scratch_shapes=scratch),
        compiler_params=pltpu.CompilerParams(
            dimension_semantics=("parallel",),   # shard batch across v7x's 2 TCs
            vmem_limit_bytes=32 * 1024 * 1024),
    )(xs, prep["d1"], prep["b1r"], prep["d2"], prep["b2r"], prep["d3"],
      prep["b3r"], prep["w1cat"], prep["c1cat"], prep["w2cat"], prep["c2cat"])

    return q.reshape(n, qpad)[:, :actions]


# ----------------------------------------------------------------------------
# Model parameters (PyTorch-equivalent init) + pure-JAX reference.
# ----------------------------------------------------------------------------
def init_params(key, in_channels, actions, conv_out):
    ks = jax.random.split(key, 14)

    def u(k, shape, fan_in):
        bound = float(fan_in) ** -0.5
        return jax.random.uniform(k, shape, jnp.float32, -bound, bound)

    p = {}
    # Conv weights stored HWIO (kh, kw, cin, cout).
    p["w_c1"] = u(ks[0], (8, 8, in_channels, 32), 8 * 8 * in_channels)
    p["b_c1"] = u(ks[1], (32,), 8 * 8 * in_channels)
    p["w_c2"] = u(ks[2], (4, 4, 32, 64), 4 * 4 * 32)
    p["b_c2"] = u(ks[3], (64,), 4 * 4 * 32)
    p["w_c3"] = u(ks[4], (3, 3, 64, 64), 3 * 3 * 64)
    p["b_c3"] = u(ks[5], (64,), 3 * 3 * 64)
    # Head weights stored (in_features, out_features), rows in NHWC-flatten order.
    # (Importing PyTorch weights would need a one-time NCHW->NHWC row permutation.)
    p["w1a"] = u(ks[6], (conv_out, 512), conv_out)
    p["b1a"] = u(ks[7], (512,), conv_out)
    p["w2a"] = u(ks[8], (512, actions), 512)
    p["b2a"] = u(ks[9], (actions,), 512)
    p["w1v"] = u(ks[10], (conv_out, 512), conv_out)
    p["b1v"] = u(ks[11], (512,), conv_out)
    p["w2v"] = u(ks[12], (512, 1), 512)
    p["b2v"] = u(ks[13], (1,), 512)
    return p


def reference_forward(params, state_nchw):
    x = jnp.transpose(state_nchw, (0, 2, 3, 1))

    def conv(x, w, b, s):
        y = jax.lax.conv_general_dilated(
            x, w, (s, s), "VALID", dimension_numbers=("NHWC", "HWIO", "NHWC"))
        return jax.nn.relu(y + b)

    x = conv(x, params["w_c1"], params["b_c1"], 4)
    x = conv(x, params["w_c2"], params["b_c2"], 2)
    x = conv(x, params["w_c3"], params["b_c3"], 1)
    flat = x.reshape(x.shape[0], -1)           # NHWC flatten (head weights match)
    ha = jax.nn.relu(flat @ params["w1a"] + params["b1a"])
    adv = ha @ params["w2a"] + params["b2a"]
    hv = jax.nn.relu(flat @ params["w1v"] + params["b1v"])
    val = hv @ params["w2v"] + params["b2v"]
    return val + (adv - adv.mean(axis=1, keepdims=True))


# ----------------------------------------------------------------------------
if __name__ == "__main__":
    key = jax.random.PRNGKey(0)
    kp, kx = jax.random.split(key)

    batch, channels, height, width = 2, 4, 48, 48
    actions = 6
    # conv trunk: 48 -> (k8,s4) 11 -> (k4,s2) 4 -> (k3,s1) 2  => conv_out = 64*2*2
    conv_out = 64 * 2 * 2

    params = init_params(kp, channels, actions, conv_out)
    state = jax.random.normal(kx, (batch, channels, height, width), jnp.float32)
    q_ref = reference_forward(params, state)

    # f32 compute path (exact math, different summation order only).
    prep32 = prepare_params(params, (height, width), compute_dtype=jnp.float32)
    q32 = jax.block_until_ready(forward(prep32, state, actions=actions))
    assert q32.shape == (batch, actions), q32.shape
    err32 = float(jnp.max(jnp.abs(q32 - q_ref)))
    assert jnp.allclose(q32, q_ref, atol=2e-3, rtol=2e-3), err32

    # bf16 MXU path (native on v6e/v7x); f32 accumulation, looser tolerance.
    prep16 = prepare_params(params, (height, width), compute_dtype=jnp.bfloat16)
    q16 = jax.block_until_ready(forward(prep16, state, actions=actions))
    err16 = float(jnp.max(jnp.abs(q16 - q_ref)))
    assert jnp.allclose(q16, q_ref, atol=2.5e-1, rtol=1e-1), err16

    print("KERNEL_OK")
</pallas_src>

<mosaic_0001>
module attributes {stable_mosaic.version = 11 : i64} {
  func.func @kernel(%arg0: i32, %arg1: memref<1x12x768xf32, #tpu.memory_space<vmem>>, %arg2: memref<2x768x352xf32, #tpu.memory_space<vmem>>, %arg3: memref<1x352xf32, #tpu.memory_space<vmem>>, %arg4: memref<4x352x256xf32, #tpu.memory_space<vmem>>, %arg5: memref<1x256xf32, #tpu.memory_space<vmem>>, %arg6: memref<3x256x128xf32, #tpu.memory_space<vmem>>, %arg7: memref<1x128xf32, #tpu.memory_space<vmem>>, %arg8: memref<256x1024xf32, #tpu.memory_space<vmem>>, %arg9: memref<1x1024xf32, #tpu.memory_space<vmem>>, %arg10: memref<1024x128xf32, #tpu.memory_space<vmem>>, %arg11: memref<1x128xf32, #tpu.memory_space<vmem>>, %arg12: memref<1x1x128xf32, #tpu.memory_space<vmem>>, %arg13: memref<11x352xf32, #tpu.memory_space<vmem>>, %arg14: memref<4x256xf32, #tpu.memory_space<vmem>>, %arg15: memref<1x256xf32, #tpu.memory_space<vmem>>) attributes {dimension_semantics = [#tpu.dimension_semantics<parallel>], iteration_bounds = array<i64: 2>, scalar_prefetch = 0 : i64, scratch_operands = 3 : i64, tpu.core_type = #tpu.core_type<tc>, window_params = [{transform_indices = @transform_0, window_bounds = array<i64: 1, 12, 768>}, {pipeline_mode = #tpu.pipeline_mode<synchronous>, transform_indices = @transform_1, window_bounds = array<i64: 2, 768, 352>}, {pipeline_mode = #tpu.pipeline_mode<synchronous>, transform_indices = @transform_2, window_bounds = array<i64: 1, 352>}, {pipeline_mode = #tpu.pipeline_mode<synchronous>, transform_indices = @transform_3, window_bounds = array<i64: 4, 352, 256>}, {pipeline_mode = #tpu.pipeline_mode<synchronous>, transform_indices = @transform_4, window_bounds = array<i64: 1, 256>}, {pipeline_mode = #tpu.pipeline_mode<synchronous>, transform_indices = @transform_5, window_bounds = array<i64: 3, 256, 128>}, {pipeline_mode = #tpu.pipeline_mode<synchronous>, transform_indices = @transform_6, window_bounds = array<i64: 1, 128>}, {pipeline_mode = #tpu.pipeline_mode<synchronous>, transform_indices = @transform_7, window_bounds = array<i64: 256, 1024>}, {pipeline_mode = #tpu.pipeline_mode<synchronous>, transform_indices = @transform_8, window_bounds = array<i64: 1, 1024>}, {pipeline_mode = #tpu.pipeline_mode<synchronous>, transform_indices = @transform_9, window_bounds = array<i64: 1024, 128>}, {pipeline_mode = #tpu.pipeline_mode<synchronous>, transform_indices = @transform_10, window_bounds = array<i64: 1, 128>}, {transform_indices = @transform_11, window_bounds = array<i64: 1, 1, 128>}]} {
    %c0 = arith.constant 0 : index
    %c0_0 = arith.constant 0 : index
    %c0_1 = arith.constant 0 : index
    %0 = vector.load %arg1[%c0, %c0_0, %c0_1] : memref<1x12x768xf32, #tpu.memory_space<vmem>>, vector<1x11x768xf32>
    %1 = vector.shape_cast %0 : vector<1x11x768xf32> to vector<11x768xf32>
    %c0_2 = arith.constant 0 : index
    %c0_3 = arith.constant 0 : index
    %c0_4 = arith.constant 0 : index
    %2 = vector.load %arg2[%c0_2, %c0_3, %c0_4] : memref<2x768x352xf32, #tpu.memory_space<vmem>>, vector<1x768x352xf32>
    %3 = vector.shape_cast %2 : vector<1x768x352xf32> to vector<768x352xf32>
    %cst = arith.constant dense<0.000000e+00> : vector<11x352xf32>
    %4 = tpu.matmul %1, %3, %cst {dimension_numbers = #tpu.dot_dimension_numbers<[1], [0], [0], [1], [0, 0, 1, 1], [], []>} : vector<11x768xf32>, vector<768x352xf32>, vector<11x352xf32> -> vector<11x352xf32>
    %c0_5 = arith.constant 0 : index
    %c1 = arith.constant 1 : index
    %c0_6 = arith.constant 0 : index
    %5 = vector.load %arg1[%c0_5, %c1, %c0_6] : memref<1x12x768xf32, #tpu.memory_space<vmem>>, vector<1x11x768xf32>
    %6 = vector.shape_cast %5 : vector<1x11x768xf32> to vector<11x768xf32>
    %c1_7 = arith.constant 1 : index
    %c0_8 = arith.constant 0 : index
    %c0_9 = arith.constant 0 : index
    %7 = vector.load %arg2[%c1_7, %c0_8, %c0_9] : memref<2x768x352xf32, #tpu.memory_space<vmem>>, vector<1x768x352xf32>
    %8 = vector.shape_cast %7 : vector<1x768x352xf32> to vector<768x352xf32>
    %cst_10 = arith.constant dense<0.000000e+00> : vector<11x352xf32>
    %9 = tpu.matmul %6, %8, %cst_10 {dimension_numbers = #tpu.dot_dimension_numbers<[1], [0], [0], [1], [0, 0, 1, 1], [], []>} : vector<11x768xf32>, vector<768x352xf32>, vector<11x352xf32> -> vector<11x352xf32>
    %10 = arith.addf %4, %9 : vector<11x352xf32>
    %c0_11 = arith.constant 0 : index
    %c0_12 = arith.constant 0 : index
    %11 = vector.load %arg3[%c0_11, %c0_12] : memref<1x352xf32, #tpu.memory_space<vmem>>, vector<1x352xf32>
    %12 = vector.broadcast %11 : vector<1x352xf32> to vector<11x352xf32>
    %13 = arith.addf %10, %12 : vector<11x352xf32>
    %cst_13 = arith.constant 0.000000e+00 : f32
    %14 = vector.broadcast %cst_13 : f32 to vector<11x352xf32>
    %15 = arith.maximumf %13, %14 : vector<11x352xf32>
    %c0_14 = arith.constant 0 : index
    %c0_15 = arith.constant 0 : index
    %16 = vector.load %arg13[%c0_14, %c0_15] : memref<11x352xf32, #tpu.memory_space<vmem>>, vector<11x352xf32>
    tpu.vector_store %arg13[%c0_14, %c0_15], %15 {strides = array<i32>} : memref<11x352xf32, #tpu.memory_space<vmem>>, vector<11x352xf32>,
    %c0_16 = arith.constant 0 : index
    %c0_17 = arith.constant 0 : index
    %17 = vector.load %arg13[%c0_16, %c0_17] : memref<11x352xf32, #tpu.memory_space<vmem>>, vector<1x352xf32>
    %c0_18 = arith.constant 0 : index
    %c0_19 = arith.constant 0 : index
    %c0_20 = arith.constant 0 : index
    %18 = vector.load %arg4[%c0_18, %c0_19, %c0_20] : memref<4x352x256xf32, #tpu.memory_space<vmem>>, vector<1x352x256xf32>
    %19 = vector.shape_cast %18 : vector<1x352x256xf32> to vector<352x256xf32>
    %cst_21 = arith.constant dense<0.000000e+00> : vector<1x256xf32>
    %20 = tpu.matmul %17, %19, %cst_21 {dimension_numbers = #tpu.dot_dimension_numbers<[1], [0], [0], [1], [0, 0, 1, 1], [], []>} : vector<1x352xf32>, vector<352x256xf32>, vector<1x256xf32> -> vector<1x256xf32>
    %c1_22 = arith.constant 1 : index
    %c0_23 = arith.constant 0 : index
    %21 = vector.load %arg13[%c1_22, %c0_23] : memref<11x352xf32, #tpu.memory_space<vmem>>, vector<1x352xf32>
    %c1_24 = arith.constant 1 : index
    %c0_25 = arith.constant 0 : index
    %c0_26 = arith.constant 0 : index
    %22 = vector.load %arg4[%c1_24, %c0_25, %c0_26] : memref<4x352x256xf32, #tpu.memory_space<vmem>>, vector<1x352x256xf32>
    %23 = vector.shape_cast %22 : vector<1x352x256xf32> to vector<352x256xf32>
    %cst_27 = arith.constant dense<0.000000e+00> : vector<1x256xf32>
    %24 = tpu.matmul %21, %23, %cst_27 {dimension_numbers = #tpu.dot_dimension_numbers<[1], [0], [0], [1], [0, 0, 1, 1], [], []>} : vector<1x352xf32>, vector<352x256xf32>, vector<1x256xf32> -> vector<1x256xf32>
    %25 = arith.addf %20, %24 : vector<1x256xf32>
    %c2 = arith.constant 2 : index
    %c0_28 = arith.constant 0 : index
    %26 = vector.load %arg13[%c2, %c0_28] : memref<11x352xf32, #tpu.memory_space<vmem>>, vector<1x352xf32>
    %c2_29 = arith.constant 2 : index
    %c0_30 = arith.constant 0 : index
    %c0_31 = arith.constant 0 : index
    %27 = vector.load %arg4[%c2_29, %c0_30, %c0_31] : memref<4x352x256xf32, #tpu.memory_space<vmem>>, vector<1x352x256xf32>
    %28 = vector.shape_cast %27 : vector<1x352x256xf32> to vector<352x256xf32>
    %cst_32 = arith.constant dense<0.000000e+00> : vector<1x256xf32>
    %29 = tpu.matmul %26, %28, %cst_32 {dimension_numbers = #tpu.dot_dimension_numbers<[1], [0], [0], [1], [0, 0, 1, 1], [], []>} : vector<1x352xf32>, vector<352x256xf32>, vector<1x256xf32> -> vector<1x256xf32>
    %30 = arith.addf %25, %29 : vector<1x256xf32>
    %c3 = arith.constant 3 : index
    %c0_33 = arith.constant 0 : index
    %31 = vector.load %arg13[%c3, %c0_33] : memref<11x352xf32, #tpu.memory_space<vmem>>, vector<1x352xf32>
    %c3_34 = arith.constant 3 : index
    %c0_35 = arith.constant 0 : index
    %c0_36 = arith.constant 0 : index
    %32 = vector.load %arg4[%c3_34, %c0_35, %c0_36] : memref<4x352x256xf32, #tpu.memory_space<vmem>>, vector<1x352x256xf32>
    %33 = vector.shape_cast %32 : vector<1x352x256xf32> to vector<352x256xf32>
    %cst_37 = arith.constant dense<0.000000e+00> : vector<1x256xf32>
    %34 = tpu.matmul %31, %33, %cst_37 {dimension_numbers = #tpu.dot_dimension_numbers<[1], [0], [0], [1], [0, 0, 1, 1], [], []>} : vector<1x352xf32>, vector<352x256xf32>, vector<1x256xf32> -> vector<1x256xf32>
    %35 = arith.addf %30, %34 : vector<1x256xf32>
    %c0_38 = arith.constant 0 : index
    %c0_39 = arith.constant 0 : index
    %36 = vector.load %arg5[%c0_38, %c0_39] : memref<1x256xf32, #tpu.memory_space<vmem>>, vector<1x256xf32>
    %37 = arith.addf %35, %36 : vector<1x256xf32>
    %cst_40 = arith.constant 0.000000e+00 : f32
    %38 = vector.broadcast %cst_40 : f32 to vector<1x256xf32>
    %39 = arith.maximumf %37, %38 : vector<1x256xf32>
    %c0_41 = arith.constant 0 : index
    %c0_42 = arith.constant 0 : index
    %40 = vector.load %arg14[%c0_41, %c0_42] : memref<4x256xf32, #tpu.memory_space<vmem>>, vector<1x256xf32>
    tpu.vector_store %arg14[%c0_41, %c0_42], %39 {strides = array<i32>} : memref<4x256xf32, #tpu.memory_space<vmem>>, vector<1x256xf32>,
    %c2_43 = arith.constant 2 : index
    %c0_44 = arith.constant 0 : index
    %41 = vector.load %arg13[%c2_43, %c0_44] : memref<11x352xf32, #tpu.memory_space<vmem>>, vector<1x352xf32>
    %c0_45 = arith.constant 0 : index
    %c0_46 = arith.constant 0 : index
    %c0_47 = arith.constant 0 : index
    %42 = vector.load %arg4[%c0_45, %c0_46, %c0_47] : memref<4x352x256xf32, #tpu.memory_space<vmem>>, vector<1x352x256xf32>
    %43 = vector.shape_cast %42 : vector<1x352x256xf32> to vector<352x256xf32>
    %cst_48 = arith.constant dense<0.000000e+00> : vector<1x256xf32>
    %44 = tpu.matmul %41, %43, %cst_48 {dimension_numbers = #tpu.dot_dimension_numbers<[1], [0], [0], [1], [0, 0, 1, 1], [], []>} : vector<1x352xf32>, vector<352x256xf32>, vector<1x256xf32> -> vector<1x256xf32>
    %c3_49 = arith.constant 3 : index
    %c0_50 = arith.constant 0 : index
    %45 = vector.load %arg13[%c3_49, %c0_50] : memref<11x352xf32, #tpu.memory_space<vmem>>, vector<1x352xf32>
    %c1_51 = arith.constant 1 : index
    %c0_52 = arith.constant 0 : index
    %c0_53 = arith.constant 0 : index
    %46 = vector.load %arg4[%c1_51, %c0_52, %c0_53] : memref<4x352x256xf32, #tpu.memory_space<vmem>>, vector<1x352x256xf32>
    %47 = vector.shape_cast %46 : vector<1x352x256xf32> to vector<352x256xf32>
    %cst_54 = arith.constant dense<0.000000e+00> : vector<1x256xf32>
    %48 = tpu.matmul %45, %47, %cst_54 {dimension_numbers = #tpu.dot_dimension_numbers<[1], [0], [0], [1], [0, 0, 1, 1], [], []>} : vector<1x352xf32>, vector<352x256xf32>, vector<1x256xf32> -> vector<1x256xf32>
    %49 = arith.addf %44, %48 : vector<1x256xf32>
    %c4 = arith.constant 4 : index
    %c0_55 = arith.constant 0 : index
    %50 = vector.load %arg13[%c4, %c0_55] : memref<11x352xf32, #tpu.memory_space<vmem>>, vector<1x352xf32>
    %c2_56 = arith.constant 2 : index
    %c0_57 = arith.constant 0 : index
    %c0_58 = arith.constant 0 : index
    %51 = vector.load %arg4[%c2_56, %c0_57, %c0_58] : memref<4x352x256xf32, #tpu.memory_space<vmem>>, vector<1x352x256xf32>
    %52 = vector.shape_cast %51 : vector<1x352x256xf32> to vector<352x256xf32>
    %cst_59 = arith.constant dense<0.000000e+00> : vector<1x256xf32>
    %53 = tpu.matmul %50, %52, %cst_59 {dimension_numbers = #tpu.dot_dimension_numbers<[1], [0], [0], [1], [0, 0, 1, 1], [], []>} : vector<1x352xf32>, vector<352x256xf32>, vector<1x256xf32> -> vector<1x256xf32>
    %54 = arith.addf %49, %53 : vector<1x256xf32>
    %c5 = arith.constant 5 : index
    %c0_60 = arith.constant 0 : index
    %55 = vector.load %arg13[%c5, %c0_60] : memref<11x352xf32, #tpu.memory_space<vmem>>, vector<1x352xf32>
    %c3_61 = arith.constant 3 : index
    %c0_62 = arith.constant 0 : index
    %c0_63 = arith.constant 0 : index
    %56 = vector.load %arg4[%c3_61, %c0_62, %c0_63] : memref<4x352x256xf32, #tpu.memory_space<vmem>>, vector<1x352x256xf32>
    %57 = vector.shape_cast %56 : vector<1x352x256xf32> to vector<352x256xf32>
    %cst_64 = arith.constant dense<0.000000e+00> : vector<1x256xf32>
    %58 = tpu.matmul %55, %57, %cst_64 {dimension_numbers = #tpu.dot_dimension_numbers<[1], [0], [0], [1], [0, 0, 1, 1], [], []>} : vector<1x352xf32>, vector<352x256xf32>, vector<1x256xf32> -> vector<1x256xf32>
    %59 = arith.addf %54, %58 : vector<1x256xf32>
    %c0_65 = arith.constant 0 : index
    %c0_66 = arith.constant 0 : index
    %60 = vector.load %arg5[%c0_65, %c0_66] : memref<1x256xf32, #tpu.memory_space<vmem>>, vector<1x256xf32>
    %61 = arith.addf %59, %60 : vector<1x256xf32>
    %cst_67 = arith.constant 0.000000e+00 : f32
    %62 = vector.broadcast %cst_67 : f32 to vector<1x256xf32>
    %63 = arith.maximumf %61, %62 : vector<1x256xf32>
    %c1_68 = arith.constant 1 : index
    %c0_69 = arith.constant 0 : index
    %64 = vector.load %arg14[%c1_68, %c0_69] : memref<4x256xf32, #tpu.memory_space<vmem>>, vector<1x256xf32>
    tpu.vector_store %arg14[%c1_68, %c0_69], %63 {strides = array<i32>} : memref<4x256xf32, #tpu.memory_space<vmem>>, vector<1x256xf32>,
    %c4_70 = arith.constant 4 : index
    %c0_71 = arith.constant 0 : index
    %65 = vector.load %arg13[%c4_70, %c0_71] : memref<11x352xf32, #tpu.memory_space<vmem>>, vector<1x352xf32>
    %c0_72 = arith.constant 0 : index
    %c0_73 = arith.constant 0 : index
    %c0_74 = arith.constant 0 : index
    %66 = vector.load %arg4[%c0_72, %c0_73, %c0_74] : memref<4x352x256xf32, #tpu.memory_space<vmem>>, vector<1x352x256xf32>
    %67 = vector.shape_cast %66 : vector<1x352x256xf32> to vector<352x256xf32>
    %cst_75 = arith.constant dense<0.000000e+00> : vector<1x256xf32>
    %68 = tpu.matmul %65, %67, %cst_75 {dimension_numbers = #tpu.dot_dimension_numbers<[1], [0], [0], [1], [0, 0, 1, 1], [], []>} : vector<1x352xf32>, vector<352x256xf32>, vector<1x256xf32> -> vector<1x256xf32>
    %c5_76 = arith.constant 5 : index
    %c0_77 = arith.constant 0 : index
    %69 = vector.load %arg13[%c5_76, %c0_77] : memref<11x352xf32, #tpu.memory_space<vmem>>, vector<1x352xf32>
    %c1_78 = arith.constant 1 : index
    %c0_79 = arith.constant 0 : index
    %c0_80 = arith.constant 0 : index
    %70 = vector.load %arg4[%c1_78, %c0_79, %c0_80] : memref<4x352x256xf32, #tpu.memory_space<vmem>>, vector<1x352x256xf32>
    %71 = vector.shape_cast %70 : vector<1x352x256xf32> to vector<352x256xf32>
    %cst_81 = arith.constant dense<0.000000e+00> : vector<1x256xf32>
    %72 = tpu.matmul %69, %71, %cst_81 {dimension_numbers = #tpu.dot_dimension_numbers<[1], [0], [0], [1], [0, 0, 1, 1], [], []>} : vector<1x352xf32>, vector<352x256xf32>, vector<1x256xf32> -> vector<1x256xf32>
    %73 = arith.addf %68, %72 : vector<1x256xf32>
    %c6 = arith.constant 6 : index
    %c0_82 = arith.constant 0 : index
    %74 = vector.load %arg13[%c6, %c0_82] : memref<11x352xf32, #tpu.memory_space<vmem>>, vector<1x352xf32>
    %c2_83 = arith.constant 2 : index
    %c0_84 = arith.constant 0 : index
    %c0_85 = arith.constant 0 : index
    %75 = vector.load %arg4[%c2_83, %c0_84, %c0_85] : memref<4x352x256xf32, #tpu.memory_space<vmem>>, vector<1x352x256xf32>
    %76 = vector.shape_cast %75 : vector<1x352x256xf32> to vector<352x256xf32>
    %cst_86 = arith.constant dense<0.000000e+00> : vector<1x256xf32>
    %77 = tpu.matmul %74, %76, %cst_86 {dimension_numbers = #tpu.dot_dimension_numbers<[1], [0], [0], [1], [0, 0, 1, 1], [], []>} : vector<1x352xf32>, vector<352x256xf32>, vector<1x256xf32> -> vector<1x256xf32>
    %78 = arith.addf %73, %77 : vector<1x256xf32>
    %c7 = arith.constant 7 : index
    %c0_87 = arith.constant 0 : index
    %79 = vector.load %arg13[%c7, %c0_87] : memref<11x352xf32, #tpu.memory_space<vmem>>, vector<1x352xf32>
    %c3_88 = arith.constant 3 : index
    %c0_89 = arith.constant 0 : index
    %c0_90 = arith.constant 0 : index
    %80 = vector.load %arg4[%c3_88, %c0_89, %c0_90] : memref<4x352x256xf32, #tpu.memory_space<vmem>>, vector<1x352x256xf32>
    %81 = vector.shape_cast %80 : vector<1x352x256xf32> to vector<352x256xf32>
    %cst_91 = arith.constant dense<0.000000e+00> : vector<1x256xf32>
    %82 = tpu.matmul %79, %81, %cst_91 {dimension_numbers = #tpu.dot_dimension_numbers<[1], [0], [0], [1], [0, 0, 1, 1], [], []>} : vector<1x352xf32>, vector<352x256xf32>, vector<1x256xf32> -> vector<1x256xf32>
    %83 = arith.addf %78, %82 : vector<1x256xf32>
    %c0_92 = arith.constant 0 : index
    %c0_93 = arith.constant 0 : index
    %84 = vector.load %arg5[%c0_92, %c0_93] : memref<1x256xf32, #tpu.memory_space<vmem>>, vector<1x256xf32>
    %85 = arith.addf %83, %84 : vector<1x256xf32>
    %cst_94 = arith.constant 0.000000e+00 : f32
    %86 = vector.broadcast %cst_94 : f32 to vector<1x256xf32>
    %87 = arith.maximumf %85, %86 : vector<1x256xf32>
    %c2_95 = arith.constant 2 : index
    %c0_96 = arith.constant 0 : index
    %88 = vector.load %arg14[%c2_95, %c0_96] : memref<4x256xf32, #tpu.memory_space<vmem>>, vector<1x256xf32>
    tpu.vector_store %arg14[%c2_95, %c0_96], %87 {strides = array<i32>} : memref<4x256xf32, #tpu.memory_space<vmem>>, vector<1x256xf32>,
    %c6_97 = arith.constant 6 : index
    %c0_98 = arith.constant 0 : index
    %89 = vector.load %arg13[%c6_97, %c0_98] : memref<11x352xf32, #tpu.memory_space<vmem>>, vector<1x352xf32>
    %c0_99 = arith.constant 0 : index
    %c0_100 = arith.constant 0 : index
    %c0_101 = arith.constant 0 : index
    %90 = vector.load %arg4[%c0_99, %c0_100, %c0_101] : memref<4x352x256xf32, #tpu.memory_space<vmem>>, vector<1x352x256xf32>
    %91 = vector.shape_cast %90 : vector<1x352x256xf32> to vector<352x256xf32>
    %cst_102 = arith.constant dense<0.000000e+00> : vector<1x256xf32>
    %92 = tpu.matmul %89, %91, %cst_102 {dimension_numbers = #tpu.dot_dimension_numbers<[1], [0], [0], [1], [0, 0, 1, 1], [], []>} : vector<1x352xf32>, vector<352x256xf32>, vector<1x256xf32> -> vector<1x256xf32>
    %c7_103 = arith.constant 7 : index
    %c0_104 = arith.constant 0 : index
    %93 = vector.load %arg13[%c7_103, %c0_104] : memref<11x352xf32, #tpu.memory_space<vmem>>, vector<1x352xf32>
    %c1_105 = arith.constant 1 : index
    %c0_106 = arith.constant 0 : index
    %c0_107 = arith.constant 0 : index
    %94 = vector.load %arg4[%c1_105, %c0_106, %c0_107] : memref<4x352x256xf32, #tpu.memory_space<vmem>>, vector<1x352x256xf32>
    %95 = vector.shape_cast %94 : vector<1x352x256xf32> to vector<352x256xf32>
    %cst_108 = arith.constant dense<0.000000e+00> : vector<1x256xf32>
    %96 = tpu.matmul %93, %95, %cst_108 {dimension_numbers = #tpu.dot_dimension_numbers<[1], [0], [0], [1], [0, 0, 1, 1], [], []>} : vector<1x352xf32>, vector<352x256xf32>, vector<1x256xf32> -> vector<1x256xf32>
    %97 = arith.addf %92, %96 : vector<1x256xf32>
    %c8 = arith.constant 8 : index
    %c0_109 = arith.constant 0 : index
    %98 = vector.load %arg13[%c8, %c0_109] : memref<11x352xf32, #tpu.memory_space<vmem>>, vector<1x352xf32>
    %c2_110 = arith.constant 2 : index
    %c0_111 = arith.constant 0 : index
    %c0_112 = arith.constant 0 : index
    %99 = vector.load %arg4[%c2_110, %c0_111, %c0_112] : memref<4x352x256xf32, #tpu.memory_space<vmem>>, vector<1x352x256xf32>
    %100 = vector.shape_cast %99 : vector<1x352x256xf32> to vector<352x256xf32>
    %cst_113 = arith.constant dense<0.000000e+00> : vector<1x256xf32>
    %101 = tpu.matmul %98, %100, %cst_113 {dimension_numbers = #tpu.dot_dimension_numbers<[1], [0], [0], [1], [0, 0, 1, 1], [], []>} : vector<1x352xf32>, vector<352x256xf32>, vector<1x256xf32> -> vector<1x256xf32>
    %102 = arith.addf %97, %101 : vector<1x256xf32>
    %c9 = arith.constant 9 : index
    %c0_114 = arith.constant 0 : index
    %103 = vector.load %arg13[%c9, %c0_114] : memref<11x352xf32, #tpu.memory_space<vmem>>, vector<1x352xf32>
    %c3_115 = arith.constant 3 : index
    %c0_116 = arith.constant 0 : index
    %c0_117 = arith.constant 0 : index
    %104 = vector.load %arg4[%c3_115, %c0_116, %c0_117] : memref<4x352x256xf32, #tpu.memory_space<vmem>>, vector<1x352x256xf32>
    %105 = vector.shape_cast %104 : vector<1x352x256xf32> to vector<352x256xf32>
    %cst_118 = arith.constant dense<0.000000e+00> : vector<1x256xf32>
    %106 = tpu.matmul %103, %105, %cst_118 {dimension_numbers = #tpu.dot_dimension_numbers<[1], [0], [0], [1], [0, 0, 1, 1], [], []>} : vector<1x352xf32>, vector<352x256xf32>, vector<1x256xf32> -> vector<1x256xf32>
    %107 = arith.addf %102, %106 : vector<1x256xf32>
    %c0_119 = arith.constant 0 : index
    %c0_120 = arith.constant 0 : index
    %108 = vector.load %arg5[%c0_119, %c0_120] : memref<1x256xf32, #tpu.memory_space<vmem>>, vector<1x256xf32>
    %109 = arith.addf %107, %108 : vector<1x256xf32>
    %cst_121 = arith.constant 0.000000e+00 : f32
    %110 = vector.broadcast %cst_121 : f32 to vector<1x256xf32>
    %111 = arith.maximumf %109, %110 : vector<1x256xf32>
    %c3_122 = arith.constant 3 : index
    %c0_123 = arith.constant 0 : index
    %112 = vector.load %arg14[%c3_122, %c0_123] : memref<4x256xf32, #tpu.memory_space<vmem>>, vector<1x256xf32>
    tpu.vector_store %arg14[%c3_122, %c0_123], %111 {strides = array<i32>} : memref<4x256xf32, #tpu.memory_space<vmem>>, vector<1x256xf32>,
    %c0_124 = arith.constant 0 : index
    %c0_125 = arith.constant 0 : index
    %113 = vector.load %arg14[%c0_124, %c0_125] : memref<4x256xf32, #tpu.memory_space<vmem>>, vector<2x256xf32>
    %c0_126 = arith.constant 0 : index
    %c0_127 = arith.constant 0 : index
    %c0_128 = arith.constant 0 : index
    %114 = vector.load %arg6[%c0_126, %c0_127, %c0_128] : memref<3x256x128xf32, #tpu.memory_space<vmem>>, vector<1x256x128xf32>
    %115 = vector.shape_cast %114 : vector<1x256x128xf32> to vector<256x128xf32>
    %cst_129 = arith.constant dense<0.000000e+00> : vector<2x128xf32>
    %116 = tpu.matmul %113, %115, %cst_129 {dimension_numbers = #tpu.dot_dimension_numbers<[1], [0], [0], [1], [0, 0, 1, 1], [], []>} : vector<2x256xf32>, vector<256x128xf32>, vector<2x128xf32> -> vector<2x128xf32>
    %c1_130 = arith.constant 1 : index
    %c0_131 = arith.constant 0 : index
    %117 = vector.load %arg14[%c1_130, %c0_131] : memref<4x256xf32, #tpu.memory_space<vmem>>, vector<2x256xf32>
    %c1_132 = arith.constant 1 : index
    %c0_133 = arith.constant 0 : index
    %c0_134 = arith.constant 0 : index
    %118 = vector.load %arg6[%c1_132, %c0_133, %c0_134] : memref<3x256x128xf32, #tpu.memory_space<vmem>>, vector<1x256x128xf32>
    %119 = vector.shape_cast %118 : vector<1x256x128xf32> to vector<256x128xf32>
    %cst_135 = arith.constant dense<0.000000e+00> : vector<2x128xf32>
    %120 = tpu.matmul %117, %119, %cst_135 {dimension_numbers = #tpu.dot_dimension_numbers<[1], [0], [0], [1], [0, 0, 1, 1], [], []>} : vector<2x256xf32>, vector<256x128xf32>, vector<2x128xf32> -> vector<2x128xf32>
    %121 = arith.addf %116, %120 : vector<2x128xf32>
    %c2_136 = arith.constant 2 : index
    %c0_137 = arith.constant 0 : index
    %122 = vector.load %arg14[%c2_136, %c0_137] : memref<4x256xf32, #tpu.memory_space<vmem>>, vector<2x256xf32>
    %c2_138 = arith.constant 2 : index
    %c0_139 = arith.constant 0 : index
    %c0_140 = arith.constant 0 : index
    %123 = vector.load %arg6[%c2_138, %c0_139, %c0_140] : memref<3x256x128xf32, #tpu.memory_space<vmem>>, vector<1x256x128xf32>
    %124 = vector.shape_cast %123 : vector<1x256x128xf32> to vector<256x128xf32>
    %cst_141 = arith.constant dense<0.000000e+00> : vector<2x128xf32>
    %125 = tpu.matmul %122, %124, %cst_141 {dimension_numbers = #tpu.dot_dimension_numbers<[1], [0], [0], [1], [0, 0, 1, 1], [], []>} : vector<2x256xf32>, vector<256x128xf32>, vector<2x128xf32> -> vector<2x128xf32>
    %126 = arith.addf %121, %125 : vector<2x128xf32>
    %c0_142 = arith.constant 0 : index
    %c0_143 = arith.constant 0 : index
    %127 = vector.load %arg7[%c0_142, %c0_143] : memref<1x128xf32, #tpu.memory_space<vmem>>, vector<1x128xf32>
    %128 = vector.broadcast %127 : vector<1x128xf32> to vector<2x128xf32>
    %129 = arith.addf %126, %128 : vector<2x128xf32>
    %cst_144 = arith.constant 0.000000e+00 : f32
    %130 = vector.broadcast %cst_144 : f32 to vector<2x128xf32>
    %131 = arith.maximumf %129, %130 : vector<2x128xf32>
    %132 = vector.extract_strided_slice %131 {offsets = [0, 0], sizes = [1, 128], strides = [1, 1]} : vector<2x128xf32> to vector<1x128xf32>
    %c0_145 = arith.constant 0 : index
    %c0_146 = arith.constant 0 : index
    %133 = vector.load %arg15[%c0_145, %c0_146] : memref<1x256xf32, #tpu.memory_space<vmem>>, vector<1x128xf32>
    tpu.vector_store %arg15[%c0_145, %c0_146], %132 {strides = array<i32>} : memref<1x256xf32, #tpu.memory_space<vmem>>, vector<1x128xf32>,
    %134 = vector.extract_strided_slice %131 {offsets = [1, 0], sizes = [1, 128], strides = [1, 1]} : vector<2x128xf32> to vector<1x128xf32>
    %c0_147 = arith.constant 0 : index
    %c128 = arith.constant 128 : index
    %135 = vector.load %arg15[%c0_147, %c128] : memref<1x256xf32, #tpu.memory_space<vmem>>, vector<1x128xf32>
    tpu.vector_store %arg15[%c0_147, %c128], %134 {strides = array<i32>} : memref<1x256xf32, #tpu.memory_space<vmem>>, vector<1x128xf32>,
    %c0_148 = arith.constant 0 : index
    %c0_149 = arith.constant 0 : index
    %136 = vector.load %arg15[%c0_148, %c0_149] : memref<1x256xf32, #tpu.memory_space<vmem>>, vector<1x256xf32>
    %c0_150 = arith.constant 0 : index
    %c0_151 = arith.constant 0 : index
    %137 = vector.load %arg8[%c0_150, %c0_151] : memref<256x1024xf32, #tpu.memory_space<vmem>>, vector<256x1024xf32>
    %cst_152 = arith.constant dense<0.000000e+00> : vector<1x1024xf32>
    %138 = tpu.matmul %136, %137, %cst_152 {dimension_numbers = #tpu.dot_dimension_numbers<[1], [0], [0], [1], [0, 0, 1, 1], [], []>} : vector<1x256xf32>, vector<256x1024xf32>, vector<1x1024xf32> -> vector<1x1024xf32>
    %c0_153 = arith.constant 0 : index
    %c0_154 = arith.constant 0 : index
    %139 = vector.load %arg9[%c0_153, %c0_154] : memref<1x1024xf32, #tpu.memory_space<vmem>>, vector<1x1024xf32>
    %140 = arith.addf %138, %139 : vector<1x1024xf32>
    %cst_155 = arith.constant 0.000000e+00 : f32
    %141 = vector.broadcast %cst_155 : f32 to vector<1x1024xf32>
    %142 = arith.maximumf %140, %141 : vector<1x1024xf32>
    %c0_156 = arith.constant 0 : index
    %c0_157 = arith.constant 0 : index
    %143 = vector.load %arg10[%c0_156, %c0_157] : memref<1024x128xf32, #tpu.memory_space<vmem>>, vector<1024x128xf32>
    %cst_158 = arith.constant dense<0.000000e+00> : vector<1x128xf32>
    %144 = tpu.matmul %142, %143, %cst_158 {dimension_numbers = #tpu.dot_dimension_numbers<[1], [0], [0], [1], [0, 0, 1, 1], [], []>} : vector<1x1024xf32>, vector<1024x128xf32>, vector<1x128xf32> -> vector<1x128xf32>
    %c0_159 = arith.constant 0 : index
    %c0_160 = arith.constant 0 : index
    %145 = vector.load %arg11[%c0_159, %c0_160] : memref<1x128xf32, #tpu.memory_space<vmem>>, vector<1x128xf32>
    %146 = arith.addf %144, %145 : vector<1x128xf32>
    %147 = vector.extract_strided_slice %146 {offsets = [0, 0], sizes = [1, 6], strides = [1, 1]} : vector<1x128xf32> to vector<1x6xf32>
    %148 = vector.extract_strided_slice %146 {offsets = [0, 6], sizes = [1, 1], strides = [1, 1]} : vector<1x128xf32> to vector<1x1xf32>
    %cst_161 = arith.constant dense<0.000000e+00> : vector<1xf32>
    %149 = vector.multi_reduction <add>, %147, %cst_161 [1] : vector<1x6xf32> to vector<1xf32>
    %150 = vector.shape_cast %149 : vector<1xf32> to vector<1x1xf32>
    %cst_162 = arith.constant 0.166666672 : f32
    %151 = vector.broadcast %cst_162 : f32 to vector<1x1xf32>
    %152 = arith.mulf %150, %151 : vector<1x1xf32>
    %153 = arith.subf %148, %152 : vector<1x1xf32>
    %154 = vector.broadcast %153 : vector<1x1xf32> to vector<1x128xf32>
    %155 = arith.addf %146, %154 : vector<1x128xf32>
    %c0_163 = arith.constant 0 : index
    %c0_164 = arith.constant 0 : index
    %c0_165 = arith.constant 0 : index
    %156 = vector.load %arg12[%c0_163, %c0_164, %c0_165] : memref<1x1x128xf32, #tpu.memory_space<vmem>>, vector<1x1x128xf32>
    %157 = vector.shape_cast %156 : vector<1x1x128xf32> to vector<1x128xf32>
    %158 = vector.shape_cast %155 : vector<1x128xf32> to vector<1x1x128xf32>
    tpu.vector_store %arg12[%c0_163, %c0_164, %c0_165], %158 {strides = array<i32>} : memref<1x1x128xf32, #tpu.memory_space<vmem>>, vector<1x1x128xf32>,
    return
  }
  func.func @transform_0(%arg0: i32) -> (i32, i32, i32) {
    %c0_i32 = arith.constant 0 : i32
    %c0_i32_0 = arith.constant 0 : i32
    %c0_i32_1 = arith.constant 0 : i32
    return %arg0, %c0_i32, %c0_i32_0 : i32, i32, i32
  }
  func.func @transform_1(%arg0: i32) -> (i32, i32, i32) {
    %c0_i32 = arith.constant 0 : i32
    %c0_i32_0 = arith.constant 0 : i32
    %c0_i32_1 = arith.constant 0 : i32
    %c0_i32_2 = arith.constant 0 : i32
    return %c0_i32, %c0_i32_0, %c0_i32_1 : i32, i32, i32
  }
  func.func @transform_2(%arg0: i32) -> (i32, i32) {
    %c0_i32 = arith.constant 0 : i32
    %c0_i32_0 = arith.constant 0 : i32
    %c0_i32_1 = arith.constant 0 : i32
    return %c0_i32, %c0_i32_0 : i32, i32
  }
  func.func @transform_3(%arg0: i32) -> (i32, i32, i32) {
    %c0_i32 = arith.constant 0 : i32
    %c0_i32_0 = arith.constant 0 : i32
    %c0_i32_1 = arith.constant 0 : i32
    %c0_i32_2 = arith.constant 0 : i32
    return %c0_i32, %c0_i32_0, %c0_i32_1 : i32, i32, i32
  }
  func.func @transform_4(%arg0: i32) -> (i32, i32) {
    %c0_i32 = arith.constant 0 : i32
    %c0_i32_0 = arith.constant 0 : i32
    %c0_i32_1 = arith.constant 0 : i32
    return %c0_i32, %c0_i32_0 : i32, i32
  }
  func.func @transform_5(%arg0: i32) -> (i32, i32, i32) {
    %c0_i32 = arith.constant 0 : i32
    %c0_i32_0 = arith.constant 0 : i32
    %c0_i32_1 = arith.constant 0 : i32
    %c0_i32_2 = arith.constant 0 : i32
    return %c0_i32, %c0_i32_0, %c0_i32_1 : i32, i32, i32
  }
  func.func @transform_6(%arg0: i32) -> (i32, i32) {
    %c0_i32 = arith.constant 0 : i32
    %c0_i32_0 = arith.constant 0 : i32
    %c0_i32_1 = arith.constant 0 : i32
    return %c0_i32, %c0_i32_0 : i32, i32
  }
  func.func @transform_7(%arg0: i32) -> (i32, i32) {
    %c0_i32 = arith.constant 0 : i32
    %c0_i32_0 = arith.constant 0 : i32
    %c0_i32_1 = arith.constant 0 : i32
    return %c0_i32, %c0_i32_0 : i32, i32
  }
  func.func @transform_8(%arg0: i32) -> (i32, i32) {
    %c0_i32 = arith.constant 0 : i32
    %c0_i32_0 = arith.constant 0 : i32
    %c0_i32_1 = arith.constant 0 : i32
    return %c0_i32, %c0_i32_0 : i32, i32
  }
  func.func @transform_9(%arg0: i32) -> (i32, i32) {
    %c0_i32 = arith.constant 0 : i32
    %c0_i32_0 = arith.constant 0 : i32
    %c0_i32_1 = arith.constant 0 : i32
    return %c0_i32, %c0_i32_0 : i32, i32
  }
  func.func @transform_10(%arg0: i32) -> (i32, i32) {
    %c0_i32 = arith.constant 0 : i32
    %c0_i32_0 = arith.constant 0 : i32
    %c0_i32_1 = arith.constant 0 : i32
    return %c0_i32, %c0_i32_0 : i32, i32
  }
  func.func @transform_11(%arg0: i32) -> (i32, i32, i32) {
    %c0_i32 = arith.constant 0 : i32
    %c0_i32_0 = arith.constant 0 : i32
    %c0_i32_1 = arith.constant 0 : i32
    return %arg0, %c0_i32, %c0_i32_0 : i32, i32, i32
  }
}

</mosaic_0001>

<llo_original>
// kernel: forward.1
$region0: #{forward.1}
  #allocation0 [shape = 'u32[]', space=smem, size = 0x4, offset = 0x4, fixed_abs, tag = 'smem constant byte address 0x4 - core index']
  #allocation1 [shape = 'u32[144,128]{1,0:T(1,128)}', space=vmem, size = 0x12000, scoped, tag = 'internal scratch']
  #allocation2 [shape = 'f32[11,352]{1,0:T(8,128)}', space=vmem, size = 0x6000, scoped, tag = 'scratch operand']
  #allocation3 [shape = 'f32[4,256]{1,0:T(4,128)}', space=vmem, size = 0x1000, scoped, tag = 'scratch operand']
  #allocation4 [shape = 'f32[1,256]{1,0:T(1,128)}', space=vmem, size = 0x400, scoped, tag = 'scratch operand']
  %s0 = inlined_call_operand.vmem [shape: f32[2,12,768], index: 0, kind: input, shape index: {}]
  %s1 = inlined_call_operand.vmem [shape: f32[2,768,352], index: 1, kind: input, shape index: {}]
  %s2 = inlined_call_operand.vmem [shape: f32[1,352], index: 2, kind: input, shape index: {}]
  %s3 = inlined_call_operand.vmem [shape: f32[4,352,256], index: 3, kind: input, shape index: {}]
  %s4 = inlined_call_operand.vmem [shape: f32[1,256], index: 4, kind: input, shape index: {}]
  %s5 = inlined_call_operand.vmem [shape: f32[3,256,128], index: 5, kind: input, shape index: {}]
  %s6 = inlined_call_operand.vmem [shape: f32[1,128], index: 6, kind: input, shape index: {}]
  %s7 = inlined_call_operand.vmem [shape: f32[256,1024], index: 7, kind: input, shape index: {}]
  %s8 = inlined_call_operand.vmem [shape: f32[1,1024], index: 8, kind: input, shape index: {}]
  %s9 = inlined_call_operand.vmem [shape: f32[1024,128], index: 9, kind: input, shape index: {}]
  %s10 = inlined_call_operand.vmem [shape: f32[1,128], index: 10, kind: input, shape index: {}]
  %s11 = inlined_call_operand.hbm [shape: f32[2,1,128], index: 11, kind: output, shape index: {}]
  %s12 = sld [smem:[#allocation0]]
  $region77: #{forward.1} parent=0
    _
  %s14 = ssub.s32 1, %s12
  %s15 = scalar_select 0, %s14, %s12
  $region1: #{forward.1} parent=0
    #allocation5 [shape = 'u8[1024]{0}', space=vmem, size = 0x400, scoped, tag = 'output window, operand 0']
    #allocation6 [shape = 's32[2]{0}', space=sflag, size = 0x8, scoped, tag = 'scoped memory for forward.1']
    %16 = vsyncpa [#allocation6], 0
    %s17 = scalar_lea.sflag [#allocation6], 1
    %18 = vsyncpa %s17, 0
    loop: start=0, step=1, limit=4
    $region2: #{forward.1} parent=1 // loop_pre_header
      _
    $region3: #{forward.1} parent=1 // loop_header
      %s20 = sphi 0, %s24
      %p21 = scmp.ge.s32.totalorder %s20, 4
      %s30 = sphi 0, %s32
      %s33 = sphi 0, %s30
      %s34 = sphi 0, %s33
      %s50 = sphi 0, %s34
      %s54 = sphi 0, %s54
      %s56 = sphi 0, %s54
      %s57 = sphi 0, %s56
      %s71 = sphi 0, %s57
      %s75 = sphi 0, %s75
      %s77 = sphi 0, %s75
      %s78 = sphi 0, %s77
      %s92 = sphi 0, %s78
      %s96 = sphi 0, %s96
      %s98 = sphi 0, %s96
      %s99 = sphi 0, %s98
      %s113 = sphi 0, %s99
      %s117 = sphi 0, %s117
      %s119 = sphi 0, %s117
      %s120 = sphi 0, %s119
      %s134 = sphi 0, %s120
      %s138 = sphi 0, %s138
      %s140 = sphi 0, %s138
      %s141 = sphi 0, %s140
      %s155 = sphi 0, %s141
      %s159 = sphi 0, %s159
      %s161 = sphi 0, %s159
      %s162 = sphi 0, %s161
      %s176 = sphi 0, %s162
      %s180 = sphi 0, %s180
      %s182 = sphi 0, %s180
      %s183 = sphi 0, %s182
      %s197 = sphi 0, %s183
      %s201 = sphi 0, %s201
      %s203 = sphi 0, %s201
      %s204 = sphi 0, %s203
      %s218 = sphi 0, %s204
      %s222 = sphi 0, %s222
      %s224 = sphi 0, %s222
      %s225 = sphi 0, %s224
      %s239 = sphi 0, %s225
      %s243 = sphi 0, %s243
      %s245 = sphi 0, %s243
      %s246 = sphi 0, %s245
      %s260 = sphi 0, %s246
      %s266 = sphi 0, %s268
      %s269 = sphi 0, %s266
      %s270 = sphi 0, %s269
      %s286 = sphi 0, %s270
    $region4: #{forward.1} parent=1 // loop_header_branch
      %23 = sbr.rel (%p21) target = $region8
    $region5: #{forward.1} parent=1 // loop_body
      %s25 = ssub.s32 %s20, 1
      %s26 = ssub.s32 %s20, 2
      %s27 = sadd.s32 %s20, 1
      %s28 = ssub.s32 %s20, %s27
      %p29 = scmp.eq.s32.totalorder %s28, 0
      %s31 = sadd.s32 %s30, 1
      %s32 = scalar_select %p29, %s30, %s31
      %p35 = pneg %p29
      %p36 = scmp.eq.s32.totalorder %s20, 1
      %p37 = por %p35, %p36
      %p38 = scmp.ne.s32.totalorder %s30, %s33
      %p39 = scmp.eq.s32.totalorder %s20, 0
      %p40 = por %p38, %p39
      %p41 = scmp.ne.s32.totalorder %s30, %s33
      %p42 = scmp.eq.s32.totalorder %s25, 1
      %p43 = por %p41, %p42
      %p44 = scmp.ne.s32.totalorder %s33, %s34
      %p45 = scmp.eq.s32.totalorder %s25, 0
      %p46 = por %p44, %p45
      %p47 = scmp.ne.s32.totalorder %s33, %s34
      %p48 = scmp.eq.s32.totalorder %s26, 1
      %p49 = por %p47, %p48
      %p51 = scmp.ne.s32.totalorder %s34, %s50
      %p52 = scmp.eq.s32.totalorder %s26, 0
      %p53 = por %p51, %p52
      %s55 = sadd.s32 %s54, 1
      %p58 = scmp.eq.s32.totalorder %s20, 1
      %p59 = scmp.ne.s32.totalorder %s54, %s56
      %p60 = scmp.eq.s32.totalorder %s20, 0
      %p61 = por %p59, %p60
      %p62 = scmp.ne.s32.totalorder %s54, %s56
      %p63 = scmp.eq.s32.totalorder %s25, 1
      %p64 = por %p62, %p63
      %p65 = scmp.ne.s32.totalorder %s56, %s57
      %p66 = scmp.eq.s32.totalorder %s25, 0
      %p67 = por %p65, %p66
      %p68 = scmp.ne.s32.totalorder %s56, %s57
      %p69 = scmp.eq.s32.totalorder %s26, 1
      %p70 = por %p68, %p69
      %p72 = scmp.ne.s32.totalorder %s57, %s71
      %p73 = scmp.eq.s32.totalorder %s26, 0
      %p74 = por %p72, %p73
      %s76 = sadd.s32 %s75, 1
      %p79 = scmp.eq.s32.totalorder %s20, 1
      %p80 = scmp.ne.s32.totalorder %s75, %s77
      %p81 = scmp.eq.s32.totalorder %s20, 0
      %p82 = por %p80, %p81
      %p83 = scmp.ne.s32.totalorder %s75, %s77
      %p84 = scmp.eq.s32.totalorder %s25, 1
      %p85 = por %p83, %p84
      %p86 = scmp.ne.s32.totalorder %s77, %s78
      %p87 = scmp.eq.s32.totalorder %s25, 0
      %p88 = por %p86, %p87
      %p89 = scmp.ne.s32.totalorder %s77, %s78
      %p90 = scmp.eq.s32.totalorder %s26, 1
      %p91 = por %p89, %p90
      %p93 = scmp.ne.s32.totalorder %s78, %s92
      %p94 = scmp.eq.s32.totalorder %s26, 0
      %p95 = por %p93, %p94
      %s97 = sadd.s32 %s96, 1
      %p100 = scmp.eq.s32.totalorder %s20, 1
      %p101 = scmp.ne.s32.totalorder %s96, %s98
      %p102 = scmp.eq.s32.totalorder %s20, 0
      %p103 = por %p101, %p102
      %p104 = scmp.ne.s32.totalorder %s96, %s98
      %p105 = scmp.eq.s32.totalorder %s25, 1
      %p106 = por %p104, %p105
      %p107 = scmp.ne.s32.totalorder %s98, %s99
      %p108 = scmp.eq.s32.totalorder %s25, 0
      %p109 = por %p107, %p108
      %p110 = scmp.ne.s32.totalorder %s98, %s99
      %p111 = scmp.eq.s32.totalorder %s26, 1
      %p112 = por %p110, %p111
      %p114 = scmp.ne.s32.totalorder %s99, %s113
      %p115 = scmp.eq.s32.totalorder %s26, 0
      %p116 = por %p114, %p115
      %s118 = sadd.s32 %s117, 1
      %p121 = scmp.eq.s32.totalorder %s20, 1
      %p122 = scmp.ne.s32.totalorder %s117, %s119
      %p123 = scmp.eq.s32.totalorder %s20, 0
      %p124 = por %p122, %p123
      %p125 = scmp.ne.s32.totalorder %s117, %s119
      %p126 = scmp.eq.s32.totalorder %s25, 1
      %p127 = por %p125, %p126
      %p128 = scmp.ne.s32.totalorder %s119, %s120
      %p129 = scmp.eq.s32.totalorder %s25, 0
      %p130 = por %p128, %p129
      %p131 = scmp.ne.s32.totalorder %s119, %s120
      %p132 = scmp.eq.s32.totalorder %s26, 1
      %p133 = por %p131, %p132
      %p135 = scmp.ne.s32.totalorder %s120, %s134
      %p136 = scmp.eq.s32.totalorder %s26, 0
      %p137 = por %p135, %p136
      %s139 = sadd.s32 %s138, 1
      %p142 = scmp.eq.s32.totalorder %s20, 1
      %p143 = scmp.ne.s32.totalorder %s138, %s140
      %p144 = scmp.eq.s32.totalorder %s20, 0
      %p145 = por %p143, %p144
      %p146 = scmp.ne.s32.totalorder %s138, %s140
      %p147 = scmp.eq.s32.totalorder %s25, 1
      %p148 = por %p146, %p147
      %p149 = scmp.ne.s32.totalorder %s140, %s141
      %p150 = scmp.eq.s32.totalorder %s25, 0
      %p151 = por %p149, %p150
      %p152 = scmp.ne.s32.totalorder %s140, %s141
      %p153 = scmp.eq.s32.totalorder %s26, 1
      %p154 = por %p152, %p153
      %p156 = scmp.ne.s32.totalorder %s141, %s155
      %p157 = scmp.eq.s32.totalorder %s26, 0
      %p158 = por %p156, %p157
      %s160 = sadd.s32 %s159, 1
      %p163 = scmp.eq.s32.totalorder %s20, 1
      %p164 = scmp.ne.s32.totalorder %s159, %s161
      %p165 = scmp.eq.s32.totalorder %s20, 0
      %p166 = por %p164, %p165
      %p167 = scmp.ne.s32.totalorder %s159, %s161
      %p168 = scmp.eq.s32.totalorder %s25, 1
      %p169 = por %p167, %p168
      %p170 = scmp.ne.s32.totalorder %s161, %s162
      %p171 = scmp.eq.s32.totalorder %s25, 0
      %p172 = por %p170, %p171
      %p173 = scmp.ne.s32.totalorder %s161, %s162
      %p174 = scmp.eq.s32.totalorder %s26, 1
      %p175 = por %p173, %p174
      %p177 = scmp.ne.s32.totalorder %s162, %s176
      %p178 = scmp.eq.s32.totalorder %s26, 0
      %p179 = por %p177, %p178
      %s181 = sadd.s32 %s180, 1
      %p184 = scmp.eq.s32.totalorder %s20, 1
      %p185 = scmp.ne.s32.totalorder %s180, %s182
      %p186 = scmp.eq.s32.totalorder %s20, 0
      %p187 = por %p185, %p186
      %p188 = scmp.ne.s32.totalorder %s180, %s182
      %p189 = scmp.eq.s32.totalorder %s25, 1
      %p190 = por %p188, %p189
      %p191 = scmp.ne.s32.totalorder %s182, %s183
      %p192 = scmp.eq.s32.totalorder %s25, 0
      %p193 = por %p191, %p192
      %p194 = scmp.ne.s32.totalorder %s182, %s183
      %p195 = scmp.eq.s32.totalorder %s26, 1
      %p196 = por %p194, %p195
      %p198 = scmp.ne.s32.totalorder %s183, %s197
      %p199 = scmp.eq.s32.totalorder %s26, 0
      %p200 = por %p198, %p199
      %s202 = sadd.s32 %s201, 1
      %p205 = scmp.eq.s32.totalorder %s20, 1
      %p206 = scmp.ne.s32.totalorder %s201, %s203
      %p207 = scmp.eq.s32.totalorder %s20, 0
      %p208 = por %p206, %p207
      %p209 = scmp.ne.s32.totalorder %s201, %s203
      %p210 = scmp.eq.s32.totalorder %s25, 1
      %p211 = por %p209, %p210
      %p212 = scmp.ne.s32.totalorder %s203, %s204
      %p213 = scmp.eq.s32.totalorder %s25, 0
      %p214 = por %p212, %p213
      %p215 = scmp.ne.s32.totalorder %s203, %s204
      %p216 = scmp.eq.s32.totalorder %s26, 1
      %p217 = por %p215, %p216
      %p219 = scmp.ne.s32.totalorder %s204, %s218
      %p220 = scmp.eq.s32.totalorder %s26, 0
      %p221 = por %p219, %p220
      %s223 = sadd.s32 %s222, 1
      %p226 = scmp.eq.s32.totalorder %s20, 1
      %p227 = scmp.ne.s32.totalorder %s222, %s224
      %p228 = scmp.eq.s32.totalorder %s20, 0
      %p229 = por %p227, %p228
      %p230 = scmp.ne.s32.totalorder %s222, %s224
      %p231 = scmp.eq.s32.totalorder %s25, 1
      %p232 = por %p230, %p231
      %p233 = scmp.ne.s32.totalorder %s224, %s225
      %p234 = scmp.eq.s32.totalorder %s25, 0
      %p235 = por %p233, %p234
      %p236 = scmp.ne.s32.totalorder %s224, %s225
      %p237 = scmp.eq.s32.totalorder %s26, 1
      %p238 = por %p236, %p237
      %p240 = scmp.ne.s32.totalorder %s225, %s239
      %p241 = scmp.eq.s32.totalorder %s26, 0
      %p242 = por %p240, %p241
      %s244 = sadd.s32 %s243, 1
      %p247 = scmp.eq.s32.totalorder %s20, 1
      %p248 = scmp.ne.s32.totalorder %s243, %s245
      %p249 = scmp.eq.s32.totalorder %s20, 0
      %p250 = por %p248, %p249
      %p251 = scmp.ne.s32.totalorder %s243, %s245
      %p252 = scmp.eq.s32.totalorder %s25, 1
      %p253 = por %p251, %p252
      %p254 = scmp.ne.s32.totalorder %s245, %s246
      %p255 = scmp.eq.s32.totalorder %s25, 0
      %p256 = por %p254, %p255
      %p257 = scmp.ne.s32.totalorder %s245, %s246
      %p258 = scmp.eq.s32.totalorder %s26, 1
      %p259 = por %p257, %p258
      %p261 = scmp.ne.s32.totalorder %s246, %s260
      %p262 = scmp.eq.s32.totalorder %s26, 0
      %p263 = por %p261, %p262
      %s264 = ssub.s32 %s20, %s27
      %p265 = scmp.eq.s32.totalorder %s264, 0
      %s267 = sadd.s32 %s266, 1
      %s268 = scalar_select %p265, %s266, %s267
      %p271 = pneg %p265
      %p272 = scmp.eq.s32.totalorder %s20, 1
      %p273 = por %p271, %p272
      %p274 = scmp.ne.s32.totalorder %s266, %s269
      %p275 = scmp.eq.s32.totalorder %s20, 0
      %p276 = por %p274, %p275
      %p277 = scmp.ne.s32.totalorder %s266, %s269
      %p278 = scmp.eq.s32.totalorder %s25, 1
      %p279 = por %p277, %p278
      %p280 = scmp.ne.s32.totalorder %s269, %s270
      %p281 = scmp.eq.s32.totalorder %s25, 0
      %p282 = por %p280, %p281
      %p283 = scmp.ne.s32.totalorder %s269, %s270
      %p284 = scmp.eq.s32.totalorder %s26, 1
      %p285 = por %p283, %p284
      %p287 = scmp.ne.s32.totalorder %s270, %s286
      %p288 = scmp.eq.s32.totalorder %s26, 0
      %p289 = por %p287, %p288
      %p290 = scmp.le.s32.totalorder 1, %s20
      %p291 = scmp.lt.s32.totalorder %s20, 3
      %p292 = pnand %p290, %p291
      %p293 = pneg %p292
      // Predicated region
      $region9: #{forward.1} parent=5 // pred_check
        _
      $region10: #{forward.1} parent=5 // pred_check_branch
        %295 = sbr.rel (%p292) target = $region12
      $region11: #{forward.1} parent=5 // pred_region
        %s296 = ssub.s32 %s20, 1
        // Predicated region
        $region13: #{forward.1} parent=11 // pred_check
          %p297 = pneg %p67
        $region14: #{forward.1} parent=11 // pred_check_branch
          %299 = sbr.rel (%p297) target = $region16
        $region15: #{forward.1} parent=11 // pred_region
          _
        $region16: #{forward.1} parent=11 // pred_fallthru
          _
        // Predicated region
        $region17: #{forward.1} parent=11 // pred_check
          %p300 = pneg %p88
        $region18: #{forward.1} parent=11 // pred_check_branch
          %302 = sbr.rel (%p300) target = $region20
        $region19: #{forward.1} parent=11 // pred_region
          _
        $region20: #{forward.1} parent=11 // pred_fallthru
          _
        // Predicated region
        $region21: #{forward.1} parent=11 // pred_check
          %p303 = pneg %p109
        $region22: #{forward.1} parent=11 // pred_check_branch
          %305 = sbr.rel (%p303) target = $region24
        $region23: #{forward.1} parent=11 // pred_region
          _
        $region24: #{forward.1} parent=11 // pred_fallthru
          _
        // Predicated region
        $region25: #{forward.1} parent=11 // pred_check
          %p306 = pneg %p130
        $region26: #{forward.1} parent=11 // pred_check_branch
          %308 = sbr.rel (%p306) target = $region28
        $region27: #{forward.1} parent=11 // pred_region
          _
        $region28: #{forward.1} parent=11 // pred_fallthru
          _
        // Predicated region
        $region29: #{forward.1} parent=11 // pred_check
          %p309 = pneg %p151
        $region30: #{forward.1} parent=11 // pred_check_branch
          %311 = sbr.rel (%p309) target = $region32
        $region31: #{forward.1} parent=11 // pred_region
          _
        $region32: #{forward.1} parent=11 // pred_fallthru
          _
        // Predicated region
        $region33: #{forward.1} parent=11 // pred_check
          %p312 = pneg %p172
        $region34: #{forward.1} parent=11 // pred_check_branch
          %314 = sbr.rel (%p312) target = $region36
        $region35: #{forward.1} parent=11 // pred_region
          _
        $region36: #{forward.1} parent=11 // pred_fallthru
          _
        // Predicated region
        $region37: #{forward.1} parent=11 // pred_check
          %p315 = pneg %p193
        $region38: #{forward.1} parent=11 // pred_check_branch
          %317 = sbr.rel (%p315) target = $region40
        $region39: #{forward.1} parent=11 // pred_region
          _
        $region40: #{forward.1} parent=11 // pred_fallthru
          _
        // Predicated region
        $region41: #{forward.1} parent=11 // pred_check
          %p318 = pneg %p214
        $region42: #{forward.1} parent=11 // pred_check_branch
          %320 = sbr.rel (%p318) target = $region44
        $region43: #{forward.1} parent=11 // pred_region
          _
        $region44: #{forward.1} parent=11 // pred_fallthru
          _
        // Predicated region
        $region45: #{forward.1} parent=11 // pred_check
          %p321 = pneg %p235
        $region46: #{forward.1} parent=11 // pred_check_branch
          %323 = sbr.rel (%p321) target = $region48
        $region47: #{forward.1} parent=11 // pred_region
          _
        $region48: #{forward.1} parent=11 // pred_fallthru
          _
        // Predicated region
        $region49: #{forward.1} parent=11 // pred_check
          %p324 = pneg %p256
        $region50: #{forward.1} parent=11 // pred_check_branch
          %326 = sbr.rel (%p324) target = $region52
        $region51: #{forward.1} parent=11 // pred_region
          _
        $region52: #{forward.1} parent=11 // pred_fallthru
          _
      $region12: #{forward.1} parent=5 // pred_fallthru
        _
      %p327 = scmp.lt.s32.totalorder %s20, 2
      // Predicated region
      $region53: #{forward.1} parent=5 // pred_check
        %p328 = pneg %p327
      $region54: #{forward.1} parent=5 // pred_check_branch
        %330 = sbr.rel (%p328) target = $region56
      $region55: #{forward.1} parent=5 // pred_region
        // Predicated region
        $region57: #{forward.1} parent=55 // pred_check
          %p331 = pneg %p40
        $region58: #{forward.1} parent=55 // pred_check_branch
          %333 = sbr.rel (%p331) target = $region60
        $region59: #{forward.1} parent=55 // pred_region
          %p334 = scmp.lt.s32.totalorder %s20, 1
          %s335 = scalar_select %p334, %s20, 1
          %s336 = smul.addr %s335, 12
          %s337 = smul.addr %s336, 8
          %s338 = scalar_lea.vmem %s0, %s337
        $region60: #{forward.1} parent=55 // pred_fallthru
          _
      $region56: #{forward.1} parent=5 // pred_fallthru
        _
      %p339 = scmp.le.s32.totalorder 1, %s20
      %p340 = scmp.lt.s32.totalorder %s20, 3
      %p341 = pnand %p339, %p340
      %p342 = pneg %p341
      // Predicated region
      $region61: #{forward.1} parent=5 // pred_check
        _
      $region62: #{forward.1} parent=5 // pred_check_branch
        %344 = sbr.rel (%p341) target = $region64
      $region63: #{forward.1} parent=5 // pred_region
        %s345 = ssub.s32 %s20, 1
        %p346 = scmp.lt.s32.totalorder %s25, 1
        %s347 = scalar_select %p346, %s25, 1
        %s348 = smul.addr %s347, 12
        %s349 = smul.addr %s348, 8
        %s350 = scalar_lea.vmem %s0, %s349
        %p351 = pneg %p46
        %p352 = pneg %p43
        %p353 = pneg %p67
        %p354 = pneg %p64
        %p355 = pneg %p88
        %p356 = pneg %p85
        %p357 = pneg %p109
        %p358 = pneg %p106
        %p359 = pneg %p130
        %p360 = pneg %p127
        %p361 = pneg %p151
        %p362 = pneg %p148
        %p363 = pneg %p172
        %p364 = pneg %p169
        %p365 = pneg %p193
        %p366 = pneg %p190
        %p367 = pneg %p214
        %p368 = pneg %p211
        %p369 = pneg %p235
        %p370 = pneg %p232
        %p371 = pneg %p256
        %p372 = pneg %p253
        %p373 = pneg %p282
        %p374 = pneg %p279
        %s375 = sand.u32 %s269, 1
        %s376 = scalar_lea.sflag [#allocation6], %s375
        %s377 = sand.u32 %s269, 1
        %s378 = scalar_lea.vmem [#allocation5], %s377
        %p379 = scmp.lt.s32.totalorder %s25, 1
        %s380 = scalar_select %p379, %s25, 1
        %s381 = smul.addr %s380, 12
        %s382 = smul.addr %s381, 8
        %s383 = scalar_lea.vmem %s0, %s382
        %v384 = vld [vmem:[%s383] sm:$0xff]
        %v385 = vld [vmem:[%s383 + $0x8] sm:$0xff]
        %v386 = vld [vmem:[%s383 + $0x10] sm:$0xff]
        %v387 = vld [vmem:[%s383 + $0x18] sm:$0xff]
        %v388 = vld [vmem:[%s383 + $0x20] sm:$0xff]
        %v389 = vld [vmem:[%s383 + $0x28] sm:$0xff]
        %v390 = vld [vmem:[%s383 + $0x30] sm:$0x7]
        %v391 = vld [vmem:[%s383 + $0x38] sm:$0x7]
        %v392 = vld [vmem:[%s383 + $0x40] sm:$0x7]
        %v393 = vld [vmem:[%s383 + $0x48] sm:$0x7]
        %v394 = vld [vmem:[%s383 + $0x50] sm:$0x7]
        %v395 = vld [vmem:[%s383 + $0x58] sm:$0x7]
        %v396 = vld [vmem:[%s1] sm:$0xff]
        %v397 = vld [vmem:[%s1 + $0x8] sm:$0xff]
        %v398 = vld [vmem:[%s1 + $0x10] sm:$0xff]
        %v399 = vld [vmem:[%s1 + $0x18] sm:$0xff]
        %v400 = vld [vmem:[%s1 + $0x20] sm:$0xff]
        %v401 = vld [vmem:[%s1 + $0x28] sm:$0xff]
        %v402 = vld [vmem:[%s1 + $0x30] sm:$0xff]
        %v403 = vld [vmem:[%s1 + $0x38] sm:$0xff]
        %v404 = vld [vmem:[%s1 + $0x40] sm:$0xff]
        %v405 = vld [vmem:[%s1 + $0x48] sm:$0xff]
        %v406 = vld [vmem:[%s1 + $0x50] sm:$0xff]
        %v407 = vld [vmem:[%s1 + $0x58] sm:$0xff]
        %v408 = vld [vmem:[%s1 + $0x60] sm:$0xff]
        %v409 = vld [vmem:[%s1 + $0x68] sm:$0xff]
        %v410 = vld [vmem:[%s1 + $0x70] sm:$0xff]
        %v411 = vld [vmem:[%s1 + $0x78] sm:$0xff]
        %v412 = vld [vmem:[%s1 + $0x80] sm:$0xff]
        %v413 = vld [vmem:[%s1 + $0x88] sm:$0xff]
        %v414 = vld [vmem:[%s1 + $0x90] sm:$0xff]
        %v415 = vld [vmem:[%s1 + $0x98] sm:$0xff]
        %v416 = vld [vmem:[%s1 + $0xa0] sm:$0xff]
        %v417 = vld [vmem:[%s1 + $0xa8] sm:$0xff]
        %v418 = vld [vmem:[%s1 + $0xb0] sm:$0xff]
        %v419 = vld [vmem:[%s1 + $0xb8] sm:$0xff]
        %v420 = vld [vmem:[%s1 + $0xc0] sm:$0xff]
        %v421 = vld [vmem:[%s1 + $0xc8] sm:$0xff]
        %v422 = vld [vmem:[%s1 + $0xd0] sm:$0xff]
        %v423 = vld [vmem:[%s1 + $0xd8] sm:$0xff]
        %v424 = vld [vmem:[%s1 + $0xe0] sm:$0xff]
        %v425 = vld [vmem:[%s1 + $0xe8] sm:$0xff]
        %v426 = vld [vmem:[%s1 + $0xf0] sm:$0xff]
        %v427 = vld [vmem:[%s1 + $0xf8] sm:$0xff]
        %v428 = vld [vmem:[%s1 + $0x100] sm:$0xff]
        %v429 = vld [vmem:[%s1 + $0x108] sm:$0xff]
        %v430 = vld [vmem:[%s1 + $0x110] sm:$0xff]
        %v431 = vld [vmem:[%s1 + $0x118] sm:$0xff]
        %v432 = vld [vmem:[%s1 + $0x120] sm:$0xff]
        %v433 = vld [vmem:[%s1 + $0x128] sm:$0xff]
        %v434 = vld [vmem:[%s1 + $0x130] sm:$0xff]
        %v435 = vld [vmem:[%s1 + $0x138] sm:$0xff]
        %v436 = vld [vmem:[%s1 + $0x140] sm:$0xff]
        %v437 = vld [vmem:[%s1 + $0x148] sm:$0xff]
        %v438 = vld [vmem:[%s1 + $0x150] sm:$0xff]
        %v439 = vld [vmem:[%s1 + $0x158] sm:$0xff]
        %v440 = vld [vmem:[%s1 + $0x160] sm:$0xff]
        %v441 = vld [vmem:[%s1 + $0x168] sm:$0xff]
        %v442 = vld [vmem:[%s1 + $0x170] sm:$0xff]
        %v443 = vld [vmem:[%s1 + $0x178] sm:$0xff]
        %v444 = vld [vmem:[%s1 + $0x180] sm:$0xff]
        %v445 = vld [vmem:[%s1 + $0x188] sm:$0xff]
        %v446 = vld [vmem:[%s1 + $0x190] sm:$0xff]
        %v447 = vld [vmem:[%s1 + $0x198] sm:$0xff]
        %v448 = vld [vmem:[%s1 + $0x1a0] sm:$0xff]
        %v449 = vld [vmem:[%s1 + $0x1a8] sm:$0xff]
        %v450 = vld [vmem:[%s1 + $0x1b0] sm:$0xff]
        %v451 = vld [vmem:[%s1 + $0x1b8] sm:$0xff]
        %v452 = vld [vmem:[%s1 + $0x1c0] sm:$0xff]
        %v453 = vld [vmem:[%s1 + $0x1c8] sm:$0xff]
        %v454 = vld [vmem:[%s1 + $0x1d0] sm:$0xff]
        %v455 = vld [vmem:[%s1 + $0x1d8] sm:$0xff]
        %v456 = vld [vmem:[%s1 + $0x1e0] sm:$0xff]
        %v457 = vld [vmem:[%s1 + $0x1e8] sm:$0xff]
        %v458 = vld [vmem:[%s1 + $0x1f0] sm:$0xff]
        %v459 = vld [vmem:[%s1 + $0x1f8] sm:$0xff]
        %v460 = vld [vmem:[%s1 + $0x200] sm:$0xff]
        %v461 = vld [vmem:[%s1 + $0x208] sm:$0xff]
        %v462 = vld [vmem:[%s1 + $0x210] sm:$0xff]
        %v463 = vld [vmem:[%s1 + $0x218] sm:$0xff]
        %v464 = vld [vmem:[%s1 + $0x220] sm:$0xff]
        %v465 = vld [vmem:[%s1 + $0x228] sm:$0xff]
        %v466 = vld [vmem:[%s1 + $0x230] sm:$0xff]
        %v467 = vld [vmem:[%s1 + $0x238] sm:$0xff]
        %v468 = vld [vmem:[%s1 + $0x240] sm:$0xff]
        %v469 = vld [vmem:[%s1 + $0x248] sm:$0xff]
        %v470 = vld [vmem:[%s1 + $0x250] sm:$0xff]
        %v471 = vld [vmem:[%s1 + $0x258] sm:$0xff]
        %v472 = vld [vmem:[%s1 + $0x260] sm:$0xff]
        %v473 = vld [vmem:[%s1 + $0x268] sm:$0xff]
        %v474 = vld [vmem:[%s1 + $0x270] sm:$0xff]
        %v475 = vld [vmem:[%s1 + $0x278] sm:$0xff]
        %v476 = vld [vmem:[%s1 + $0x280] sm:$0xff]
        %v477 = vld [vmem:[%s1 + $0x288] sm:$0xff]
        %v478 = vld [vmem:[%s1 + $0x290] sm:$0xff]
        %v479 = vld [vmem:[%s1 + $0x298] sm:$0xff]
        %v480 = vld [vmem:[%s1 + $0x2a0] sm:$0xff]
        %v481 = vld [vmem:[%s1 + $0x2a8] sm:$0xff]
        %v482 = vld [vmem:[%s1 + $0x2b0] sm:$0xff]
        %v483 = vld [vmem:[%s1 + $0x2b8] sm:$0xff]
        %v484 = vld [vmem:[%s1 + $0x2c0] sm:$0xff]
        %v485 = vld [vmem:[%s1 + $0x2c8] sm:$0xff]
        %v486 = vld [vmem:[%s1 + $0x2d0] sm:$0xff]
        %v487 = vld [vmem:[%s1 + $0x2d8] sm:$0xff]
        %v488 = vld [vmem:[%s1 + $0x2e0] sm:$0xff]
        %v489 = vld [vmem:[%s1 + $0x2e8] sm:$0xff]
        %v490 = vld [vmem:[%s1 + $0x2f0] sm:$0xff]
        %v491 = vld [vmem:[%s1 + $0x2f8] sm:$0xff]
        %v492 = vld [vmem:[%s1 + $0x300] sm:$0xff]
        %v493 = vld [vmem:[%s1 + $0x308] sm:$0xff]
        %v494 = vld [vmem:[%s1 + $0x310] sm:$0xff]
        %v495 = vld [vmem:[%s1 + $0x318] sm:$0xff]
        %v496 = vld [vmem:[%s1 + $0x320] sm:$0xff]
        %v497 = vld [vmem:[%s1 + $0x328] sm:$0xff]
        %v498 = vld [vmem:[%s1 + $0x330] sm:$0xff]
        %v499 = vld [vmem:[%s1 + $0x338] sm:$0xff]
        %v500 = vld [vmem:[%s1 + $0x340] sm:$0xff]
        %v501 = vld [vmem:[%s1 + $0x348] sm:$0xff]
        %v502 = vld [vmem:[%s1 + $0x350] sm:$0xff]
        %v503 = vld [vmem:[%s1 + $0x358] sm:$0xff]
        %v504 = vld [vmem:[%s1 + $0x360] sm:$0xff]
        %v505 = vld [vmem:[%s1 + $0x368] sm:$0xff]
        %v506 = vld [vmem:[%s1 + $0x370] sm:$0xff]
        %v507 = vld [vmem:[%s1 + $0x378] sm:$0xff]
        %v508 = vld [vmem:[%s1 + $0x380] sm:$0xff]
        %v509 = vld [vmem:[%s1 + $0x388] sm:$0xff]
        %v510 = vld [vmem:[%s1 + $0x390] sm:$0xff]
        %v511 = vld [vmem:[%s1 + $0x398] sm:$0xff]
        %v512 = vld [vmem:[%s1 + $0x3a0] sm:$0xff]
        %v513 = vld [vmem:[%s1 + $0x3a8] sm:$0xff]
        %v514 = vld [vmem:[%s1 + $0x3b0] sm:$0xff]
        %v515 = vld [vmem:[%s1 + $0x3b8] sm:$0xff]
        %v516 = vld [vmem:[%s1 + $0x3c0] sm:$0xff]
        %v517 = vld [vmem:[%s1 + $0x3c8] sm:$0xff]
        %v518 = vld [vmem:[%s1 + $0x3d0] sm:$0xff]
        %v519 = vld [vmem:[%s1 + $0x3d8] sm:$0xff]
        %v520 = vld [vmem:[%s1 + $0x3e0] sm:$0xff]
        %v521 = vld [vmem:[%s1 + $0x3e8] sm:$0xff]
        %v522 = vld [vmem:[%s1 + $0x3f0] sm:$0xff]
        %v523 = vld [vmem:[%s1 + $0x3f8] sm:$0xff]
        %v524 = vld [vmem:[%s1 + $0x400] sm:$0xff]
        %v525 = vld [vmem:[%s1 + $0x408] sm:$0xff]
        %v526 = vld [vmem:[%s1 + $0x410] sm:$0xff]
        %v527 = vld [vmem:[%s1 + $0x418] sm:$0xff]
        %v528 = vld [vmem:[%s1 + $0x420] sm:$0xff]
        %v529 = vld [vmem:[%s1 + $0x428] sm:$0xff]
        %v530 = vld [vmem:[%s1 + $0x430] sm:$0xff]
        %v531 = vld [vmem:[%s1 + $0x438] sm:$0xff]
        %v532 = vld [vmem:[%s1 + $0x440] sm:$0xff]
        %v533 = vld [vmem:[%s1 + $0x448] sm:$0xff]
        %v534 = vld [vmem:[%s1 + $0x450] sm:$0xff]
        %v535 = vld [vmem:[%s1 + $0x458] sm:$0xff]
        %v536 = vld [vmem:[%s1 + $0x460] sm:$0xff]
        %v537 = vld [vmem:[%s1 + $0x468] sm:$0xff]
        %v538 = vld [vmem:[%s1 + $0x470] sm:$0xff]
        %v539 = vld [vmem:[%s1 + $0x478] sm:$0xff]
        %v540 = vld [vmem:[%s1 + $0x480] sm:$0xff]
        %v541 = vld [vmem:[%s1 + $0x488] sm:$0xff]
        %v542 = vld [vmem:[%s1 + $0x490] sm:$0xff]
        %v543 = vld [vmem:[%s1 + $0x498] sm:$0xff]
        %v544 = vld [vmem:[%s1 + $0x4a0] sm:$0xff]
        %v545 = vld [vmem:[%s1 + $0x4a8] sm:$0xff]
        %v546 = vld [vmem:[%s1 + $0x4b0] sm:$0xff]
        %v547 = vld [vmem:[%s1 + $0x4b8] sm:$0xff]
        %v548 = vld [vmem:[%s1 + $0x4c0] sm:$0xff]
        %v549 = vld [vmem:[%s1 + $0x4c8] sm:$0xff]
        %v550 = vld [vmem:[%s1 + $0x4d0] sm:$0xff]
        %v551 = vld [vmem:[%s1 + $0x4d8] sm:$0xff]
        %v552 = vld [vmem:[%s1 + $0x4e0] sm:$0xff]
        %v553 = vld [vmem:[%s1 + $0x4e8] sm:$0xff]
        %v554 = vld [vmem:[%s1 + $0x4f0] sm:$0xff]
        %v555 = vld [vmem:[%s1 + $0x4f8] sm:$0xff]
        %v556 = vld [vmem:[%s1 + $0x500] sm:$0xff]
        %v557 = vld [vmem:[%s1 + $0x508] sm:$0xff]
        %v558 = vld [vmem:[%s1 + $0x510] sm:$0xff]
        %v559 = vld [vmem:[%s1 + $0x518] sm:$0xff]
        %v560 = vld [vmem:[%s1 + $0x520] sm:$0xff]
        %v561 = vld [vmem:[%s1 + $0x528] sm:$0xff]
        %v562 = vld [vmem:[%s1 + $0x530] sm:$0xff]
        %v563 = vld [vmem:[%s1 + $0x538] sm:$0xff]
        %v564 = vld [vmem:[%s1 + $0x540] sm:$0xff]
        %v565 = vld [vmem:[%s1 + $0x548] sm:$0xff]
        %v566 = vld [vmem:[%s1 + $0x550] sm:$0xff]
        %v567 = vld [vmem:[%s1 + $0x558] sm:$0xff]
        %v568 = vld [vmem:[%s1 + $0x560] sm:$0xff]
        %v569 = vld [vmem:[%s1 + $0x568] sm:$0xff]
        %v570 = vld [vmem:[%s1 + $0x570] sm:$0xff]
        %v571 = vld [vmem:[%s1 + $0x578] sm:$0xff]
        %v572 = vld [vmem:[%s1 + $0x580] sm:$0xff]
        %v573 = vld [vmem:[%s1 + $0x588] sm:$0xff]
        %v574 = vld [vmem:[%s1 + $0x590] sm:$0xff]
        %v575 = vld [vmem:[%s1 + $0x598] sm:$0xff]
        %v576 = vld [vmem:[%s1 + $0x5a0] sm:$0xff]
        %v577 = vld [vmem:[%s1 + $0x5a8] sm:$0xff]
        %v578 = vld [vmem:[%s1 + $0x5b0] sm:$0xff]
        %v579 = vld [vmem:[%s1 + $0x5b8] sm:$0xff]
        %v580 = vld [vmem:[%s1 + $0x5c0] sm:$0xff]
        %v581 = vld [vmem:[%s1 + $0x5c8] sm:$0xff]
        %v582 = vld [vmem:[%s1 + $0x5d0] sm:$0xff]
        %v583 = vld [vmem:[%s1 + $0x5d8] sm:$0xff]
        %v584 = vld [vmem:[%s1 + $0x5e0] sm:$0xff]
        %v585 = vld [vmem:[%s1 + $0x5e8] sm:$0xff]
        %v586 = vld [vmem:[%s1 + $0x5f0] sm:$0xff]
        %v587 = vld [vmem:[%s1 + $0x5f8] sm:$0xff]
        %v588 = vld [vmem:[%s1 + $0x600] sm:$0xff]
        %v589 = vld [vmem:[%s1 + $0x608] sm:$0xff]
        %v590 = vld [vmem:[%s1 + $0x610] sm:$0xff]
        %v591 = vld [vmem:[%s1 + $0x618] sm:$0xff]
        %v592 = vld [vmem:[%s1 + $0x620] sm:$0xff]
        %v593 = vld [vmem:[%s1 + $0x628] sm:$0xff]
        %v594 = vld [vmem:[%s1 + $0x630] sm:$0xff]
        %v595 = vld [vmem:[%s1 + $0x638] sm:$0xff]
        %v596 = vld [vmem:[%s1 + $0x640] sm:$0xff]
        %v597 = vld [vmem:[%s1 + $0x648] sm:$0xff]
        %v598 = vld [vmem:[%s1 + $0x650] sm:$0xff]
        %v599 = vld [vmem:[%s1 + $0x658] sm:$0xff]
        %v600 = vld [vmem:[%s1 + $0x660] sm:$0xff]
        %v601 = vld [vmem:[%s1 + $0x668] sm:$0xff]
        %v602 = vld [vmem:[%s1 + $0x670] sm:$0xff]
        %v603 = vld [vmem:[%s1 + $0x678] sm:$0xff]
        %v604 = vld [vmem:[%s1 + $0x680] sm:$0xff]
        %v605 = vld [vmem:[%s1 + $0x688] sm:$0xff]
        %v606 = vld [vmem:[%s1 + $0x690] sm:$0xff]
        %v607 = vld [vmem:[%s1 + $0x698] sm:$0xff]
        %v608 = vld [vmem:[%s1 + $0x6a0] sm:$0xff]
        %v609 = vld [vmem:[%s1 + $0x6a8] sm:$0xff]
        %v610 = vld [vmem:[%s1 + $0x6b0] sm:$0xff]
        %v611 = vld [vmem:[%s1 + $0x6b8] sm:$0xff]
        %v612 = vld [vmem:[%s1 + $0x6c0] sm:$0xff]
        %v613 = vld [vmem:[%s1 + $0x6c8] sm:$0xff]
        %v614 = vld [vmem:[%s1 + $0x6d0] sm:$0xff]
        %v615 = vld [vmem:[%s1 + $0x6d8] sm:$0xff]
        %v616 = vld [vmem:[%s1 + $0x6e0] sm:$0xff]
        %v617 = vld [vmem:[%s1 + $0x6e8] sm:$0xff]
        %v618 = vld [vmem:[%s1 + $0x6f0] sm:$0xff]
        %v619 = vld [vmem:[%s1 + $0x6f8] sm:$0xff]
        %v620 = vld [vmem:[%s1 + $0x700] sm:$0xff]
        %v621 = vld [vmem:[%s1 + $0x708] sm:$0xff]
        %v622 = vld [vmem:[%s1 + $0x710] sm:$0xff]
        %v623 = vld [vmem:[%s1 + $0x718] sm:$0xff]
        %v624 = vld [vmem:[%s1 + $0x720] sm:$0xff]
        %v625 = vld [vmem:[%s1 + $0x728] sm:$0xff]
        %v626 = vld [vmem:[%s1 + $0x730] sm:$0xff]
        %v627 = vld [vmem:[%s1 + $0x738] sm:$0xff]
        %v628 = vld [vmem:[%s1 + $0x740] sm:$0xff]
        %v629 = vld [vmem:[%s1 + $0x748] sm:$0xff]
        %v630 = vld [vmem:[%s1 + $0x750] sm:$0xff]
        %v631 = vld [vmem:[%s1 + $0x758] sm:$0xff]
        %v632 = vld [vmem:[%s1 + $0x760] sm:$0xff]
        %v633 = vld [vmem:[%s1 + $0x768] sm:$0xff]
        %v634 = vld [vmem:[%s1 + $0x770] sm:$0xff]
        %v635 = vld [vmem:[%s1 + $0x778] sm:$0xff]
        %v636 = vld [vmem:[%s1 + $0x780] sm:$0xff]
        %v637 = vld [vmem:[%s1 + $0x788] sm:$0xff]
        %v638 = vld [vmem:[%s1 + $0x790] sm:$0xff]
        %v639 = vld [vmem:[%s1 + $0x798] sm:$0xff]
        %v640 = vld [vmem:[%s1 + $0x7a0] sm:$0xff]
        %v641 = vld [vmem:[%s1 + $0x7a8] sm:$0xff]
        %v642 = vld [vmem:[%s1 + $0x7b0] sm:$0xff]
        %v643 = vld [vmem:[%s1 + $0x7b8] sm:$0xff]
        %v644 = vld [vmem:[%s1 + $0x7c0] sm:$0xff]
        %v645 = vld [vmem:[%s1 + $0x7c8] sm:$0xff]
        %v646 = vld [vmem:[%s1 + $0x7d0] sm:$0xff]
        %v647 = vld [vmem:[%s1 + $0x7d8] sm:$0xff]
        %v648 = vld [vmem:[%s1 + $0x7e0] sm:$0xff]
        %v649 = vld [vmem:[%s1 + $0x7e8] sm:$0xff]
        %v650 = vld [vmem:[%s1 + $0x7f0] sm:$0xff]
        %v651 = vld [vmem:[%s1 + $0x7f8] sm:$0xff]
        %v652 = vld [vmem:[%s1 + $0x800] sm:$0xff]
        %v653 = vld [vmem:[%s1 + $0x808] sm:$0xff]
        %v654 = vld [vmem:[%s1 + $0x810] sm:$0xff]
        %v655 = vld [vmem:[%s1 + $0x818] sm:$0xff]
        %v656 = vld [vmem:[%s1 + $0x820] sm:$0xff]
        %v657 = vld [vmem:[%s1 + $0x828] sm:$0xff]
        %v658 = vld [vmem:[%s1 + $0x830] sm:$0xff]
        %v659 = vld [vmem:[%s1 + $0x838] sm:$0xff]
        %v660 = vld [vmem:[%s1 + $0x840] sm:$0xff]
        %v661 = vld [vmem:[%s1 + $0x848] sm:$0xff]
        %v662 = vld [vmem:[%s1 + $0x850] sm:$0xff]
        %v663 = vld [vmem:[%s1 + $0x858] sm:$0xff]
        %v664 = vld [vmem:[%s1 + $0x860] sm:$0xff]
        %v665 = vld [vmem:[%s1 + $0x868] sm:$0xff]
        %v666 = vld [vmem:[%s1 + $0x870] sm:$0xff]
        %v667 = vld [vmem:[%s1 + $0x878] sm:$0xff]
        %v668 = vld [vmem:[%s1 + $0x880] sm:$0xff]
        %v669 = vld [vmem:[%s1 + $0x888] sm:$0xff]
        %v670 = vld [vmem:[%s1 + $0x890] sm:$0xff]
        %v671 = vld [vmem:[%s1 + $0x898] sm:$0xff]
        %v672 = vld [vmem:[%s1 + $0x8a0] sm:$0xff]
        %v673 = vld [vmem:[%s1 + $0x8a8] sm:$0xff]
        %v674 = vld [vmem:[%s1 + $0x8b0] sm:$0xff]
        %v675 = vld [vmem:[%s1 + $0x8b8] sm:$0xff]
        %v676 = vld [vmem:[%s1 + $0x8c0] sm:$0xff]
        %v677 = vld [vmem:[%s1 + $0x8c8] sm:$0xff]
        %v678 = vld [vmem:[%s1 + $0x8d0] sm:$0xff]
        %v679 = vld [vmem:[%s1 + $0x8d8] sm:$0xff]
        %v680 = vld [vmem:[%s1 + $0x8e0] sm:$0xff]
        %v681 = vld [vmem:[%s1 + $0x8e8] sm:$0xff]
        %v682 = vld [vmem:[%s1 + $0x8f0] sm:$0xff]
        %v683 = vld [vmem:[%s1 + $0x8f8] sm:$0xff]
        %v684 = vld [vmem:[%s383] sm:$0xfe]
        %v685 = vld [vmem:[%s383 + $0x8] sm:$0xfe]
        %v686 = vld [vmem:[%s383 + $0x10] sm:$0xfe]
        %v687 = vld [vmem:[%s383 + $0x18] sm:$0xfe]
        %v688 = vld [vmem:[%s383 + $0x20] sm:$0xfe]
        %v689 = vld [vmem:[%s383 + $0x28] sm:$0xfe]
        %v690 = vld [vmem:[%s383 + $0x30] sm:$0xf]
        %v691 = vld [vmem:[%s383 + $0x38] sm:$0xf]
        %v692 = vld [vmem:[%s383 + $0x40] sm:$0xf]
        %v693 = vld [vmem:[%s383 + $0x48] sm:$0xf]
        %v694 = vld [vmem:[%s383 + $0x50] sm:$0xf]
        %v695 = vld [vmem:[%s383 + $0x58] sm:$0xf]
        %s696 = scalar_lea.vmem %s1, 2304
        %v697 = vld [vmem:[%s696] sm:$0xff]
        %v698 = vld [vmem:[%s696 + $0x8] sm:$0xff]
        %v699 = vld [vmem:[%s696 + $0x10] sm:$0xff]
        %v700 = vld [vmem:[%s696 + $0x18] sm:$0xff]
        %v701 = vld [vmem:[%s696 + $0x20] sm:$0xff]
        %v702 = vld [vmem:[%s696 + $0x28] sm:$0xff]
        %v703 = vld [vmem:[%s696 + $0x30] sm:$0xff]
        %v704 = vld [vmem:[%s696 + $0x38] sm:$0xff]
        %v705 = vld [vmem:[%s696 + $0x40] sm:$0xff]
        %v706 = vld [vmem:[%s696 + $0x48] sm:$0xff]
        %v707 = vld [vmem:[%s696 + $0x50] sm:$0xff]
        %v708 = vld [vmem:[%s696 + $0x58] sm:$0xff]
        %v709 = vld [vmem:[%s696 + $0x60] sm:$0xff]
        %v710 = vld [vmem:[%s696 + $0x68] sm:$0xff]
        %v711 = vld [vmem:[%s696 + $0x70] sm:$0xff]
        %v712 = vld [vmem:[%s696 + $0x78] sm:$0xff]
        %v713 = vld [vmem:[%s696 + $0x80] sm:$0xff]
        %v714 = vld [vmem:[%s696 + $0x88] sm:$0xff]
        %v715 = vld [vmem:[%s696 + $0x90] sm:$0xff]
        %v716 = vld [vmem:[%s696 + $0x98] sm:$0xff]
        %v717 = vld [vmem:[%s696 + $0xa0] sm:$0xff]
        %v718 = vld [vmem:[%s696 + $0xa8] sm:$0xff]
        %v719 = vld [vmem:[%s696 + $0xb0] sm:$0xff]
        %v720 = vld [vmem:[%s696 + $0xb8] sm:$0xff]
        %v721 = vld [vmem:[%s696 + $0xc0] sm:$0xff]
        %v722 = vld [vmem:[%s696 + $0xc8] sm:$0xff]
        %v723 = vld [vmem:[%s696 + $0xd0] sm:$0xff]
        %v724 = vld [vmem:[%s696 + $0xd8] sm:$0xff]
        %v725 = vld [vmem:[%s696 + $0xe0] sm:$0xff]
        %v726 = vld [vmem:[%s696 + $0xe8] sm:$0xff]
        %v727 = vld [vmem:[%s696 + $0xf0] sm:$0xff]
        %v728 = vld [vmem:[%s696 + $0xf8] sm:$0xff]
        %v729 = vld [vmem:[%s696 + $0x100] sm:$0xff]
        %v730 = vld [vmem:[%s696 + $0x108] sm:$0xff]
        %v731 = vld [vmem:[%s696 + $0x110] sm:$0xff]
        %v732 = vld [vmem:[%s696 + $0x118] sm:$0xff]
        %v733 = vld [vmem:[%s696 + $0x120] sm:$0xff]
        %v734 = vld [vmem:[%s696 + $0x128] sm:$0xff]
        %v735 = vld [vmem:[%s696 + $0x130] sm:$0xff]
        %v736 = vld [vmem:[%s696 + $0x138] sm:$0xff]
        %v737 = vld [vmem:[%s696 + $0x140] sm:$0xff]
        %v738 = vld [vmem:[%s696 + $0x148] sm:$0xff]
        %v739 = vld [vmem:[%s696 + $0x150] sm:$0xff]
        %v740 = vld [vmem:[%s696 + $0x158] sm:$0xff]
        %v741 = vld [vmem:[%s696 + $0x160] sm:$0xff]
        %v742 = vld [vmem:[%s696 + $0x168] sm:$0xff]
        %v743 = vld [vmem:[%s696 + $0x170] sm:$0xff]
        %v744 = vld [vmem:[%s696 + $0x178] sm:$0xff]
        %v745 = vld [vmem:[%s696 + $0x180] sm:$0xff]
        %v746 = vld [vmem:[%s696 + $0x188] sm:$0xff]
        %v747 = vld [vmem:[%s696 + $0x190] sm:$0xff]
        %v748 = vld [vmem:[%s696 + $0x198] sm:$0xff]
        %v749 = vld [vmem:[%s696 + $0x1a0] sm:$0xff]
        %v750 = vld [vmem:[%s696 + $0x1a8] sm:$0xff]
        %v751 = vld [vmem:[%s696 + $0x1b0] sm:$0xff]
        %v752 = vld [vmem:[%s696 + $0x1b8] sm:$0xff]
        %v753 = vld [vmem:[%s696 + $0x1c0] sm:$0xff]
        %v754 = vld [vmem:[%s696 + $0x1c8] sm:$0xff]
        %v755 = vld [vmem:[%s696 + $0x1d0] sm:$0xff]
        %v756 = vld [vmem:[%s696 + $0x1d8] sm:$0xff]
        %v757 = vld [vmem:[%s696 + $0x1e0] sm:$0xff]
        %v758 = vld [vmem:[%s696 + $0x1e8] sm:$0xff]
        %v759 = vld [vmem:[%s696 + $0x1f0] sm:$0xff]
        %v760 = vld [vmem:[%s696 + $0x1f8] sm:$0xff]
        %v761 = vld [vmem:[%s696 + $0x200] sm:$0xff]
        %v762 = vld [vmem:[%s696 + $0x208] sm:$0xff]
        %v763 = vld [vmem:[%s696 + $0x210] sm:$0xff]
        %v764 = vld [vmem:[%s696 + $0x218] sm:$0xff]
        %v765 = vld [vmem:[%s696 + $0x220] sm:$0xff]
        %v766 = vld [vmem:[%s696 + $0x228] sm:$0xff]
        %v767 = vld [vmem:[%s696 + $0x230] sm:$0xff]
        %v768 = vld [vmem:[%s696 + $0x238] sm:$0xff]
        %v769 = vld [vmem:[%s696 + $0x240] sm:$0xff]
        %v770 = vld [vmem:[%s696 + $0x248] sm:$0xff]
        %v771 = vld [vmem:[%s696 + $0x250] sm:$0xff]
        %v772 = vld [vmem:[%s696 + $0x258] sm:$0xff]
        %v773 = vld [vmem:[%s696 + $0x260] sm:$0xff]
        %v774 = vld [vmem:[%s696 + $0x268] sm:$0xff]
        %v775 = vld [vmem:[%s696 + $0x270] sm:$0xff]
        %v776 = vld [vmem:[%s696 + $0x278] sm:$0xff]
        %v777 = vld [vmem:[%s696 + $0x280] sm:$0xff]
        %v778 = vld [vmem:[%s696 + $0x288] sm:$0xff]
        %v779 = vld [vmem:[%s696 + $0x290] sm:$0xff]
        %v780 = vld [vmem:[%s696 + $0x298] sm:$0xff]
        %v781 = vld [vmem:[%s696 + $0x2a0] sm:$0xff]
        %v782 = vld [vmem:[%s696 + $0x2a8] sm:$0xff]
        %v783 = vld [vmem:[%s696 + $0x2b0] sm:$0xff]
        %v784 = vld [vmem:[%s696 + $0x2b8] sm:$0xff]
        %v785 = vld [vmem:[%s696 + $0x2c0] sm:$0xff]
        %v786 = vld [vmem:[%s696 + $0x2c8] sm:$0xff]
        %v787 = vld [vmem:[%s696 + $0x2d0] sm:$0xff]
        %v788 = vld [vmem:[%s696 + $0x2d8] sm:$0xff]
        %v789 = vld [vmem:[%s696 + $0x2e0] sm:$0xff]
        %v790 = vld [vmem:[%s696 + $0x2e8] sm:$0xff]
        %v791 = vld [vmem:[%s696 + $0x2f0] sm:$0xff]
        %v792 = vld [vmem:[%s696 + $0x2f8] sm:$0xff]
        %v793 = vld [vmem:[%s696 + $0x300] sm:$0xff]
        %v794 = vld [vmem:[%s696 + $0x308] sm:$0xff]
        %v795 = vld [vmem:[%s696 + $0x310] sm:$0xff]
        %v796 = vld [vmem:[%s696 + $0x318] sm:$0xff]
        %v797 = vld [vmem:[%s696 + $0x320] sm:$0xff]
        %v798 = vld [vmem:[%s696 + $0x328] sm:$0xff]
        %v799 = vld [vmem:[%s696 + $0x330] sm:$0xff]
        %v800 = vld [vmem:[%s696 + $0x338] sm:$0xff]
        %v801 = vld [vmem:[%s696 + $0x340] sm:$0xff]
        %v802 = vld [vmem:[%s696 + $0x348] sm:$0xff]
        %v803 = vld [vmem:[%s696 + $0x350] sm:$0xff]
        %v804 = vld [vmem:[%s696 + $0x358] sm:$0xff]
        %v805 = vld [vmem:[%s696 + $0x360] sm:$0xff]
        %v806 = vld [vmem:[%s696 + $0x368] sm:$0xff]
        %v807 = vld [vmem:[%s696 + $0x370] sm:$0xff]
        %v808 = vld [vmem:[%s696 + $0x378] sm:$0xff]
        %v809 = vld [vmem:[%s696 + $0x380] sm:$0xff]
        %v810 = vld [vmem:[%s696 + $0x388] sm:$0xff]
        %v811 = vld [vmem:[%s696 + $0x390] sm:$0xff]
        %v812 = vld [vmem:[%s696 + $0x398] sm:$0xff]
        %v813 = vld [vmem:[%s696 + $0x3a0] sm:$0xff]
        %v814 = vld [vmem:[%s696 + $0x3a8] sm:$0xff]
        %v815 = vld [vmem:[%s696 + $0x3b0] sm:$0xff]
        %v816 = vld [vmem:[%s696 + $0x3b8] sm:$0xff]
        %v817 = vld [vmem:[%s696 + $0x3c0] sm:$0xff]
        %v818 = vld [vmem:[%s696 + $0x3c8] sm:$0xff]
        %v819 = vld [vmem:[%s696 + $0x3d0] sm:$0xff]
        %v820 = vld [vmem:[%s696 + $0x3d8] sm:$0xff]
        %v821 = vld [vmem:[%s696 + $0x3e0] sm:$0xff]
        %v822 = vld [vmem:[%s696 + $0x3e8] sm:$0xff]
        %v823 = vld [vmem:[%s696 + $0x3f0] sm:$0xff]
        %v824 = vld [vmem:[%s696 + $0x3f8] sm:$0xff]
        %v825 = vld [vmem:[%s696 + $0x400] sm:$0xff]
        %v826 = vld [vmem:[%s696 + $0x408] sm:$0xff]
        %v827 = vld [vmem:[%s696 + $0x410] sm:$0xff]
        %v828 = vld [vmem:[%s696 + $0x418] sm:$0xff]
        %v829 = vld [vmem:[%s696 + $0x420] sm:$0xff]
        %v830 = vld [vmem:[%s696 + $0x428] sm:$0xff]
        %v831 = vld [vmem:[%s696 + $0x430] sm:$0xff]
        %v832 = vld [vmem:[%s696 + $0x438] sm:$0xff]
        %v833 = vld [vmem:[%s696 + $0x440] sm:$0xff]
        %v834 = vld [vmem:[%s696 + $0x448] sm:$0xff]
        %v835 = vld [vmem:[%s696 + $0x450] sm:$0xff]
        %v836 = vld [vmem:[%s696 + $0x458] sm:$0xff]
        %v837 = vld [vmem:[%s696 + $0x460] sm:$0xff]
        %v838 = vld [vmem:[%s696 + $0x468] sm:$0xff]
        %v839 = vld [vmem:[%s696 + $0x470] sm:$0xff]
        %v840 = vld [vmem:[%s696 + $0x478] sm:$0xff]
        %v841 = vld [vmem:[%s696 + $0x480] sm:$0xff]
        %v842 = vld [vmem:[%s696 + $0x488] sm:$0xff]
        %v843 = vld [vmem:[%s696 + $0x490] sm:$0xff]
        %v844 = vld [vmem:[%s696 + $0x498] sm:$0xff]
        %v845 = vld [vmem:[%s696 + $0x4a0] sm:$0xff]
        %v846 = vld [vmem:[%s696 + $0x4a8] sm:$0xff]
        %v847 = vld [vmem:[%s696 + $0x4b0] sm:$0xff]
        %v848 = vld [vmem:[%s696 + $0x4b8] sm:$0xff]
        %v849 = vld [vmem:[%s696 + $0x4c0] sm:$0xff]
        %v850 = vld [vmem:[%s696 + $0x4c8] sm:$0xff]
        %v851 = vld [vmem:[%s696 + $0x4d0] sm:$0xff]
        %v852 = vld [vmem:[%s696 + $0x4d8] sm:$0xff]
        %v853 = vld [vmem:[%s696 + $0x4e0] sm:$0xff]
        %v854 = vld [vmem:[%s696 + $0x4e8] sm:$0xff]
        %v855 = vld [vmem:[%s696 + $0x4f0] sm:$0xff]
        %v856 = vld [vmem:[%s696 + $0x4f8] sm:$0xff]
        %v857 = vld [vmem:[%s696 + $0x500] sm:$0xff]
        %v858 = vld [vmem:[%s696 + $0x508] sm:$0xff]
        %v859 = vld [vmem:[%s696 + $0x510] sm:$0xff]
        %v860 = vld [vmem:[%s696 + $0x518] sm:$0xff]
        %v861 = vld [vmem:[%s696 + $0x520] sm:$0xff]
        %v862 = vld [vmem:[%s696 + $0x528] sm:$0xff]
        %v863 = vld [vmem:[%s696 + $0x530] sm:$0xff]
        %v864 = vld [vmem:[%s696 + $0x538] sm:$0xff]
        %v865 = vld [vmem:[%s696 + $0x540] sm:$0xff]
        %v866 = vld [vmem:[%s696 + $0x548] sm:$0xff]
        %v867 = vld [vmem:[%s696 + $0x550] sm:$0xff]
        %v868 = vld [vmem:[%s696 + $0x558] sm:$0xff]
        %v869 = vld [vmem:[%s696 + $0x560] sm:$0xff]
        %v870 = vld [vmem:[%s696 + $0x568] sm:$0xff]
        %v871 = vld [vmem:[%s696 + $0x570] sm:$0xff]
        %v872 = vld [vmem:[%s696 + $0x578] sm:$0xff]
        %v873 = vld [vmem:[%s696 + $0x580] sm:$0xff]
        %v874 = vld [vmem:[%s696 + $0x588] sm:$0xff]
        %v875 = vld [vmem:[%s696 + $0x590] sm:$0xff]
        %v876 = vld [vmem:[%s696 + $0x598] sm:$0xff]
        %v877 = vld [vmem:[%s696 + $0x5a0] sm:$0xff]
        %v878 = vld [vmem:[%s696 + $0x5a8] sm:$0xff]
        %v879 = vld [vmem:[%s696 + $0x5b0] sm:$0xff]
        %v880 = vld [vmem:[%s696 + $0x5b8] sm:$0xff]
        %v881 = vld [vmem:[%s696 + $0x5c0] sm:$0xff]
        %v882 = vld [vmem:[%s696 + $0x5c8] sm:$0xff]
        %v883 = vld [vmem:[%s696 + $0x5d0] sm:$0xff]
        %v884 = vld [vmem:[%s696 + $0x5d8] sm:$0xff]
        %v885 = vld [vmem:[%s696 + $0x5e0] sm:$0xff]
        %v886 = vld [vmem:[%s696 + $0x5e8] sm:$0xff]
        %v887 = vld [vmem:[%s696 + $0x5f0] sm:$0xff]
        %v888 = vld [vmem:[%s696 + $0x5f8] sm:$0xff]
        %v889 = vld [vmem:[%s696 + $0x600] sm:$0xff]
        %v890 = vld [vmem:[%s696 + $0x608] sm:$0xff]
        %v891 = vld [vmem:[%s696 + $0x610] sm:$0xff]
        %v892 = vld [vmem:[%s696 + $0x618] sm:$0xff]
        %v893 = vld [vmem:[%s696 + $0x620] sm:$0xff]
        %v894 = vld [vmem:[%s696 + $0x628] sm:$0xff]
        %v895 = vld [vmem:[%s696 + $0x630] sm:$0xff]
        %v896 = vld [vmem:[%s696 + $0x638] sm:$0xff]
        %v897 = vld [vmem:[%s696 + $0x640] sm:$0xff]
        %v898 = vld [vmem:[%s696 + $0x648] sm:$0xff]
        %v899 = vld [vmem:[%s696 + $0x650] sm:$0xff]
        %v900 = vld [vmem:[%s696 + $0x658] sm:$0xff]
        %v901 = vld [vmem:[%s696 + $0x660] sm:$0xff]
        %v902 = vld [vmem:[%s696 + $0x668] sm:$0xff]
        %v903 = vld [vmem:[%s696 + $0x670] sm:$0xff]
        %v904 = vld [vmem:[%s696 + $0x678] sm:$0xff]
        %v905 = vld [vmem:[%s696 + $0x680] sm:$0xff]
        %v906 = vld [vmem:[%s696 + $0x688] sm:$0xff]
        %v907 = vld [vmem:[%s696 + $0x690] sm:$0xff]
        %v908 = vld [vmem:[%s696 + $0x698] sm:$0xff]
        %v909 = vld [vmem:[%s696 + $0x6a0] sm:$0xff]
        %v910 = vld [vmem:[%s696 + $0x6a8] sm:$0xff]
        %v911 = vld [vmem:[%s696 + $0x6b0] sm:$0xff]
        %v912 = vld [vmem:[%s696 + $0x6b8] sm:$0xff]
        %v913 = vld [vmem:[%s696 + $0x6c0] sm:$0xff]
        %v914 = vld [vmem:[%s696 + $0x6c8] sm:$0xff]
        %v915 = vld [vmem:[%s696 + $0x6d0] sm:$0xff]
        %v916 = vld [vmem:[%s696 + $0x6d8] sm:$0xff]
        %v917 = vld [vmem:[%s696 + $0x6e0] sm:$0xff]
        %v918 = vld [vmem:[%s696 + $0x6e8] sm:$0xff]
        %v919 = vld [vmem:[%s696 + $0x6f0] sm:$0xff]
        %v920 = vld [vmem:[%s696 + $0x6f8] sm:$0xff]
        %v921 = vld [vmem:[%s696 + $0x700] sm:$0xff]
        %v922 = vld [vmem:[%s696 + $0x708] sm:$0xff]
        %v923 = vld [vmem:[%s696 + $0x710] sm:$0xff]
        %v924 = vld [vmem:[%s696 + $0x718] sm:$0xff]
        %v925 = vld [vmem:[%s696 + $0x720] sm:$0xff]
        %v926 = vld [vmem:[%s696 + $0x728] sm:$0xff]
        %v927 = vld [vmem:[%s696 + $0x730] sm:$0xff]
        %v928 = vld [vmem:[%s696 + $0x738] sm:$0xff]
        %v929 = vld [vmem:[%s696 + $0x740] sm:$0xff]
        %v930 = vld [vmem:[%s696 + $0x748] sm:$0xff]
        %v931 = vld [vmem:[%s696 + $0x750] sm:$0xff]
        %v932 = vld [vmem:[%s696 + $0x758] sm:$0xff]
        %v933 = vld [vmem:[%s696 + $0x760] sm:$0xff]
        %v934 = vld [vmem:[%s696 + $0x768] sm:$0xff]
        %v935 = vld [vmem:[%s696 + $0x770] sm:$0xff]
        %v936 = vld [vmem:[%s696 + $0x778] sm:$0xff]
        %v937 = vld [vmem:[%s696 + $0x780] sm:$0xff]
        %v938 = vld [vmem:[%s696 + $0x788] sm:$0xff]
        %v939 = vld [vmem:[%s696 + $0x790] sm:$0xff]
        %v940 = vld [vmem:[%s696 + $0x798] sm:$0xff]
        %v941 = vld [vmem:[%s696 + $0x7a0] sm:$0xff]
        %v942 = vld [vmem:[%s696 + $0x7a8] sm:$0xff]
        %v943 = vld [vmem:[%s696 + $0x7b0] sm:$0xff]
        %v944 = vld [vmem:[%s696 + $0x7b8] sm:$0xff]
        %v945 = vld [vmem:[%s696 + $0x7c0] sm:$0xff]
        %v946 = vld [vmem:[%s696 + $0x7c8] sm:$0xff]
        %v947 = vld [vmem:[%s696 + $0x7d0] sm:$0xff]
        %v948 = vld [vmem:[%s696 + $0x7d8] sm:$0xff]
        %v949 = vld [vmem:[%s696 + $0x7e0] sm:$0xff]
        %v950 = vld [vmem:[%s696 + $0x7e8] sm:$0xff]
        %v951 = vld [vmem:[%s696 + $0x7f0] sm:$0xff]
        %v952 = vld [vmem:[%s696 + $0x7f8] sm:$0xff]
        %v953 = vld [vmem:[%s696 + $0x800] sm:$0xff]
        %v954 = vld [vmem:[%s696 + $0x808] sm:$0xff]
        %v955 = vld [vmem:[%s696 + $0x810] sm:$0xff]
        %v956 = vld [vmem:[%s696 + $0x818] sm:$0xff]
        %v957 = vld [vmem:[%s696 + $0x820] sm:$0xff]
        %v958 = vld [vmem:[%s696 + $0x828] sm:$0xff]
        %v959 = vld [vmem:[%s696 + $0x830] sm:$0xff]
        %v960 = vld [vmem:[%s696 + $0x838] sm:$0xff]
        %v961 = vld [vmem:[%s696 + $0x840] sm:$0xff]
        %v962 = vld [vmem:[%s696 + $0x848] sm:$0xff]
        %v963 = vld [vmem:[%s696 + $0x850] sm:$0xff]
        %v964 = vld [vmem:[%s696 + $0x858] sm:$0xff]
        %v965 = vld [vmem:[%s696 + $0x860] sm:$0xff]
        %v966 = vld [vmem:[%s696 + $0x868] sm:$0xff]
        %v967 = vld [vmem:[%s696 + $0x870] sm:$0xff]
        %v968 = vld [vmem:[%s696 + $0x878] sm:$0xff]
        %v969 = vld [vmem:[%s696 + $0x880] sm:$0xff]
        %v970 = vld [vmem:[%s696 + $0x888] sm:$0xff]
        %v971 = vld [vmem:[%s696 + $0x890] sm:$0xff]
        %v972 = vld [vmem:[%s696 + $0x898] sm:$0xff]
        %v973 = vld [vmem:[%s696 + $0x8a0] sm:$0xff]
        %v974 = vld [vmem:[%s696 + $0x8a8] sm:$0xff]
        %v975 = vld [vmem:[%s696 + $0x8b0] sm:$0xff]
        %v976 = vld [vmem:[%s696 + $0x8b8] sm:$0xff]
        %v977 = vld [vmem:[%s696 + $0x8c0] sm:$0xff]
        %v978 = vld [vmem:[%s696 + $0x8c8] sm:$0xff]
        %v979 = vld [vmem:[%s696 + $0x8d0] sm:$0xff]
        %v980 = vld [vmem:[%s696 + $0x8d8] sm:$0xff]
        %v981 = vld [vmem:[%s696 + $0x8e0] sm:$0xff]
        %v982 = vld [vmem:[%s696 + $0x8e8] sm:$0xff]
        %v983 = vld [vmem:[%s696 + $0x8f0] sm:$0xff]
        %v984 = vld [vmem:[%s696 + $0x8f8] sm:$0xff]
        %vm997 = vcmask 1046528
        %v998 = vrot.slane %v684, 1
        %v999 = vrot.slane %v690, 1
        %v1000 = vsel %vm997, %v998, %v999
        %v1001 = vrot.slane %v685, 1
        %v1002 = vrot.slane %v691, 1
        %v1003 = vsel %vm997, %v1001, %v1002
        %v1004 = vrot.slane %v686, 1
        %v1005 = vrot.slane %v692, 1
        %v1006 = vsel %vm997, %v1004, %v1005
        %v1007 = vrot.slane %v687, 1
        %v1008 = vrot.slane %v693, 1
        %v1009 = vsel %vm997, %v1007, %v1008
        %v1010 = vrot.slane %v688, 1
        %v1011 = vrot.slane %v694, 1
        %v1012 = vsel %vm997, %v1010, %v1011
        %v1013 = vrot.slane %v689, 1
        %v1014 = vrot.slane %v695, 1
        %v1015 = vsel %vm997, %v1013, %v1014
        %1028 = vmatprep.subr.mxu0 %v698
        %1029 = vmatpush1.msra.mxu0 %v697
        %1030 = vmatprep.subr.mxu0 %v701
        %1031 = vmatpush1.msra.mxu0 %v700
        %1032 = vmatprep.subr.mxu0 %v704
        %1033 = vmatpush1.msra.mxu0 %v703
        %1034 = vmatprep.subr.mxu0 %v707
        %1035 = vmatpush1.msra.mxu0 %v706
        %1036 = vmatprep.subr.mxu0 %v710
        %1037 = vmatpush1.msra.mxu0 %v709
        %1038 = vmatprep.subr.mxu0 %v713
        %1039 = vmatpush1.msra.mxu0 %v712
        %1040 = vmatprep.subr.mxu0 %v716
        %1041 = vmatpush1.msra.mxu0 %v715
        %1042 = vmatprep.subr.mxu0 %v719
        %1043 = vmatpush1.msra.mxu0 %v718
        %1044 = vmatprep.subr.mxu0 %v722
        %1045 = vmatpush1.msra.mxu0 %v721
        %1046 = vmatprep.subr.mxu0 %v725
        %1047 = vmatpush1.msra.mxu0 %v724
        %1048 = vmatprep.subr.mxu0 %v728
        %1049 = vmatpush1.msra.mxu0 %v727
        %1050 = vmatprep.subr.mxu0 %v731
        %1051 = vmatpush1.msra.mxu0 %v730
        %1052 = vmatprep.subr.mxu0 %v734
        %1053 = vmatpush1.msra.mxu0 %v733
        %1054 = vmatprep.subr.mxu0 %v737
        %1055 = vmatpush1.msra.mxu0 %v736
        %1056 = vmatprep.subr.mxu0 %v740
        %1057 = vmatpush1.msra.mxu0 %v739
        %1058 = vmatprep.subr.mxu0 %v743
        %1059 = vmatpush1.msra.mxu0 %v742
        %1060 = vmatprep.subr.mxu0 %v746
        %1061 = vmatpush1.msra.mxu0 %v745
        %1062 = vmatprep.subr.mxu0 %v749
        %1063 = vmatpush1.msra.mxu0 %v748
        %1064 = vmatprep.subr.mxu0 %v752
        %1065 = vmatpush1.msra.mxu0 %v751
        %1066 = vmatprep.subr.mxu0 %v755
        %1067 = vmatpush1.msra.mxu0 %v754
        %1068 = vmatprep.subr.mxu0 %v758
        %1069 = vmatpush1.msra.mxu0 %v757
        %1070 = vmatprep.subr.mxu0 %v761
        %1071 = vmatpush1.msra.mxu0 %v760
        %1072 = vmatprep.subr.mxu0 %v764
        %1073 = vmatpush1.msra.mxu0 %v763
        %1074 = vmatprep.subr.mxu0 %v767
        %1075 = vmatpush1.msra.mxu0 %v766
        %1076 = vmatprep.subr.mxu0 %v770
        %1077 = vmatpush1.msra.mxu0 %v769
        %1078 = vmatprep.subr.mxu0 %v773
        %1079 = vmatpush1.msra.mxu0 %v772
        %1080 = vmatprep.subr.mxu0 %v776
        %1081 = vmatpush1.msra.mxu0 %v775
        %1082 = vmatprep.subr.mxu0 %v779
        %1083 = vmatpush1.msra.mxu0 %v778
        %1084 = vmatprep.subr.mxu0 %v782
        %1085 = vmatpush1.msra.mxu0 %v781
        %1086 = vmatprep.subr.mxu0 %v785
        %1087 = vmatpush1.msra.mxu0 %v784
        %1088 = vmatprep.subr.mxu0 %v788
        %1089 = vmatpush1.msra.mxu0 %v787
        %1090 = vmatprep.subr.mxu0 %v791
        %1091 = vmatpush1.msra.mxu0 %v790
        %1092 = vmatprep.mubr.f32.mxu0 %v1003
        %1093 = vmatmul.mubr.f32.gmra.mrb[0].mxu0 %v1000
        %v1094 = vpop.f32.mrb[0].mxu0
        %v1095 = vadd.f32 0.0, %v1094
        %v1096 = vpop.f32.mrb[0].mxu0
        %v1097 = vadd.f32 0.0, %v1096
        %1098 = vmatprep.mubr.f32.mxu0 %v1002
        %1099 = vmatmul.mubr.f32.gmra.mrb[0].mxu0 %v999
        %v1100 = vpop.f32.mrb[0].mxu0
        %v1101 = vadd.f32 0.0, %v1100
        %v1102 = vpop.f32.mrb[0].mxu0
        %v1103 = vadd.f32 0.0, %v1102
        %1104 = vdwg.mxu0
        %1105 = vmatprep.subr.mxu0 %v794
        %1106 = vmatpush1.msra.mxu0 %v793
        %1107 = vmatprep.subr.mxu0 %v797
        %1108 = vmatpush1.msra.mxu0 %v796
        %1109 = vmatprep.subr.mxu0 %v800
        %1110 = vmatpush1.msra.mxu0 %v799
        %1111 = vmatprep.subr.mxu0 %v803
        %1112 = vmatpush1.msra.mxu0 %v802
        %1113 = vmatprep.subr.mxu0 %v806
        %1114 = vmatpush1.msra.mxu0 %v805
        %1115 = vmatprep.subr.mxu0 %v809
        %1116 = vmatpush1.msra.mxu0 %v808
        %1117 = vmatprep.subr.mxu0 %v812
        %1118 = vmatpush1.msra.mxu0 %v811
        %1119 = vmatprep.subr.mxu0 %v815
        %1120 = vmatpush1.msra.mxu0 %v814
        %1121 = vmatprep.subr.mxu0 %v818
        %1122 = vmatpush1.msra.mxu0 %v817
        %1123 = vmatprep.subr.mxu0 %v821
        %1124 = vmatpush1.msra.mxu0 %v820
        %1125 = vmatprep.subr.mxu0 %v824
        %1126 = vmatpush1.msra.mxu0 %v823
        %1127 = vmatprep.subr.mxu0 %v827
        %1128 = vmatpush1.msra.mxu0 %v826
        %1129 = vmatprep.subr.mxu0 %v830
        %1130 = vmatpush1.msra.mxu0 %v829
        %1131 = vmatprep.subr.mxu0 %v833
        %1132 = vmatpush1.msra.mxu0 %v832
        %1133 = vmatprep.subr.mxu0 %v836
        %1134 = vmatpush1.msra.mxu0 %v835
        %1135 = vmatprep.subr.mxu0 %v839
        %1136 = vmatpush1.msra.mxu0 %v838
        %1137 = vmatprep.subr.mxu0 %v842
        %1138 = vmatpush1.msra.mxu0 %v841
        %1139 = vmatprep.subr.mxu0 %v845
        %1140 = vmatpush1.msra.mxu0 %v844
        %1141 = vmatprep.subr.mxu0 %v848
        %1142 = vmatpush1.msra.mxu0 %v847
        %1143 = vmatprep.subr.mxu0 %v851
        %1144 = vmatpush1.msra.mxu0 %v850
        %1145 = vmatprep.subr.mxu0 %v854
        %1146 = vmatpush1.msra.mxu0 %v853
        %1147 = vmatprep.subr.mxu0 %v857
        %1148 = vmatpush1.msra.mxu0 %v856
        %1149 = vmatprep.subr.mxu0 %v860
        %1150 = vmatpush1.msra.mxu0 %v859
        %1151 = vmatprep.subr.mxu0 %v863
        %1152 = vmatpush1.msra.mxu0 %v862
        %1153 = vmatprep.subr.mxu0 %v866
        %1154 = vmatpush1.msra.mxu0 %v865
        %1155 = vmatprep.subr.mxu0 %v869
        %1156 = vmatpush1.msra.mxu0 %v868
        %1157 = vmatprep.subr.mxu0 %v872
        %1158 = vmatpush1.msra.mxu0 %v871
        %1159 = vmatprep.subr.mxu0 %v875
        %1160 = vmatpush1.msra.mxu0 %v874
        %1161 = vmatprep.subr.mxu0 %v878
        %1162 = vmatpush1.msra.mxu0 %v877
        %1163 = vmatprep.subr.mxu0 %v881
        %1164 = vmatpush1.msra.mxu0 %v880
        %1165 = vmatprep.subr.mxu0 %v884
        %1166 = vmatpush1.msra.mxu0 %v883
        %1167 = vmatprep.subr.mxu0 %v887
        %1168 = vmatpush1.msra.mxu0 %v886
        %1169 = vmatprep.mubr.f32.mxu0 %v1009
        %1170 = vmatmul.mubr.f32.gmra.mrb[0].mxu0 %v1006
        %v1171 = vpop.f32.mrb[0].mxu0
        %v1172 = vadd.f32 %v1095, %v1171
        %v1173 = vpop.f32.mrb[0].mxu0
        %v1174 = vadd.f32 %v1097, %v1173
        %1175 = vmatprep.mubr.f32.mxu0 %v1008
        %1176 = vmatmul.mubr.f32.gmra.mrb[0].mxu0 %v1005
        %v1177 = vpop.f32.mrb[0].mxu0
        %v1178 = vadd.f32 %v1101, %v1177
        %v1179 = vpop.f32.mrb[0].mxu0
        %v1180 = vadd.f32 %v1103, %v1179
        %1181 = vdwg.mxu0
        %1182 = vmatprep.subr.mxu0 %v890
        %1183 = vmatpush1.msra.mxu0 %v889
        %1184 = vmatprep.subr.mxu0 %v893
        %1185 = vmatpush1.msra.mxu0 %v892
        %1186 = vmatprep.subr.mxu0 %v896
        %1187 = vmatpush1.msra.mxu0 %v895
        %1188 = vmatprep.subr.mxu0 %v899
        %1189 = vmatpush1.msra.mxu0 %v898
        %1190 = vmatprep.subr.mxu0 %v902
        %1191 = vmatpush1.msra.mxu0 %v901
        %1192 = vmatprep.subr.mxu0 %v905
        %1193 = vmatpush1.msra.mxu0 %v904
        %1194 = vmatprep.subr.mxu0 %v908
        %1195 = vmatpush1.msra.mxu0 %v907
        %1196 = vmatprep.subr.mxu0 %v911
        %1197 = vmatpush1.msra.mxu0 %v910
        %1198 = vmatprep.subr.mxu0 %v914
        %1199 = vmatpush1.msra.mxu0 %v913
        %1200 = vmatprep.subr.mxu0 %v917
        %1201 = vmatpush1.msra.mxu0 %v916
        %1202 = vmatprep.subr.mxu0 %v920
        %1203 = vmatpush1.msra.mxu0 %v919
        %1204 = vmatprep.subr.mxu0 %v923
        %1205 = vmatpush1.msra.mxu0 %v922
        %1206 = vmatprep.subr.mxu0 %v926
        %1207 = vmatpush1.msra.mxu0 %v925
        %1208 = vmatprep.subr.mxu0 %v929
        %1209 = vmatpush1.msra.mxu0 %v928
        %1210 = vmatprep.subr.mxu0 %v932
        %1211 = vmatpush1.msra.mxu0 %v931
        %1212 = vmatprep.subr.mxu0 %v935
        %1213 = vmatpush1.msra.mxu0 %v934
        %1214 = vmatprep.subr.mxu0 %v938
        %1215 = vmatpush1.msra.mxu0 %v937
        %1216 = vmatprep.subr.mxu0 %v941
        %1217 = vmatpush1.msra.mxu0 %v940
        %1218 = vmatprep.subr.mxu0 %v944
        %1219 = vmatpush1.msra.mxu0 %v943
        %1220 = vmatprep.subr.mxu0 %v947
        %1221 = vmatpush1.msra.mxu0 %v946
        %1222 = vmatprep.subr.mxu0 %v950
        %1223 = vmatpush1.msra.mxu0 %v949
        %1224 = vmatprep.subr.mxu0 %v953
        %1225 = vmatpush1.msra.mxu0 %v952
        %1226 = vmatprep.subr.mxu0 %v956
        %1227 = vmatpush1.msra.mxu0 %v955
        %1228 = vmatprep.subr.mxu0 %v959
        %1229 = vmatpush1.msra.mxu0 %v958
        %1230 = vmatprep.subr.mxu0 %v962
        %1231 = vmatpush1.msra.mxu0 %v961
        %1232 = vmatprep.subr.mxu0 %v965
        %1233 = vmatpush1.msra.mxu0 %v964
        %1234 = vmatprep.subr.mxu0 %v968
        %1235 = vmatpush1.msra.mxu0 %v967
        %1236 = vmatprep.subr.mxu0 %v971
        %1237 = vmatpush1.msra.mxu0 %v970
        %1238 = vmatprep.subr.mxu0 %v974
        %1239 = vmatpush1.msra.mxu0 %v973
        %1240 = vmatprep.subr.mxu0 %v977
        %1241 = vmatpush1.msra.mxu0 %v976
        %1242 = vmatprep.subr.mxu0 %v980
        %1243 = vmatpush1.msra.mxu0 %v979
        %1244 = vmatprep.subr.mxu0 %v983
        %1245 = vmatpush1.msra.mxu0 %v982
        %1246 = vmatprep.mubr.f32.mxu0 %v1015
        %1247 = vmatmul.mubr.f32.gmra.mrb[0].mxu0 %v1012
        %v1248 = vpop.f32.mrb[0].mxu0
        %v1249 = vadd.f32 %v1172, %v1248
        %v1250 = vpop.f32.mrb[0].mxu0
        %v1251 = vadd.f32 %v1174, %v1250
        %1252 = vmatprep.mubr.f32.mxu0 %v1014
        %1253 = vmatmul.mubr.f32.gmra.mrb[0].mxu0 %v1011
        %v1254 = vpop.f32.mrb[0].mxu0
        %v1255 = vadd.f32 %v1178, %v1254
        %v1256 = vpop.f32.mrb[0].mxu0
        %v1257 = vadd.f32 %v1180, %v1256
        %1258 = vdwg.mxu0
        %1259 = vmatprep.subr.mxu0 0.0
        %1260 = vmatpush1.msra.mxu0 %v699
        %1261 = vmatprep.subr.mxu0 0.0
        %1262 = vmatpush1.msra.mxu0 %v702
        %1263 = vmatprep.subr.mxu0 0.0
        %1264 = vmatpush1.msra.mxu0 %v705
        %1265 = vmatprep.subr.mxu0 0.0
        %1266 = vmatpush1.msra.mxu0 %v708
        %1267 = vmatprep.subr.mxu0 0.0
        %1268 = vmatpush1.msra.mxu0 %v711
        %1269 = vmatprep.subr.mxu0 0.0
        %1270 = vmatpush1.msra.mxu0 %v714
        %1271 = vmatprep.subr.mxu0 0.0
        %1272 = vmatpush1.msra.mxu0 %v717
        %1273 = vmatprep.subr.mxu0 0.0
        %1274 = vmatpush1.msra.mxu0 %v720
        %1275 = vmatprep.subr.mxu0 0.0
        %1276 = vmatpush1.msra.mxu0 %v723
        %1277 = vmatprep.subr.mxu0 0.0
        %1278 = vmatpush1.msra.mxu0 %v726
        %1279 = vmatprep.subr.mxu0 0.0
        %1280 = vmatpush1.msra.mxu0 %v729
        %1281 = vmatprep.subr.mxu0 0.0
        %1282 = vmatpush1.msra.mxu0 %v732
        %1283 = vmatprep.subr.mxu0 0.0
        %1284 = vmatpush1.msra.mxu0 %v735
        %1285 = vmatprep.subr.mxu0 0.0
        %1286 = vmatpush1.msra.mxu0 %v738
        %1287 = vmatprep.subr.mxu0 0.0
        %1288 = vmatpush1.msra.mxu0 %v741
        %1289 = vmatprep.subr.mxu0 0.0
        %1290 = vmatpush1.msra.mxu0 %v744
        %1291 = vmatprep.subr.mxu0 0.0
        %1292 = vmatpush1.msra.mxu0 %v747
        %1293 = vmatprep.subr.mxu0 0.0
        %1294 = vmatpush1.msra.mxu0 %v750
        %1295 = vmatprep.subr.mxu0 0.0
        %1296 = vmatpush1.msra.mxu0 %v753
        %1297 = vmatprep.subr.mxu0 0.0
        %1298 = vmatpush1.msra.mxu0 %v756
        %1299 = vmatprep.subr.mxu0 0.0
        %1300 = vmatpush1.msra.mxu0 %v759
        %1301 = vmatprep.subr.mxu0 0.0
        %1302 = vmatpush1.msra.mxu0 %v762
        %1303 = vmatprep.subr.mxu0 0.0
        %1304 = vmatpush1.msra.mxu0 %v765
        %1305 = vmatprep.subr.mxu0 0.0
        %1306 = vmatpush1.msra.mxu0 %v768
        %1307 = vmatprep.subr.mxu0 0.0
        %1308 = vmatpush1.msra.mxu0 %v771
        %1309 = vmatprep.subr.mxu0 0.0
        %1310 = vmatpush1.msra.mxu0 %v774
        %1311 = vmatprep.subr.mxu0 0.0
        %1312 = vmatpush1.msra.mxu0 %v777
        %1313 = vmatprep.subr.mxu0 0.0
        %1314 = vmatpush1.msra.mxu0 %v780
        %1315 = vmatprep.subr.mxu0 0.0
        %1316 = vmatpush1.msra.mxu0 %v783
        %1317 = vmatprep.subr.mxu0 0.0
        %1318 = vmatpush1.msra.mxu0 %v786
        %1319 = vmatprep.subr.mxu0 0.0
        %1320 = vmatpush1.msra.mxu0 %v789
        %1321 = vmatprep.subr.mxu0 0.0
        %1322 = vmatpush1.msra.mxu0 %v792
        %1323 = vmatprep.mubr.f32.mxu0 %v1003
        %1324 = vmatmul.mubr.f32.gmra.mrb[0].mxu0 %v1000
        %v1325 = vpop.f32.mrb[0].mxu0
        %v1326 = vadd.f32 0.0, %v1325
        %v1327 = vpop.f32.mrb[0].mxu0
        %1328 = vmatprep.mubr.f32.mxu0 %v1002
        %1329 = vmatmul.mubr.f32.gmra.mrb[0].mxu0 %v999
        %v1330 = vpop.f32.mrb[0].mxu0
        %v1331 = vadd.f32 0.0, %v1330
        %v1332 = vpop.f32.mrb[0].mxu0
        %1333 = vdwg.mxu0
        %1334 = vmatprep.subr.mxu0 0.0
        %1335 = vmatpush1.msra.mxu0 %v795
        %1336 = vmatprep.subr.mxu0 0.0
        %1337 = vmatpush1.msra.mxu0 %v798
        %1338 = vmatprep.subr.mxu0 0.0
        %1339 = vmatpush1.msra.mxu0 %v801
        %1340 = vmatprep.subr.mxu0 0.0
        %1341 = vmatpush1.msra.mxu0 %v804
        %1342 = vmatprep.subr.mxu0 0.0
        %1343 = vmatpush1.msra.mxu0 %v807
        %1344 = vmatprep.subr.mxu0 0.0
        %1345 = vmatpush1.msra.mxu0 %v810
        %1346 = vmatprep.subr.mxu0 0.0
        %1347 = vmatpush1.msra.mxu0 %v813
        %1348 = vmatprep.subr.mxu0 0.0
        %1349 = vmatpush1.msra.mxu0 %v816
        %1350 = vmatprep.subr.mxu0 0.0
        %1351 = vmatpush1.msra.mxu0 %v819
        %1352 = vmatprep.subr.mxu0 0.0
        %1353 = vmatpush1.msra.mxu0 %v822
        %1354 = vmatprep.subr.mxu0 0.0
        %1355 = vmatpush1.msra.mxu0 %v825
        %1356 = vmatprep.subr.mxu0 0.0
        %1357 = vmatpush1.msra.mxu0 %v828
        %1358 = vmatprep.subr.mxu0 0.0
        %1359 = vmatpush1.msra.mxu0 %v831
        %1360 = vmatprep.subr.mxu0 0.0
        %1361 = vmatpush1.msra.mxu0 %v834
        %1362 = vmatprep.subr.mxu0 0.0
        %1363 = vmatpush1.msra.mxu0 %v837
        %1364 = vmatprep.subr.mxu0 0.0
        %1365 = vmatpush1.msra.mxu0 %v840
        %1366 = vmatprep.subr.mxu0 0.0
        %1367 = vmatpush1.msra.mxu0 %v843
        %1368 = vmatprep.subr.mxu0 0.0
        %1369 = vmatpush1.msra.mxu0 %v846
        %1370 = vmatprep.subr.mxu0 0.0
        %1371 = vmatpush1.msra.mxu0 %v849
        %1372 = vmatprep.subr.mxu0 0.0
        %1373 = vmatpush1.msra.mxu0 %v852
        %1374 = vmatprep.subr.mxu0 0.0
        %1375 = vmatpush1.msra.mxu0 %v855
        %1376 = vmatprep.subr.mxu0 0.0
        %1377 = vmatpush1.msra.mxu0 %v858
        %1378 = vmatprep.subr.mxu0 0.0
        %1379 = vmatpush1.msra.mxu0 %v861
        %1380 = vmatprep.subr.mxu0 0.0
        %1381 = vmatpush1.msra.mxu0 %v864
        %1382 = vmatprep.subr.mxu0 0.0
        %1383 = vmatpush1.msra.mxu0 %v867
        %1384 = vmatprep.subr.mxu0 0.0
        %1385 = vmatpush1.msra.mxu0 %v870
        %1386 = vmatprep.subr.mxu0 0.0
        %1387 = vmatpush1.msra.mxu0 %v873
        %1388 = vmatprep.subr.mxu0 0.0
        %1389 = vmatpush1.msra.mxu0 %v876
        %1390 = vmatprep.subr.mxu0 0.0
        %1391 = vmatpush1.msra.mxu0 %v879
        %1392 = vmatprep.subr.mxu0 0.0
        %1393 = vmatpush1.msra.mxu0 %v882
        %1394 = vmatprep.subr.mxu0 0.0
        %1395 = vmatpush1.msra.mxu0 %v885
        %1396 = vmatprep.subr.mxu0 0.0
        %1397 = vmatpush1.msra.mxu0 %v888
        %1398 = vmatprep.mubr.f32.mxu0 %v1009
        %1399 = vmatmul.mubr.f32.gmra.mrb[0].mxu0 %v1006
        %v1400 = vpop.f32.mrb[0].mxu0
        %v1401 = vadd.f32 %v1326, %v1400
        %v1402 = vpop.f32.mrb[0].mxu0
        %1403 = vmatprep.mubr.f32.mxu0 %v1008
        %1404 = vmatmul.mubr.f32.gmra.mrb[0].mxu0 %v1005
        %v1405 = vpop.f32.mrb[0].mxu0
        %v1406 = vadd.f32 %v1331, %v1405
        %v1407 = vpop.f32.mrb[0].mxu0
        %1408 = vdwg.mxu0
        %1409 = vmatprep.subr.mxu0 0.0
        %1410 = vmatpush1.msra.mxu0 %v891
        %1411 = vmatprep.subr.mxu0 0.0
        %1412 = vmatpush1.msra.mxu0 %v894
        %1413 = vmatprep.subr.mxu0 0.0
        %1414 = vmatpush1.msra.mxu0 %v897
        %1415 = vmatprep.subr.mxu0 0.0
        %1416 = vmatpush1.msra.mxu0 %v900
        %1417 = vmatprep.subr.mxu0 0.0
        %1418 = vmatpush1.msra.mxu0 %v903
        %1419 = vmatprep.subr.mxu0 0.0
        %1420 = vmatpush1.msra.mxu0 %v906
        %1421 = vmatprep.subr.mxu0 0.0
        %1422 = vmatpush1.msra.mxu0 %v909
        %1423 = vmatprep.subr.mxu0 0.0
        %1424 = vmatpush1.msra.mxu0 %v912
        %1425 = vmatprep.subr.mxu0 0.0
        %1426 = vmatpush1.msra.mxu0 %v915
        %1427 = vmatprep.subr.mxu0 0.0
        %1428 = vmatpush1.msra.mxu0 %v918
        %1429 = vmatprep.subr.mxu0 0.0
        %1430 = vmatpush1.msra.mxu0 %v921
        %1431 = vmatprep.subr.mxu0 0.0
        %1432 = vmatpush1.msra.mxu0 %v924
        %1433 = vmatprep.subr.mxu0 0.0
        %1434 = vmatpush1.msra.mxu0 %v927
        %1435 = vmatprep.subr.mxu0 0.0
        %1436 = vmatpush1.msra.mxu0 %v930
        %1437 = vmatprep.subr.mxu0 0.0
        %1438 = vmatpush1.msra.mxu0 %v933
        %1439 = vmatprep.subr.mxu0 0.0
        %1440 = vmatpush1.msra.mxu0 %v936
        %1441 = vmatprep.subr.mxu0 0.0
        %1442 = vmatpush1.msra.mxu0 %v939
        %1443 = vmatprep.subr.mxu0 0.0
        %1444 = vmatpush1.msra.mxu0 %v942
        %1445 = vmatprep.subr.mxu0 0.0
        %1446 = vmatpush1.msra.mxu0 %v945
        %1447 = vmatprep.subr.mxu0 0.0
        %1448 = vmatpush1.msra.mxu0 %v948
        %1449 = vmatprep.subr.mxu0 0.0
        %1450 = vmatpush1.msra.mxu0 %v951
        %1451 = vmatprep.subr.mxu0 0.0
        %1452 = vmatpush1.msra.mxu0 %v954
        %1453 = vmatprep.subr.mxu0 0.0
        %1454 = vmatpush1.msra.mxu0 %v957
        %1455 = vmatprep.subr.mxu0 0.0
        %1456 = vmatpush1.msra.mxu0 %v960
        %1457 = vmatprep.subr.mxu0 0.0
        %1458 = vmatpush1.msra.mxu0 %v963
        %1459 = vmatprep.subr.mxu0 0.0
        %1460 = vmatpush1.msra.mxu0 %v966
        %1461 = vmatprep.subr.mxu0 0.0
        %1462 = vmatpush1.msra.mxu0 %v969
        %1463 = vmatprep.subr.mxu0 0.0
        %1464 = vmatpush1.msra.mxu0 %v972
        %1465 = vmatprep.subr.mxu0 0.0
        %1466 = vmatpush1.msra.mxu0 %v975
        %1467 = vmatprep.subr.mxu0 0.0
        %1468 = vmatpush1.msra.mxu0 %v978
        %1469 = vmatprep.subr.mxu0 0.0
        %1470 = vmatpush1.msra.mxu0 %v981
        %1471 = vmatprep.subr.mxu0 0.0
        %1472 = vmatpush1.msra.mxu0 %v984
        %1473 = vmatprep.mubr.f32.mxu0 %v1015
        %1474 = vmatmul.mubr.f32.gmra.mrb[0].mxu0 %v1012
        %v1475 = vpop.f32.mrb[0].mxu0
        %v1476 = vadd.f32 %v1401, %v1475
        %v1477 = vpop.f32.mrb[0].mxu0
        %1478 = vmatprep.mubr.f32.mxu0 %v1014
        %1479 = vmatmul.mubr.f32.gmra.mrb[0].mxu0 %v1011
        %v1480 = vpop.f32.mrb[0].mxu0
        %v1481 = vadd.f32 %v1406, %v1480
        %v1482 = vpop.f32.mrb[0].mxu0
        %1483 = vdwg.mxu0
        %1484 = vmatprep.subr.mxu0 %v397
        %1485 = vmatpush1.msra.mxu0 %v396
        %1486 = vmatprep.subr.mxu0 %v400
        %1487 = vmatpush1.msra.mxu0 %v399
        %1488 = vmatprep.subr.mxu0 %v403
        %1489 = vmatpush1.msra.mxu0 %v402
        %1490 = vmatprep.subr.mxu0 %v406
        %1491 = vmatpush1.msra.mxu0 %v405
        %1492 = vmatprep.subr.mxu0 %v409
        %1493 = vmatpush1.msra.mxu0 %v408
        %1494 = vmatprep.subr.mxu0 %v412
        %1495 = vmatpush1.msra.mxu0 %v411
        %1496 = vmatprep.subr.mxu0 %v415
        %1497 = vmatpush1.msra.mxu0 %v414
        %1498 = vmatprep.subr.mxu0 %v418
        %1499 = vmatpush1.msra.mxu0 %v417
        %1500 = vmatprep.subr.mxu0 %v421
        %1501 = vmatpush1.msra.mxu0 %v420
        %1502 = vmatprep.subr.mxu0 %v424
        %1503 = vmatpush1.msra.mxu0 %v423
        %1504 = vmatprep.subr.mxu0 %v427
        %1505 = vmatpush1.msra.mxu0 %v426
        %1506 = vmatprep.subr.mxu0 %v430
        %1507 = vmatpush1.msra.mxu0 %v429
        %1508 = vmatprep.subr.mxu0 %v433
        %1509 = vmatpush1.msra.mxu0 %v432
        %1510 = vmatprep.subr.mxu0 %v436
        %1511 = vmatpush1.msra.mxu0 %v435
        %1512 = vmatprep.subr.mxu0 %v439
        %1513 = vmatpush1.msra.mxu0 %v438
        %1514 = vmatprep.subr.mxu0 %v442
        %1515 = vmatpush1.msra.mxu0 %v441
        %1516 = vmatprep.subr.mxu0 %v445
        %1517 = vmatpush1.msra.mxu0 %v444
        %1518 = vmatprep.subr.mxu0 %v448
        %1519 = vmatpush1.msra.mxu0 %v447
        %1520 = vmatprep.subr.mxu0 %v451
        %1521 = vmatpush1.msra.mxu0 %v450
        %1522 = vmatprep.subr.mxu0 %v454
        %1523 = vmatpush1.msra.mxu0 %v453
        %1524 = vmatprep.subr.mxu0 %v457
        %1525 = vmatpush1.msra.mxu0 %v456
        %1526 = vmatprep.subr.mxu0 %v460
        %1527 = vmatpush1.msra.mxu0 %v459
        %1528 = vmatprep.subr.mxu0 %v463
        %1529 = vmatpush1.msra.mxu0 %v462
        %1530 = vmatprep.subr.mxu0 %v466
        %1531 = vmatpush1.msra.mxu0 %v465
        %1532 = vmatprep.subr.mxu0 %v469
        %1533 = vmatpush1.msra.mxu0 %v468
        %1534 = vmatprep.subr.mxu0 %v472
        %1535 = vmatpush1.msra.mxu0 %v471
        %1536 = vmatprep.subr.mxu0 %v475
        %1537 = vmatpush1.msra.mxu0 %v474
        %1538 = vmatprep.subr.mxu0 %v478
        %1539 = vmatpush1.msra.mxu0 %v477
        %1540 = vmatprep.subr.mxu0 %v481
        %1541 = vmatpush1.msra.mxu0 %v480
        %1542 = vmatprep.subr.mxu0 %v484
        %1543 = vmatpush1.msra.mxu0 %v483
        %1544 = vmatprep.subr.mxu0 %v487
        %1545 = vmatpush1.msra.mxu0 %v486
        %1546 = vmatprep.subr.mxu0 %v490
        %1547 = vmatpush1.msra.mxu0 %v489
        %1548 = vmatprep.mubr.f32.mxu0 %v385
        %1549 = vmatmul.mubr.f32.gmra.mrb[0].mxu0 %v384
        %v1550 = vpop.f32.mrb[0].mxu0
        %v1551 = vadd.f32 %v1249, %v1550
        %v1552 = vpop.f32.mrb[0].mxu0
        %v1553 = vadd.f32 %v1251, %v1552
        %1554 = vmatprep.mubr.f32.mxu0 %v391
        %1555 = vmatmul.mubr.f32.gmra.mrb[0].mxu0 %v390
        %v1556 = vpop.f32.mrb[0].mxu0
        %v1557 = vadd.f32 %v1255, %v1556
        %v1558 = vpop.f32.mrb[0].mxu0
        %v1559 = vadd.f32 %v1257, %v1558
        %1560 = vdwg.mxu0
        %1561 = vmatprep.subr.mxu0 %v493
        %1562 = vmatpush1.msra.mxu0 %v492
        %1563 = vmatprep.subr.mxu0 %v496
        %1564 = vmatpush1.msra.mxu0 %v495
        %1565 = vmatprep.subr.mxu0 %v499
        %1566 = vmatpush1.msra.mxu0 %v498
        %1567 = vmatprep.subr.mxu0 %v502
        %1568 = vmatpush1.msra.mxu0 %v501
        %1569 = vmatprep.subr.mxu0 %v505
        %1570 = vmatpush1.msra.mxu0 %v504
        %1571 = vmatprep.subr.mxu0 %v508
        %1572 = vmatpush1.msra.mxu0 %v507
        %1573 = vmatprep.subr.mxu0 %v511
        %1574 = vmatpush1.msra.mxu0 %v510
        %1575 = vmatprep.subr.mxu0 %v514
        %1576 = vmatpush1.msra.mxu0 %v513
        %1577 = vmatprep.subr.mxu0 %v517
        %1578 = vmatpush1.msra.mxu0 %v516
        %1579 = vmatprep.subr.mxu0 %v520
        %1580 = vmatpush1.msra.mxu0 %v519
        %1581 = vmatprep.subr.mxu0 %v523
        %1582 = vmatpush1.msra.mxu0 %v522
        %1583 = vmatprep.subr.mxu0 %v526
        %1584 = vmatpush1.msra.mxu0 %v525
        %1585 = vmatprep.subr.mxu0 %v529
        %1586 = vmatpush1.msra.mxu0 %v528
        %1587 = vmatprep.subr.mxu0 %v532
        %1588 = vmatpush1.msra.mxu0 %v531
        %1589 = vmatprep.subr.mxu0 %v535
        %1590 = vmatpush1.msra.mxu0 %v534
        %1591 = vmatprep.subr.mxu0 %v538
        %1592 = vmatpush1.msra.mxu0 %v537
        %1593 = vmatprep.subr.mxu0 %v541
        %1594 = vmatpush1.msra.mxu0 %v540
        %1595 = vmatprep.subr.mxu0 %v544
        %1596 = vmatpush1.msra.mxu0 %v543
        %1597 = vmatprep.subr.mxu0 %v547
        %1598 = vmatpush1.msra.mxu0 %v546
        %1599 = vmatprep.subr.mxu0 %v550
        %1600 = vmatpush1.msra.mxu0 %v549
        %1601 = vmatprep.subr.mxu0 %v553
        %1602 = vmatpush1.msra.mxu0 %v552
        %1603 = vmatprep.subr.mxu0 %v556
        %1604 = vmatpush1.msra.mxu0 %v555
        %1605 = vmatprep.subr.mxu0 %v559
        %1606 = vmatpush1.msra.mxu0 %v558
        %1607 = vmatprep.subr.mxu0 %v562
        %1608 = vmatpush1.msra.mxu0 %v561
        %1609 = vmatprep.subr.mxu0 %v565
        %1610 = vmatpush1.msra.mxu0 %v564
        %1611 = vmatprep.subr.mxu0 %v568
        %1612 = vmatpush1.msra.mxu0 %v567
        %1613 = vmatprep.subr.mxu0 %v571
        %1614 = vmatpush1.msra.mxu0 %v570
        %1615 = vmatprep.subr.mxu0 %v574
        %1616 = vmatpush1.msra.mxu0 %v573
        %1617 = vmatprep.subr.mxu0 %v577
        %1618 = vmatpush1.msra.mxu0 %v576
        %1619 = vmatprep.subr.mxu0 %v580
        %1620 = vmatpush1.msra.mxu0 %v579
        %1621 = vmatprep.subr.mxu0 %v583
        %1622 = vmatpush1.msra.mxu0 %v582
        %1623 = vmatprep.subr.mxu0 %v586
        %1624 = vmatpush1.msra.mxu0 %v585
        %1625 = vmatprep.mubr.f32.mxu0 %v387
        %1626 = vmatmul.mubr.f32.gmra.mrb[0].mxu0 %v386
        %v1627 = vpop.f32.mrb[0].mxu0
        %v1628 = vadd.f32 %v1551, %v1627
        %v1629 = vpop.f32.mrb[0].mxu0
        %v1630 = vadd.f32 %v1553, %v1629
        %1631 = vmatprep.mubr.f32.mxu0 %v393
        %1632 = vmatmul.mubr.f32.gmra.mrb[0].mxu0 %v392
        %v1633 = vpop.f32.mrb[0].mxu0
        %v1634 = vadd.f32 %v1557, %v1633
        %v1635 = vpop.f32.mrb[0].mxu0
        %v1636 = vadd.f32 %v1559, %v1635
        %1637 = vdwg.mxu0
        %1638 = vmatprep.subr.mxu0 %v589
        %1639 = vmatpush1.msra.mxu0 %v588
        %1640 = vmatprep.subr.mxu0 %v592
        %1641 = vmatpush1.msra.mxu0 %v591
        %1642 = vmatprep.subr.mxu0 %v595
        %1643 = vmatpush1.msra.mxu0 %v594
        %1644 = vmatprep.subr.mxu0 %v598
        %1645 = vmatpush1.msra.mxu0 %v597
        %1646 = vmatprep.subr.mxu0 %v601
        %1647 = vmatpush1.msra.mxu0 %v600
        %1648 = vmatprep.subr.mxu0 %v604
        %1649 = vmatpush1.msra.mxu0 %v603
        %1650 = vmatprep.subr.mxu0 %v607
        %1651 = vmatpush1.msra.mxu0 %v606
        %1652 = vmatprep.subr.mxu0 %v610
        %1653 = vmatpush1.msra.mxu0 %v609
        %1654 = vmatprep.subr.mxu0 %v613
        %1655 = vmatpush1.msra.mxu0 %v612
        %1656 = vmatprep.subr.mxu0 %v616
        %1657 = vmatpush1.msra.mxu0 %v615
        %1658 = vmatprep.subr.mxu0 %v619
        %1659 = vmatpush1.msra.mxu0 %v618
        %1660 = vmatprep.subr.mxu0 %v622
        %1661 = vmatpush1.msra.mxu0 %v621
        %1662 = vmatprep.subr.mxu0 %v625
        %1663 = vmatpush1.msra.mxu0 %v624
        %1664 = vmatprep.subr.mxu0 %v628
        %1665 = vmatpush1.msra.mxu0 %v627
        %1666 = vmatprep.subr.mxu0 %v631
        %1667 = vmatpush1.msra.mxu0 %v630
        %1668 = vmatprep.subr.mxu0 %v634
        %1669 = vmatpush1.msra.mxu0 %v633
        %1670 = vmatprep.subr.mxu0 %v637
        %1671 = vmatpush1.msra.mxu0 %v636
        %1672 = vmatprep.subr.mxu0 %v640
        %1673 = vmatpush1.msra.mxu0 %v639
        %1674 = vmatprep.subr.mxu0 %v643
        %1675 = vmatpush1.msra.mxu0 %v642
        %1676 = vmatprep.subr.mxu0 %v646
        %1677 = vmatpush1.msra.mxu0 %v645
        %1678 = vmatprep.subr.mxu0 %v649
        %1679 = vmatpush1.msra.mxu0 %v648
        %1680 = vmatprep.subr.mxu0 %v652
        %1681 = vmatpush1.msra.mxu0 %v651
        %1682 = vmatprep.subr.mxu0 %v655
        %1683 = vmatpush1.msra.mxu0 %v654
        %1684 = vmatprep.subr.mxu0 %v658
        %1685 = vmatpush1.msra.mxu0 %v657
        %1686 = vmatprep.subr.mxu0 %v661
        %1687 = vmatpush1.msra.mxu0 %v660
        %1688 = vmatprep.subr.mxu0 %v664
        %1689 = vmatpush1.msra.mxu0 %v663
        %1690 = vmatprep.subr.mxu0 %v667
        %1691 = vmatpush1.msra.mxu0 %v666
        %1692 = vmatprep.subr.mxu0 %v670
        %1693 = vmatpush1.msra.mxu0 %v669
        %1694 = vmatprep.subr.mxu0 %v673
        %1695 = vmatpush1.msra.mxu0 %v672
        %1696 = vmatprep.subr.mxu0 %v676
        %1697 = vmatpush1.msra.mxu0 %v675
        %1698 = vmatprep.subr.mxu0 %v679
        %1699 = vmatpush1.msra.mxu0 %v678
        %1700 = vmatprep.subr.mxu0 %v682
        %1701 = vmatpush1.msra.mxu0 %v681
        %1702 = vmatprep.mubr.f32.mxu0 %v389
        %1703 = vmatmul.mubr.f32.gmra.mrb[0].mxu0 %v388
        %v1704 = vpop.f32.mrb[0].mxu0
        %v1705 = vadd.f32 %v1628, %v1704
        %v1706 = vpop.f32.mrb[0].mxu0
        %v1707 = vadd.f32 %v1630, %v1706
        %1708 = vmatprep.mubr.f32.mxu0 %v395
        %1709 = vmatmul.mubr.f32.gmra.mrb[0].mxu0 %v394
        %v1710 = vpop.f32.mrb[0].mxu0
        %v1711 = vadd.f32 %v1634, %v1710
        %v1712 = vpop.f32.mrb[0].mxu0
        %v1713 = vadd.f32 %v1636, %v1712
        %1714 = vdwg.mxu0
        %1715 = vmatprep.subr.mxu0 0.0
        %1716 = vmatpush1.msra.mxu0 %v398
        %1717 = vmatprep.subr.mxu0 0.0
        %1718 = vmatpush1.msra.mxu0 %v401
        %1719 = vmatprep.subr.mxu0 0.0
        %1720 = vmatpush1.msra.mxu0 %v404
        %1721 = vmatprep.subr.mxu0 0.0
        %1722 = vmatpush1.msra.mxu0 %v407
        %1723 = vmatprep.subr.mxu0 0.0
        %1724 = vmatpush1.msra.mxu0 %v410
        %1725 = vmatprep.subr.mxu0 0.0
        %1726 = vmatpush1.msra.mxu0 %v413
        %1727 = vmatprep.subr.mxu0 0.0
        %1728 = vmatpush1.msra.mxu0 %v416
        %1729 = vmatprep.subr.mxu0 0.0
        %1730 = vmatpush1.msra.mxu0 %v419
        %1731 = vmatprep.subr.mxu0 0.0
        %1732 = vmatpush1.msra.mxu0 %v422
        %1733 = vmatprep.subr.mxu0 0.0
        %1734 = vmatpush1.msra.mxu0 %v425
        %1735 = vmatprep.subr.mxu0 0.0
        %1736 = vmatpush1.msra.mxu0 %v428
        %1737 = vmatprep.subr.mxu0 0.0
        %1738 = vmatpush1.msra.mxu0 %v431
        %1739 = vmatprep.subr.mxu0 0.0
        %1740 = vmatpush1.msra.mxu0 %v434
        %1741 = vmatprep.subr.mxu0 0.0
        %1742 = vmatpush1.msra.mxu0 %v437
        %1743 = vmatprep.subr.mxu0 0.0
        %1744 = vmatpush1.msra.mxu0 %v440
        %1745 = vmatprep.subr.mxu0 0.0
        %1746 = vmatpush1.msra.mxu0 %v443
        %1747 = vmatprep.subr.mxu0 0.0
        %1748 = vmatpush1.msra.mxu0 %v446
        %1749 = vmatprep.subr.mxu0 0.0
        %1750 = vmatpush1.msra.mxu0 %v449
        %1751 = vmatprep.subr.mxu0 0.0
        %1752 = vmatpush1.msra.mxu0 %v452
        %1753 = vmatprep.subr.mxu0 0.0
        %1754 = vmatpush1.msra.mxu0 %v455
        %1755 = vmatprep.subr.mxu0 0.0
        %1756 = vmatpush1.msra.mxu0 %v458
        %1757 = vmatprep.subr.mxu0 0.0
        %1758 = vmatpush1.msra.mxu0 %v461
        %1759 = vmatprep.subr.mxu0 0.0
        %1760 = vmatpush1.msra.mxu0 %v464
        %1761 = vmatprep.subr.mxu0 0.0
        %1762 = vmatpush1.msra.mxu0 %v467
        %1763 = vmatprep.subr.mxu0 0.0
        %1764 = vmatpush1.msra.mxu0 %v470
        %1765 = vmatprep.subr.mxu0 0.0
        %1766 = vmatpush1.msra.mxu0 %v473
        %1767 = vmatprep.subr.mxu0 0.0
        %1768 = vmatpush1.msra.mxu0 %v476
        %1769 = vmatprep.subr.mxu0 0.0
        %1770 = vmatpush1.msra.mxu0 %v479
        %1771 = vmatprep.subr.mxu0 0.0
        %1772 = vmatpush1.msra.mxu0 %v482
        %1773 = vmatprep.subr.mxu0 0.0
        %1774 = vmatpush1.msra.mxu0 %v485
        %1775 = vmatprep.subr.mxu0 0.0
        %1776 = vmatpush1.msra.mxu0 %v488
        %1777 = vmatprep.subr.mxu0 0.0
        %1778 = vmatpush1.msra.mxu0 %v491
        %1779 = vmatprep.mubr.f32.mxu0 %v385
        %1780 = vmatmul.mubr.f32.gmra.mrb[0].mxu0 %v384
        %v1781 = vpop.f32.mrb[0].mxu0
        %v1782 = vadd.f32 %v1476, %v1781
        %v1783 = vpop.f32.mrb[0].mxu0
        %1784 = vmatprep.mubr.f32.mxu0 %v391
        %1785 = vmatmul.mubr.f32.gmra.mrb[0].mxu0 %v390
        %v1786 = vpop.f32.mrb[0].mxu0
        %v1787 = vadd.f32 %v1481, %v1786
        %v1788 = vpop.f32.mrb[0].mxu0
        %1789 = vdwg.mxu0
        %1790 = vmatprep.subr.mxu0 0.0
        %1791 = vmatpush1.msra.mxu0 %v494
        %1792 = vmatprep.subr.mxu0 0.0
        %1793 = vmatpush1.msra.mxu0 %v497
        %1794 = vmatprep.subr.mxu0 0.0
        %1795 = vmatpush1.msra.mxu0 %v500
        %1796 = vmatprep.subr.mxu0 0.0
        %1797 = vmatpush1.msra.mxu0 %v503
        %1798 = vmatprep.subr.mxu0 0.0
        %1799 = vmatpush1.msra.mxu0 %v506
        %1800 = vmatprep.subr.mxu0 0.0
        %1801 = vmatpush1.msra.mxu0 %v509
        %1802 = vmatprep.subr.mxu0 0.0
        %1803 = vmatpush1.msra.mxu0 %v512
        %1804 = vmatprep.subr.mxu0 0.0
        %1805 = vmatpush1.msra.mxu0 %v515
        %1806 = vmatprep.subr.mxu0 0.0
        %1807 = vmatpush1.msra.mxu0 %v518
        %1808 = vmatprep.subr.mxu0 0.0
        %1809 = vmatpush1.msra.mxu0 %v521
        %1810 = vmatprep.subr.mxu0 0.0
        %1811 = vmatpush1.msra.mxu0 %v524
        %1812 = vmatprep.subr.mxu0 0.0
        %1813 = vmatpush1.msra.mxu0 %v527
        %1814 = vmatprep.subr.mxu0 0.0
        %1815 = vmatpush1.msra.mxu0 %v530
        %1816 = vmatprep.subr.mxu0 0.0
        %1817 = vmatpush1.msra.mxu0 %v533
        %1818 = vmatprep.subr.mxu0 0.0
        %1819 = vmatpush1.msra.mxu0 %v536
        %1820 = vmatprep.subr.mxu0 0.0
        %1821 = vmatpush1.msra.mxu0 %v539
        %1822 = vmatprep.subr.mxu0 0.0
        %1823 = vmatpush1.msra.mxu0 %v542
        %1824 = vmatprep.subr.mxu0 0.0
        %1825 = vmatpush1.msra.mxu0 %v545
        %1826 = vmatprep.subr.mxu0 0.0
        %1827 = vmatpush1.msra.mxu0 %v548
        %1828 = vmatprep.subr.mxu0 0.0
        %1829 = vmatpush1.msra.mxu0 %v551
        %1830 = vmatprep.subr.mxu0 0.0
        %1831 = vmatpush1.msra.mxu0 %v554
        %1832 = vmatprep.subr.mxu0 0.0
        %1833 = vmatpush1.msra.mxu0 %v557
        %1834 = vmatprep.subr.mxu0 0.0
        %1835 = vmatpush1.msra.mxu0 %v560
        %1836 = vmatprep.subr.mxu0 0.0
        %1837 = vmatpush1.msra.mxu0 %v563
        %1838 = vmatprep.subr.mxu0 0.0
        %1839 = vmatpush1.msra.mxu0 %v566
        %1840 = vmatprep.subr.mxu0 0.0
        %1841 = vmatpush1.msra.mxu0 %v569
        %1842 = vmatprep.subr.mxu0 0.0
        %1843 = vmatpush1.msra.mxu0 %v572
        %1844 = vmatprep.subr.mxu0 0.0
        %1845 = vmatpush1.msra.mxu0 %v575
        %1846 = vmatprep.subr.mxu0 0.0
        %1847 = vmatpush1.msra.mxu0 %v578
        %1848 = vmatprep.subr.mxu0 0.0
        %1849 = vmatpush1.msra.mxu0 %v581
        %1850 = vmatprep.subr.mxu0 0.0
        %1851 = vmatpush1.msra.mxu0 %v584
        %1852 = vmatprep.subr.mxu0 0.0
        %1853 = vmatpush1.msra.mxu0 %v587
        %1854 = vmatprep.mubr.f32.mxu0 %v387
        %1855 = vmatmul.mubr.f32.gmra.mrb[0].mxu0 %v386
        %v1856 = vpop.f32.mrb[0].mxu0
        %v1857 = vadd.f32 %v1782, %v1856
        %v1858 = vpop.f32.mrb[0].mxu0
        %1859 = vmatprep.mubr.f32.mxu0 %v393
        %1860 = vmatmul.mubr.f32.gmra.mrb[0].mxu0 %v392
        %v1861 = vpop.f32.mrb[0].mxu0
        %v1862 = vadd.f32 %v1787, %v1861
        %v1863 = vpop.f32.mrb[0].mxu0
        %1864 = vdwg.mxu0
        %1865 = vmatprep.subr.mxu0 0.0
        %1866 = vmatpush1.msra.mxu0 %v590
        %1867 = vmatprep.subr.mxu0 0.0
        %1868 = vmatpush1.msra.mxu0 %v593
        %1869 = vmatprep.subr.mxu0 0.0
        %1870 = vmatpush1.msra.mxu0 %v596
        %1871 = vmatprep.subr.mxu0 0.0
        %1872 = vmatpush1.msra.mxu0 %v599
        %1873 = vmatprep.subr.mxu0 0.0
        %1874 = vmatpush1.msra.mxu0 %v602
        %1875 = vmatprep.subr.mxu0 0.0
        %1876 = vmatpush1.msra.mxu0 %v605
        %1877 = vmatprep.subr.mxu0 0.0
        %1878 = vmatpush1.msra.mxu0 %v608
        %1879 = vmatprep.subr.mxu0 0.0
        %1880 = vmatpush1.msra.mxu0 %v611
        %1881 = vmatprep.subr.mxu0 0.0
        %1882 = vmatpush1.msra.mxu0 %v614
        %1883 = vmatprep.subr.mxu0 0.0
        %1884 = vmatpush1.msra.mxu0 %v617
        %1885 = vmatprep.subr.mxu0 0.0
        %1886 = vmatpush1.msra.mxu0 %v620
        %1887 = vmatprep.subr.mxu0 0.0
        %1888 = vmatpush1.msra.mxu0 %v623
        %1889 = vmatprep.subr.mxu0 0.0
        %1890 = vmatpush1.msra.mxu0 %v626
        %1891 = vmatprep.subr.mxu0 0.0
        %1892 = vmatpush1.msra.mxu0 %v629
        %1893 = vmatprep.subr.mxu0 0.0
        %1894 = vmatpush1.msra.mxu0 %v632
        %1895 = vmatprep.subr.mxu0 0.0
        %1896 = vmatpush1.msra.mxu0 %v635
        %1897 = vmatprep.subr.mxu0 0.0
        %1898 = vmatpush1.msra.mxu0 %v638
        %1899 = vmatprep.subr.mxu0 0.0
        %1900 = vmatpush1.msra.mxu0 %v641
        %1901 = vmatprep.subr.mxu0 0.0
        %1902 = vmatpush1.msra.mxu0 %v644
        %1903 = vmatprep.subr.mxu0 0.0
        %1904 = vmatpush1.msra.mxu0 %v647
        %1905 = vmatprep.subr.mxu0 0.0
        %1906 = vmatpush1.msra.mxu0 %v650
        %1907 = vmatprep.subr.mxu0 0.0
        %1908 = vmatpush1.msra.mxu0 %v653
        %1909 = vmatprep.subr.mxu0 0.0
        %1910 = vmatpush1.msra.mxu0 %v656
        %1911 = vmatprep.subr.mxu0 0.0
        %1912 = vmatpush1.msra.mxu0 %v659
        %1913 = vmatprep.subr.mxu0 0.0
        %1914 = vmatpush1.msra.mxu0 %v662
        %1915 = vmatprep.subr.mxu0 0.0
        %1916 = vmatpush1.msra.mxu0 %v665
        %1917 = vmatprep.subr.mxu0 0.0
        %1918 = vmatpush1.msra.mxu0 %v668
        %1919 = vmatprep.subr.mxu0 0.0
        %1920 = vmatpush1.msra.mxu0 %v671
        %1921 = vmatprep.subr.mxu0 0.0
        %1922 = vmatpush1.msra.mxu0 %v674
        %1923 = vmatprep.subr.mxu0 0.0
        %1924 = vmatpush1.msra.mxu0 %v677
        %1925 = vmatprep.subr.mxu0 0.0
        %1926 = vmatpush1.msra.mxu0 %v680
        %1927 = vmatprep.subr.mxu0 0.0
        %1928 = vmatpush1.msra.mxu0 %v683
        %1929 = vmatprep.mubr.f32.mxu0 %v389
        %1930 = vmatmul.mubr.f32.gmra.mrb[0].mxu0 %v388
        %v1931 = vpop.f32.mrb[0].mxu0
        %v1932 = vadd.f32 %v1857, %v1931
        %v1933 = vpop.f32.mrb[0].mxu0
        %1934 = vmatprep.mubr.f32.mxu0 %v395
        %1935 = vmatmul.mubr.f32.gmra.mrb[0].mxu0 %v394
        %v1936 = vpop.f32.mrb[0].mxu0
        %v1937 = vadd.f32 %v1862, %v1936
        %v1938 = vpop.f32.mrb[0].mxu0
        %1939 = vdwg.mxu0
        %v1940 = vld [vmem:[%s2] sm:$0x7]
        %v1942 = vlaneseq
        %v1943 = vshrl.u32 %v1942, 7
        %v1944 = vsub.s32 0, %v1943
        %v1945 = vrot.slane %v1940, %v1944
        %v1946 = vlaneseq
        %v1947 = vshrl.u32 %v1946, 7
        %v1948 = vsub.s32 1, %v1947
        %v1949 = vrot.slane %v1940, %v1948
        %v1950 = vlaneseq
        %v1951 = vshrl.u32 %v1950, 7
        %v1952 = vsub.s32 2, %v1951
        %v1953 = vrot.slane %v1940, %v1952
        %v1957 = vadd.f32 %v1705, %v1945
        %v1958 = vadd.f32 %v1707, %v1949
        %v1959 = vadd.f32 %v1932, %v1953
        %v1960 = vadd.f32 %v1711, %v1945
        %v1961 = vadd.f32 %v1713, %v1949
        %v1962 = vadd.f32 %v1937, %v1953
        %v1963 = vmax.f32 %v1957, 0.0
        %v1964 = vmax.f32 %v1958, 0.0
        %v1965 = vmax.f32 %v1959, 0.0
        %v1966 = vmax.f32 %v1960, 0.0
        %v1967 = vmax.f32 %v1961, 0.0
        %v1968 = vmax.f32 %v1962, 0.0
        %1969 = vst [vmem:[#allocation2] sm:$0xff] %v1963
        %1970 = vst [vmem:[#allocation2 + $0x8] sm:$0xff] %v1964
        %vm1971 = vcmask 785408
        %1972 = vst.msk [vmem:[#allocation2 + $0x10] sm:$0xff] %vm1971, %v1965
        %1973 = vst [vmem:[#allocation2 + $0x18] sm:$0x7] %v1966
        %1974 = vst [vmem:[#allocation2 + $0x20] sm:$0x7] %v1967
        %vm1975 = vcmask 780288
        %1976 = vst.msk [vmem:[#allocation2 + $0x28] sm:$0x7] %vm1975, %v1968
        %v1977 = vld [vmem:[#allocation2] ss:$8 sm:$0x7]
        %v1978 = vld [vmem:[%s3] sm:$0xff]
        %v1979 = vld [vmem:[%s3 + $0x8] sm:$0xff]
        %v1980 = vld [vmem:[%s3 + $0x10] sm:$0xff]
        %v1981 = vld [vmem:[%s3 + $0x18] sm:$0xff]
        %v1982 = vld [vmem:[%s3 + $0x20] sm:$0xff]
        %v1983 = vld [vmem:[%s3 + $0x28] sm:$0xff]
        %v1984 = vld [vmem:[%s3 + $0x30] sm:$0xff]
        %v1985 = vld [vmem:[%s3 + $0x38] sm:$0xff]
        %v1986 = vld [vmem:[%s3 + $0x40] sm:$0xff]
        %v1987 = vld [vmem:[%s3 + $0x48] sm:$0xff]
        %v1988 = vld [vmem:[%s3 + $0x50] sm:$0xff]
        %v1989 = vld [vmem:[%s3 + $0x58] sm:$0xff]
        %v1990 = vld [vmem:[%s3 + $0x60] sm:$0xff]
        %v1991 = vld [vmem:[%s3 + $0x68] sm:$0xff]
        %v1992 = vld [vmem:[%s3 + $0x70] sm:$0xff]
        %v1993 = vld [vmem:[%s3 + $0x78] sm:$0xff]
        %v1994 = vld [vmem:[%s3 + $0x80] sm:$0xff]
        %v1995 = vld [vmem:[%s3 + $0x88] sm:$0xff]
        %v1996 = vld [vmem:[%s3 + $0x90] sm:$0xff]
        %v1997 = vld [vmem:[%s3 + $0x98] sm:$0xff]
        %v1998 = vld [vmem:[%s3 + $0xa0] sm:$0xff]
        %v1999 = vld [vmem:[%s3 + $0xa8] sm:$0xff]
        %v2000 = vld [vmem:[%s3 + $0xb0] sm:$0xff]
        %v2001 = vld [vmem:[%s3 + $0xb8] sm:$0xff]
        %v2002 = vld [vmem:[%s3 + $0xc0] sm:$0xff]
        %v2003 = vld [vmem:[%s3 + $0xc8] sm:$0xff]
        %v2004 = vld [vmem:[%s3 + $0xd0] sm:$0xff]
        %v2005 = vld [vmem:[%s3 + $0xd8] sm:$0xff]
        %v2006 = vld [vmem:[%s3 + $0xe0] sm:$0xff]
        %v2007 = vld [vmem:[%s3 + $0xe8] sm:$0xff]
        %v2008 = vld [vmem:[%s3 + $0xf0] sm:$0xff]
        %v2009 = vld [vmem:[%s3 + $0xf8] sm:$0xff]
        %v2010 = vld [vmem:[%s3 + $0x100] sm:$0xff]
        %v2011 = vld [vmem:[%s3 + $0x108] sm:$0xff]
        %v2012 = vld [vmem:[%s3 + $0x110] sm:$0xff]
        %v2013 = vld [vmem:[%s3 + $0x118] sm:$0xff]
        %v2014 = vld [vmem:[%s3 + $0x120] sm:$0xff]
        %v2015 = vld [vmem:[%s3 + $0x128] sm:$0xff]
        %v2016 = vld [vmem:[%s3 + $0x130] sm:$0xff]
        %v2017 = vld [vmem:[%s3 + $0x138] sm:$0xff]
        %v2018 = vld [vmem:[%s3 + $0x140] sm:$0xff]
        %v2019 = vld [vmem:[%s3 + $0x148] sm:$0xff]
        %v2020 = vld [vmem:[%s3 + $0x150] sm:$0xff]
        %v2021 = vld [vmem:[%s3 + $0x158] sm:$0xff]
        %v2022 = vld [vmem:[%s3 + $0x160] sm:$0xff]
        %v2023 = vld [vmem:[%s3 + $0x168] sm:$0xff]
        %v2024 = vld [vmem:[%s3 + $0x170] sm:$0xff]
        %v2025 = vld [vmem:[%s3 + $0x178] sm:$0xff]
        %v2026 = vld [vmem:[%s3 + $0x180] sm:$0xff]
        %v2027 = vld [vmem:[%s3 + $0x188] sm:$0xff]
        %v2028 = vld [vmem:[%s3 + $0x190] sm:$0xff]
        %v2029 = vld [vmem:[%s3 + $0x198] sm:$0xff]
        %v2030 = vld [vmem:[%s3 + $0x1a0] sm:$0xff]
        %v2031 = vld [vmem:[%s3 + $0x1a8] sm:$0xff]
        %v2032 = vld [vmem:[%s3 + $0x1b0] sm:$0xff]
        %v2033 = vld [vmem:[%s3 + $0x1b8] sm:$0xff]
        %v2034 = vld [vmem:[%s3 + $0x1c0] sm:$0xff]
        %v2035 = vld [vmem:[%s3 + $0x1c8] sm:$0xff]
        %v2036 = vld [vmem:[%s3 + $0x1d0] sm:$0xff]
        %v2037 = vld [vmem:[%s3 + $0x1d8] sm:$0xff]
        %v2038 = vld [vmem:[%s3 + $0x1e0] sm:$0xff]
        %v2039 = vld [vmem:[%s3 + $0x1e8] sm:$0xff]
        %v2040 = vld [vmem:[%s3 + $0x1f0] sm:$0xff]
        %v2041 = vld [vmem:[%s3 + $0x1f8] sm:$0xff]
        %v2042 = vld [vmem:[%s3 + $0x200] sm:$0xff]
        %v2043 = vld [vmem:[%s3 + $0x208] sm:$0xff]
        %v2044 = vld [vmem:[%s3 + $0x210] sm:$0xff]
        %v2045 = vld [vmem:[%s3 + $0x218] sm:$0xff]
        %v2046 = vld [vmem:[%s3 + $0x220] sm:$0xff]
        %v2047 = vld [vmem:[%s3 + $0x228] sm:$0xff]
        %v2048 = vld [vmem:[%s3 + $0x230] sm:$0xff]
        %v2049 = vld [vmem:[%s3 + $0x238] sm:$0xff]
        %v2050 = vld [vmem:[%s3 + $0x240] sm:$0xff]
        %v2051 = vld [vmem:[%s3 + $0x248] sm:$0xff]
        %v2052 = vld [vmem:[%s3 + $0x250] sm:$0xff]
        %v2053 = vld [vmem:[%s3 + $0x258] sm:$0xff]
        %v2054 = vld [vmem:[%s3 + $0x260] sm:$0xff]
        %v2055 = vld [vmem:[%s3 + $0x268] sm:$0xff]
        %v2056 = vld [vmem:[%s3 + $0x270] sm:$0xff]
        %v2057 = vld [vmem:[%s3 + $0x278] sm:$0xff]
        %v2058 = vld [vmem:[%s3 + $0x280] sm:$0xff]
        %v2059 = vld [vmem:[%s3 + $0x288] sm:$0xff]
        %v2060 = vld [vmem:[%s3 + $0x290] sm:$0xff]
        %v2061 = vld [vmem:[%s3 + $0x298] sm:$0xff]
        %v2062 = vld [vmem:[%s3 + $0x2a0] sm:$0xff]
        %v2063 = vld [vmem:[%s3 + $0x2a8] sm:$0xff]
        %v2064 = vld [vmem:[%s3 + $0x2b0] sm:$0xff]
        %v2065 = vld [vmem:[%s3 + $0x2b8] sm:$0xff]
        %s2066 = scalar_lea.vmem [#allocation2], 1
        %v2067 = vld [vmem:[%s2066] ss:$8 sm:$0x7]
        %s2068 = scalar_lea.vmem %s3, 704
        %v2069 = vld [vmem:[%s2068] sm:$0xff]
        %v2070 = vld [vmem:[%s2068 + $0x8] sm:$0xff]
        %v2071 = vld [vmem:[%s2068 + $0x10] sm:$0xff]
        %v2072 = vld [vmem:[%s2068 + $0x18] sm:$0xff]
        %v2073 = vld [vmem:[%s2068 + $0x20] sm:$0xff]
        %v2074 = vld [vmem:[%s2068 + $0x28] sm:$0xff]
        %v2075 = vld [vmem:[%s2068 + $0x30] sm:$0xff]
        %v2076 = vld [vmem:[%s2068 + $0x38] sm:$0xff]
        %v2077 = vld [vmem:[%s2068 + $0x40] sm:$0xff]
        %v2078 = vld [vmem:[%s2068 + $0x48] sm:$0xff]
        %v2079 = vld [vmem:[%s2068 + $0x50] sm:$0xff]
        %v2080 = vld [vmem:[%s2068 + $0x58] sm:$0xff]
        %v2081 = vld [vmem:[%s2068 + $0x60] sm:$0xff]
        %v2082 = vld [vmem:[%s2068 + $0x68] sm:$0xff]
        %v2083 = vld [vmem:[%s2068 + $0x70] sm:$0xff]
        %v2084 = vld [vmem:[%s2068 + $0x78] sm:$0xff]
        %v2085 = vld [vmem:[%s2068 + $0x80] sm:$0xff]
        %v2086 = vld [vmem:[%s2068 + $0x88] sm:$0xff]
        %v2087 = vld [vmem:[%s2068 + $0x90] sm:$0xff]
        %v2088 = vld [vmem:[%s2068 + $0x98] sm:$0xff]
        %v2089 = vld [vmem:[%s2068 + $0xa0] sm:$0xff]
        %v2090 = vld [vmem:[%s2068 + $0xa8] sm:$0xff]
        %v2091 = vld [vmem:[%s2068 + $0xb0] sm:$0xff]
        %v2092 = vld [vmem:[%s2068 + $0xb8] sm:$0xff]
        %v2093 = vld [vmem:[%s2068 + $0xc0] sm:$0xff]
        %v2094 = vld [vmem:[%s2068 + $0xc8] sm:$0xff]
        %v2095 = vld [vmem:[%s2068 + $0xd0] sm:$0xff]
        %v2096 = vld [vmem:[%s2068 + $0xd8] sm:$0xff]
        %v2097 = vld [vmem:[%s2068 + $0xe0] sm:$0xff]
        %v2098 = vld [vmem:[%s2068 + $0xe8] sm:$0xff]
        %v2099 = vld [vmem:[%s2068 + $0xf0] sm:$0xff]
        %v2100 = vld [vmem:[%s2068 + $0xf8] sm:$0xff]
        %v2101 = vld [vmem:[%s2068 + $0x100] sm:$0xff]
        %v2102 = vld [vmem:[%s2068 + $0x108] sm:$0xff]
        %v2103 = vld [vmem:[%s2068 + $0x110] sm:$0xff]
        %v2104 = vld [vmem:[%s2068 + $0x118] sm:$0xff]
        %v2105 = vld [vmem:[%s2068 + $0x120] sm:$0xff]
        %v2106 = vld [vmem:[%s2068 + $0x128] sm:$0xff]
        %v2107 = vld [vmem:[%s2068 + $0x130] sm:$0xff]
        %v2108 = vld [vmem:[%s2068 + $0x138] sm:$0xff]
        %v2109 = vld [vmem:[%s2068 + $0x140] sm:$0xff]
        %v2110 = vld [vmem:[%s2068 + $0x148] sm:$0xff]
        %v2111 = vld [vmem:[%s2068 + $0x150] sm:$0xff]
        %v2112 = vld [vmem:[%s2068 + $0x158] sm:$0xff]
        %v2113 = vld [vmem:[%s2068 + $0x160] sm:$0xff]
        %v2114 = vld [vmem:[%s2068 + $0x168] sm:$0xff]
        %v2115 = vld [vmem:[%s2068 + $0x170] sm:$0xff]
        %v2116 = vld [vmem:[%s2068 + $0x178] sm:$0xff]
        %v2117 = vld [vmem:[%s2068 + $0x180] sm:$0xff]
        %v2118 = vld [vmem:[%s2068 + $0x188] sm:$0xff]
        %v2119 = vld [vmem:[%s2068 + $0x190] sm:$0xff]
        %v2120 = vld [vmem:[%s2068 + $0x198] sm:$0xff]
        %v2121 = vld [vmem:[%s2068 + $0x1a0] sm:$0xff]
        %v2122 = vld [vmem:[%s2068 + $0x1a8] sm:$0xff]
        %v2123 = vld [vmem:[%s2068 + $0x1b0] sm:$0xff]
        %v2124 = vld [vmem:[%s2068 + $0x1b8] sm:$0xff]
        %v2125 = vld [vmem:[%s2068 + $0x1c0] sm:$0xff]
        %v2126 = vld [vmem:[%s2068 + $0x1c8] sm:$0xff]
        %v2127 = vld [vmem:[%s2068 + $0x1d0] sm:$0xff]
        %v2128 = vld [vmem:[%s2068 + $0x1d8] sm:$0xff]
        %v2129 = vld [vmem:[%s2068 + $0x1e0] sm:$0xff]
        %v2130 = vld [vmem:[%s2068 + $0x1e8] sm:$0xff]
        %v2131 = vld [vmem:[%s2068 + $0x1f0] sm:$0xff]
        %v2132 = vld [vmem:[%s2068 + $0x1f8] sm:$0xff]
        %v2133 = vld [vmem:[%s2068 + $0x200] sm:$0xff]
        %v2134 = vld [vmem:[%s2068 + $0x208] sm:$0xff]
        %v2135 = vld [vmem:[%s2068 + $0x210] sm:$0xff]
        %v2136 = vld [vmem:[%s2068 + $0x218] sm:$0xff]
        %v2137 = vld [vmem:[%s2068 + $0x220] sm:$0xff]
        %v2138 = vld [vmem:[%s2068 + $0x228] sm:$0xff]
        %v2139 = vld [vmem:[%s2068 + $0x230] sm:$0xff]
        %v2140 = vld [vmem:[%s2068 + $0x238] sm:$0xff]
        %v2141 = vld [vmem:[%s2068 + $0x240] sm:$0xff]
        %v2142 = vld [vmem:[%s2068 + $0x248] sm:$0xff]
        %v2143 = vld [vmem:[%s2068 + $0x250] sm:$0xff]
        %v2144 = vld [vmem:[%s2068 + $0x258] sm:$0xff]
        %v2145 = vld [vmem:[%s2068 + $0x260] sm:$0xff]
        %v2146 = vld [vmem:[%s2068 + $0x268] sm:$0xff]
        %v2147 = vld [vmem:[%s2068 + $0x270] sm:$0xff]
        %v2148 = vld [vmem:[%s2068 + $0x278] sm:$0xff]
        %v2149 = vld [vmem:[%s2068 + $0x280] sm:$0xff]
        %v2150 = vld [vmem:[%s2068 + $0x288] sm:$0xff]
        %v2151 = vld [vmem:[%s2068 + $0x290] sm:$0xff]
        %v2152 = vld [vmem:[%s2068 + $0x298] sm:$0xff]
        %v2153 = vld [vmem:[%s2068 + $0x2a0] sm:$0xff]
        %v2154 = vld [vmem:[%s2068 + $0x2a8] sm:$0xff]
        %v2155 = vld [vmem:[%s2068 + $0x2b0] sm:$0xff]
        %v2156 = vld [vmem:[%s2068 + $0x2b8] sm:$0xff]
        %v2158 = vlaneseq
        %v2159 = vshrl.u32 %v2158, 7
        %v2160 = vsub.s32 0, %v2159
        %v2161 = vrot.slane %v2067, %v2160
        %v2162 = vlaneseq
        %v2163 = vshrl.u32 %v2162, 7
        %v2164 = vsub.s32 1, %v2163
        %v2165 = vrot.slane %v2067, %v2164
        %v2166 = vlaneseq
        %v2167 = vshrl.u32 %v2166, 7
        %v2168 = vsub.s32 2, %v2167
        %v2169 = vrot.slane %v2067, %v2168
        %v2172 = vsel %vm1971, %v2169, 0
        %2174 = vmatprep.subr.mxu0 %v2070
        %2175 = vmatpush1.msra.mxu0 %v2069
        %2176 = vmatprep.subr.mxu0 %v2072
        %2177 = vmatpush1.msra.mxu0 %v2071
        %2178 = vmatprep.subr.mxu0 %v2074
        %2179 = vmatpush1.msra.mxu0 %v2073
        %2180 = vmatprep.subr.mxu0 %v2076
        %2181 = vmatpush1.msra.mxu0 %v2075
        %2182 = vmatprep.subr.mxu0 %v2078
        %2183 = vmatpush1.msra.mxu0 %v2077
        %2184 = vmatprep.subr.mxu0 %v2080
        %2185 = vmatpush1.msra.mxu0 %v2079
        %2186 = vmatprep.subr.mxu0 %v2082
        %2187 = vmatpush1.msra.mxu0 %v2081
        %2188 = vmatprep.subr.mxu0 %v2084
        %2189 = vmatpush1.msra.mxu0 %v2083
        %2190 = vmatprep.subr.mxu0 %v2086
        %2191 = vmatpush1.msra.mxu0 %v2085
        %2192 = vmatprep.subr.mxu0 %v2088
        %2193 = vmatpush1.msra.mxu0 %v2087
        %2194 = vmatprep.subr.mxu0 %v2090
        %2195 = vmatpush1.msra.mxu0 %v2089
        %2196 = vmatprep.subr.mxu0 %v2092
        %2197 = vmatpush1.msra.mxu0 %v2091
        %2198 = vmatprep.subr.mxu0 %v2094
        %2199 = vmatpush1.msra.mxu0 %v2093
        %2200 = vmatprep.subr.mxu0 %v2096
        %2201 = vmatpush1.msra.mxu0 %v2095
        %2202 = vmatprep.subr.mxu0 %v2098
        %2203 = vmatpush1.msra.mxu0 %v2097
        %2204 = vmatprep.subr.mxu0 %v2100
        %2205 = vmatpush1.msra.mxu0 %v2099
        %2206 = vmatprep.subr.mxu0 %v2102
        %2207 = vmatpush1.msra.mxu0 %v2101
        %2208 = vmatprep.subr.mxu0 %v2104
        %2209 = vmatpush1.msra.mxu0 %v2103
        %2210 = vmatprep.subr.mxu0 %v2106
        %2211 = vmatpush1.msra.mxu0 %v2105
        %2212 = vmatprep.subr.mxu0 %v2108
        %2213 = vmatpush1.msra.mxu0 %v2107
        %2214 = vmatprep.subr.mxu0 %v2110
        %2215 = vmatpush1.msra.mxu0 %v2109
        %2216 = vmatprep.subr.mxu0 %v2112
        %2217 = vmatpush1.msra.mxu0 %v2111
        %2218 = vmatprep.subr.mxu0 %v2114
        %2219 = vmatpush1.msra.mxu0 %v2113
        %2220 = vmatprep.subr.mxu0 %v2116
        %2221 = vmatpush1.msra.mxu0 %v2115
        %2222 = vmatprep.subr.mxu0 %v2118
        %2223 = vmatpush1.msra.mxu0 %v2117
        %2224 = vmatprep.subr.mxu0 %v2120
        %2225 = vmatpush1.msra.mxu0 %v2119
        %2226 = vmatprep.subr.mxu0 %v2122
        %2227 = vmatpush1.msra.mxu0 %v2121
        %2228 = vmatprep.subr.mxu0 %v2124
        %2229 = vmatpush1.msra.mxu0 %v2123
        %2230 = vmatprep.subr.mxu0 %v2126
        %2231 = vmatpush1.msra.mxu0 %v2125
        %2232 = vmatprep.subr.mxu0 %v2128
        %2233 = vmatpush1.msra.mxu0 %v2127
        %2234 = vmatprep.subr.mxu0 %v2130
        %2235 = vmatpush1.msra.mxu0 %v2129
        %2236 = vmatprep.subr.mxu0 %v2132
        %2237 = vmatpush1.msra.mxu0 %v2131
        %2238 = vmatprep.mubr.f32.mxu0 %v2165
        %2239 = vmatmul.mubr.f32.gmra.mrb[0].mxu0 %v2161
        %v2240 = vpop.f32.mrb[0].mxu0
        %v2241 = vadd.f32 0.0, %v2240
        %v2242 = vpop.f32.mrb[0].mxu0
        %v2243 = vadd.f32 0.0, %v2242
        %2244 = vdwg.mxu0
        %2245 = vmatprep.subr.mxu0 %v2134
        %2246 = vmatpush1.msra.mxu0 %v2133
        %2247 = vmatprep.subr.mxu0 %v2136
        %2248 = vmatpush1.msra.mxu0 %v2135
        %2249 = vmatprep.subr.mxu0 %v2138
        %2250 = vmatpush1.msra.mxu0 %v2137
        %2251 = vmatprep.subr.mxu0 %v2140
        %2252 = vmatpush1.msra.mxu0 %v2139
        %2253 = vmatprep.subr.mxu0 %v2142
        %2254 = vmatpush1.msra.mxu0 %v2141
        %2255 = vmatprep.subr.mxu0 %v2144
        %2256 = vmatpush1.msra.mxu0 %v2143
        %2257 = vmatprep.subr.mxu0 %v2146
        %2258 = vmatpush1.msra.mxu0 %v2145
        %2259 = vmatprep.subr.mxu0 %v2148
        %2260 = vmatpush1.msra.mxu0 %v2147
        %2261 = vmatprep.subr.mxu0 %v2150
        %2262 = vmatpush1.msra.mxu0 %v2149
        %2263 = vmatprep.subr.mxu0 %v2152
        %2264 = vmatpush1.msra.mxu0 %v2151
        %2265 = vmatprep.subr.mxu0 %v2154
        %2266 = vmatpush1.msra.mxu0 %v2153
        %2267 = vmatprep.subr.mxu0 %v2156
        %2268 = vmatpush1.msra.mxu0 %v2155
        %2269 = vmatprep.subr.mxu0 0.0
        %2270 = vmatpush1.msra.mxu0 0.0
        %2271 = vmatprep.subr.mxu0 0.0
        %2272 = vmatpush1.msra.mxu0 0.0
        %2273 = vmatprep.subr.mxu0 0.0
        %2274 = vmatpush1.msra.mxu0 0.0
        %2275 = vmatprep.subr.mxu0 0.0
        %2276 = vmatpush1.msra.mxu0 0.0
        %2277 = vmatprep.subr.mxu0 0.0
        %2278 = vmatpush1.msra.mxu0 0.0
        %2279 = vmatprep.subr.mxu0 0.0
        %2280 = vmatpush1.msra.mxu0 0.0
        %2281 = vmatprep.subr.mxu0 0.0
        %2282 = vmatpush1.msra.mxu0 0.0
        %2283 = vmatprep.subr.mxu0 0.0
        %2284 = vmatpush1.msra.mxu0 0.0
        %2285 = vmatprep.subr.mxu0 0.0
        %2286 = vmatpush1.msra.mxu0 0.0
        %2287 = vmatprep.subr.mxu0 0.0
        %2288 = vmatpush1.msra.mxu0 0.0
        %2289 = vmatprep.subr.mxu0 0.0
        %2290 = vmatpush1.msra.mxu0 0.0
        %2291 = vmatprep.subr.mxu0 0.0
        %2292 = vmatpush1.msra.mxu0 0.0
        %2293 = vmatprep.subr.mxu0 0.0
        %2294 = vmatpush1.msra.mxu0 0.0
        %2295 = vmatprep.subr.mxu0 0.0
        %2296 = vmatpush1.msra.mxu0 0.0
        %2297 = vmatprep.subr.mxu0 0.0
        %2298 = vmatpush1.msra.mxu0 0.0
        %2299 = vmatprep.subr.mxu0 0.0
        %2300 = vmatpush1.msra.mxu0 0.0
        %2301 = vmatprep.subr.mxu0 0.0
        %2302 = vmatpush1.msra.mxu0 0.0
        %2303 = vmatprep.subr.mxu0 0.0
        %2304 = vmatpush1.msra.mxu0 0.0
        %2305 = vmatprep.subr.mxu0 0.0
        %2306 = vmatpush1.msra.mxu0 0.0
        %2307 = vmatprep.subr.mxu0 0.0
        %2308 = vmatpush1.msra.mxu0 0.0
        %2309 = vmatprep.mubr.f32.mxu0 0.0
        %2310 = vmatmul.mubr.f32.gmra.mrb[0].mxu0 %v2172
        %v2311 = vpop.f32.mrb[0].mxu0
        %v2312 = vadd.f32 %v2241, %v2311
        %v2313 = vpop.f32.mrb[0].mxu0
        %v2314 = vadd.f32 %v2243, %v2313
        %2315 = vdwg.mxu0
        %v2317 = vlaneseq
        %v2318 = vshrl.u32 %v2317, 7
        %v2319 = vsub.s32 0, %v2318
        %v2320 = vrot.slane %v1977, %v2319
        %v2321 = vlaneseq
        %v2322 = vshrl.u32 %v2321, 7
        %v2323 = vsub.s32 1, %v2322
        %v2324 = vrot.slane %v1977, %v2323
        %v2325 = vlaneseq
        %v2326 = vshrl.u32 %v2325, 7
        %v2327 = vsub.s32 2, %v2326
        %v2328 = vrot.slane %v1977, %v2327
        %v2331 = vsel %vm1971, %v2328, 0
        %2333 = vmatprep.subr.mxu0 %v1979
        %2334 = vmatpush1.msra.mxu0 %v1978
        %2335 = vmatprep.subr.mxu0 %v1981
        %2336 = vmatpush1.msra.mxu0 %v1980
        %2337 = vmatprep.subr.mxu0 %v1983
        %2338 = vmatpush1.msra.mxu0 %v1982
        %2339 = vmatprep.subr.mxu0 %v1985
        %2340 = vmatpush1.msra.mxu0 %v1984
        %2341 = vmatprep.subr.mxu0 %v1987
        %2342 = vmatpush1.msra.mxu0 %v1986
        %2343 = vmatprep.subr.mxu0 %v1989
        %2344 = vmatpush1.msra.mxu0 %v1988
        %2345 = vmatprep.subr.mxu0 %v1991
        %2346 = vmatpush1.msra.mxu0 %v1990
        %2347 = vmatprep.subr.mxu0 %v1993
        %2348 = vmatpush1.msra.mxu0 %v1992
        %2349 = vmatprep.subr.mxu0 %v1995
        %2350 = vmatpush1.msra.mxu0 %v1994
        %2351 = vmatprep.subr.mxu0 %v1997
        %2352 = vmatpush1.msra.mxu0 %v1996
        %2353 = vmatprep.subr.mxu0 %v1999
        %2354 = vmatpush1.msra.mxu0 %v1998
        %2355 = vmatprep.subr.mxu0 %v2001
        %2356 = vmatpush1.msra.mxu0 %v2000
        %2357 = vmatprep.subr.mxu0 %v2003
        %2358 = vmatpush1.msra.mxu0 %v2002
        %2359 = vmatprep.subr.mxu0 %v2005
        %2360 = vmatpush1.msra.mxu0 %v2004
        %2361 = vmatprep.subr.mxu0 %v2007
        %2362 = vmatpush1.msra.mxu0 %v2006
        %2363 = vmatprep.subr.mxu0 %v2009
        %2364 = vmatpush1.msra.mxu0 %v2008
        %2365 = vmatprep.subr.mxu0 %v2011
        %2366 = vmatpush1.msra.mxu0 %v2010
        %2367 = vmatprep.subr.mxu0 %v2013
        %2368 = vmatpush1.msra.mxu0 %v2012
        %2369 = vmatprep.subr.mxu0 %v2015
        %2370 = vmatpush1.msra.mxu0 %v2014
        %2371 = vmatprep.subr.mxu0 %v2017
        %2372 = vmatpush1.msra.mxu0 %v2016
        %2373 = vmatprep.subr.mxu0 %v2019
        %2374 = vmatpush1.msra.mxu0 %v2018
        %2375 = vmatprep.subr.mxu0 %v2021
        %2376 = vmatpush1.msra.mxu0 %v2020
        %2377 = vmatprep.subr.mxu0 %v2023
        %2378 = vmatpush1.msra.mxu0 %v2022
        %2379 = vmatprep.subr.mxu0 %v2025
        %2380 = vmatpush1.msra.mxu0 %v2024
        %2381 = vmatprep.subr.mxu0 %v2027
        %2382 = vmatpush1.msra.mxu0 %v2026
        %2383 = vmatprep.subr.mxu0 %v2029
        %2384 = vmatpush1.msra.mxu0 %v2028
        %2385 = vmatprep.subr.mxu0 %v2031
        %2386 = vmatpush1.msra.mxu0 %v2030
        %2387 = vmatprep.subr.mxu0 %v2033
        %2388 = vmatpush1.msra.mxu0 %v2032
        %2389 = vmatprep.subr.mxu0 %v2035
        %2390 = vmatpush1.msra.mxu0 %v2034
        %2391 = vmatprep.subr.mxu0 %v2037
        %2392 = vmatpush1.msra.mxu0 %v2036
        %2393 = vmatprep.subr.mxu0 %v2039
        %2394 = vmatpush1.msra.mxu0 %v2038
        %2395 = vmatprep.subr.mxu0 %v2041
        %2396 = vmatpush1.msra.mxu0 %v2040
        %2397 = vmatprep.mubr.f32.mxu0 %v2324
        %2398 = vmatmul.mubr.f32.gmra.mrb[0].mxu0 %v2320
        %v2399 = vpop.f32.mrb[0].mxu0
        %v2400 = vadd.f32 %v2312, %v2399
        %v2401 = vpop.f32.mrb[0].mxu0
        %v2402 = vadd.f32 %v2314, %v2401
        %2403 = vdwg.mxu0
        %2404 = vmatprep.subr.mxu0 %v2043
        %2405 = vmatpush1.msra.mxu0 %v2042
        %2406 = vmatprep.subr.mxu0 %v2045
        %2407 = vmatpush1.msra.mxu0 %v2044
        %2408 = vmatprep.subr.mxu0 %v2047
        %2409 = vmatpush1.msra.mxu0 %v2046
        %2410 = vmatprep.subr.mxu0 %v2049
        %2411 = vmatpush1.msra.mxu0 %v2048
        %2412 = vmatprep.subr.mxu0 %v2051
        %2413 = vmatpush1.msra.mxu0 %v2050
        %2414 = vmatprep.subr.mxu0 %v2053
        %2415 = vmatpush1.msra.mxu0 %v2052
        %2416 = vmatprep.subr.mxu0 %v2055
        %2417 = vmatpush1.msra.mxu0 %v2054
        %2418 = vmatprep.subr.mxu0 %v2057
        %2419 = vmatpush1.msra.mxu0 %v2056
        %2420 = vmatprep.subr.mxu0 %v2059
        %2421 = vmatpush1.msra.mxu0 %v2058
        %2422 = vmatprep.subr.mxu0 %v2061
        %2423 = vmatpush1.msra.mxu0 %v2060
        %2424 = vmatprep.subr.mxu0 %v2063
        %2425 = vmatpush1.msra.mxu0 %v2062
        %2426 = vmatprep.subr.mxu0 %v2065
        %2427 = vmatpush1.msra.mxu0 %v2064
        %2428 = vmatprep.subr.mxu0 0.0
        %2429 = vmatpush1.msra.mxu0 0.0
        %2430 = vmatprep.subr.mxu0 0.0
        %2431 = vmatpush1.msra.mxu0 0.0
        %2432 = vmatprep.subr.mxu0 0.0
        %2433 = vmatpush1.msra.mxu0 0.0
        %2434 = vmatprep.subr.mxu0 0.0
        %2435 = vmatpush1.msra.mxu0 0.0
        %2436 = vmatprep.subr.mxu0 0.0
        %2437 = vmatpush1.msra.mxu0 0.0
        %2438 = vmatprep.subr.mxu0 0.0
        %2439 = vmatpush1.msra.mxu0 0.0
        %2440 = vmatprep.subr.mxu0 0.0
        %2441 = vmatpush1.msra.mxu0 0.0
        %2442 = vmatprep.subr.mxu0 0.0
        %2443 = vmatpush1.msra.mxu0 0.0
        %2444 = vmatprep.subr.mxu0 0.0
        %2445 = vmatpush1.msra.mxu0 0.0
        %2446 = vmatprep.subr.mxu0 0.0
        %2447 = vmatpush1.msra.mxu0 0.0
        %2448 = vmatprep.subr.mxu0 0.0
        %2449 = vmatpush1.msra.mxu0 0.0
        %2450 = vmatprep.subr.mxu0 0.0
        %2451 = vmatpush1.msra.mxu0 0.0
        %2452 = vmatprep.subr.mxu0 0.0
        %2453 = vmatpush1.msra.mxu0 0.0
        %2454 = vmatprep.subr.mxu0 0.0
        %2455 = vmatpush1.msra.mxu0 0.0
        %2456 = vmatprep.subr.mxu0 0.0
        %2457 = vmatpush1.msra.mxu0 0.0
        %2458 = vmatprep.subr.mxu0 0.0
        %2459 = vmatpush1.msra.mxu0 0.0
        %2460 = vmatprep.subr.mxu0 0.0
        %2461 = vmatpush1.msra.mxu0 0.0
        %2462 = vmatprep.subr.mxu0 0.0
        %2463 = vmatpush1.msra.mxu0 0.0
        %2464 = vmatprep.subr.mxu0 0.0
        %2465 = vmatpush1.msra.mxu0 0.0
        %2466 = vmatprep.subr.mxu0 0.0
        %2467 = vmatpush1.msra.mxu0 0.0
        %2468 = vmatprep.mubr.f32.mxu0 0.0
        %2469 = vmatmul.mubr.f32.gmra.mrb[0].mxu0 %v2331
        %v2470 = vpop.f32.mrb[0].mxu0
        %v2471 = vadd.f32 %v2400, %v2470
        %v2472 = vpop.f32.mrb[0].mxu0
        %v2473 = vadd.f32 %v2402, %v2472
        %2474 = vdwg.mxu0
        %s2475 = scalar_lea.vmem [#allocation2], 2
        %v2476 = vld [vmem:[%s2475] ss:$8 sm:$0x7]
        %s2477 = scalar_lea.vmem %s3, 1408
        %v2478 = vld [vmem:[%s2477] sm:$0xff]
        %v2479 = vld [vmem:[%s2477 + $0x8] sm:$0xff]
        %v2480 = vld [vmem:[%s2477 + $0x10] sm:$0xff]
        %v2481 = vld [vmem:[%s2477 + $0x18] sm:$0xff]
        %v2482 = vld [vmem:[%s2477 + $0x20] sm:$0xff]
        %v2483 = vld [vmem:[%s2477 + $0x28] sm:$0xff]
        %v2484 = vld [vmem:[%s2477 + $0x30] sm:$0xff]
        %v2485 = vld [vmem:[%s2477 + $0x38] sm:$0xff]
        %v2486 = vld [vmem:[%s2477 + $0x40] sm:$0xff]
        %v2487 = vld [vmem:[%s2477 + $0x48] sm:$0xff]
        %v2488 = vld [vmem:[%s2477 + $0x50] sm:$0xff]
        %v2489 = vld [vmem:[%s2477 + $0x58] sm:$0xff]
        %v2490 = vld [vmem:[%s2477 + $0x60] sm:$0xff]
        %v2491 = vld [vmem:[%s2477 + $0x68] sm:$0xff]
        %v2492 = vld [vmem:[%s2477 + $0x70] sm:$0xff]
        %v2493 = vld [vmem:[%s2477 + $0x78] sm:$0xff]
        %v2494 = vld [vmem:[%s2477 + $0x80] sm:$0xff]
        %v2495 = vld [vmem:[%s2477 + $0x88] sm:$0xff]
        %v2496 = vld [vmem:[%s2477 + $0x90] sm:$0xff]
        %v2497 = vld [vmem:[%s2477 + $0x98] sm:$0xff]
        %v2498 = vld [vmem:[%s2477 + $0xa0] sm:$0xff]
        %v2499 = vld [vmem:[%s2477 + $0xa8] sm:$0xff]
        %v2500 = vld [vmem:[%s2477 + $0xb0] sm:$0xff]
        %v2501 = vld [vmem:[%s2477 + $0xb8] sm:$0xff]
        %v2502 = vld [vmem:[%s2477 + $0xc0] sm:$0xff]
        %v2503 = vld [vmem:[%s2477 + $0xc8] sm:$0xff]
        %v2504 = vld [vmem:[%s2477 + $0xd0] sm:$0xff]
        %v2505 = vld [vmem:[%s2477 + $0xd8] sm:$0xff]
        %v2506 = vld [vmem:[%s2477 + $0xe0] sm:$0xff]
        %v2507 = vld [vmem:[%s2477 + $0xe8] sm:$0xff]
        %v2508 = vld [vmem:[%s2477 + $0xf0] sm:$0xff]
        %v2509 = vld [vmem:[%s2477 + $0xf8] sm:$0xff]
        %v2510 = vld [vmem:[%s2477 + $0x100] sm:$0xff]
        %v2511 = vld [vmem:[%s2477 + $0x108] sm:$0xff]
        %v2512 = vld [vmem:[%s2477 + $0x110] sm:$0xff]
        %v2513 = vld [vmem:[%s2477 + $0x118] sm:$0xff]
        %v2514 = vld [vmem:[%s2477 + $0x120] sm:$0xff]
        %v2515 = vld [vmem:[%s2477 + $0x128] sm:$0xff]
        %v2516 = vld [vmem:[%s2477 + $0x130] sm:$0xff]
        %v2517 = vld [vmem:[%s2477 + $0x138] sm:$0xff]
        %v2518 = vld [vmem:[%s2477 + $0x140] sm:$0xff]
        %v2519 = vld [vmem:[%s2477 + $0x148] sm:$0xff]
        %v2520 = vld [vmem:[%s2477 + $0x150] sm:$0xff]
        %v2521 = vld [vmem:[%s2477 + $0x158] sm:$0xff]
        %v2522 = vld [vmem:[%s2477 + $0x160] sm:$0xff]
        %v2523 = vld [vmem:[%s2477 + $0x168] sm:$0xff]
        %v2524 = vld [vmem:[%s2477 + $0x170] sm:$0xff]
        %v2525 = vld [vmem:[%s2477 + $0x178] sm:$0xff]
        %v2526 = vld [vmem:[%s2477 + $0x180] sm:$0xff]
        %v2527 = vld [vmem:[%s2477 + $0x188] sm:$0xff]
        %v2528 = vld [vmem:[%s2477 + $0x190] sm:$0xff]
        %v2529 = vld [vmem:[%s2477 + $0x198] sm:$0xff]
        %v2530 = vld [vmem:[%s2477 + $0x1a0] sm:$0xff]
        %v2531 = vld [vmem:[%s2477 + $0x1a8] sm:$0xff]
        %v2532 = vld [vmem:[%s2477 + $0x1b0] sm:$0xff]
        %v2533 = vld [vmem:[%s2477 + $0x1b8] sm:$0xff]
        %v2534 = vld [vmem:[%s2477 + $0x1c0] sm:$0xff]
        %v2535 = vld [vmem:[%s2477 + $0x1c8] sm:$0xff]
        %v2536 = vld [vmem:[%s2477 + $0x1d0] sm:$0xff]
        %v2537 = vld [vmem:[%s2477 + $0x1d8] sm:$0xff]
        %v2538 = vld [vmem:[%s2477 + $0x1e0] sm:$0xff]
        %v2539 = vld [vmem:[%s2477 + $0x1e8] sm:$0xff]
        %v2540 = vld [vmem:[%s2477 + $0x1f0] sm:$0xff]
        %v2541 = vld [vmem:[%s2477 + $0x1f8] sm:$0xff]
        %v2542 = vld [vmem:[%s2477 + $0x200] sm:$0xff]
        %v2543 = vld [vmem:[%s2477 + $0x208] sm:$0xff]
        %v2544 = vld [vmem:[%s2477 + $0x210] sm:$0xff]
        %v2545 = vld [vmem:[%s2477 + $0x218] sm:$0xff]
        %v2546 = vld [vmem:[%s2477 + $0x220] sm:$0xff]
        %v2547 = vld [vmem:[%s2477 + $0x228] sm:$0xff]
        %v2548 = vld [vmem:[%s2477 + $0x230] sm:$0xff]
        %v2549 = vld [vmem:[%s2477 + $0x238] sm:$0xff]
        %v2550 = vld [vmem:[%s2477 + $0x240] sm:$0xff]
        %v2551 = vld [vmem:[%s2477 + $0x248] sm:$0xff]
        %v2552 = vld [vmem:[%s2477 + $0x250] sm:$0xff]
        %v2553 = vld [vmem:[%s2477 + $0x258] sm:$0xff]
        %v2554 = vld [vmem:[%s2477 + $0x260] sm:$0xff]
        %v2555 = vld [vmem:[%s2477 + $0x268] sm:$0xff]
        %v2556 = vld [vmem:[%s2477 + $0x270] sm:$0xff]
        %v2557 = vld [vmem:[%s2477 + $0x278] sm:$0xff]
        %v2558 = vld [vmem:[%s2477 + $0x280] sm:$0xff]
        %v2559 = vld [vmem:[%s2477 + $0x288] sm:$0xff]
        %v2560 = vld [vmem:[%s2477 + $0x290] sm:$0xff]
        %v2561 = vld [vmem:[%s2477 + $0x298] sm:$0xff]
        %v2562 = vld [vmem:[%s2477 + $0x2a0] sm:$0xff]
        %v2563 = vld [vmem:[%s2477 + $0x2a8] sm:$0xff]
        %v2564 = vld [vmem:[%s2477 + $0x2b0] sm:$0xff]
        %v2565 = vld [vmem:[%s2477 + $0x2b8] sm:$0xff]
        %v2567 = vlaneseq
        %v2568 = vshrl.u32 %v2567, 7
        %v2569 = vsub.s32 0, %v2568
        %v2570 = vrot.slane %v2476, %v2569
        %v2571 = vlaneseq
        %v2572 = vshrl.u32 %v2571, 7
        %v2573 = vsub.s32 1, %v2572
        %v2574 = vrot.slane %v2476, %v2573
        %v2575 = vlaneseq
        %v2576 = vshrl.u32 %v2575, 7
        %v2577 = vsub.s32 2, %v2576
        %v2578 = vrot.slane %v2476, %v2577
        %v2581 = vsel %vm1971, %v2578, 0
        %2583 = vmatprep.subr.mxu0 %v2479
        %2584 = vmatpush1.msra.mxu0 %v2478
        %2585 = vmatprep.subr.mxu0 %v2481
        %2586 = vmatpush1.msra.mxu0 %v2480
        %2587 = vmatprep.subr.mxu0 %v2483
        %2588 = vmatpush1.msra.mxu0 %v2482
        %2589 = vmatprep.subr.mxu0 %v2485
        %2590 = vmatpush1.msra.mxu0 %v2484
        %2591 = vmatprep.subr.mxu0 %v2487
        %2592 = vmatpush1.msra.mxu0 %v2486
        %2593 = vmatprep.subr.mxu0 %v2489
        %2594 = vmatpush1.msra.mxu0 %v2488
        %2595 = vmatprep.subr.mxu0 %v2491
        %2596 = vmatpush1.msra.mxu0 %v2490
        %2597 = vmatprep.subr.mxu0 %v2493
        %2598 = vmatpush1.msra.mxu0 %v2492
        %2599 = vmatprep.subr.mxu0 %v2495
        %2600 = vmatpush1.msra.mxu0 %v2494
        %2601 = vmatprep.subr.mxu0 %v2497
        %2602 = vmatpush1.msra.mxu0 %v2496
        %2603 = vmatprep.subr.mxu0 %v2499
        %2604 = vmatpush1.msra.mxu0 %v2498
        %2605 = vmatprep.subr.mxu0 %v2501
        %2606 = vmatpush1.msra.mxu0 %v2500
        %2607 = vmatprep.subr.mxu0 %v2503
        %2608 = vmatpush1.msra.mxu0 %v2502
        %2609 = vmatprep.subr.mxu0 %v2505
        %2610 = vmatpush1.msra.mxu0 %v2504
        %2611 = vmatprep.subr.mxu0 %v2507
        %2612 = vmatpush1.msra.mxu0 %v2506
        %2613 = vmatprep.subr.mxu0 %v2509
        %2614 = vmatpush1.msra.mxu0 %v2508
        %2615 = vmatprep.subr.mxu0 %v2511
        %2616 = vmatpush1.msra.mxu0 %v2510
        %2617 = vmatprep.subr.mxu0 %v2513
        %2618 = vmatpush1.msra.mxu0 %v2512
        %2619 = vmatprep.subr.mxu0 %v2515
        %2620 = vmatpush1.msra.mxu0 %v2514
        %2621 = vmatprep.subr.mxu0 %v2517
        %2622 = vmatpush1.msra.mxu0 %v2516
        %2623 = vmatprep.subr.mxu0 %v2519
        %2624 = vmatpush1.msra.mxu0 %v2518
        %2625 = vmatprep.subr.mxu0 %v2521
        %2626 = vmatpush1.msra.mxu0 %v2520
        %2627 = vmatprep.subr.mxu0 %v2523
        %2628 = vmatpush1.msra.mxu0 %v2522
        %2629 = vmatprep.subr.mxu0 %v2525
        %2630 = vmatpush1.msra.mxu0 %v2524
        %2631 = vmatprep.subr.mxu0 %v2527
        %2632 = vmatpush1.msra.mxu0 %v2526
        %2633 = vmatprep.subr.mxu0 %v2529
        %2634 = vmatpush1.msra.mxu0 %v2528
        %2635 = vmatprep.subr.mxu0 %v2531
        %2636 = vmatpush1.msra.mxu0 %v2530
        %2637 = vmatprep.subr.mxu0 %v2533
        %2638 = vmatpush1.msra.mxu0 %v2532
        %2639 = vmatprep.subr.mxu0 %v2535
        %2640 = vmatpush1.msra.mxu0 %v2534
        %2641 = vmatprep.subr.mxu0 %v2537
        %2642 = vmatpush1.msra.mxu0 %v2536
        %2643 = vmatprep.subr.mxu0 %v2539
        %2644 = vmatpush1.msra.mxu0 %v2538
        %2645 = vmatprep.subr.mxu0 %v2541
        %2646 = vmatpush1.msra.mxu0 %v2540
        %2647 = vmatprep.mubr.f32.mxu0 %v2574
        %2648 = vmatmul.mubr.f32.gmra.mrb[0].mxu0 %v2570
        %v2649 = vpop.f32.mrb[0].mxu0
        %v2650 = vadd.f32 0.0, %v2649
        %v2651 = vpop.f32.mrb[0].mxu0
        %v2652 = vadd.f32 0.0, %v2651
        %2653 = vdwg.mxu0
        %2654 = vmatprep.subr.mxu0 %v2543
        %2655 = vmatpush1.msra.mxu0 %v2542
        %2656 = vmatprep.subr.mxu0 %v2545
        %2657 = vmatpush1.msra.mxu0 %v2544
        %2658 = vmatprep.subr.mxu0 %v2547
        %2659 = vmatpush1.msra.mxu0 %v2546
        %2660 = vmatprep.subr.mxu0 %v2549
        %2661 = vmatpush1.msra.mxu0 %v2548
        %2662 = vmatprep.subr.mxu0 %v2551
        %2663 = vmatpush1.msra.mxu0 %v2550
        %2664 = vmatprep.subr.mxu0 %v2553
        %2665 = vmatpush1.msra.mxu0 %v2552
        %2666 = vmatprep.subr.mxu0 %v2555
        %2667 = vmatpush1.msra.mxu0 %v2554
        %2668 = vmatprep.subr.mxu0 %v2557
        %2669 = vmatpush1.msra.mxu0 %v2556
        %2670 = vmatprep.subr.mxu0 %v2559
        %2671 = vmatpush1.msra.mxu0 %v2558
        %2672 = vmatprep.subr.mxu0 %v2561
        %2673 = vmatpush1.msra.mxu0 %v2560
        %2674 = vmatprep.subr.mxu0 %v2563
        %2675 = vmatpush1.msra.mxu0 %v2562
        %2676 = vmatprep.subr.mxu0 %v2565
        %2677 = vmatpush1.msra.mxu0 %v2564
        %2678 = vmatprep.subr.mxu0 0.0
        %2679 = vmatpush1.msra.mxu0 0.0
        %2680 = vmatprep.subr.mxu0 0.0
        %2681 = vmatpush1.msra.mxu0 0.0
        %2682 = vmatprep.subr.mxu0 0.0
        %2683 = vmatpush1.msra.mxu0 0.0
        %2684 = vmatprep.subr.mxu0 0.0
        %2685 = vmatpush1.msra.mxu0 0.0
        %2686 = vmatprep.subr.mxu0 0.0
        %2687 = vmatpush1.msra.mxu0 0.0
        %2688 = vmatprep.subr.mxu0 0.0
        %2689 = vmatpush1.msra.mxu0 0.0
        %2690 = vmatprep.subr.mxu0 0.0
        %2691 = vmatpush1.msra.mxu0 0.0
        %2692 = vmatprep.subr.mxu0 0.0
        %2693 = vmatpush1.msra.mxu0 0.0
        %2694 = vmatprep.subr.mxu0 0.0
        %2695 = vmatpush1.msra.mxu0 0.0
        %2696 = vmatprep.subr.mxu0 0.0
        %2697 = vmatpush1.msra.mxu0 0.0
        %2698 = vmatprep.subr.mxu0 0.0
        %2699 = vmatpush1.msra.mxu0 0.0
        %2700 = vmatprep.subr.mxu0 0.0
        %2701 = vmatpush1.msra.mxu0 0.0
        %2702 = vmatprep.subr.mxu0 0.0
        %2703 = vmatpush1.msra.mxu0 0.0
        %2704 = vmatprep.subr.mxu0 0.0
        %2705 = vmatpush1.msra.mxu0 0.0
        %2706 = vmatprep.subr.mxu0 0.0
        %2707 = vmatpush1.msra.mxu0 0.0
        %2708 = vmatprep.subr.mxu0 0.0
        %2709 = vmatpush1.msra.mxu0 0.0
        %2710 = vmatprep.subr.mxu0 0.0
        %2711 = vmatpush1.msra.mxu0 0.0
        %2712 = vmatprep.subr.mxu0 0.0
        %2713 = vmatpush1.msra.mxu0 0.0
        %2714 = vmatprep.subr.mxu0 0.0
        %2715 = vmatpush1.msra.mxu0 0.0
        %2716 = vmatprep.subr.mxu0 0.0
        %2717 = vmatpush1.msra.mxu0 0.0
        %2718 = vmatprep.mubr.f32.mxu0 0.0
        %2719 = vmatmul.mubr.f32.gmra.mrb[0].mxu0 %v2581
        %v2720 = vpop.f32.mrb[0].mxu0
        %v2721 = vadd.f32 %v2650, %v2720
        %v2722 = vpop.f32.mrb[0].mxu0
        %v2723 = vadd.f32 %v2652, %v2722
        %2724 = vdwg.mxu0
        %v2725 = vadd.f32 %v2471, %v2721
        %v2726 = vadd.f32 %v2473, %v2723
        %s2727 = scalar_lea.vmem [#allocation2], 3
        %v2728 = vld [vmem:[%s2727] ss:$8 sm:$0x7]
        %s2729 = scalar_lea.vmem %s3, 2112
        %v2730 = vld [vmem:[%s2729] sm:$0xff]
        %v2731 = vld [vmem:[%s2729 + $0x8] sm:$0xff]
        %v2732 = vld [vmem:[%s2729 + $0x10] sm:$0xff]
        %v2733 = vld [vmem:[%s2729 + $0x18] sm:$0xff]
        %v2734 = vld [vmem:[%s2729 + $0x20] sm:$0xff]
        %v2735 = vld [vmem:[%s2729 + $0x28] sm:$0xff]
        %v2736 = vld [vmem:[%s2729 + $0x30] sm:$0xff]
        %v2737 = vld [vmem:[%s2729 + $0x38] sm:$0xff]
        %v2738 = vld [vmem:[%s2729 + $0x40] sm:$0xff]
        %v2739 = vld [vmem:[%s2729 + $0x48] sm:$0xff]
        %v2740 = vld [vmem:[%s2729 + $0x50] sm:$0xff]
        %v2741 = vld [vmem:[%s2729 + $0x58] sm:$0xff]
        %v2742 = vld [vmem:[%s2729 + $0x60] sm:$0xff]
        %v2743 = vld [vmem:[%s2729 + $0x68] sm:$0xff]
        %v2744 = vld [vmem:[%s2729 + $0x70] sm:$0xff]
        %v2745 = vld [vmem:[%s2729 + $0x78] sm:$0xff]
        %v2746 = vld [vmem:[%s2729 + $0x80] sm:$0xff]
        %v2747 = vld [vmem:[%s2729 + $0x88] sm:$0xff]
        %v2748 = vld [vmem:[%s2729 + $0x90] sm:$0xff]
        %v2749 = vld [vmem:[%s2729 + $0x98] sm:$0xff]
        %v2750 = vld [vmem:[%s2729 + $0xa0] sm:$0xff]
        %v2751 = vld [vmem:[%s2729 + $0xa8] sm:$0xff]
        %v2752 = vld [vmem:[%s2729 + $0xb0] sm:$0xff]
        %v2753 = vld [vmem:[%s2729 + $0xb8] sm:$0xff]
        %v2754 = vld [vmem:[%s2729 + $0xc0] sm:$0xff]
        %v2755 = vld [vmem:[%s2729 + $0xc8] sm:$0xff]
        %v2756 = vld [vmem:[%s2729 + $0xd0] sm:$0xff]
        %v2757 = vld [vmem:[%s2729 + $0xd8] sm:$0xff]
        %v2758 = vld [vmem:[%s2729 + $0xe0] sm:$0xff]
        %v2759 = vld [vmem:[%s2729 + $0xe8] sm:$0xff]
        %v2760 = vld [vmem:[%s2729 + $0xf0] sm:$0xff]
        %v2761 = vld [vmem:[%s2729 + $0xf8] sm:$0xff]
        %v2762 = vld [vmem:[%s2729 + $0x100] sm:$0xff]
        %v2763 = vld [vmem:[%s2729 + $0x108] sm:$0xff]
        %v2764 = vld [vmem:[%s2729 + $0x110] sm:$0xff]
        %v2765 = vld [vmem:[%s2729 + $0x118] sm:$0xff]
        %v2766 = vld [vmem:[%s2729 + $0x120] sm:$0xff]
        %v2767 = vld [vmem:[%s2729 + $0x128] sm:$0xff]
        %v2768 = vld [vmem:[%s2729 + $0x130] sm:$0xff]
        %v2769 = vld [vmem:[%s2729 + $0x138] sm:$0xff]
        %v2770 = vld [vmem:[%s2729 + $0x140] sm:$0xff]
        %v2771 = vld [vmem:[%s2729 + $0x148] sm:$0xff]
        %v2772 = vld [vmem:[%s2729 + $0x150] sm:$0xff]
        %v2773 = vld [vmem:[%s2729 + $0x158] sm:$0xff]
        %v2774 = vld [vmem:[%s2729 + $0x160] sm:$0xff]
        %v2775 = vld [vmem:[%s2729 + $0x168] sm:$0xff]
        %v2776 = vld [vmem:[%s2729 + $0x170] sm:$0xff]
        %v2777 = vld [vmem:[%s2729 + $0x178] sm:$0xff]
        %v2778 = vld [vmem:[%s2729 + $0x180] sm:$0xff]
        %v2779 = vld [vmem:[%s2729 + $0x188] sm:$0xff]
        %v2780 = vld [vmem:[%s2729 + $0x190] sm:$0xff]
        %v2781 = vld [vmem:[%s2729 + $0x198] sm:$0xff]
        %v2782 = vld [vmem:[%s2729 + $0x1a0] sm:$0xff]
        %v2783 = vld [vmem:[%s2729 + $0x1a8] sm:$0xff]
        %v2784 = vld [vmem:[%s2729 + $0x1b0] sm:$0xff]
        %v2785 = vld [vmem:[%s2729 + $0x1b8] sm:$0xff]
        %v2786 = vld [vmem:[%s2729 + $0x1c0] sm:$0xff]
        %v2787 = vld [vmem:[%s2729 + $0x1c8] sm:$0xff]
        %v2788 = vld [vmem:[%s2729 + $0x1d0] sm:$0xff]
        %v2789 = vld [vmem:[%s2729 + $0x1d8] sm:$0xff]
        %v2790 = vld [vmem:[%s2729 + $0x1e0] sm:$0xff]
        %v2791 = vld [vmem:[%s2729 + $0x1e8] sm:$0xff]
        %v2792 = vld [vmem:[%s2729 + $0x1f0] sm:$0xff]
        %v2793 = vld [vmem:[%s2729 + $0x1f8] sm:$0xff]
        %v2794 = vld [vmem:[%s2729 + $0x200] sm:$0xff]
        %v2795 = vld [vmem:[%s2729 + $0x208] sm:$0xff]
        %v2796 = vld [vmem:[%s2729 + $0x210] sm:$0xff]
        %v2797 = vld [vmem:[%s2729 + $0x218] sm:$0xff]
        %v2798 = vld [vmem:[%s2729 + $0x220] sm:$0xff]
        %v2799 = vld [vmem:[%s2729 + $0x228] sm:$0xff]
        %v2800 = vld [vmem:[%s2729 + $0x230] sm:$0xff]
        %v2801 = vld [vmem:[%s2729 + $0x238] sm:$0xff]
        %v2802 = vld [vmem:[%s2729 + $0x240] sm:$0xff]
        %v2803 = vld [vmem:[%s2729 + $0x248] sm:$0xff]
        %v2804 = vld [vmem:[%s2729 + $0x250] sm:$0xff]
        %v2805 = vld [vmem:[%s2729 + $0x258] sm:$0xff]
        %v2806 = vld [vmem:[%s2729 + $0x260] sm:$0xff]
        %v2807 = vld [vmem:[%s2729 + $0x268] sm:$0xff]
        %v2808 = vld [vmem:[%s2729 + $0x270] sm:$0xff]
        %v2809 = vld [vmem:[%s2729 + $0x278] sm:$0xff]
        %v2810 = vld [vmem:[%s2729 + $0x280] sm:$0xff]
        %v2811 = vld [vmem:[%s2729 + $0x288] sm:$0xff]
        %v2812 = vld [vmem:[%s2729 + $0x290] sm:$0xff]
        %v2813 = vld [vmem:[%s2729 + $0x298] sm:$0xff]
        %v2814 = vld [vmem:[%s2729 + $0x2a0] sm:$0xff]
        %v2815 = vld [vmem:[%s2729 + $0x2a8] sm:$0xff]
        %v2816 = vld [vmem:[%s2729 + $0x2b0] sm:$0xff]
        %v2817 = vld [vmem:[%s2729 + $0x2b8] sm:$0xff]
        %v2819 = vlaneseq
        %v2820 = vshrl.u32 %v2819, 7
        %v2821 = vsub.s32 0, %v2820
        %v2822 = vrot.slane %v2728, %v2821
        %v2823 = vlaneseq
        %v2824 = vshrl.u32 %v2823, 7
        %v2825 = vsub.s32 1, %v2824
        %v2826 = vrot.slane %v2728, %v2825
        %v2827 = vlaneseq
        %v2828 = vshrl.u32 %v2827, 7
        %v2829 = vsub.s32 2, %v2828
        %v2830 = vrot.slane %v2728, %v2829
        %v2833 = vsel %vm1971, %v2830, 0
        %2835 = vmatprep.subr.mxu0 %v2731
        %2836 = vmatpush1.msra.mxu0 %v2730
        %2837 = vmatprep.subr.mxu0 %v2733
        %2838 = vmatpush1.msra.mxu0 %v2732
        %2839 = vmatprep.subr.mxu0 %v2735
        %2840 = vmatpush1.msra.mxu0 %v2734
        %2841 = vmatprep.subr.mxu0 %v2737
        %2842 = vmatpush1.msra.mxu0 %v2736
        %2843 = vmatprep.subr.mxu0 %v2739
        %2844 = vmatpush1.msra.mxu0 %v2738
        %2845 = vmatprep.subr.mxu0 %v2741
        %2846 = vmatpush1.msra.mxu0 %v2740
        %2847 = vmatprep.subr.mxu0 %v2743
        %2848 = vmatpush1.msra.mxu0 %v2742
        %2849 = vmatprep.subr.mxu0 %v2745
        %2850 = vmatpush1.msra.mxu0 %v2744
        %2851 = vmatprep.subr.mxu0 %v2747
        %2852 = vmatpush1.msra.mxu0 %v2746
        %2853 = vmatprep.subr.mxu0 %v2749
        %2854 = vmatpush1.msra.mxu0 %v2748
        %2855 = vmatprep.subr.mxu0 %v2751
        %2856 = vmatpush1.msra.mxu0 %v2750
        %2857 = vmatprep.subr.mxu0 %v2753
        %2858 = vmatpush1.msra.mxu0 %v2752
        %2859 = vmatprep.subr.mxu0 %v2755
        %2860 = vmatpush1.msra.mxu0 %v2754
        %2861 = vmatprep.subr.mxu0 %v2757
        %2862 = vmatpush1.msra.mxu0 %v2756
        %2863 = vmatprep.subr.mxu0 %v2759
        %2864 = vmatpush1.msra.mxu0 %v2758
        %2865 = vmatprep.subr.mxu0 %v2761
        %2866 = vmatpush1.msra.mxu0 %v2760
        %2867 = vmatprep.subr.mxu0 %v2763
        %2868 = vmatpush1.msra.mxu0 %v2762
        %2869 = vmatprep.subr.mxu0 %v2765
        %2870 = vmatpush1.msra.mxu0 %v2764
        %2871 = vmatprep.subr.mxu0 %v2767
        %2872 = vmatpush1.msra.mxu0 %v2766
        %2873 = vmatprep.subr.mxu0 %v2769
        %2874 = vmatpush1.msra.mxu0 %v2768
        %2875 = vmatprep.subr.mxu0 %v2771
        %2876 = vmatpush1.msra.mxu0 %v2770
        %2877 = vmatprep.subr.mxu0 %v2773
        %2878 = vmatpush1.msra.mxu0 %v2772
        %2879 = vmatprep.subr.mxu0 %v2775
        %2880 = vmatpush1.msra.mxu0 %v2774
        %2881 = vmatprep.subr.mxu0 %v2777
        %2882 = vmatpush1.msra.mxu0 %v2776
        %2883 = vmatprep.subr.mxu0 %v2779
        %2884 = vmatpush1.msra.mxu0 %v2778
        %2885 = vmatprep.subr.mxu0 %v2781
        %2886 = vmatpush1.msra.mxu0 %v2780
        %2887 = vmatprep.subr.mxu0 %v2783
        %2888 = vmatpush1.msra.mxu0 %v2782
        %2889 = vmatprep.subr.mxu0 %v2785
        %2890 = vmatpush1.msra.mxu0 %v2784
        %2891 = vmatprep.subr.mxu0 %v2787
        %2892 = vmatpush1.msra.mxu0 %v2786
        %2893 = vmatprep.subr.mxu0 %v2789
        %2894 = vmatpush1.msra.mxu0 %v2788
        %2895 = vmatprep.subr.mxu0 %v2791
        %2896 = vmatpush1.msra.mxu0 %v2790
        %2897 = vmatprep.subr.mxu0 %v2793
        %2898 = vmatpush1.msra.mxu0 %v2792
        %2899 = vmatprep.mubr.f32.mxu0 %v2826
        %2900 = vmatmul.mubr.f32.gmra.mrb[0].mxu0 %v2822
        %v2901 = vpop.f32.mrb[0].mxu0
        %v2902 = vadd.f32 0.0, %v2901
        %v2903 = vpop.f32.mrb[0].mxu0
        %v2904 = vadd.f32 0.0, %v2903
        %2905 = vdwg.mxu0
        %2906 = vmatprep.subr.mxu0 %v2795
        %2907 = vmatpush1.msra.mxu0 %v2794
        %2908 = vmatprep.subr.mxu0 %v2797
        %2909 = vmatpush1.msra.mxu0 %v2796
        %2910 = vmatprep.subr.mxu0 %v2799
        %2911 = vmatpush1.msra.mxu0 %v2798
        %2912 = vmatprep.subr.mxu0 %v2801
        %2913 = vmatpush1.msra.mxu0 %v2800
        %2914 = vmatprep.subr.mxu0 %v2803
        %2915 = vmatpush1.msra.mxu0 %v2802
        %2916 = vmatprep.subr.mxu0 %v2805
        %2917 = vmatpush1.msra.mxu0 %v2804
        %2918 = vmatprep.subr.mxu0 %v2807
        %2919 = vmatpush1.msra.mxu0 %v2806
        %2920 = vmatprep.subr.mxu0 %v2809
        %2921 = vmatpush1.msra.mxu0 %v2808
        %2922 = vmatprep.subr.mxu0 %v2811
        %2923 = vmatpush1.msra.mxu0 %v2810
        %2924 = vmatprep.subr.mxu0 %v2813
        %2925 = vmatpush1.msra.mxu0 %v2812
        %2926 = vmatprep.subr.mxu0 %v2815
        %2927 = vmatpush1.msra.mxu0 %v2814
        %2928 = vmatprep.subr.mxu0 %v2817
        %2929 = vmatpush1.msra.mxu0 %v2816
        %2930 = vmatprep.subr.mxu0 0.0
        %2931 = vmatpush1.msra.mxu0 0.0
        %2932 = vmatprep.subr.mxu0 0.0
        %2933 = vmatpush1.msra.mxu0 0.0
        %2934 = vmatprep.subr.mxu0 0.0
        %2935 = vmatpush1.msra.mxu0 0.0
        %2936 = vmatprep.subr.mxu0 0.0
        %2937 = vmatpush1.msra.mxu0 0.0
        %2938 = vmatprep.subr.mxu0 0.0
        %2939 = vmatpush1.msra.mxu0 0.0
        %2940 = vmatprep.subr.mxu0 0.0
        %2941 = vmatpush1.msra.mxu0 0.0
        %2942 = vmatprep.subr.mxu0 0.0
        %2943 = vmatpush1.msra.mxu0 0.0
        %2944 = vmatprep.subr.mxu0 0.0
        %2945 = vmatpush1.msra.mxu0 0.0
        %2946 = vmatprep.subr.mxu0 0.0
        %2947 = vmatpush1.msra.mxu0 0.0
        %2948 = vmatprep.subr.mxu0 0.0
        %2949 = vmatpush1.msra.mxu0 0.0
        %2950 = vmatprep.subr.mxu0 0.0
        %2951 = vmatpush1.msra.mxu0 0.0
        %2952 = vmatprep.subr.mxu0 0.0
        %2953 = vmatpush1.msra.mxu0 0.0
        %2954 = vmatprep.subr.mxu0 0.0
        %2955 = vmatpush1.msra.mxu0 0.0
        %2956 = vmatprep.subr.mxu0 0.0
        %2957 = vmatpush1.msra.mxu0 0.0
        %2958 = vmatprep.subr.mxu0 0.0
        %2959 = vmatpush1.msra.mxu0 0.0
        %2960 = vmatprep.subr.mxu0 0.0
        %2961 = vmatpush1.msra.mxu0 0.0
        %2962 = vmatprep.subr.mxu0 0.0
        %2963 = vmatpush1.msra.mxu0 0.0
        %2964 = vmatprep.subr.mxu0 0.0
        %2965 = vmatpush1.msra.mxu0 0.0
        %2966 = vmatprep.subr.mxu0 0.0
        %2967 = vmatpush1.msra.mxu0 0.0
        %2968 = vmatprep.subr.mxu0 0.0
        %2969 = vmatpush1.msra.mxu0 0.0
        %2970 = vmatprep.mubr.f32.mxu0 0.0
        %2971 = vmatmul.mubr.f32.gmra.mrb[0].mxu0 %v2833
        %v2972 = vpop.f32.mrb[0].mxu0
        %v2973 = vadd.f32 %v2902, %v2972
        %v2974 = vpop.f32.mrb[0].mxu0
        %v2975 = vadd.f32 %v2904, %v2974
        %2976 = vdwg.mxu0
        %v2977 = vadd.f32 %v2725, %v2973
        %v2978 = vadd.f32 %v2726, %v2975
        %v2979 = vld [vmem:[%s4] sm:$0x3]
        %v2981 = vlaneseq
        %v2982 = vshrl.u32 %v2981, 7
        %v2983 = vsub.s32 0, %v2982
        %v2984 = vrot.slane %v2979, %v2983
        %v2985 = vlaneseq
        %v2986 = vshrl.u32 %v2985, 7
        %v2987 = vsub.s32 1, %v2986
        %v2988 = vrot.slane %v2979, %v2987
        %v2991 = vadd.f32 %v2977, %v2984
        %v2992 = vadd.f32 %v2978, %v2988
        %v2993 = vmax.f32 %v2991, 0.0
        %v2994 = vmax.f32 %v2992, 0.0
        %v2997 = vcombine.low %v2993, %v2994
        %v2999 = vunpack.c.l.s4 1966171168
        %v3000 = vunpack.c.0.s8 %v2999
        %v3001 = vlaneseq
        %v3002 = vshrl.u32 %v3001, 7
        %v3003 = vsub.s32 %v3000, %v3002
        %v3004 = vrot.slane %v2997, %v3003
        %v3006 = vunpack.c.l.s4 1966171168
        %v3007 = vunpack.c.0.s8 %v3006
        %v3008 = vlaneseq
        %v3009 = vshrl.u32 %v3008, 7
        %v3010 = vsub.s32 %v3007, %v3009
        %v3011 = vrot.slane %v3004, %v3010
        %v3013 = vlaneseq
        %vm3014 = vcmp.ge.s32.totalorder %v3013, 0
        %vm3015 = vcmp.lt.s32.totalorder %v3013, 256
        %vm3016 = vmand %vm3014, %vm3015
        %3017 = vst.msk [vmem:[#allocation3] ss:$4 sm:$0x3] %vm3016, %v3011
        %v3018 = vld [vmem:[%s2475] ss:$8 sm:$0x7]
        %v3019 = vld [vmem:[%s3] sm:$0xff]
        %v3020 = vld [vmem:[%s3 + $0x8] sm:$0xff]
        %v3021 = vld [vmem:[%s3 + $0x10] sm:$0xff]
        %v3022 = vld [vmem:[%s3 + $0x18] sm:$0xff]
        %v3023 = vld [vmem:[%s3 + $0x20] sm:$0xff]
        %v3024 = vld [vmem:[%s3 + $0x28] sm:$0xff]
        %v3025 = vld [vmem:[%s3 + $0x30] sm:$0xff]
        %v3026 = vld [vmem:[%s3 + $0x38] sm:$0xff]
        %v3027 = vld [vmem:[%s3 + $0x40] sm:$0xff]
        %v3028 = vld [vmem:[%s3 + $0x48] sm:$0xff]
        %v3029 = vld [vmem:[%s3 + $0x50] sm:$0xff]
        %v3030 = vld [vmem:[%s3 + $0x58] sm:$0xff]
        %v3031 = vld [vmem:[%s3 + $0x60] sm:$0xff]
        %v3032 = vld [vmem:[%s3 + $0x68] sm:$0xff]
        %v3033 = vld [vmem:[%s3 + $0x70] sm:$0xff]
        %v3034 = vld [vmem:[%s3 + $0x78] sm:$0xff]
        %v3035 = vld [vmem:[%s3 + $0x80] sm:$0xff]
        %v3036 = vld [vmem:[%s3 + $0x88] sm:$0xff]
        %v3037 = vld [vmem:[%s3 + $0x90] sm:$0xff]
        %v3038 = vld [vmem:[%s3 + $0x98] sm:$0xff]
        %v3039 = vld [vmem:[%s3 + $0xa0] sm:$0xff]
        %v3040 = vld [vmem:[%s3 + $0xa8] sm:$0xff]
        %v3041 = vld [vmem:[%s3 + $0xb0] sm:$0xff]
        %v3042 = vld [vmem:[%s3 + $0xb8] sm:$0xff]
        %v3043 = vld [vmem:[%s3 + $0xc0] sm:$0xff]
        %v3044 = vld [vmem:[%s3 + $0xc8] sm:$0xff]
        %v3045 = vld [vmem:[%s3 + $0xd0] sm:$0xff]
        %v3046 = vld [vmem:[%s3 + $0xd8] sm:$0xff]
        %v3047 = vld [vmem:[%s3 + $0xe0] sm:$0xff]
        %v3048 = vld [vmem:[%s3 + $0xe8] sm:$0xff]
        %v3049 = vld [vmem:[%s3 + $0xf0] sm:$0xff]
        %v3050 = vld [vmem:[%s3 + $0xf8] sm:$0xff]
        %v3051 = vld [vmem:[%s3 + $0x100] sm:$0xff]
        %v3052 = vld [vmem:[%s3 + $0x108] sm:$0xff]
        %v3053 = vld [vmem:[%s3 + $0x110] sm:$0xff]
        %v3054 = vld [vmem:[%s3 + $0x118] sm:$0xff]
        %v3055 = vld [vmem:[%s3 + $0x120] sm:$0xff]
        %v3056 = vld [vmem:[%s3 + $0x128] sm:$0xff]
        %v3057 = vld [vmem:[%s3 + $0x130] sm:$0xff]
        %v3058 = vld [vmem:[%s3 + $0x138] sm:$0xff]
        %v3059 = vld [vmem:[%s3 + $0x140] sm:$0xff]
        %v3060 = vld [vmem:[%s3 + $0x148] sm:$0xff]
        %v3061 = vld [vmem:[%s3 + $0x150] sm:$0xff]
        %v3062 = vld [vmem:[%s3 + $0x158] sm:$0xff]
        %v3063 = vld [vmem:[%s3 + $0x160] sm:$0xff]
        %v3064 = vld [vmem:[%s3 + $0x168] sm:$0xff]
        %v3065 = vld [vmem:[%s3 + $0x170] sm:$0xff]
        %v3066 = vld [vmem:[%s3 + $0x178] sm:$0xff]
        %v3067 = vld [vmem:[%s3 + $0x180] sm:$0xff]
        %v3068 = vld [vmem:[%s3 + $0x188] sm:$0xff]
        %v3069 = vld [vmem:[%s3 + $0x190] sm:$0xff]
        %v3070 = vld [vmem:[%s3 + $0x198] sm:$0xff]
        %v3071 = vld [vmem:[%s3 + $0x1a0] sm:$0xff]
        %v3072 = vld [vmem:[%s3 + $0x1a8] sm:$0xff]
        %v3073 = vld [vmem:[%s3 + $0x1b0] sm:$0xff]
        %v3074 = vld [vmem:[%s3 + $0x1b8] sm:$0xff]
        %v3075 = vld [vmem:[%s3 + $0x1c0] sm:$0xff]
        %v3076 = vld [vmem:[%s3 + $0x1c8] sm:$0xff]
        %v3077 = vld [vmem:[%s3 + $0x1d0] sm:$0xff]
        %v3078 = vld [vmem:[%s3 + $0x1d8] sm:$0xff]
        %v3079 = vld [vmem:[%s3 + $0x1e0] sm:$0xff]
        %v3080 = vld [vmem:[%s3 + $0x1e8] sm:$0xff]
        %v3081 = vld [vmem:[%s3 + $0x1f0] sm:$0xff]
        %v3082 = vld [vmem:[%s3 + $0x1f8] sm:$0xff]
        %v3083 = vld [vmem:[%s3 + $0x200] sm:$0xff]
        %v3084 = vld [vmem:[%s3 + $0x208] sm:$0xff]
        %v3085 = vld [vmem:[%s3 + $0x210] sm:$0xff]
        %v3086 = vld [vmem:[%s3 + $0x218] sm:$0xff]
        %v3087 = vld [vmem:[%s3 + $0x220] sm:$0xff]
        %v3088 = vld [vmem:[%s3 + $0x228] sm:$0xff]
        %v3089 = vld [vmem:[%s3 + $0x230] sm:$0xff]
        %v3090 = vld [vmem:[%s3 + $0x238] sm:$0xff]
        %v3091 = vld [vmem:[%s3 + $0x240] sm:$0xff]
        %v3092 = vld [vmem:[%s3 + $0x248] sm:$0xff]
        %v3093 = vld [vmem:[%s3 + $0x250] sm:$0xff]
        %v3094 = vld [vmem:[%s3 + $0x258] sm:$0xff]
        %v3095 = vld [vmem:[%s3 + $0x260] sm:$0xff]
        %v3096 = vld [vmem:[%s3 + $0x268] sm:$0xff]
        %v3097 = vld [vmem:[%s3 + $0x270] sm:$0xff]
        %v3098 = vld [vmem:[%s3 + $0x278] sm:$0xff]
        %v3099 = vld [vmem:[%s3 + $0x280] sm:$0xff]
        %v3100 = vld [vmem:[%s3 + $0x288] sm:$0xff]
        %v3101 = vld [vmem:[%s3 + $0x290] sm:$0xff]
        %v3102 = vld [vmem:[%s3 + $0x298] sm:$0xff]
        %v3103 = vld [vmem:[%s3 + $0x2a0] sm:$0xff]
        %v3104 = vld [vmem:[%s3 + $0x2a8] sm:$0xff]
        %v3105 = vld [vmem:[%s3 + $0x2b0] sm:$0xff]
        %v3106 = vld [vmem:[%s3 + $0x2b8] sm:$0xff]
        %v3107 = vld [vmem:[%s2727] ss:$8 sm:$0x7]
        %v3108 = vld [vmem:[%s2068] sm:$0xff]
        %v3109 = vld [vmem:[%s2068 + $0x8] sm:$0xff]
        %v3110 = vld [vmem:[%s2068 + $0x10] sm:$0xff]
        %v3111 = vld [vmem:[%s2068 + $0x18] sm:$0xff]
        %v3112 = vld [vmem:[%s2068 + $0x20] sm:$0xff]
        %v3113 = vld [vmem:[%s2068 + $0x28] sm:$0xff]
        %v3114 = vld [vmem:[%s2068 + $0x30] sm:$0xff]
        %v3115 = vld [vmem:[%s2068 + $0x38] sm:$0xff]
        %v3116 = vld [vmem:[%s2068 + $0x40] sm:$0xff]
        %v3117 = vld [vmem:[%s2068 + $0x48] sm:$0xff]
        %v3118 = vld [vmem:[%s2068 + $0x50] sm:$0xff]
        %v3119 = vld [vmem:[%s2068 + $0x58] sm:$0xff]
        %v3120 = vld [vmem:[%s2068 + $0x60] sm:$0xff]
        %v3121 = vld [vmem:[%s2068 + $0x68] sm:$0xff]
        %v3122 = vld [vmem:[%s2068 + $0x70] sm:$0xff]
        %v3123 = vld [vmem:[%s2068 + $0x78] sm:$0xff]
        %v3124 = vld [vmem:[%s2068 + $0x80] sm:$0xff]
        %v3125 = vld [vmem:[%s2068 + $0x88] sm:$0xff]
        %v3126 = vld [vmem:[%s2068 + $0x90] sm:$0xff]
        %v3127 = vld [vmem:[%s2068 + $0x98] sm:$0xff]
        %v3128 = vld [vmem:[%s2068 + $0xa0] sm:$0xff]
        %v3129 = vld [vmem:[%s2068 + $0xa8] sm:$0xff]
        %v3130 = vld [vmem:[%s2068 + $0xb0] sm:$0xff]
        %v3131 = vld [vmem:[%s2068 + $0xb8] sm:$0xff]
        %v3132 = vld [vmem:[%s2068 + $0xc0] sm:$0xff]
        %v3133 = vld [vmem:[%s2068 + $0xc8] sm:$0xff]
        %v3134 = vld [vmem:[%s2068 + $0xd0] sm:$0xff]
        %v3135 = vld [vmem:[%s2068 + $0xd8] sm:$0xff]
        %v3136 = vld [vmem:[%s2068 + $0xe0] sm:$0xff]
        %v3137 = vld [vmem:[%s2068 + $0xe8] sm:$0xff]
        %v3138 = vld [vmem:[%s2068 + $0xf0] sm:$0xff]
        %v3139 = vld [vmem:[%s2068 + $0xf8] sm:$0xff]
        %v3140 = vld [vmem:[%s2068 + $0x100] sm:$0xff]
        %v3141 = vld [vmem:[%s2068 + $0x108] sm:$0xff]
        %v3142 = vld [vmem:[%s2068 + $0x110] sm:$0xff]
        %v3143 = vld [vmem:[%s2068 + $0x118] sm:$0xff]
        %v3144 = vld [vmem:[%s2068 + $0x120] sm:$0xff]
        %v3145 = vld [vmem:[%s2068 + $0x128] sm:$0xff]
        %v3146 = vld [vmem:[%s2068 + $0x130] sm:$0xff]
        %v3147 = vld [vmem:[%s2068 + $0x138] sm:$0xff]
        %v3148 = vld [vmem:[%s2068 + $0x140] sm:$0xff]
        %v3149 = vld [vmem:[%s2068 + $0x148] sm:$0xff]
        %v3150 = vld [vmem:[%s2068 + $0x150] sm:$0xff]
        %v3151 = vld [vmem:[%s2068 + $0x158] sm:$0xff]
        %v3152 = vld [vmem:[%s2068 + $0x160] sm:$0xff]
        %v3153 = vld [vmem:[%s2068 + $0x168] sm:$0xff]
        %v3154 = vld [vmem:[%s2068 + $0x170] sm:$0xff]
        %v3155 = vld [vmem:[%s2068 + $0x178] sm:$0xff]
        %v3156 = vld [vmem:[%s2068 + $0x180] sm:$0xff]
        %v3157 = vld [vmem:[%s2068 + $0x188] sm:$0xff]
        %v3158 = vld [vmem:[%s2068 + $0x190] sm:$0xff]
        %v3159 = vld [vmem:[%s2068 + $0x198] sm:$0xff]
        %v3160 = vld [vmem:[%s2068 + $0x1a0] sm:$0xff]
        %v3161 = vld [vmem:[%s2068 + $0x1a8] sm:$0xff]
        %v3162 = vld [vmem:[%s2068 + $0x1b0] sm:$0xff]
        %v3163 = vld [vmem:[%s2068 + $0x1b8] sm:$0xff]
        %v3164 = vld [vmem:[%s2068 + $0x1c0] sm:$0xff]
        %v3165 = vld [vmem:[%s2068 + $0x1c8] sm:$0xff]
        %v3166 = vld [vmem:[%s2068 + $0x1d0] sm:$0xff]
        %v3167 = vld [vmem:[%s2068 + $0x1d8] sm:$0xff]
        %v3168 = vld [vmem:[%s2068 + $0x1e0] sm:$0xff]
        %v3169 = vld [vmem:[%s2068 + $0x1e8] sm:$0xff]
        %v3170 = vld [vmem:[%s2068 + $0x1f0] sm:$0xff]
        %v3171 = vld [vmem:[%s2068 + $0x1f8] sm:$0xff]
        %v3172 = vld [vmem:[%s2068 + $0x200] sm:$0xff]
        %v3173 = vld [vmem:[%s2068 + $0x208] sm:$0xff]
        %v3174 = vld [vmem:[%s2068 + $0x210] sm:$0xff]
        %v3175 = vld [vmem:[%s2068 + $0x218] sm:$0xff]
        %v3176 = vld [vmem:[%s2068 + $0x220] sm:$0xff]
        %v3177 = vld [vmem:[%s2068 + $0x228] sm:$0xff]
        %v3178 = vld [vmem:[%s2068 + $0x230] sm:$0xff]
        %v3179 = vld [vmem:[%s2068 + $0x238] sm:$0xff]
        %v3180 = vld [vmem:[%s2068 + $0x240] sm:$0xff]
        %v3181 = vld [vmem:[%s2068 + $0x248] sm:$0xff]
        %v3182 = vld [vmem:[%s2068 + $0x250] sm:$0xff]
        %v3183 = vld [vmem:[%s2068 + $0x258] sm:$0xff]
        %v3184 = vld [vmem:[%s2068 + $0x260] sm:$0xff]
        %v3185 = vld [vmem:[%s2068 + $0x268] sm:$0xff]
        %v3186 = vld [vmem:[%s2068 + $0x270] sm:$0xff]
        %v3187 = vld [vmem:[%s2068 + $0x278] sm:$0xff]
        %v3188 = vld [vmem:[%s2068 + $0x280] sm:$0xff]
        %v3189 = vld [vmem:[%s2068 + $0x288] sm:$0xff]
        %v3190 = vld [vmem:[%s2068 + $0x290] sm:$0xff]
        %v3191 = vld [vmem:[%s2068 + $0x298] sm:$0xff]
        %v3192 = vld [vmem:[%s2068 + $0x2a0] sm:$0xff]
        %v3193 = vld [vmem:[%s2068 + $0x2a8] sm:$0xff]
        %v3194 = vld [vmem:[%s2068 + $0x2b0] sm:$0xff]
        %v3195 = vld [vmem:[%s2068 + $0x2b8] sm:$0xff]
        %v3197 = vlaneseq
        %v3198 = vshrl.u32 %v3197, 7
        %v3199 = vsub.s32 0, %v3198
        %v3200 = vrot.slane %v3107, %v3199
        %v3201 = vlaneseq
        %v3202 = vshrl.u32 %v3201, 7
        %v3203 = vsub.s32 1, %v3202
        %v3204 = vrot.slane %v3107, %v3203
        %v3205 = vlaneseq
        %v3206 = vshrl.u32 %v3205, 7
        %v3207 = vsub.s32 2, %v3206
        %v3208 = vrot.slane %v3107, %v3207
        %v3211 = vsel %vm1971, %v3208, 0
        %3213 = vmatprep.subr.mxu0 %v3109
        %3214 = vmatpush1.msra.mxu0 %v3108
        %3215 = vmatprep.subr.mxu0 %v3111
        %3216 = vmatpush1.msra.mxu0 %v3110
        %3217 = vmatprep.subr.mxu0 %v3113
        %3218 = vmatpush1.msra.mxu0 %v3112
        %3219 = vmatprep.subr.mxu0 %v3115
        %3220 = vmatpush1.msra.mxu0 %v3114
        %3221 = vmatprep.subr.mxu0 %v3117
        %3222 = vmatpush1.msra.mxu0 %v3116
        %3223 = vmatprep.subr.mxu0 %v3119
        %3224 = vmatpush1.msra.mxu0 %v3118
        %3225 = vmatprep.subr.mxu0 %v3121
        %3226 = vmatpush1.msra.mxu0 %v3120
        %3227 = vmatprep.subr.mxu0 %v3123
        %3228 = vmatpush1.msra.mxu0 %v3122
        %3229 = vmatprep.subr.mxu0 %v3125
        %3230 = vmatpush1.msra.mxu0 %v3124
        %3231 = vmatprep.subr.mxu0 %v3127
        %3232 = vmatpush1.msra.mxu0 %v3126
        %3233 = vmatprep.subr.mxu0 %v3129
        %3234 = vmatpush1.msra.mxu0 %v3128
        %3235 = vmatprep.subr.mxu0 %v3131
        %3236 = vmatpush1.msra.mxu0 %v3130
        %3237 = vmatprep.subr.mxu0 %v3133
        %3238 = vmatpush1.msra.mxu0 %v3132
        %3239 = vmatprep.subr.mxu0 %v3135
        %3240 = vmatpush1.msra.mxu0 %v3134
        %3241 = vmatprep.subr.mxu0 %v3137
        %3242 = vmatpush1.msra.mxu0 %v3136
        %3243 = vmatprep.subr.mxu0 %v3139
        %3244 = vmatpush1.msra.mxu0 %v3138
        %3245 = vmatprep.subr.mxu0 %v3141
        %3246 = vmatpush1.msra.mxu0 %v3140
        %3247 = vmatprep.subr.mxu0 %v3143
        %3248 = vmatpush1.msra.mxu0 %v3142
        %3249 = vmatprep.subr.mxu0 %v3145
        %3250 = vmatpush1.msra.mxu0 %v3144
        %3251 = vmatprep.subr.mxu0 %v3147
        %3252 = vmatpush1.msra.mxu0 %v3146
        %3253 = vmatprep.subr.mxu0 %v3149
        %3254 = vmatpush1.msra.mxu0 %v3148
        %3255 = vmatprep.subr.mxu0 %v3151
        %3256 = vmatpush1.msra.mxu0 %v3150
        %3257 = vmatprep.subr.mxu0 %v3153
        %3258 = vmatpush1.msra.mxu0 %v3152
        %3259 = vmatprep.subr.mxu0 %v3155
        %3260 = vmatpush1.msra.mxu0 %v3154
        %3261 = vmatprep.subr.mxu0 %v3157
        %3262 = vmatpush1.msra.mxu0 %v3156
        %3263 = vmatprep.subr.mxu0 %v3159
        %3264 = vmatpush1.msra.mxu0 %v3158
        %3265 = vmatprep.subr.mxu0 %v3161
        %3266 = vmatpush1.msra.mxu0 %v3160
        %3267 = vmatprep.subr.mxu0 %v3163
        %3268 = vmatpush1.msra.mxu0 %v3162
        %3269 = vmatprep.subr.mxu0 %v3165
        %3270 = vmatpush1.msra.mxu0 %v3164
        %3271 = vmatprep.subr.mxu0 %v3167
        %3272 = vmatpush1.msra.mxu0 %v3166
        %3273 = vmatprep.subr.mxu0 %v3169
        %3274 = vmatpush1.msra.mxu0 %v3168
        %3275 = vmatprep.subr.mxu0 %v3171
        %3276 = vmatpush1.msra.mxu0 %v3170
        %3277 = vmatprep.mubr.f32.mxu0 %v3204
        %3278 = vmatmul.mubr.f32.gmra.mrb[0].mxu0 %v3200
        %v3279 = vpop.f32.mrb[0].mxu0
        %v3280 = vadd.f32 0.0, %v3279
        %v3281 = vpop.f32.mrb[0].mxu0
        %v3282 = vadd.f32 0.0, %v3281
        %3283 = vdwg.mxu0
        %3284 = vmatprep.subr.mxu0 %v3173
        %3285 = vmatpush1.msra.mxu0 %v3172
        %3286 = vmatprep.subr.mxu0 %v3175
        %3287 = vmatpush1.msra.mxu0 %v3174
        %3288 = vmatprep.subr.mxu0 %v3177
        %3289 = vmatpush1.msra.mxu0 %v3176
        %3290 = vmatprep.subr.mxu0 %v3179
        %3291 = vmatpush1.msra.mxu0 %v3178
        %3292 = vmatprep.subr.mxu0 %v3181
        %3293 = vmatpush1.msra.mxu0 %v3180
        %3294 = vmatprep.subr.mxu0 %v3183
        %3295 = vmatpush1.msra.mxu0 %v3182
        %3296 = vmatprep.subr.mxu0 %v3185
        %3297 = vmatpush1.msra.mxu0 %v3184
        %3298 = vmatprep.subr.mxu0 %v3187
        %3299 = vmatpush1.msra.mxu0 %v3186
        %3300 = vmatprep.subr.mxu0 %v3189
        %3301 = vmatpush1.msra.mxu0 %v3188
        %3302 = vmatprep.subr.mxu0 %v3191
        %3303 = vmatpush1.msra.mxu0 %v3190
        %3304 = vmatprep.subr.mxu0 %v3193
        %3305 = vmatpush1.msra.mxu0 %v3192
        %3306 = vmatprep.subr.mxu0 %v3195
        %3307 = vmatpush1.msra.mxu0 %v3194
        %3308 = vmatprep.subr.mxu0 0.0
        %3309 = vmatpush1.msra.mxu0 0.0
        %3310 = vmatprep.subr.mxu0 0.0
        %3311 = vmatpush1.msra.mxu0 0.0
        %3312 = vmatprep.subr.mxu0 0.0
        %3313 = vmatpush1.msra.mxu0 0.0
        %3314 = vmatprep.subr.mxu0 0.0
        %3315 = vmatpush1.msra.mxu0 0.0
        %3316 = vmatprep.subr.mxu0 0.0
        %3317 = vmatpush1.msra.mxu0 0.0
        %3318 = vmatprep.subr.mxu0 0.0
        %3319 = vmatpush1.msra.mxu0 0.0
        %3320 = vmatprep.subr.mxu0 0.0
        %3321 = vmatpush1.msra.mxu0 0.0
        %3322 = vmatprep.subr.mxu0 0.0
        %3323 = vmatpush1.msra.mxu0 0.0
        %3324 = vmatprep.subr.mxu0 0.0
        %3325 = vmatpush1.msra.mxu0 0.0
        %3326 = vmatprep.subr.mxu0 0.0
        %3327 = vmatpush1.msra.mxu0 0.0
        %3328 = vmatprep.subr.mxu0 0.0
        %3329 = vmatpush1.msra.mxu0 0.0
        %3330 = vmatprep.subr.mxu0 0.0
        %3331 = vmatpush1.msra.mxu0 0.0
        %3332 = vmatprep.subr.mxu0 0.0
        %3333 = vmatpush1.msra.mxu0 0.0
        %3334 = vmatprep.subr.mxu0 0.0
        %3335 = vmatpush1.msra.mxu0 0.0
        %3336 = vmatprep.subr.mxu0 0.0
        %3337 = vmatpush1.msra.mxu0 0.0
        %3338 = vmatprep.subr.mxu0 0.0
        %3339 = vmatpush1.msra.mxu0 0.0
        %3340 = vmatprep.subr.mxu0 0.0
        %3341 = vmatpush1.msra.mxu0 0.0
        %3342 = vmatprep.subr.mxu0 0.0
        %3343 = vmatpush1.msra.mxu0 0.0
        %3344 = vmatprep.subr.mxu0 0.0
        %3345 = vmatpush1.msra.mxu0 0.0
        %3346 = vmatprep.subr.mxu0 0.0
        %3347 = vmatpush1.msra.mxu0 0.0
        %3348 = vmatprep.mubr.f32.mxu0 0.0
        %3349 = vmatmul.mubr.f32.gmra.mrb[0].mxu0 %v3211
        %v3350 = vpop.f32.mrb[0].mxu0
        %v3351 = vadd.f32 %v3280, %v3350
        %v3352 = vpop.f32.mrb[0].mxu0
        %v3353 = vadd.f32 %v3282, %v3352
        %3354 = vdwg.mxu0
        %v3356 = vlaneseq
        %v3357 = vshrl.u32 %v3356, 7
        %v3358 = vsub.s32 0, %v3357
        %v3359 = vrot.slane %v3018, %v3358
        %v3360 = vlaneseq
        %v3361 = vshrl.u32 %v3360, 7
        %v3362 = vsub.s32 1, %v3361
        %v3363 = vrot.slane %v3018, %v3362
        %v3364 = vlaneseq
        %v3365 = vshrl.u32 %v3364, 7
        %v3366 = vsub.s32 2, %v3365
        %v3367 = vrot.slane %v3018, %v3366
        %v3370 = vsel %vm1971, %v3367, 0
        %3372 = vmatprep.subr.mxu0 %v3020
        %3373 = vmatpush1.msra.mxu0 %v3019
        %3374 = vmatprep.subr.mxu0 %v3022
        %3375 = vmatpush1.msra.mxu0 %v3021
        %3376 = vmatprep.subr.mxu0 %v3024
        %3377 = vmatpush1.msra.mxu0 %v3023
        %3378 = vmatprep.subr.mxu0 %v3026
        %3379 = vmatpush1.msra.mxu0 %v3025
        %3380 = vmatprep.subr.mxu0 %v3028
        %3381 = vmatpush1.msra.mxu0 %v3027
        %3382 = vmatprep.subr.mxu0 %v3030
        %3383 = vmatpush1.msra.mxu0 %v3029
        %3384 = vmatprep.subr.mxu0 %v3032
        %3385 = vmatpush1.msra.mxu0 %v3031
        %3386 = vmatprep.subr.mxu0 %v3034
        %3387 = vmatpush1.msra.mxu0 %v3033
        %3388 = vmatprep.subr.mxu0 %v3036
        %3389 = vmatpush1.msra.mxu0 %v3035
        %3390 = vmatprep.subr.mxu0 %v3038
        %3391 = vmatpush1.msra.mxu0 %v3037
        %3392 = vmatprep.subr.mxu0 %v3040
        %3393 = vmatpush1.msra.mxu0 %v3039
        %3394 = vmatprep.subr.mxu0 %v3042
        %3395 = vmatpush1.msra.mxu0 %v3041
        %3396 = vmatprep.subr.mxu0 %v3044
        %3397 = vmatpush1.msra.mxu0 %v3043
        %3398 = vmatprep.subr.mxu0 %v3046
        %3399 = vmatpush1.msra.mxu0 %v3045
        %3400 = vmatprep.subr.mxu0 %v3048
        %3401 = vmatpush1.msra.mxu0 %v3047
        %3402 = vmatprep.subr.mxu0 %v3050
        %3403 = vmatpush1.msra.mxu0 %v3049
        %3404 = vmatprep.subr.mxu0 %v3052
        %3405 = vmatpush1.msra.mxu0 %v3051
        %3406 = vmatprep.subr.mxu0 %v3054
        %3407 = vmatpush1.msra.mxu0 %v3053
        %3408 = vmatprep.subr.mxu0 %v3056
        %3409 = vmatpush1.msra.mxu0 %v3055
        %3410 = vmatprep.subr.mxu0 %v3058
        %3411 = vmatpush1.msra.mxu0 %v3057
        %3412 = vmatprep.subr.mxu0 %v3060
        %3413 = vmatpush1.msra.mxu0 %v3059
        %3414 = vmatprep.subr.mxu0 %v3062
        %3415 = vmatpush1.msra.mxu0 %v3061
        %3416 = vmatprep.subr.mxu0 %v3064
        %3417 = vmatpush1.msra.mxu0 %v3063
        %3418 = vmatprep.subr.mxu0 %v3066
        %3419 = vmatpush1.msra.mxu0 %v3065
        %3420 = vmatprep.subr.mxu0 %v3068
        %3421 = vmatpush1.msra.mxu0 %v3067
        %3422 = vmatprep.subr.mxu0 %v3070
        %3423 = vmatpush1.msra.mxu0 %v3069
        %3424 = vmatprep.subr.mxu0 %v3072
        %3425 = vmatpush1.msra.mxu0 %v3071
        %3426 = vmatprep.subr.mxu0 %v3074
        %3427 = vmatpush1.msra.mxu0 %v3073
        %3428 = vmatprep.subr.mxu0 %v3076
        %3429 = vmatpush1.msra.mxu0 %v3075
        %3430 = vmatprep.subr.mxu0 %v3078
        %3431 = vmatpush1.msra.mxu0 %v3077
        %3432 = vmatprep.subr.mxu0 %v3080
        %3433 = vmatpush1.msra.mxu0 %v3079
        %3434 = vmatprep.subr.mxu0 %v3082
        %3435 = vmatpush1.msra.mxu0 %v3081
        %3436 = vmatprep.mubr.f32.mxu0 %v3363
        %3437 = vmatmul.mubr.f32.gmra.mrb[0].mxu0 %v3359
        %v3438 = vpop.f32.mrb[0].mxu0
        %v3439 = vadd.f32 %v3351, %v3438
        %v3440 = vpop.f32.mrb[0].mxu0
        %v3441 = vadd.f32 %v3353, %v3440
        %3442 = vdwg.mxu0
        %3443 = vmatprep.subr.mxu0 %v3084
        %3444 = vmatpush1.msra.mxu0 %v3083
        %3445 = vmatprep.subr.mxu0 %v3086
        %3446 = vmatpush1.msra.mxu0 %v3085
        %3447 = vmatprep.subr.mxu0 %v3088
        %3448 = vmatpush1.msra.mxu0 %v3087
        %3449 = vmatprep.subr.mxu0 %v3090
        %3450 = vmatpush1.msra.mxu0 %v3089
        %3451 = vmatprep.subr.mxu0 %v3092
        %3452 = vmatpush1.msra.mxu0 %v3091
        %3453 = vmatprep.subr.mxu0 %v3094
        %3454 = vmatpush1.msra.mxu0 %v3093
        %3455 = vmatprep.subr.mxu0 %v3096
        %3456 = vmatpush1.msra.mxu0 %v3095
        %3457 = vmatprep.subr.mxu0 %v3098
        %3458 = vmatpush1.msra.mxu0 %v3097
        %3459 = vmatprep.subr.mxu0 %v3100
        %3460 = vmatpush1.msra.mxu0 %v3099
        %3461 = vmatprep.subr.mxu0 %v3102
        %3462 = vmatpush1.msra.mxu0 %v3101
        %3463 = vmatprep.subr.mxu0 %v3104
        %3464 = vmatpush1.msra.mxu0 %v3103
        %3465 = vmatprep.subr.mxu0 %v3106
        %3466 = vmatpush1.msra.mxu0 %v3105
        %3467 = vmatprep.subr.mxu0 0.0
        %3468 = vmatpush1.msra.mxu0 0.0
        %3469 = vmatprep.subr.mxu0 0.0
        %3470 = vmatpush1.msra.mxu0 0.0
        %3471 = vmatprep.subr.mxu0 0.0
        %3472 = vmatpush1.msra.mxu0 0.0
        %3473 = vmatprep.subr.mxu0 0.0
        %3474 = vmatpush1.msra.mxu0 0.0
        %3475 = vmatprep.subr.mxu0 0.0
        %3476 = vmatpush1.msra.mxu0 0.0
        %3477 = vmatprep.subr.mxu0 0.0
        %3478 = vmatpush1.msra.mxu0 0.0
        %3479 = vmatprep.subr.mxu0 0.0
        %3480 = vmatpush1.msra.mxu0 0.0
        %3481 = vmatprep.subr.mxu0 0.0
        %3482 = vmatpush1.msra.mxu0 0.0
        %3483 = vmatprep.subr.mxu0 0.0
        %3484 = vmatpush1.msra.mxu0 0.0
        %3485 = vmatprep.subr.mxu0 0.0
        %3486 = vmatpush1.msra.mxu0 0.0
        %3487 = vmatprep.subr.mxu0 0.0
        %3488 = vmatpush1.msra.mxu0 0.0
        %3489 = vmatprep.subr.mxu0 0.0
        %3490 = vmatpush1.msra.mxu0 0.0
        %3491 = vmatprep.subr.mxu0 0.0
        %3492 = vmatpush1.msra.mxu0 0.0
        %3493 = vmatprep.subr.mxu0 0.0
        %3494 = vmatpush1.msra.mxu0 0.0
        %3495 = vmatprep.subr.mxu0 0.0
        %3496 = vmatpush1.msra.mxu0 0.0
        %3497 = vmatprep.subr.mxu0 0.0
        %3498 = vmatpush1.msra.mxu0 0.0
        %3499 = vmatprep.subr.mxu0 0.0
        %3500 = vmatpush1.msra.mxu0 0.0
        %3501 = vmatprep.subr.mxu0 0.0
        %3502 = vmatpush1.msra.mxu0 0.0
        %3503 = vmatprep.subr.mxu0 0.0
        %3504 = vmatpush1.msra.mxu0 0.0
        %3505 = vmatprep.subr.mxu0 0.0
        %3506 = vmatpush1.msra.mxu0 0.0
        %3507 = vmatprep.mubr.f32.mxu0 0.0
        %3508 = vmatmul.mubr.f32.gmra.mrb[0].mxu0 %v3370
        %v3509 = vpop.f32.mrb[0].mxu0
        %v3510 = vadd.f32 %v3439, %v3509
        %v3511 = vpop.f32.mrb[0].mxu0
        %v3512 = vadd.f32 %v3441, %v3511
        %3513 = vdwg.mxu0
        %s3514 = scalar_lea.vmem [#allocation2], 4
        %v3515 = vld [vmem:[%s3514] ss:$8 sm:$0x7]
        %v3516 = vld [vmem:[%s2477] sm:$0xff]
        %v3517 = vld [vmem:[%s2477 + $0x8] sm:$0xff]
        %v3518 = vld [vmem:[%s2477 + $0x10] sm:$0xff]
        %v3519 = vld [vmem:[%s2477 + $0x18] sm:$0xff]
        %v3520 = vld [vmem:[%s2477 + $0x20] sm:$0xff]
        %v3521 = vld [vmem:[%s2477 + $0x28] sm:$0xff]
        %v3522 = vld [vmem:[%s2477 + $0x30] sm:$0xff]
        %v3523 = vld [vmem:[%s2477 + $0x38] sm:$0xff]
        %v3524 = vld [vmem:[%s2477 + $0x40] sm:$0xff]
        %v3525 = vld [vmem:[%s2477 + $0x48] sm:$0xff]
        %v3526 = vld [vmem:[%s2477 + $0x50] sm:$0xff]
        %v3527 = vld [vmem:[%s2477 + $0x58] sm:$0xff]
        %v3528 = vld [vmem:[%s2477 + $0x60] sm:$0xff]
        %v3529 = vld [vmem:[%s2477 + $0x68] sm:$0xff]
        %v3530 = vld [vmem:[%s2477 + $0x70] sm:$0xff]
        %v3531 = vld [vmem:[%s2477 + $0x78] sm:$0xff]
        %v3532 = vld [vmem:[%s2477 + $0x80] sm:$0xff]
        %v3533 = vld [vmem:[%s2477 + $0x88] sm:$0xff]
        %v3534 = vld [vmem:[%s2477 + $0x90] sm:$0xff]
        %v3535 = vld [vmem:[%s2477 + $0x98] sm:$0xff]
        %v3536 = vld [vmem:[%s2477 + $0xa0] sm:$0xff]
        %v3537 = vld [vmem:[%s2477 + $0xa8] sm:$0xff]
        %v3538 = vld [vmem:[%s2477 + $0xb0] sm:$0xff]
        %v3539 = vld [vmem:[%s2477 + $0xb8] sm:$0xff]
        %v3540 = vld [vmem:[%s2477 + $0xc0] sm:$0xff]
        %v3541 = vld [vmem:[%s2477 + $0xc8] sm:$0xff]
        %v3542 = vld [vmem:[%s2477 + $0xd0] sm:$0xff]
        %v3543 = vld [vmem:[%s2477 + $0xd8] sm:$0xff]
        %v3544 = vld [vmem:[%s2477 + $0xe0] sm:$0xff]
        %v3545 = vld [vmem:[%s2477 + $0xe8] sm:$0xff]
        %v3546 = vld [vmem:[%s2477 + $0xf0] sm:$0xff]
        %v3547 = vld [vmem:[%s2477 + $0xf8] sm:$0xff]
        %v3548 = vld [vmem:[%s2477 + $0x100] sm:$0xff]
        %v3549 = vld [vmem:[%s2477 + $0x108] sm:$0xff]
        %v3550 = vld [vmem:[%s2477 + $0x110] sm:$0xff]
        %v3551 = vld [vmem:[%s2477 + $0x118] sm:$0xff]
        %v3552 = vld [vmem:[%s2477 + $0x120] sm:$0xff]
        %v3553 = vld [vmem:[%s2477 + $0x128] sm:$0xff]
        %v3554 = vld [vmem:[%s2477 + $0x130] sm:$0xff]
        %v3555 = vld [vmem:[%s2477 + $0x138] sm:$0xff]
        %v3556 = vld [vmem:[%s2477 + $0x140] sm:$0xff]
        %v3557 = vld [vmem:[%s2477 + $0x148] sm:$0xff]
        %v3558 = vld [vmem:[%s2477 + $0x150] sm:$0xff]
        %v3559 = vld [vmem:[%s2477 + $0x158] sm:$0xff]
        %v3560 = vld [vmem:[%s2477 + $0x160] sm:$0xff]
        %v3561 = vld [vmem:[%s2477 + $0x168] sm:$0xff]
        %v3562 = vld [vmem:[%s2477 + $0x170] sm:$0xff]
        %v3563 = vld [vmem:[%s2477 + $0x178] sm:$0xff]
        %v3564 = vld [vmem:[%s2477 + $0x180] sm:$0xff]
        %v3565 = vld [vmem:[%s2477 + $0x188] sm:$0xff]
        %v3566 = vld [vmem:[%s2477 + $0x190] sm:$0xff]
        %v3567 = vld [vmem:[%s2477 + $0x198] sm:$0xff]
        %v3568 = vld [vmem:[%s2477 + $0x1a0] sm:$0xff]
        %v3569 = vld [vmem:[%s2477 + $0x1a8] sm:$0xff]
        %v3570 = vld [vmem:[%s2477 + $0x1b0] sm:$0xff]
        %v3571 = vld [vmem:[%s2477 + $0x1b8] sm:$0xff]
        %v3572 = vld [vmem:[%s2477 + $0x1c0] sm:$0xff]
        %v3573 = vld [vmem:[%s2477 + $0x1c8] sm:$0xff]
        %v3574 = vld [vmem:[%s2477 + $0x1d0] sm:$0xff]
        %v3575 = vld [vmem:[%s2477 + $0x1d8] sm:$0xff]
        %v3576 = vld [vmem:[%s2477 + $0x1e0] sm:$0xff]
        %v3577 = vld [vmem:[%s2477 + $0x1e8] sm:$0xff]
        %v3578 = vld [vmem:[%s2477 + $0x1f0] sm:$0xff]
        %v3579 = vld [vmem:[%s2477 + $0x1f8] sm:$0xff]
        %v3580 = vld [vmem:[%s2477 + $0x200] sm:$0xff]
        %v3581 = vld [vmem:[%s2477 + $0x208] sm:$0xff]
        %v3582 = vld [vmem:[%s2477 + $0x210] sm:$0xff]
        %v3583 = vld [vmem:[%s2477 + $0x218] sm:$0xff]
        %v3584 = vld [vmem:[%s2477 + $0x220] sm:$0xff]
        %v3585 = vld [vmem:[%s2477 + $0x228] sm:$0xff]
        %v3586 = vld [vmem:[%s2477 + $0x230] sm:$0xff]
        %v3587 = vld [vmem:[%s2477 + $0x238] sm:$0xff]
        %v3588 = vld [vmem:[%s2477 + $0x240] sm:$0xff]
        %v3589 = vld [vmem:[%s2477 + $0x248] sm:$0xff]
        %v3590 = vld [vmem:[%s2477 + $0x250] sm:$0xff]
        %v3591 = vld [vmem:[%s2477 + $0x258] sm:$0xff]
        %v3592 = vld [vmem:[%s2477 + $0x260] sm:$0xff]
        %v3593 = vld [vmem:[%s2477 + $0x268] sm:$0xff]
        %v3594 = vld [vmem:[%s2477 + $0x270] sm:$0xff]
        %v3595 = vld [vmem:[%s2477 + $0x278] sm:$0xff]
        %v3596 = vld [vmem:[%s2477 + $0x280] sm:$0xff]
        %v3597 = vld [vmem:[%s2477 + $0x288] sm:$0xff]
        %v3598 = vld [vmem:[%s2477 + $0x290] sm:$0xff]
        %v3599 = vld [vmem:[%s2477 + $0x298] sm:$0xff]
        %v3600 = vld [vmem:[%s2477 + $0x2a0] sm:$0xff]
        %v3601 = vld [vmem:[%s2477 + $0x2a8] sm:$0xff]
        %v3602 = vld [vmem:[%s2477 + $0x2b0] sm:$0xff]
        %v3603 = vld [vmem:[%s2477 + $0x2b8] sm:$0xff]
        %v3605 = vlaneseq
        %v3606 = vshrl.u32 %v3605, 7
        %v3607 = vsub.s32 0, %v3606
        %v3608 = vrot.slane %v3515, %v3607
        %v3609 = vlaneseq
        %v3610 = vshrl.u32 %v3609, 7
        %v3611 = vsub.s32 1, %v3610
        %v3612 = vrot.slane %v3515, %v3611
        %v3613 = vlaneseq
        %v3614 = vshrl.u32 %v3613, 7
        %v3615 = vsub.s32 2, %v3614
        %v3616 = vrot.slane %v3515, %v3615
        %v3619 = vsel %vm1971, %v3616, 0
        %3621 = vmatprep.subr.mxu0 %v3517
        %3622 = vmatpush1.msra.mxu0 %v3516
        %3623 = vmatprep.subr.mxu0 %v3519
        %3624 = vmatpush1.msra.mxu0 %v3518
        %3625 = vmatprep.subr.mxu0 %v3521
        %3626 = vmatpush1.msra.mxu0 %v3520
        %3627 = vmatprep.subr.mxu0 %v3523
        %3628 = vmatpush1.msra.mxu0 %v3522
        %3629 = vmatprep.subr.mxu0 %v3525
        %3630 = vmatpush1.msra.mxu0 %v3524
        %3631 = vmatprep.subr.mxu0 %v3527
        %3632 = vmatpush1.msra.mxu0 %v3526
        %3633 = vmatprep.subr.mxu0 %v3529
        %3634 = vmatpush1.msra.mxu0 %v3528
        %3635 = vmatprep.subr.mxu0 %v3531
        %3636 = vmatpush1.msra.mxu0 %v3530
        %3637 = vmatprep.subr.mxu0 %v3533
        %3638 = vmatpush1.msra.mxu0 %v3532
        %3639 = vmatprep.subr.mxu0 %v3535
        %3640 = vmatpush1.msra.mxu0 %v3534
        %3641 = vmatprep.subr.mxu0 %v3537
        %3642 = vmatpush1.msra.mxu0 %v3536
        %3643 = vmatprep.subr.mxu0 %v3539
        %3644 = vmatpush1.msra.mxu0 %v3538
        %3645 = vmatprep.subr.mxu0 %v3541
        %3646 = vmatpush1.msra.mxu0 %v3540
        %3647 = vmatprep.subr.mxu0 %v3543
        %3648 = vmatpush1.msra.mxu0 %v3542
        %3649 = vmatprep.subr.mxu0 %v3545
        %3650 = vmatpush1.msra.mxu0 %v3544
        %3651 = vmatprep.subr.mxu0 %v3547
        %3652 = vmatpush1.msra.mxu0 %v3546
        %3653 = vmatprep.subr.mxu0 %v3549
        %3654 = vmatpush1.msra.mxu0 %v3548
        %3655 = vmatprep.subr.mxu0 %v3551
        %3656 = vmatpush1.msra.mxu0 %v3550
        %3657 = vmatprep.subr.mxu0 %v3553
        %3658 = vmatpush1.msra.mxu0 %v3552
        %3659 = vmatprep.subr.mxu0 %v3555
        %3660 = vmatpush1.msra.mxu0 %v3554
        %3661 = vmatprep.subr.mxu0 %v3557
        %3662 = vmatpush1.msra.mxu0 %v3556
        %3663 = vmatprep.subr.mxu0 %v3559
        %3664 = vmatpush1.msra.mxu0 %v3558
        %3665 = vmatprep.subr.mxu0 %v3561
        %3666 = vmatpush1.msra.mxu0 %v3560
        %3667 = vmatprep.subr.mxu0 %v3563
        %3668 = vmatpush1.msra.mxu0 %v3562
        %3669 = vmatprep.subr.mxu0 %v3565
        %3670 = vmatpush1.msra.mxu0 %v3564
        %3671 = vmatprep.subr.mxu0 %v3567
        %3672 = vmatpush1.msra.mxu0 %v3566
        %3673 = vmatprep.subr.mxu0 %v3569
        %3674 = vmatpush1.msra.mxu0 %v3568
        %3675 = vmatprep.subr.mxu0 %v3571
        %3676 = vmatpush1.msra.mxu0 %v3570
        %3677 = vmatprep.subr.mxu0 %v3573
        %3678 = vmatpush1.msra.mxu0 %v3572
        %3679 = vmatprep.subr.mxu0 %v3575
        %3680 = vmatpush1.msra.mxu0 %v3574
        %3681 = vmatprep.subr.mxu0 %v3577
        %3682 = vmatpush1.msra.mxu0 %v3576
        %3683 = vmatprep.subr.mxu0 %v3579
        %3684 = vmatpush1.msra.mxu0 %v3578
        %3685 = vmatprep.mubr.f32.mxu0 %v3612
        %3686 = vmatmul.mubr.f32.gmra.mrb[0].mxu0 %v3608
        %v3687 = vpop.f32.mrb[0].mxu0
        %v3688 = vadd.f32 0.0, %v3687
        %v3689 = vpop.f32.mrb[0].mxu0
        %v3690 = vadd.f32 0.0, %v3689
        %3691 = vdwg.mxu0
        %3692 = vmatprep.subr.mxu0 %v3581
        %3693 = vmatpush1.msra.mxu0 %v3580
        %3694 = vmatprep.subr.mxu0 %v3583
        %3695 = vmatpush1.msra.mxu0 %v3582
        %3696 = vmatprep.subr.mxu0 %v3585
        %3697 = vmatpush1.msra.mxu0 %v3584
        %3698 = vmatprep.subr.mxu0 %v3587
        %3699 = vmatpush1.msra.mxu0 %v3586
        %3700 = vmatprep.subr.mxu0 %v3589
        %3701 = vmatpush1.msra.mxu0 %v3588
        %3702 = vmatprep.subr.mxu0 %v3591
        %3703 = vmatpush1.msra.mxu0 %v3590
        %3704 = vmatprep.subr.mxu0 %v3593
        %3705 = vmatpush1.msra.mxu0 %v3592
        %3706 = vmatprep.subr.mxu0 %v3595
        %3707 = vmatpush1.msra.mxu0 %v3594
        %3708 = vmatprep.subr.mxu0 %v3597
        %3709 = vmatpush1.msra.mxu0 %v3596
        %3710 = vmatprep.subr.mxu0 %v3599
        %3711 = vmatpush1.msra.mxu0 %v3598
        %3712 = vmatprep.subr.mxu0 %v3601
        %3713 = vmatpush1.msra.mxu0 %v3600
        %3714 = vmatprep.subr.mxu0 %v3603
        %3715 = vmatpush1.msra.mxu0 %v3602
        %3716 = vmatprep.subr.mxu0 0.0
        %3717 = vmatpush1.msra.mxu0 0.0
        %3718 = vmatprep.subr.mxu0 0.0
        %3719 = vmatpush1.msra.mxu0 0.0
        %3720 = vmatprep.subr.mxu0 0.0
        %3721 = vmatpush1.msra.mxu0 0.0
        %3722 = vmatprep.subr.mxu0 0.0
        %3723 = vmatpush1.msra.mxu0 0.0
        %3724 = vmatprep.subr.mxu0 0.0
        %3725 = vmatpush1.msra.mxu0 0.0
        %3726 = vmatprep.subr.mxu0 0.0
        %3727 = vmatpush1.msra.mxu0 0.0
        %3728 = vmatprep.subr.mxu0 0.0
        %3729 = vmatpush1.msra.mxu0 0.0
        %3730 = vmatprep.subr.mxu0 0.0
        %3731 = vmatpush1.msra.mxu0 0.0
        %3732 = vmatprep.subr.mxu0 0.0
        %3733 = vmatpush1.msra.mxu0 0.0
        %3734 = vmatprep.subr.mxu0 0.0
        %3735 = vmatpush1.msra.mxu0 0.0
        %3736 = vmatprep.subr.mxu0 0.0
        %3737 = vmatpush1.msra.mxu0 0.0
        %3738 = vmatprep.subr.mxu0 0.0
        %3739 = vmatpush1.msra.mxu0 0.0
        %3740 = vmatprep.subr.mxu0 0.0
        %3741 = vmatpush1.msra.mxu0 0.0
        %3742 = vmatprep.subr.mxu0 0.0
        %3743 = vmatpush1.msra.mxu0 0.0
        %3744 = vmatprep.subr.mxu0 0.0
        %3745 = vmatpush1.msra.mxu0 0.0
        %3746 = vmatprep.subr.mxu0 0.0
        %3747 = vmatpush1.msra.mxu0 0.0
        %3748 = vmatprep.subr.mxu0 0.0
        %3749 = vmatpush1.msra.mxu0 0.0
        %3750 = vmatprep.subr.mxu0 0.0
        %3751 = vmatpush1.msra.mxu0 0.0
        %3752 = vmatprep.subr.mxu0 0.0
        %3753 = vmatpush1.msra.mxu0 0.0
        %3754 = vmatprep.subr.mxu0 0.0
        %3755 = vmatpush1.msra.mxu0 0.0
        %3756 = vmatprep.mubr.f32.mxu0 0.0
        %3757 = vmatmul.mubr.f32.gmra.mrb[0].mxu0 %v3619
        %v3758 = vpop.f32.mrb[0].mxu0
        %v3759 = vadd.f32 %v3688, %v3758
        %v3760 = vpop.f32.mrb[0].mxu0
        %v3761 = vadd.f32 %v3690, %v3760
        %3762 = vdwg.mxu0
        %v3763 = vadd.f32 %v3510, %v3759
        %v3764 = vadd.f32 %v3512, %v3761
        %s3765 = scalar_lea.vmem [#allocation2], 5
        %v3766 = vld [vmem:[%s3765] ss:$8 sm:$0x7]
        %v3767 = vld [vmem:[%s2729] sm:$0xff]
        %v3768 = vld [vmem:[%s2729 + $0x8] sm:$0xff]
        %v3769 = vld [vmem:[%s2729 + $0x10] sm:$0xff]
        %v3770 = vld [vmem:[%s2729 + $0x18] sm:$0xff]
        %v3771 = vld [vmem:[%s2729 + $0x20] sm:$0xff]
        %v3772 = vld [vmem:[%s2729 + $0x28] sm:$0xff]
        %v3773 = vld [vmem:[%s2729 + $0x30] sm:$0xff]
        %v3774 = vld [vmem:[%s2729 + $0x38] sm:$0xff]
        %v3775 = vld [vmem:[%s2729 + $0x40] sm:$0xff]
        %v3776 = vld [vmem:[%s2729 + $0x48] sm:$0xff]
        %v3777 = vld [vmem:[%s2729 + $0x50] sm:$0xff]
        %v3778 = vld [vmem:[%s2729 + $0x58] sm:$0xff]
        %v3779 = vld [vmem:[%s2729 + $0x60] sm:$0xff]
        %v3780 = vld [vmem:[%s2729 + $0x68] sm:$0xff]
        %v3781 = vld [vmem:[%s2729 + $0x70] sm:$0xff]
        %v3782 = vld [vmem:[%s2729 + $0x78] sm:$0xff]
        %v3783 = vld [vmem:[%s2729 + $0x80] sm:$0xff]
        %v3784 = vld [vmem:[%s2729 + $0x88] sm:$0xff]
        %v3785 = vld [vmem:[%s2729 + $0x90] sm:$0xff]
        %v3786 = vld [vmem:[%s2729 + $0x98] sm:$0xff]
        %v3787 = vld [vmem:[%s2729 + $0xa0] sm:$0xff]
        %v3788 = vld [vmem:[%s2729 + $0xa8] sm:$0xff]
        %v3789 = vld [vmem:[%s2729 + $0xb0] sm:$0xff]
        %v3790 = vld [vmem:[%s2729 + $0xb8] sm:$0xff]
        %v3791 = vld [vmem:[%s2729 + $0xc0] sm:$0xff]
        %v3792 = vld [vmem:[%s2729 + $0xc8] sm:$0xff]
        %v3793 = vld [vmem:[%s2729 + $0xd0] sm:$0xff]
        %v3794 = vld [vmem:[%s2729 + $0xd8] sm:$0xff]
        %v3795 = vld [vmem:[%s2729 + $0xe0] sm:$0xff]
        %v3796 = vld [vmem:[%s2729 + $0xe8] sm:$0xff]
        %v3797 = vld [vmem:[%s2729 + $0xf0] sm:$0xff]
        %v3798 = vld [vmem:[%s2729 + $0xf8] sm:$0xff]
        %v3799 = vld [vmem:[%s2729 + $0x100] sm:$0xff]
        %v3800 = vld [vmem:[%s2729 + $0x108] sm:$0xff]
        %v3801 = vld [vmem:[%s2729 + $0x110] sm:$0xff]
        %v3802 = vld [vmem:[%s2729 + $0x118] sm:$0xff]
        %v3803 = vld [vmem:[%s2729 + $0x120] sm:$0xff]
        %v3804 = vld [vmem:[%s2729 + $0x128] sm:$0xff]
        %v3805 = vld [vmem:[%s2729 + $0x130] sm:$0xff]
        %v3806 = vld [vmem:[%s2729 + $0x138] sm:$0xff]
        %v3807 = vld [vmem:[%s2729 + $0x140] sm:$0xff]
        %v3808 = vld [vmem:[%s2729 + $0x148] sm:$0xff]
        %v3809 = vld [vmem:[%s2729 + $0x150] sm:$0xff]
        %v3810 = vld [vmem:[%s2729 + $0x158] sm:$0xff]
        %v3811 = vld [vmem:[%s2729 + $0x160] sm:$0xff]
        %v3812 = vld [vmem:[%s2729 + $0x168] sm:$0xff]
        %v3813 = vld [vmem:[%s2729 + $0x170] sm:$0xff]
        %v3814 = vld [vmem:[%s2729 + $0x178] sm:$0xff]
        %v3815 = vld [vmem:[%s2729 + $0x180] sm:$0xff]
        %v3816 = vld [vmem:[%s2729 + $0x188] sm:$0xff]
        %v3817 = vld [vmem:[%s2729 + $0x190] sm:$0xff]
        %v3818 = vld [vmem:[%s2729 + $0x198] sm:$0xff]
        %v3819 = vld [vmem:[%s2729 + $0x1a0] sm:$0xff]
        %v3820 = vld [vmem:[%s2729 + $0x1a8] sm:$0xff]
        %v3821 = vld [vmem:[%s2729 + $0x1b0] sm:$0xff]
        %v3822 = vld [vmem:[%s2729 + $0x1b8] sm:$0xff]
        %v3823 = vld [vmem:[%s2729 + $0x1c0] sm:$0xff]
        %v3824 = vld [vmem:[%s2729 + $0x1c8] sm:$0xff]
        %v3825 = vld [vmem:[%s2729 + $0x1d0] sm:$0xff]
        %v3826 = vld [vmem:[%s2729 + $0x1d8] sm:$0xff]
        %v3827 = vld [vmem:[%s2729 + $0x1e0] sm:$0xff]
        %v3828 = vld [vmem:[%s2729 + $0x1e8] sm:$0xff]
        %v3829 = vld [vmem:[%s2729 + $0x1f0] sm:$0xff]
        %v3830 = vld [vmem:[%s2729 + $0x1f8] sm:$0xff]
        %v3831 = vld [vmem:[%s2729 + $0x200] sm:$0xff]
        %v3832 = vld [vmem:[%s2729 + $0x208] sm:$0xff]
        %v3833 = vld [vmem:[%s2729 + $0x210] sm:$0xff]
        %v3834 = vld [vmem:[%s2729 + $0x218] sm:$0xff]
        %v3835 = vld [vmem:[%s2729 + $0x220] sm:$0xff]
        %v3836 = vld [vmem:[%s2729 + $0x228] sm:$0xff]
        %v3837 = vld [vmem:[%s2729 + $0x230] sm:$0xff]
        %v3838 = vld [vmem:[%s2729 + $0x238] sm:$0xff]
        %v3839 = vld [vmem:[%s2729 + $0x240] sm:$0xff]
        %v3840 = vld [vmem:[%s2729 + $0x248] sm:$0xff]
        %v3841 = vld [vmem:[%s2729 + $0x250] sm:$0xff]
        %v3842 = vld [vmem:[%s2729 + $0x258] sm:$0xff]
        %v3843 = vld [vmem:[%s2729 + $0x260] sm:$0xff]
        %v3844 = vld [vmem:[%s2729 + $0x268] sm:$0xff]
        %v3845 = vld [vmem:[%s2729 + $0x270] sm:$0xff]
        %v3846 = vld [vmem:[%s2729 + $0x278] sm:$0xff]
        %v3847 = vld [vmem:[%s2729 + $0x280] sm:$0xff]
        %v3848 = vld [vmem:[%s2729 + $0x288] sm:$0xff]
        %v3849 = vld [vmem:[%s2729 + $0x290] sm:$0xff]
        %v3850 = vld [vmem:[%s2729 + $0x298] sm:$0xff]
        %v3851 = vld [vmem:[%s2729 + $0x2a0] sm:$0xff]
        %v3852 = vld [vmem:[%s2729 + $0x2a8] sm:$0xff]
        %v3853 = vld [vmem:[%s2729 + $0x2b0] sm:$0xff]
        %v3854 = vld [vmem:[%s2729 + $0x2b8] sm:$0xff]
        %v3856 = vlaneseq
        %v3857 = vshrl.u32 %v3856, 7
        %v3858 = vsub.s32 0, %v3857
        %v3859 = vrot.slane %v3766, %v3858
        %v3860 = vlaneseq
        %v3861 = vshrl.u32 %v3860, 7
        %v3862 = vsub.s32 1, %v3861
        %v3863 = vrot.slane %v3766, %v3862
        %v3864 = vlaneseq
        %v3865 = vshrl.u32 %v3864, 7
        %v3866 = vsub.s32 2, %v3865
        %v3867 = vrot.slane %v3766, %v3866
        %v3870 = vsel %vm1971, %v3867, 0
        %3872 = vmatprep.subr.mxu0 %v3768
        %3873 = vmatpush1.msra.mxu0 %v3767
        %3874 = vmatprep.subr.mxu0 %v3770
        %3875 = vmatpush1.msra.mxu0 %v3769
        %3876 = vmatprep.subr.mxu0 %v3772
        %3877 = vmatpush1.msra.mxu0 %v3771
        %3878 = vmatprep.subr.mxu0 %v3774
        %3879 = vmatpush1.msra.mxu0 %v3773
        %3880 = vmatprep.subr.mxu0 %v3776
        %3881 = vmatpush1.msra.mxu0 %v3775
        %3882 = vmatprep.subr.mxu0 %v3778
        %3883 = vmatpush1.msra.mxu0 %v3777
        %3884 = vmatprep.subr.mxu0 %v3780
        %3885 = vmatpush1.msra.mxu0 %v3779
        %3886 = vmatprep.subr.mxu0 %v3782
        %3887 = vmatpush1.msra.mxu0 %v3781
        %3888 = vmatprep.subr.mxu0 %v3784
        %3889 = vmatpush1.msra.mxu0 %v3783
        %3890 = vmatprep.subr.mxu0 %v3786
        %3891 = vmatpush1.msra.mxu0 %v3785
        %3892 = vmatprep.subr.mxu0 %v3788
        %3893 = vmatpush1.msra.mxu0 %v3787
        %3894 = vmatprep.subr.mxu0 %v3790
        %3895 = vmatpush1.msra.mxu0 %v3789
        %3896 = vmatprep.subr.mxu0 %v3792
        %3897 = vmatpush1.msra.mxu0 %v3791
        %3898 = vmatprep.subr.mxu0 %v3794
        %3899 = vmatpush1.msra.mxu0 %v3793
        %3900 = vmatprep.subr.mxu0 %v3796
        %3901 = vmatpush1.msra.mxu0 %v3795
        %3902 = vmatprep.subr.mxu0 %v3798
        %3903 = vmatpush1.msra.mxu0 %v3797
        %3904 = vmatprep.subr.mxu0 %v3800
        %3905 = vmatpush1.msra.mxu0 %v3799
        %3906 = vmatprep.subr.mxu0 %v3802
        %3907 = vmatpush1.msra.mxu0 %v3801
        %3908 = vmatprep.subr.mxu0 %v3804
        %3909 = vmatpush1.msra.mxu0 %v3803
        %3910 = vmatprep.subr.mxu0 %v3806
        %3911 = vmatpush1.msra.mxu0 %v3805
        %3912 = vmatprep.subr.mxu0 %v3808
        %3913 = vmatpush1.msra.mxu0 %v3807
        %3914 = vmatprep.subr.mxu0 %v3810
        %3915 = vmatpush1.msra.mxu0 %v3809
        %3916 = vmatprep.subr.mxu0 %v3812
        %3917 = vmatpush1.msra.mxu0 %v3811
        %3918 = vmatprep.subr.mxu0 %v3814
        %3919 = vmatpush1.msra.mxu0 %v3813
        %3920 = vmatprep.subr.mxu0 %v3816
        %3921 = vmatpush1.msra.mxu0 %v3815
        %3922 = vmatprep.subr.mxu0 %v3818
        %3923 = vmatpush1.msra.mxu0 %v3817
        %3924 = vmatprep.subr.mxu0 %v3820
        %3925 = vmatpush1.msra.mxu0 %v3819
        %3926 = vmatprep.subr.mxu0 %v3822
        %3927 = vmatpush1.msra.mxu0 %v3821
        %3928 = vmatprep.subr.mxu0 %v3824
        %3929 = vmatpush1.msra.mxu0 %v3823
        %3930 = vmatprep.subr.mxu0 %v3826
        %3931 = vmatpush1.msra.mxu0 %v3825
        %3932 = vmatprep.subr.mxu0 %v3828
        %3933 = vmatpush1.msra.mxu0 %v3827
        %3934 = vmatprep.subr.mxu0 %v3830
        %3935 = vmatpush1.msra.mxu0 %v3829
        %3936 = vmatprep.mubr.f32.mxu0 %v3863
        %3937 = vmatmul.mubr.f32.gmra.mrb[0].mxu0 %v3859
        %v3938 = vpop.f32.mrb[0].mxu0
        %v3939 = vadd.f32 0.0, %v3938
        %v3940 = vpop.f32.mrb[0].mxu0
        %v3941 = vadd.f32 0.0, %v3940
        %3942 = vdwg.mxu0
        %3943 = vmatprep.subr.mxu0 %v3832
        %3944 = vmatpush1.msra.mxu0 %v3831
        %3945 = vmatprep.subr.mxu0 %v3834
        %3946 = vmatpush1.msra.mxu0 %v3833
        %3947 = vmatprep.subr.mxu0 %v3836
        %3948 = vmatpush1.msra.mxu0 %v3835
        %3949 = vmatprep.subr.mxu0 %v3838
        %3950 = vmatpush1.msra.mxu0 %v3837
        %3951 = vmatprep.subr.mxu0 %v3840
        %3952 = vmatpush1.msra.mxu0 %v3839
        %3953 = vmatprep.subr.mxu0 %v3842
        %3954 = vmatpush1.msra.mxu0 %v3841
        %3955 = vmatprep.subr.mxu0 %v3844
        %3956 = vmatpush1.msra.mxu0 %v3843
        %3957 = vmatprep.subr.mxu0 %v3846
        %3958 = vmatpush1.msra.mxu0 %v3845
        %3959 = vmatprep.subr.mxu0 %v3848
        %3960 = vmatpush1.msra.mxu0 %v3847
        %3961 = vmatprep.subr.mxu0 %v3850
        %3962 = vmatpush1.msra.mxu0 %v3849
        %3963 = vmatprep.subr.mxu0 %v3852
        %3964 = vmatpush1.msra.mxu0 %v3851
        %3965 = vmatprep.subr.mxu0 %v3854
        %3966 = vmatpush1.msra.mxu0 %v3853
        %3967 = vmatprep.subr.mxu0 0.0
        %3968 = vmatpush1.msra.mxu0 0.0
        %3969 = vmatprep.subr.mxu0 0.0
        %3970 = vmatpush1.msra.mxu0 0.0
        %3971 = vmatprep.subr.mxu0 0.0
        %3972 = vmatpush1.msra.mxu0 0.0
        %3973 = vmatprep.subr.mxu0 0.0
        %3974 = vmatpush1.msra.mxu0 0.0
        %3975 = vmatprep.subr.mxu0 0.0
        %3976 = vmatpush1.msra.mxu0 0.0
        %3977 = vmatprep.subr.mxu0 0.0
        %3978 = vmatpush1.msra.mxu0 0.0
        %3979 = vmatprep.subr.mxu0 0.0
        %3980 = vmatpush1.msra.mxu0 0.0
        %3981 = vmatprep.subr.mxu0 0.0
        %3982 = vmatpush1.msra.mxu0 0.0
        %3983 = vmatprep.subr.mxu0 0.0
        %3984 = vmatpush1.msra.mxu0 0.0
        %3985 = vmatprep.subr.mxu0 0.0
        %3986 = vmatpush1.msra.mxu0 0.0
        %3987 = vmatprep.subr.mxu0 0.0
        %3988 = vmatpush1.msra.mxu0 0.0
        %3989 = vmatprep.subr.mxu0 0.0
        %3990 = vmatpush1.msra.mxu0 0.0
        %3991 = vmatprep.subr.mxu0 0.0
        %3992 = vmatpush1.msra.mxu0 0.0
        %3993 = vmatprep.subr.mxu0 0.0
        %3994 = vmatpush1.msra.mxu0 0.0
        %3995 = vmatprep.subr.mxu0 0.0
        %3996 = vmatpush1.msra.mxu0 0.0
        %3997 = vmatprep.subr.mxu0 0.0
        %3998 = vmatpush1.msra.mxu0 0.0
        %3999 = vmatprep.subr.mxu0 0.0
        %4000 = vmatpush1.msra.mxu0 0.0
        %4001 = vmatprep.subr.mxu0 0.0
        %4002 = vmatpush1.msra.mxu0 0.0
        %4003 = vmatprep.subr.mxu0 0.0
        %4004 = vmatpush1.msra.mxu0 0.0
        %4005 = vmatprep.subr.mxu0 0.0
        %4006 = vmatpush1.msra.mxu0 0.0
        %4007 = vmatprep.mubr.f32.mxu0 0.0
        %4008 = vmatmul.mubr.f32.gmra.mrb[0].mxu0 %v3870
        %v4009 = vpop.f32.mrb[0].mxu0
        %v4010 = vadd.f32 %v3939, %v4009
        %v4011 = vpop.f32.mrb[0].mxu0
        %v4012 = vadd.f32 %v3941, %v4011
        %4013 = vdwg.mxu0
        %v4014 = vadd.f32 %v3763, %v4010
        %v4015 = vadd.f32 %v3764, %v4012
        %v4016 = vld [vmem:[%s4] sm:$0x3]
        %v4018 = vlaneseq
        %v4019 = vshrl.u32 %v4018, 7
        %v4020 = vsub.s32 0, %v4019
        %v4021 = vrot.slane %v4016, %v4020
        %v4022 = vlaneseq
        %v4023 = vshrl.u32 %v4022, 7
        %v4024 = vsub.s32 1, %v4023
        %v4025 = vrot.slane %v4016, %v4024
        %v4028 = vadd.f32 %v4014, %v4021
        %v4029 = vadd.f32 %v4015, %v4025
        %v4030 = vmax.f32 %v4028, 0.0
        %v4031 = vmax.f32 %v4029, 0.0
        %v4034 = vcombine.low %v4030, %v4031
        %v4036 = vunpack.c.l.s4 1966171168
        %v4037 = vunpack.c.0.s8 %v4036
        %v4038 = vlaneseq
        %v4039 = vshrl.u32 %v4038, 7
        %v4040 = vsub.s32 %v4037, %v4039
        %v4041 = vrot.slane %v4034, %v4040
        %v4043 = vunpack.c.l.s4 1966171168
        %v4044 = vunpack.c.0.s8 %v4043
        %v4045 = vlaneseq
        %v4046 = vshrl.u32 %v4045, 7
        %v4047 = vsub.s32 %v4044, %v4046
        %v4048 = vrot.slane %v4041, %v4047
        %s4050 = scalar_lea.vmem [#allocation3], 1
        %4051 = vst.msk [vmem:[%s4050] ss:$4 sm:$0x3] %vm3016, %v4048
        %v4052 = vld [vmem:[%s3514] ss:$8 sm:$0x7]
        %v4053 = vld [vmem:[%s3] sm:$0xff]
        %v4054 = vld [vmem:[%s3 + $0x8] sm:$0xff]
        %v4055 = vld [vmem:[%s3 + $0x10] sm:$0xff]
        %v4056 = vld [vmem:[%s3 + $0x18] sm:$0xff]
        %v4057 = vld [vmem:[%s3 + $0x20] sm:$0xff]
        %v4058 = vld [vmem:[%s3 + $0x28] sm:$0xff]
        %v4059 = vld [vmem:[%s3 + $0x30] sm:$0xff]
        %v4060 = vld [vmem:[%s3 + $0x38] sm:$0xff]
        %v4061 = vld [vmem:[%s3 + $0x40] sm:$0xff]
        %v4062 = vld [vmem:[%s3 + $0x48] sm:$0xff]
        %v4063 = vld [vmem:[%s3 + $0x50] sm:$0xff]
        %v4064 = vld [vmem:[%s3 + $0x58] sm:$0xff]
        %v4065 = vld [vmem:[%s3 + $0x60] sm:$0xff]
        %v4066 = vld [vmem:[%s3 + $0x68] sm:$0xff]
        %v4067 = vld [vmem:[%s3 + $0x70] sm:$0xff]
        %v4068 = vld [vmem:[%s3 + $0x78] sm:$0xff]
        %v4069 = vld [vmem:[%s3 + $0x80] sm:$0xff]
        %v4070 = vld [vmem:[%s3 + $0x88] sm:$0xff]
        %v4071 = vld [vmem:[%s3 + $0x90] sm:$0xff]
        %v4072 = vld [vmem:[%s3 + $0x98] sm:$0xff]
        %v4073 = vld [vmem:[%s3 + $0xa0] sm:$0xff]
        %v4074 = vld [vmem:[%s3 + $0xa8] sm:$0xff]
        %v4075 = vld [vmem:[%s3 + $0xb0] sm:$0xff]
        %v4076 = vld [vmem:[%s3 + $0xb8] sm:$0xff]
        %v4077 = vld [vmem:[%s3 + $0xc0] sm:$0xff]
        %v4078 = vld [vmem:[%s3 + $0xc8] sm:$0xff]
        %v4079 = vld [vmem:[%s3 + $0xd0] sm:$0xff]
        %v4080 = vld [vmem:[%s3 + $0xd8] sm:$0xff]
        %v4081 = vld [vmem:[%s3 + $0xe0] sm:$0xff]
        %v4082 = vld [vmem:[%s3 + $0xe8] sm:$0xff]
        %v4083 = vld [vmem:[%s3 + $0xf0] sm:$0xff]
        %v4084 = vld [vmem:[%s3 + $0xf8] sm:$0xff]
        %v4085 = vld [vmem:[%s3 + $0x100] sm:$0xff]
        %v4086 = vld [vmem:[%s3 + $0x108] sm:$0xff]
        %v4087 = vld [vmem:[%s3 + $0x110] sm:$0xff]
        %v4088 = vld [vmem:[%s3 + $0x118] sm:$0xff]
        %v4089 = vld [vmem:[%s3 + $0x120] sm:$0xff]
        %v4090 = vld [vmem:[%s3 + $0x128] sm:$0xff]
        %v4091 = vld [vmem:[%s3 + $0x130] sm:$0xff]
        %v4092 = vld [vmem:[%s3 + $0x138] sm:$0xff]
        %v4093 = vld [vmem:[%s3 + $0x140] sm:$0xff]
        %v4094 = vld [vmem:[%s3 + $0x148] sm:$0xff]
        %v4095 = vld [vmem:[%s3 + $0x150] sm:$0xff]
        %v4096 = vld [vmem:[%s3 + $0x158] sm:$0xff]
        %v4097 = vld [vmem:[%s3 + $0x160] sm:$0xff]
        %v4098 = vld [vmem:[%s3 + $0x168] sm:$0xff]
        %v4099 = vld [vmem:[%s3 + $0x170] sm:$0xff]
        %v4100 = vld [vmem:[%s3 + $0x178] sm:$0xff]
        %v4101 = vld [vmem:[%s3 + $0x180] sm:$0xff]
        %v4102 = vld [vmem:[%s3 + $0x188] sm:$0xff]
        %v4103 = vld [vmem:[%s3 + $0x190] sm:$0xff]
        %v4104 = vld [vmem:[%s3 + $0x198] sm:$0xff]
        %v4105 = vld [vmem:[%s3 + $0x1a0] sm:$0xff]
        %v4106 = vld [vmem:[%s3 + $0x1a8] sm:$0xff]
        %v4107 = vld [vmem:[%s3 + $0x1b0] sm:$0xff]
        %v4108 = vld [vmem:[%s3 + $0x1b8] sm:$0xff]
        %v4109 = vld [vmem:[%s3 + $0x1c0] sm:$0xff]
        %v4110 = vld [vmem:[%s3 + $0x1c8] sm:$0xff]
        %v4111 = vld [vmem:[%s3 + $0x1d0] sm:$0xff]
        %v4112 = vld [vmem:[%s3 + $0x1d8] sm:$0xff]
        %v4113 = vld [vmem:[%s3 + $0x1e0] sm:$0xff]
        %v4114 = vld [vmem:[%s3 + $0x1e8] sm:$0xff]
        %v4115 = vld [vmem:[%s3 + $0x1f0] sm:$0xff]
        %v4116 = vld [vmem:[%s3 + $0x1f8] sm:$0xff]
        %v4117 = vld [vmem:[%s3 + $0x200] sm:$0xff]
        %v4118 = vld [vmem:[%s3 + $0x208] sm:$0xff]
        %v4119 = vld [vmem:[%s3 + $0x210] sm:$0xff]
        %v4120 = vld [vmem:[%s3 + $0x218] sm:$0xff]
        %v4121 = vld [vmem:[%s3 + $0x220] sm:$0xff]
        %v4122 = vld [vmem:[%s3 + $0x228] sm:$0xff]
        %v4123 = vld [vmem:[%s3 + $0x230] sm:$0xff]
        %v4124 = vld [vmem:[%s3 + $0x238] sm:$0xff]
        %v4125 = vld [vmem:[%s3 + $0x240] sm:$0xff]
        %v4126 = vld [vmem:[%s3 + $0x248] sm:$0xff]
        %v4127 = vld [vmem:[%s3 + $0x250] sm:$0xff]
        %v4128 = vld [vmem:[%s3 + $0x258] sm:$0xff]
        %v4129 = vld [vmem:[%s3 + $0x260] sm:$0xff]
        %v4130 = vld [vmem:[%s3 + $0x268] sm:$0xff]
        %v4131 = vld [vmem:[%s3 + $0x270] sm:$0xff]
        %v4132 = vld [vmem:[%s3 + $0x278] sm:$0xff]
        %v4133 = vld [vmem:[%s3 + $0x280] sm:$0xff]
        %v4134 = vld [vmem:[%s3 + $0x288] sm:$0xff]
        %v4135 = vld [vmem:[%s3 + $0x290] sm:$0xff]
        %v4136 = vld [vmem:[%s3 + $0x298] sm:$0xff]
        %v4137 = vld [vmem:[%s3 + $0x2a0] sm:$0xff]
        %v4138 = vld [vmem:[%s3 + $0x2a8] sm:$0xff]
        %v4139 = vld [vmem:[%s3 + $0x2b0] sm:$0xff]
        %v4140 = vld [vmem:[%s3 + $0x2b8] sm:$0xff]
        %v4141 = vld [vmem:[%s3765] ss:$8 sm:$0x7]
        %v4142 = vld [vmem:[%s2068] sm:$0xff]
        %v4143 = vld [vmem:[%s2068 + $0x8] sm:$0xff]
        %v4144 = vld [vmem:[%s2068 + $0x10] sm:$0xff]
        %v4145 = vld [vmem:[%s2068 + $0x18] sm:$0xff]
        %v4146 = vld [vmem:[%s2068 + $0x20] sm:$0xff]
        %v4147 = vld [vmem:[%s2068 + $0x28] sm:$0xff]
        %v4148 = vld [vmem:[%s2068 + $0x30] sm:$0xff]
        %v4149 = vld [vmem:[%s2068 + $0x38] sm:$0xff]
        %v4150 = vld [vmem:[%s2068 + $0x40] sm:$0xff]
        %v4151 = vld [vmem:[%s2068 + $0x48] sm:$0xff]
        %v4152 = vld [vmem:[%s2068 + $0x50] sm:$0xff]
        %v4153 = vld [vmem:[%s2068 + $0x58] sm:$0xff]
        %v4154 = vld [vmem:[%s2068 + $0x60] sm:$0xff]
        %v4155 = vld [vmem:[%s2068 + $0x68] sm:$0xff]
        %v4156 = vld [vmem:[%s2068 + $0x70] sm:$0xff]
        %v4157 = vld [vmem:[%s2068 + $0x78] sm:$0xff]
        %v4158 = vld [vmem:[%s2068 + $0x80] sm:$0xff]
        %v4159 = vld [vmem:[%s2068 + $0x88] sm:$0xff]
        %v4160 = vld [vmem:[%s2068 + $0x90] sm:$0xff]
        %v4161 = vld [vmem:[%s2068 + $0x98] sm:$0xff]
        %v4162 = vld [vmem:[%s2068 + $0xa0] sm:$0xff]
        %v4163 = vld [vmem:[%s2068 + $0xa8] sm:$0xff]
        %v4164 = vld [vmem:[%s2068 + $0xb0] sm:$0xff]
        %v4165 = vld [vmem:[%s2068 + $0xb8] sm:$0xff]
        %v4166 = vld [vmem:[%s2068 + $0xc0] sm:$0xff]
        %v4167 = vld [vmem:[%s2068 + $0xc8] sm:$0xff]
        %v4168 = vld [vmem:[%s2068 + $0xd0] sm:$0xff]
        %v4169 = vld [vmem:[%s2068 + $0xd8] sm:$0xff]
        %v4170 = vld [vmem:[%s2068 + $0xe0] sm:$0xff]
        %v4171 = vld [vmem:[%s2068 + $0xe8] sm:$0xff]
        %v4172 = vld [vmem:[%s2068 + $0xf0] sm:$0xff]
        %v4173 = vld [vmem:[%s2068 + $0xf8] sm:$0xff]
        %v4174 = vld [vmem:[%s2068 + $0x100] sm:$0xff]
        %v4175 = vld [vmem:[%s2068 + $0x108] sm:$0xff]
        %v4176 = vld [vmem:[%s2068 + $0x110] sm:$0xff]
        %v4177 = vld [vmem:[%s2068 + $0x118] sm:$0xff]
        %v4178 = vld [vmem:[%s2068 + $0x120] sm:$0xff]
        %v4179 = vld [vmem:[%s2068 + $0x128] sm:$0xff]
        %v4180 = vld [vmem:[%s2068 + $0x130] sm:$0xff]
        %v4181 = vld [vmem:[%s2068 + $0x138] sm:$0xff]
        %v4182 = vld [vmem:[%s2068 + $0x140] sm:$0xff]
        %v4183 = vld [vmem:[%s2068 + $0x148] sm:$0xff]
        %v4184 = vld [vmem:[%s2068 + $0x150] sm:$0xff]
        %v4185 = vld [vmem:[%s2068 + $0x158] sm:$0xff]
        %v4186 = vld [vmem:[%s2068 + $0x160] sm:$0xff]
        %v4187 = vld [vmem:[%s2068 + $0x168] sm:$0xff]
        %v4188 = vld [vmem:[%s2068 + $0x170] sm:$0xff]
        %v4189 = vld [vmem:[%s2068 + $0x178] sm:$0xff]
        %v4190 = vld [vmem:[%s2068 + $0x180] sm:$0xff]
        %v4191 = vld [vmem:[%s2068 + $0x188] sm:$0xff]
        %v4192 = vld [vmem:[%s2068 + $0x190] sm:$0xff]
        %v4193 = vld [vmem:[%s2068 + $0x198] sm:$0xff]
        %v4194 = vld [vmem:[%s2068 + $0x1a0] sm:$0xff]
        %v4195 = vld [vmem:[%s2068 + $0x1a8] sm:$0xff]
        %v4196 = vld [vmem:[%s2068 + $0x1b0] sm:$0xff]
        %v4197 = vld [vmem:[%s2068 + $0x1b8] sm:$0xff]
        %v4198 = vld [vmem:[%s2068 + $0x1c0] sm:$0xff]
        %v4199 = vld [vmem:[%s2068 + $0x1c8] sm:$0xff]
        %v4200 = vld [vmem:[%s2068 + $0x1d0] sm:$0xff]
        %v4201 = vld [vmem:[%s2068 + $0x1d8] sm:$0xff]
        %v4202 = vld [vmem:[%s2068 + $0x1e0] sm:$0xff]
        %v4203 = vld [vmem:[%s2068 + $0x1e8] sm:$0xff]
        %v4204 = vld [vmem:[%s2068 + $0x1f0] sm:$0xff]
        %v4205 = vld [vmem:[%s2068 + $0x1f8] sm:$0xff]
        %v4206 = vld [vmem:[%s2068 + $0x200] sm:$0xff]
        %v4207 = vld [vmem:[%s2068 + $0x208] sm:$0xff]
        %v4208 = vld [vmem:[%s2068 + $0x210] sm:$0xff]
        %v4209 = vld [vmem:[%s2068 + $0x218] sm:$0xff]
        %v4210 = vld [vmem:[%s2068 + $0x220] sm:$0xff]
        %v4211 = vld [vmem:[%s2068 + $0x228] sm:$0xff]
        %v4212 = vld [vmem:[%s2068 + $0x230] sm:$0xff]
        %v4213 = vld [vmem:[%s2068 + $0x238] sm:$0xff]
        %v4214 = vld [vmem:[%s2068 + $0x240] sm:$0xff]
        %v4215 = vld [vmem:[%s2068 + $0x248] sm:$0xff]
        %v4216 = vld [vmem:[%s2068 + $0x250] sm:$0xff]
        %v4217 = vld [vmem:[%s2068 + $0x258] sm:$0xff]
        %v4218 = vld [vmem:[%s2068 + $0x260] sm:$0xff]
        %v4219 = vld [vmem:[%s2068 + $0x268] sm:$0xff]
        %v4220 = vld [vmem:[%s2068 + $0x270] sm:$0xff]
        %v4221 = vld [vmem:[%s2068 + $0x278] sm:$0xff]
        %v4222 = vld [vmem:[%s2068 + $0x280] sm:$0xff]
        %v4223 = vld [vmem:[%s2068 + $0x288] sm:$0xff]
        %v4224 = vld [vmem:[%s2068 + $0x290] sm:$0xff]
        %v4225 = vld [vmem:[%s2068 + $0x298] sm:$0xff]
        %v4226 = vld [vmem:[%s2068 + $0x2a0] sm:$0xff]
        %v4227 = vld [vmem:[%s2068 + $0x2a8] sm:$0xff]
        %v4228 = vld [vmem:[%s2068 + $0x2b0] sm:$0xff]
        %v4229 = vld [vmem:[%s2068 + $0x2b8] sm:$0xff]
        %v4231 = vlaneseq
        %v4232 = vshrl.u32 %v4231, 7
        %v4233 = vsub.s32 0, %v4232
        %v4234 = vrot.slane %v4141, %v4233
        %v4235 = vlaneseq
        %v4236 = vshrl.u32 %v4235, 7
        %v4237 = vsub.s32 1, %v4236
        %v4238 = vrot.slane %v4141, %v4237
        %v4239 = vlaneseq
        %v4240 = vshrl.u32 %v4239, 7
        %v4241 = vsub.s32 2, %v4240
        %v4242 = vrot.slane %v4141, %v4241
        %v4245 = vsel %vm1971, %v4242, 0
        %4247 = vmatprep.subr.mxu0 %v4143
        %4248 = vmatpush1.msra.mxu0 %v4142
        %4249 = vmatprep.subr.mxu0 %v4145
        %4250 = vmatpush1.msra.mxu0 %v4144
        %4251 = vmatprep.subr.mxu0 %v4147
        %4252 = vmatpush1.msra.mxu0 %v4146
        %4253 = vmatprep.subr.mxu0 %v4149
        %4254 = vmatpush1.msra.mxu0 %v4148
        %4255 = vmatprep.subr.mxu0 %v4151
        %4256 = vmatpush1.msra.mxu0 %v4150
        %4257 = vmatprep.subr.mxu0 %v4153
        %4258 = vmatpush1.msra.mxu0 %v4152
        %4259 = vmatprep.subr.mxu0 %v4155
        %4260 = vmatpush1.msra.mxu0 %v4154
        %4261 = vmatprep.subr.mxu0 %v4157
        %4262 = vmatpush1.msra.mxu0 %v4156
        %4263 = vmatprep.subr.mxu0 %v4159
        %4264 = vmatpush1.msra.mxu0 %v4158
        %4265 = vmatprep.subr.mxu0 %v4161
        %4266 = vmatpush1.msra.mxu0 %v4160
        %4267 = vmatprep.subr.mxu0 %v4163
        %4268 = vmatpush1.msra.mxu0 %v4162
        %4269 = vmatprep.subr.mxu0 %v4165
        %4270 = vmatpush1.msra.mxu0 %v4164
        %4271 = vmatprep.subr.mxu0 %v4167
        %4272 = vmatpush1.msra.mxu0 %v4166
        %4273 = vmatprep.subr.mxu0 %v4169
        %4274 = vmatpush1.msra.mxu0 %v4168
        %4275 = vmatprep.subr.mxu0 %v4171
        %4276 = vmatpush1.msra.mxu0 %v4170
        %4277 = vmatprep.subr.mxu0 %v4173
        %4278 = vmatpush1.msra.mxu0 %v4172
        %4279 = vmatprep.subr.mxu0 %v4175
        %4280 = vmatpush1.msra.mxu0 %v4174
        %4281 = vmatprep.subr.mxu0 %v4177
        %4282 = vmatpush1.msra.mxu0 %v4176
        %4283 = vmatprep.subr.mxu0 %v4179
        %4284 = vmatpush1.msra.mxu0 %v4178
        %4285 = vmatprep.subr.mxu0 %v4181
        %4286 = vmatpush1.msra.mxu0 %v4180
        %4287 = vmatprep.subr.mxu0 %v4183
        %4288 = vmatpush1.msra.mxu0 %v4182
        %4289 = vmatprep.subr.mxu0 %v4185
        %4290 = vmatpush1.msra.mxu0 %v4184
        %4291 = vmatprep.subr.mxu0 %v4187
        %4292 = vmatpush1.msra.mxu0 %v4186
        %4293 = vmatprep.subr.mxu0 %v4189
        %4294 = vmatpush1.msra.mxu0 %v4188
        %4295 = vmatprep.subr.mxu0 %v4191
        %4296 = vmatpush1.msra.mxu0 %v4190
        %4297 = vmatprep.subr.mxu0 %v4193
        %4298 = vmatpush1.msra.mxu0 %v4192
        %4299 = vmatprep.subr.mxu0 %v4195
        %4300 = vmatpush1.msra.mxu0 %v4194
        %4301 = vmatprep.subr.mxu0 %v4197
        %4302 = vmatpush1.msra.mxu0 %v4196
        %4303 = vmatprep.subr.mxu0 %v4199
        %4304 = vmatpush1.msra.mxu0 %v4198
        %4305 = vmatprep.subr.mxu0 %v4201
        %4306 = vmatpush1.msra.mxu0 %v4200
        %4307 = vmatprep.subr.mxu0 %v4203
        %4308 = vmatpush1.msra.mxu0 %v4202
        %4309 = vmatprep.subr.mxu0 %v4205
        %4310 = vmatpush1.msra.mxu0 %v4204
        %4311 = vmatprep.mubr.f32.mxu0 %v4238
        %4312 = vmatmul.mubr.f32.gmra.mrb[0].mxu0 %v4234
        %v4313 = vpop.f32.mrb[0].mxu0
        %v4314 = vadd.f32 0.0, %v4313
        %v4315 = vpop.f32.mrb[0].mxu0
        %v4316 = vadd.f32 0.0, %v4315
        %4317 = vdwg.mxu0
        %4318 = vmatprep.subr.mxu0 %v4207
        %4319 = vmatpush1.msra.mxu0 %v4206
        %4320 = vmatprep.subr.mxu0 %v4209
        %4321 = vmatpush1.msra.mxu0 %v4208
        %4322 = vmatprep.subr.mxu0 %v4211
        %4323 = vmatpush1.msra.mxu0 %v4210
        %4324 = vmatprep.subr.mxu0 %v4213
        %4325 = vmatpush1.msra.mxu0 %v4212
        %4326 = vmatprep.subr.mxu0 %v4215
        %4327 = vmatpush1.msra.mxu0 %v4214
        %4328 = vmatprep.subr.mxu0 %v4217
        %4329 = vmatpush1.msra.mxu0 %v4216
        %4330 = vmatprep.subr.mxu0 %v4219
        %4331 = vmatpush1.msra.mxu0 %v4218
        %4332 = vmatprep.subr.mxu0 %v4221
        %4333 = vmatpush1.msra.mxu0 %v4220
        %4334 = vmatprep.subr.mxu0 %v4223
        %4335 = vmatpush1.msra.mxu0 %v4222
        %4336 = vmatprep.subr.mxu0 %v4225
        %4337 = vmatpush1.msra.mxu0 %v4224
        %4338 = vmatprep.subr.mxu0 %v4227
        %4339 = vmatpush1.msra.mxu0 %v4226
        %4340 = vmatprep.subr.mxu0 %v4229
        %4341 = vmatpush1.msra.mxu0 %v4228
        %4342 = vmatprep.subr.mxu0 0.0
        %4343 = vmatpush1.msra.mxu0 0.0
        %4344 = vmatprep.subr.mxu0 0.0
        %4345 = vmatpush1.msra.mxu0 0.0
        %4346 = vmatprep.subr.mxu0 0.0
        %4347 = vmatpush1.msra.mxu0 0.0
        %4348 = vmatprep.subr.mxu0 0.0
        %4349 = vmatpush1.msra.mxu0 0.0
        %4350 = vmatprep.subr.mxu0 0.0
        %4351 = vmatpush1.msra.mxu0 0.0
        %4352 = vmatprep.subr.mxu0 0.0
        %4353 = vmatpush1.msra.mxu0 0.0
        %4354 = vmatprep.subr.mxu0 0.0
        %4355 = vmatpush1.msra.mxu0 0.0
        %4356 = vmatprep.subr.mxu0 0.0
        %4357 = vmatpush1.msra.mxu0 0.0
        %4358 = vmatprep.subr.mxu0 0.0
        %4359 = vmatpush1.msra.mxu0 0.0
        %4360 = vmatprep.subr.mxu0 0.0
        %4361 = vmatpush1.msra.mxu0 0.0
        %4362 = vmatprep.subr.mxu0 0.0
        %4363 = vmatpush1.msra.mxu0 0.0
        %4364 = vmatprep.subr.mxu0 0.0
        %4365 = vmatpush1.msra.mxu0 0.0
        %4366 = vmatprep.subr.mxu0 0.0
        %4367 = vmatpush1.msra.mxu0 0.0
        %4368 = vmatprep.subr.mxu0 0.0
        %4369 = vmatpush1.msra.mxu0 0.0
        %4370 = vmatprep.subr.mxu0 0.0
        %4371 = vmatpush1.msra.mxu0 0.0
        %4372 = vmatprep.subr.mxu0 0.0
        %4373 = vmatpush1.msra.mxu0 0.0
        %4374 = vmatprep.subr.mxu0 0.0
        %4375 = vmatpush1.msra.mxu0 0.0
        %4376 = vmatprep.subr.mxu0 0.0
        %4377 = vmatpush1.msra.mxu0 0.0
        %4378 = vmatprep.subr.mxu0 0.0
        %4379 = vmatpush1.msra.mxu0 0.0
        %4380 = vmatprep.subr.mxu0 0.0
        %4381 = vmatpush1.msra.mxu0 0.0
        %4382 = vmatprep.mubr.f32.mxu0 0.0
        %4383 = vmatmul.mubr.f32.gmra.mrb[0].mxu0 %v4245
        %v4384 = vpop.f32.mrb[0].mxu0
        %v4385 = vadd.f32 %v4314, %v4384
        %v4386 = vpop.f32.mrb[0].mxu0
        %v4387 = vadd.f32 %v4316, %v4386
        %4388 = vdwg.mxu0
        %v4390 = vlaneseq
        %v4391 = vshrl.u32 %v4390, 7
        %v4392 = vsub.s32 0, %v4391
        %v4393 = vrot.slane %v4052, %v4392
        %v4394 = vlaneseq
        %v4395 = vshrl.u32 %v4394, 7
        %v4396 = vsub.s32 1, %v4395
        %v4397 = vrot.slane %v4052, %v4396
        %v4398 = vlaneseq
        %v4399 = vshrl.u32 %v4398, 7
        %v4400 = vsub.s32 2, %v4399
        %v4401 = vrot.slane %v4052, %v4400
        %v4404 = vsel %vm1971, %v4401, 0
        %4406 = vmatprep.subr.mxu0 %v4054
        %4407 = vmatpush1.msra.mxu0 %v4053
        %4408 = vmatprep.subr.mxu0 %v4056
        %4409 = vmatpush1.msra.mxu0 %v4055
        %4410 = vmatprep.subr.mxu0 %v4058
        %4411 = vmatpush1.msra.mxu0 %v4057
        %4412 = vmatprep.subr.mxu0 %v4060
        %4413 = vmatpush1.msra.mxu0 %v4059
        %4414 = vmatprep.subr.mxu0 %v4062
        %4415 = vmatpush1.msra.mxu0 %v4061
        %4416 = vmatprep.subr.mxu0 %v4064
        %4417 = vmatpush1.msra.mxu0 %v4063
        %4418 = vmatprep.subr.mxu0 %v4066
        %4419 = vmatpush1.msra.mxu0 %v4065
        %4420 = vmatprep.subr.mxu0 %v4068
        %4421 = vmatpush1.msra.mxu0 %v4067
        %4422 = vmatprep.subr.mxu0 %v4070
        %4423 = vmatpush1.msra.mxu0 %v4069
        %4424 = vmatprep.subr.mxu0 %v4072
        %4425 = vmatpush1.msra.mxu0 %v4071
        %4426 = vmatprep.subr.mxu0 %v4074
        %4427 = vmatpush1.msra.mxu0 %v4073
        %4428 = vmatprep.subr.mxu0 %v4076
        %4429 = vmatpush1.msra.mxu0 %v4075
        %4430 = vmatprep.subr.mxu0 %v4078
        %4431 = vmatpush1.msra.mxu0 %v4077
        %4432 = vmatprep.subr.mxu0 %v4080
        %4433 = vmatpush1.msra.mxu0 %v4079
        %4434 = vmatprep.subr.mxu0 %v4082
        %4435 = vmatpush1.msra.mxu0 %v4081
        %4436 = vmatprep.subr.mxu0 %v4084
        %4437 = vmatpush1.msra.mxu0 %v4083
        %4438 = vmatprep.subr.mxu0 %v4086
        %4439 = vmatpush1.msra.mxu0 %v4085
        %4440 = vmatprep.subr.mxu0 %v4088
        %4441 = vmatpush1.msra.mxu0 %v4087
        %4442 = vmatprep.subr.mxu0 %v4090
        %4443 = vmatpush1.msra.mxu0 %v4089
        %4444 = vmatprep.subr.mxu0 %v4092
        %4445 = vmatpush1.msra.mxu0 %v4091
        %4446 = vmatprep.subr.mxu0 %v4094
        %4447 = vmatpush1.msra.mxu0 %v4093
        %4448 = vmatprep.subr.mxu0 %v4096
        %4449 = vmatpush1.msra.mxu0 %v4095
        %4450 = vmatprep.subr.mxu0 %v4098
        %4451 = vmatpush1.msra.mxu0 %v4097
        %4452 = vmatprep.subr.mxu0 %v4100
        %4453 = vmatpush1.msra.mxu0 %v4099
        %4454 = vmatprep.subr.mxu0 %v4102
        %4455 = vmatpush1.msra.mxu0 %v4101
        %4456 = vmatprep.subr.mxu0 %v4104
        %4457 = vmatpush1.msra.mxu0 %v4103
        %4458 = vmatprep.subr.mxu0 %v4106
        %4459 = vmatpush1.msra.mxu0 %v4105
        %4460 = vmatprep.subr.mxu0 %v4108
        %4461 = vmatpush1.msra.mxu0 %v4107
        %4462 = vmatprep.subr.mxu0 %v4110
        %4463 = vmatpush1.msra.mxu0 %v4109
        %4464 = vmatprep.subr.mxu0 %v4112
        %4465 = vmatpush1.msra.mxu0 %v4111
        %4466 = vmatprep.subr.mxu0 %v4114
        %4467 = vmatpush1.msra.mxu0 %v4113
        %4468 = vmatprep.subr.mxu0 %v4116
        %4469 = vmatpush1.msra.mxu0 %v4115
        %4470 = vmatprep.mubr.f32.mxu0 %v4397
        %4471 = vmatmul.mubr.f32.gmra.mrb[0].mxu0 %v4393
        %v4472 = vpop.f32.mrb[0].mxu0
        %v4473 = vadd.f32 %v4385, %v4472
        %v4474 = vpop.f32.mrb[0].mxu0
        %v4475 = vadd.f32 %v4387, %v4474
        %4476 = vdwg.mxu0
        %4477 = vmatprep.subr.mxu0 %v4118
        %4478 = vmatpush1.msra.mxu0 %v4117
        %4479 = vmatprep.subr.mxu0 %v4120
        %4480 = vmatpush1.msra.mxu0 %v4119
        %4481 = vmatprep.subr.mxu0 %v4122
        %4482 = vmatpush1.msra.mxu0 %v4121
        %4483 = vmatprep.subr.mxu0 %v4124
        %4484 = vmatpush1.msra.mxu0 %v4123
        %4485 = vmatprep.subr.mxu0 %v4126
        %4486 = vmatpush1.msra.mxu0 %v4125
        %4487 = vmatprep.subr.mxu0 %v4128
        %4488 = vmatpush1.msra.mxu0 %v4127
        %4489 = vmatprep.subr.mxu0 %v4130
        %4490 = vmatpush1.msra.mxu0 %v4129
        %4491 = vmatprep.subr.mxu0 %v4132
        %4492 = vmatpush1.msra.mxu0 %v4131
        %4493 = vmatprep.subr.mxu0 %v4134
        %4494 = vmatpush1.msra.mxu0 %v4133
        %4495 = vmatprep.subr.mxu0 %v4136
        %4496 = vmatpush1.msra.mxu0 %v4135
        %4497 = vmatprep.subr.mxu0 %v4138
        %4498 = vmatpush1.msra.mxu0 %v4137
        %4499 = vmatprep.subr.mxu0 %v4140
        %4500 = vmatpush1.msra.mxu0 %v4139
        %4501 = vmatprep.subr.mxu0 0.0
        %4502 = vmatpush1.msra.mxu0 0.0
        %4503 = vmatprep.subr.mxu0 0.0
        %4504 = vmatpush1.msra.mxu0 0.0
        %4505 = vmatprep.subr.mxu0 0.0
        %4506 = vmatpush1.msra.mxu0 0.0
        %4507 = vmatprep.subr.mxu0 0.0
        %4508 = vmatpush1.msra.mxu0 0.0
        %4509 = vmatprep.subr.mxu0 0.0
        %4510 = vmatpush1.msra.mxu0 0.0
        %4511 = vmatprep.subr.mxu0 0.0
        %4512 = vmatpush1.msra.mxu0 0.0
        %4513 = vmatprep.subr.mxu0 0.0
        %4514 = vmatpush1.msra.mxu0 0.0
        %4515 = vmatprep.subr.mxu0 0.0
        %4516 = vmatpush1.msra.mxu0 0.0
        %4517 = vmatprep.subr.mxu0 0.0
        %4518 = vmatpush1.msra.mxu0 0.0
        %4519 = vmatprep.subr.mxu0 0.0
        %4520 = vmatpush1.msra.mxu0 0.0
        %4521 = vmatprep.subr.mxu0 0.0
        %4522 = vmatpush1.msra.mxu0 0.0
        %4523 = vmatprep.subr.mxu0 0.0
        %4524 = vmatpush1.msra.mxu0 0.0
        %4525 = vmatprep.subr.mxu0 0.0
        %4526 = vmatpush1.msra.mxu0 0.0
        %4527 = vmatprep.subr.mxu0 0.0
        %4528 = vmatpush1.msra.mxu0 0.0
        %4529 = vmatprep.subr.mxu0 0.0
        %4530 = vmatpush1.msra.mxu0 0.0
        %4531 = vmatprep.subr.mxu0 0.0
        %4532 = vmatpush1.msra.mxu0 0.0
        %4533 = vmatprep.subr.mxu0 0.0
        %4534 = vmatpush1.msra.mxu0 0.0
        %4535 = vmatprep.subr.mxu0 0.0
        %4536 = vmatpush1.msra.mxu0 0.0
        %4537 = vmatprep.subr.mxu0 0.0
        %4538 = vmatpush1.msra.mxu0 0.0
        %4539 = vmatprep.subr.mxu0 0.0
        %4540 = vmatpush1.msra.mxu0 0.0
        %4541 = vmatprep.mubr.f32.mxu0 0.0
        %4542 = vmatmul.mubr.f32.gmra.mrb[0].mxu0 %v4404
        %v4543 = vpop.f32.mrb[0].mxu0
        %v4544 = vadd.f32 %v4473, %v4543
        %v4545 = vpop.f32.mrb[0].mxu0
        %v4546 = vadd.f32 %v4475, %v4545
        %4547 = vdwg.mxu0
        %s4548 = scalar_lea.vmem [#allocation2], 6
        %v4549 = vld [vmem:[%s4548] ss:$8 sm:$0x7]
        %v4550 = vld [vmem:[%s2477] sm:$0xff]
        %v4551 = vld [vmem:[%s2477 + $0x8] sm:$0xff]
        %v4552 = vld [vmem:[%s2477 + $0x10] sm:$0xff]
        %v4553 = vld [vmem:[%s2477 + $0x18] sm:$0xff]
        %v4554 = vld [vmem:[%s2477 + $0x20] sm:$0xff]
        %v4555 = vld [vmem:[%s2477 + $0x28] sm:$0xff]
        %v4556 = vld [vmem:[%s2477 + $0x30] sm:$0xff]
        %v4557 = vld [vmem:[%s2477 + $0x38] sm:$0xff]
        %v4558 = vld [vmem:[%s2477 + $0x40] sm:$0xff]
        %v4559 = vld [vmem:[%s2477 + $0x48] sm:$0xff]
        %v4560 = vld [vmem:[%s2477 + $0x50] sm:$0xff]
        %v4561 = vld [vmem:[%s2477 + $0x58] sm:$0xff]
        %v4562 = vld [vmem:[%s2477 + $0x60] sm:$0xff]
        %v4563 = vld [vmem:[%s2477 + $0x68] sm:$0xff]
        %v4564 = vld [vmem:[%s2477 + $0x70] sm:$0xff]
        %v4565 = vld [vmem:[%s2477 + $0x78] sm:$0xff]
        %v4566 = vld [vmem:[%s2477 + $0x80] sm:$0xff]
        %v4567 = vld [vmem:[%s2477 + $0x88] sm:$0xff]
        %v4568 = vld [vmem:[%s2477 + $0x90] sm:$0xff]
        %v4569 = vld [vmem:[%s2477 + $0x98] sm:$0xff]
        %v4570 = vld [vmem:[%s2477 + $0xa0] sm:$0xff]
        %v4571 = vld [vmem:[%s2477 + $0xa8] sm:$0xff]
        %v4572 = vld [vmem:[%s2477 + $0xb0] sm:$0xff]
        %v4573 = vld [vmem:[%s2477 + $0xb8] sm:$0xff]
        %v4574 = vld [vmem:[%s2477 + $0xc0] sm:$0xff]
        %v4575 = vld [vmem:[%s2477 + $0xc8] sm:$0xff]
        %v4576 = vld [vmem:[%s2477 + $0xd0] sm:$0xff]
        %v4577 = vld [vmem:[%s2477 + $0xd8] sm:$0xff]
        %v4578 = vld [vmem:[%s2477 + $0xe0] sm:$0xff]
        %v4579 = vld [vmem:[%s2477 + $0xe8] sm:$0xff]
        %v4580 = vld [vmem:[%s2477 + $0xf0] sm:$0xff]
        %v4581 = vld [vmem:[%s2477 + $0xf8] sm:$0xff]
        %v4582 = vld [vmem:[%s2477 + $0x100] sm:$0xff]
        %v4583 = vld [vmem:[%s2477 + $0x108] sm:$0xff]
        %v4584 = vld [vmem:[%s2477 + $0x110] sm:$0xff]
        %v4585 = vld [vmem:[%s2477 + $0x118] sm:$0xff]
        %v4586 = vld [vmem:[%s2477 + $0x120] sm:$0xff]
        %v4587 = vld [vmem:[%s2477 + $0x128] sm:$0xff]
        %v4588 = vld [vmem:[%s2477 + $0x130] sm:$0xff]
        %v4589 = vld [vmem:[%s2477 + $0x138] sm:$0xff]
        %v4590 = vld [vmem:[%s2477 + $0x140] sm:$0xff]
        %v4591 = vld [vmem:[%s2477 + $0x148] sm:$0xff]
        %v4592 = vld [vmem:[%s2477 + $0x150] sm:$0xff]
        %v4593 = vld [vmem:[%s2477 + $0x158] sm:$0xff]
        %v4594 = vld [vmem:[%s2477 + $0x160] sm:$0xff]
        %v4595 = vld [vmem:[%s2477 + $0x168] sm:$0xff]
        %v4596 = vld [vmem:[%s2477 + $0x170] sm:$0xff]
        %v4597 = vld [vmem:[%s2477 + $0x178] sm:$0xff]
        %v4598 = vld [vmem:[%s2477 + $0x180] sm:$0xff]
        %v4599 = vld [vmem:[%s2477 + $0x188] sm:$0xff]
        %v4600 = vld [vmem:[%s2477 + $0x190] sm:$0xff]
        %v4601 = vld [vmem:[%s2477 + $0x198] sm:$0xff]
        %v4602 = vld [vmem:[%s2477 + $0x1a0] sm:$0xff]
        %v4603 = vld [vmem:[%s2477 + $0x1a8] sm:$0xff]
        %v4604 = vld [vmem:[%s2477 + $0x1b0] sm:$0xff]
        %v4605 = vld [vmem:[%s2477 + $0x1b8] sm:$0xff]
        %v4606 = vld [vmem:[%s2477 + $0x1c0] sm:$0xff]
        %v4607 = vld [vmem:[%s2477 + $0x1c8] sm:$0xff]
        %v4608 = vld [vmem:[%s2477 + $0x1d0] sm:$0xff]
        %v4609 = vld [vmem:[%s2477 + $0x1d8] sm:$0xff]
        %v4610 = vld [vmem:[%s2477 + $0x1e0] sm:$0xff]
        %v4611 = vld [vmem:[%s2477 + $0x1e8] sm:$0xff]
        %v4612 = vld [vmem:[%s2477 + $0x1f0] sm:$0xff]
        %v4613 = vld [vmem:[%s2477 + $0x1f8] sm:$0xff]
        %v4614 = vld [vmem:[%s2477 + $0x200] sm:$0xff]
        %v4615 = vld [vmem:[%s2477 + $0x208] sm:$0xff]
        %v4616 = vld [vmem:[%s2477 + $0x210] sm:$0xff]
        %v4617 = vld [vmem:[%s2477 + $0x218] sm:$0xff]
        %v4618 = vld [vmem:[%s2477 + $0x220] sm:$0xff]
        %v4619 = vld [vmem:[%s2477 + $0x228] sm:$0xff]
        %v4620 = vld [vmem:[%s2477 + $0x230] sm:$0xff]
        %v4621 = vld [vmem:[%s2477 + $0x238] sm:$0xff]
        %v4622 = vld [vmem:[%s2477 + $0x240] sm:$0xff]
        %v4623 = vld [vmem:[%s2477 + $0x248] sm:$0xff]
        %v4624 = vld [vmem:[%s2477 + $0x250] sm:$0xff]
        %v4625 = vld [vmem:[%s2477 + $0x258] sm:$0xff]
        %v4626 = vld [vmem:[%s2477 + $0x260] sm:$0xff]
        %v4627 = vld [vmem:[%s2477 + $0x268] sm:$0xff]
        %v4628 = vld [vmem:[%s2477 + $0x270] sm:$0xff]
        %v4629 = vld [vmem:[%s2477 + $0x278] sm:$0xff]
        %v4630 = vld [vmem:[%s2477 + $0x280] sm:$0xff]
        %v4631 = vld [vmem:[%s2477 + $0x288] sm:$0xff]
        %v4632 = vld [vmem:[%s2477 + $0x290] sm:$0xff]
        %v4633 = vld [vmem:[%s2477 + $0x298] sm:$0xff]
        %v4634 = vld [vmem:[%s2477 + $0x2a0] sm:$0xff]
        %v4635 = vld [vmem:[%s2477 + $0x2a8] sm:$0xff]
        %v4636 = vld [vmem:[%s2477 + $0x2b0] sm:$0xff]
        %v4637 = vld [vmem:[%s2477 + $0x2b8] sm:$0xff]
        %v4639 = vlaneseq
        %v4640 = vshrl.u32 %v4639, 7
        %v4641 = vsub.s32 0, %v4640
        %v4642 = vrot.slane %v4549, %v4641
        %v4643 = vlaneseq
        %v4644 = vshrl.u32 %v4643, 7
        %v4645 = vsub.s32 1, %v4644
        %v4646 = vrot.slane %v4549, %v4645
        %v4647 = vlaneseq
        %v4648 = vshrl.u32 %v4647, 7
        %v4649 = vsub.s32 2, %v4648
        %v4650 = vrot.slane %v4549, %v4649
        %v4653 = vsel %vm1971, %v4650, 0
        %4655 = vmatprep.subr.mxu0 %v4551
        %4656 = vmatpush1.msra.mxu0 %v4550
        %4657 = vmatprep.subr.mxu0 %v4553
        %4658 = vmatpush1.msra.mxu0 %v4552
        %4659 = vmatprep.subr.mxu0 %v4555
        %4660 = vmatpush1.msra.mxu0 %v4554
        %4661 = vmatprep.subr.mxu0 %v4557
        %4662 = vmatpush1.msra.mxu0 %v4556
        %4663 = vmatprep.subr.mxu0 %v4559
        %4664 = vmatpush1.msra.mxu0 %v4558
        %4665 = vmatprep.subr.mxu0 %v4561
        %4666 = vmatpush1.msra.mxu0 %v4560
        %4667 = vmatprep.subr.mxu0 %v4563
        %4668 = vmatpush1.msra.mxu0 %v4562
        %4669 = vmatprep.subr.mxu0 %v4565
        %4670 = vmatpush1.msra.mxu0 %v4564
        %4671 = vmatprep.subr.mxu0 %v4567
        %4672 = vmatpush1.msra.mxu0 %v4566
        %4673 = vmatprep.subr.mxu0 %v4569
        %4674 = vmatpush1.msra.mxu0 %v4568
        %4675 = vmatprep.subr.mxu0 %v4571
        %4676 = vmatpush1.msra.mxu0 %v4570
        %4677 = vmatprep.subr.mxu0 %v4573
        %4678 = vmatpush1.msra.mxu0 %v4572
        %4679 = vmatprep.subr.mxu0 %v4575
        %4680 = vmatpush1.msra.mxu0 %v4574
        %4681 = vmatprep.subr.mxu0 %v4577
        %4682 = vmatpush1.msra.mxu0 %v4576
        %4683 = vmatprep.subr.mxu0 %v4579
        %4684 = vmatpush1.msra.mxu0 %v4578
        %4685 = vmatprep.subr.mxu0 %v4581
        %4686 = vmatpush1.msra.mxu0 %v4580
        %4687 = vmatprep.subr.mxu0 %v4583
        %4688 = vmatpush1.msra.mxu0 %v4582
        %4689 = vmatprep.subr.mxu0 %v4585
        %4690 = vmatpush1.msra.mxu0 %v4584
        %4691 = vmatprep.subr.mxu0 %v4587
        %4692 = vmatpush1.msra.mxu0 %v4586
        %4693 = vmatprep.subr.mxu0 %v4589
        %4694 = vmatpush1.msra.mxu0 %v4588
        %4695 = vmatprep.subr.mxu0 %v4591
        %4696 = vmatpush1.msra.mxu0 %v4590
        %4697 = vmatprep.subr.mxu0 %v4593
        %4698 = vmatpush1.msra.mxu0 %v4592
        %4699 = vmatprep.subr.mxu0 %v4595
        %4700 = vmatpush1.msra.mxu0 %v4594
        %4701 = vmatprep.subr.mxu0 %v4597
        %4702 = vmatpush1.msra.mxu0 %v4596
        %4703 = vmatprep.subr.mxu0 %v4599
        %4704 = vmatpush1.msra.mxu0 %v4598
        %4705 = vmatprep.subr.mxu0 %v4601
        %4706 = vmatpush1.msra.mxu0 %v4600
        %4707 = vmatprep.subr.mxu0 %v4603
        %4708 = vmatpush1.msra.mxu0 %v4602
        %4709 = vmatprep.subr.mxu0 %v4605
        %4710 = vmatpush1.msra.mxu0 %v4604
        %4711 = vmatprep.subr.mxu0 %v4607
        %4712 = vmatpush1.msra.mxu0 %v4606
        %4713 = vmatprep.subr.mxu0 %v4609
        %4714 = vmatpush1.msra.mxu0 %v4608
        %4715 = vmatprep.subr.mxu0 %v4611
        %4716 = vmatpush1.msra.mxu0 %v4610
        %4717 = vmatprep.subr.mxu0 %v4613
        %4718 = vmatpush1.msra.mxu0 %v4612
        %4719 = vmatprep.mubr.f32.mxu0 %v4646
        %4720 = vmatmul.mubr.f32.gmra.mrb[0].mxu0 %v4642
        %v4721 = vpop.f32.mrb[0].mxu0
        %v4722 = vadd.f32 0.0, %v4721
        %v4723 = vpop.f32.mrb[0].mxu0
        %v4724 = vadd.f32 0.0, %v4723
        %4725 = vdwg.mxu0
        %4726 = vmatprep.subr.mxu0 %v4615
        %4727 = vmatpush1.msra.mxu0 %v4614
        %4728 = vmatprep.subr.mxu0 %v4617
        %4729 = vmatpush1.msra.mxu0 %v4616
        %4730 = vmatprep.subr.mxu0 %v4619
        %4731 = vmatpush1.msra.mxu0 %v4618
        %4732 = vmatprep.subr.mxu0 %v4621
        %4733 = vmatpush1.msra.mxu0 %v4620
        %4734 = vmatprep.subr.mxu0 %v4623
        %4735 = vmatpush1.msra.mxu0 %v4622
        %4736 = vmatprep.subr.mxu0 %v4625
        %4737 = vmatpush1.msra.mxu0 %v4624
        %4738 = vmatprep.subr.mxu0 %v4627
        %4739 = vmatpush1.msra.mxu0 %v4626
        %4740 = vmatprep.subr.mxu0 %v4629
        %4741 = vmatpush1.msra.mxu0 %v4628
        %4742 = vmatprep.subr.mxu0 %v4631
        %4743 = vmatpush1.msra.mxu0 %v4630
        %4744 = vmatprep.subr.mxu0 %v4633
        %4745 = vmatpush1.msra.mxu0 %v4632
        %4746 = vmatprep.subr.mxu0 %v4635
        %4747 = vmatpush1.msra.mxu0 %v4634
        %4748 = vmatprep.subr.mxu0 %v4637
        %4749 = vmatpush1.msra.mxu0 %v4636
        %4750 = vmatprep.subr.mxu0 0.0
        %4751 = vmatpush1.msra.mxu0 0.0
        %4752 = vmatprep.subr.mxu0 0.0
        %4753 = vmatpush1.msra.mxu0 0.0
        %4754 = vmatprep.subr.mxu0 0.0
        %4755 = vmatpush1.msra.mxu0 0.0
        %4756 = vmatprep.subr.mxu0 0.0
        %4757 = vmatpush1.msra.mxu0 0.0
        %4758 = vmatprep.subr.mxu0 0.0
        %4759 = vmatpush1.msra.mxu0 0.0
        %4760 = vmatprep.subr.mxu0 0.0
        %4761 = vmatpush1.msra.mxu0 0.0
        %4762 = vmatprep.subr.mxu0 0.0
        %4763 = vmatpush1.msra.mxu0 0.0
        %4764 = vmatprep.subr.mxu0 0.0
        %4765 = vmatpush1.msra.mxu0 0.0
        %4766 = vmatprep.subr.mxu0 0.0
        %4767 = vmatpush1.msra.mxu0 0.0
        %4768 = vmatprep.subr.mxu0 0.0
        %4769 = vmatpush1.msra.mxu0 0.0
        %4770 = vmatprep.subr.mxu0 0.0
        %4771 = vmatpush1.msra.mxu0 0.0
        %4772 = vmatprep.subr.mxu0 0.0
        %4773 = vmatpush1.msra.mxu0 0.0
        %4774 = vmatprep.subr.mxu0 0.0
        %4775 = vmatpush1.msra.mxu0 0.0
        %4776 = vmatprep.subr.mxu0 0.0
        %4777 = vmatpush1.msra.mxu0 0.0
        %4778 = vmatprep.subr.mxu0 0.0
        %4779 = vmatpush1.msra.mxu0 0.0
        %4780 = vmatprep.subr.mxu0 0.0
        %4781 = vmatpush1.msra.mxu0 0.0
        %4782 = vmatprep.subr.mxu0 0.0
        %4783 = vmatpush1.msra.mxu0 0.0
        %4784 = vmatprep.subr.mxu0 0.0
        %4785 = vmatpush1.msra.mxu0 0.0
        %4786 = vmatprep.subr.mxu0 0.0
        %4787 = vmatpush1.msra.mxu0 0.0
        %4788 = vmatprep.subr.mxu0 0.0
        %4789 = vmatpush1.msra.mxu0 0.0
        %4790 = vmatprep.mubr.f32.mxu0 0.0
        %4791 = vmatmul.mubr.f32.gmra.mrb[0].mxu0 %v4653
        %v4792 = vpop.f32.mrb[0].mxu0
        %v4793 = vadd.f32 %v4722, %v4792
        %v4794 = vpop.f32.mrb[0].mxu0
        %v4795 = vadd.f32 %v4724, %v4794
        %4796 = vdwg.mxu0
        %v4797 = vadd.f32 %v4544, %v4793
        %v4798 = vadd.f32 %v4546, %v4795
        %s4799 = scalar_lea.vmem [#allocation2], 7
        %v4800 = vld [vmem:[%s4799] ss:$8 sm:$0x7]
        %v4801 = vld [vmem:[%s2729] sm:$0xff]
        %v4802 = vld [vmem:[%s2729 + $0x8] sm:$0xff]
        %v4803 = vld [vmem:[%s2729 + $0x10] sm:$0xff]
        %v4804 = vld [vmem:[%s2729 + $0x18] sm:$0xff]
        %v4805 = vld [vmem:[%s2729 + $0x20] sm:$0xff]
        %v4806 = vld [vmem:[%s2729 + $0x28] sm:$0xff]
        %v4807 = vld [vmem:[%s2729 + $0x30] sm:$0xff]
        %v4808 = vld [vmem:[%s2729 + $0x38] sm:$0xff]
        %v4809 = vld [vmem:[%s2729 + $0x40] sm:$0xff]
        %v4810 = vld [vmem:[%s2729 + $0x48] sm:$0xff]
        %v4811 = vld [vmem:[%s2729 + $0x50] sm:$0xff]
        %v4812 = vld [vmem:[%s2729 + $0x58] sm:$0xff]
        %v4813 = vld [vmem:[%s2729 + $0x60] sm:$0xff]
        %v4814 = vld [vmem:[%s2729 + $0x68] sm:$0xff]
        %v4815 = vld [vmem:[%s2729 + $0x70] sm:$0xff]
        %v4816 = vld [vmem:[%s2729 + $0x78] sm:$0xff]
        %v4817 = vld [vmem:[%s2729 + $0x80] sm:$0xff]
        %v4818 = vld [vmem:[%s2729 + $0x88] sm:$0xff]
        %v4819 = vld [vmem:[%s2729 + $0x90] sm:$0xff]
        %v4820 = vld [vmem:[%s2729 + $0x98] sm:$0xff]
        %v4821 = vld [vmem:[%s2729 + $0xa0] sm:$0xff]
        %v4822 = vld [vmem:[%s2729 + $0xa8] sm:$0xff]
        %v4823 = vld [vmem:[%s2729 + $0xb0] sm:$0xff]
        %v4824 = vld [vmem:[%s2729 + $0xb8] sm:$0xff]
        %v4825 = vld [vmem:[%s2729 + $0xc0] sm:$0xff]
        %v4826 = vld [vmem:[%s2729 + $0xc8] sm:$0xff]
        %v4827 = vld [vmem:[%s2729 + $0xd0] sm:$0xff]
        %v4828 = vld [vmem:[%s2729 + $0xd8] sm:$0xff]
        %v4829 = vld [vmem:[%s2729 + $0xe0] sm:$0xff]
        %v4830 = vld [vmem:[%s2729 + $0xe8] sm:$0xff]
        %v4831 = vld [vmem:[%s2729 + $0xf0] sm:$0xff]
        %v4832 = vld [vmem:[%s2729 + $0xf8] sm:$0xff]
        %v4833 = vld [vmem:[%s2729 + $0x100] sm:$0xff]
        %v4834 = vld [vmem:[%s2729 + $0x108] sm:$0xff]
        %v4835 = vld [vmem:[%s2729 + $0x110] sm:$0xff]
        %v4836 = vld [vmem:[%s2729 + $0x118] sm:$0xff]
        %v4837 = vld [vmem:[%s2729 + $0x120] sm:$0xff]
        %v4838 = vld [vmem:[%s2729 + $0x128] sm:$0xff]
        %v4839 = vld [vmem:[%s2729 + $0x130] sm:$0xff]
        %v4840 = vld [vmem:[%s2729 + $0x138] sm:$0xff]
        %v4841 = vld [vmem:[%s2729 + $0x140] sm:$0xff]
        %v4842 = vld [vmem:[%s2729 + $0x148] sm:$0xff]
        %v4843 = vld [vmem:[%s2729 + $0x150] sm:$0xff]
        %v4844 = vld [vmem:[%s2729 + $0x158] sm:$0xff]
        %v4845 = vld [vmem:[%s2729 + $0x160] sm:$0xff]
        %v4846 = vld [vmem:[%s2729 + $0x168] sm:$0xff]
        %v4847 = vld [vmem:[%s2729 + $0x170] sm:$0xff]
        %v4848 = vld [vmem:[%s2729 + $0x178] sm:$0xff]
        %v4849 = vld [vmem:[%s2729 + $0x180] sm:$0xff]
        %v4850 = vld [vmem:[%s2729 + $0x188] sm:$0xff]
        %v4851 = vld [vmem:[%s2729 + $0x190] sm:$0xff]
        %v4852 = vld [vmem:[%s2729 + $0x198] sm:$0xff]
        %v4853 = vld [vmem:[%s2729 + $0x1a0] sm:$0xff]
        %v4854 = vld [vmem:[%s2729 + $0x1a8] sm:$0xff]
        %v4855 = vld [vmem:[%s2729 + $0x1b0] sm:$0xff]
        %v4856 = vld [vmem:[%s2729 + $0x1b8] sm:$0xff]
        %v4857 = vld [vmem:[%s2729 + $0x1c0] sm:$0xff]
        %v4858 = vld [vmem:[%s2729 + $0x1c8] sm:$0xff]
        %v4859 = vld [vmem:[%s2729 + $0x1d0] sm:$0xff]
        %v4860 = vld [vmem:[%s2729 + $0x1d8] sm:$0xff]
        %v4861 = vld [vmem:[%s2729 + $0x1e0] sm:$0xff]
        %v4862 = vld [vmem:[%s2729 + $0x1e8] sm:$0xff]
        %v4863 = vld [vmem:[%s2729 + $0x1f0] sm:$0xff]
        %v4864 = vld [vmem:[%s2729 + $0x1f8] sm:$0xff]
        %v4865 = vld [vmem:[%s2729 + $0x200] sm:$0xff]
        %v4866 = vld [vmem:[%s2729 + $0x208] sm:$0xff]
        %v4867 = vld [vmem:[%s2729 + $0x210] sm:$0xff]
        %v4868 = vld [vmem:[%s2729 + $0x218] sm:$0xff]
        %v4869 = vld [vmem:[%s2729 + $0x220] sm:$0xff]
        %v4870 = vld [vmem:[%s2729 + $0x228] sm:$0xff]
        %v4871 = vld [vmem:[%s2729 + $0x230] sm:$0xff]
        %v4872 = vld [vmem:[%s2729 + $0x238] sm:$0xff]
        %v4873 = vld [vmem:[%s2729 + $0x240] sm:$0xff]
        %v4874 = vld [vmem:[%s2729 + $0x248] sm:$0xff]
        %v4875 = vld [vmem:[%s2729 + $0x250] sm:$0xff]
        %v4876 = vld [vmem:[%s2729 + $0x258] sm:$0xff]
        %v4877 = vld [vmem:[%s2729 + $0x260] sm:$0xff]
        %v4878 = vld [vmem:[%s2729 + $0x268] sm:$0xff]
        %v4879 = vld [vmem:[%s2729 + $0x270] sm:$0xff]
        %v4880 = vld [vmem:[%s2729 + $0x278] sm:$0xff]
        %v4881 = vld [vmem:[%s2729 + $0x280] sm:$0xff]
        %v4882 = vld [vmem:[%s2729 + $0x288] sm:$0xff]
        %v4883 = vld [vmem:[%s2729 + $0x290] sm:$0xff]
        %v4884 = vld [vmem:[%s2729 + $0x298] sm:$0xff]
        %v4885 = vld [vmem:[%s2729 + $0x2a0] sm:$0xff]
        %v4886 = vld [vmem:[%s2729 + $0x2a8] sm:$0xff]
        %v4887 = vld [vmem:[%s2729 + $0x2b0] sm:$0xff]
        %v4888 = vld [vmem:[%s2729 + $0x2b8] sm:$0xff]
        %v4890 = vlaneseq
        %v4891 = vshrl.u32 %v4890, 7
        %v4892 = vsub.s32 0, %v4891
        %v4893 = vrot.slane %v4800, %v4892
        %v4894 = vlaneseq
        %v4895 = vshrl.u32 %v4894, 7
        %v4896 = vsub.s32 1, %v4895
        %v4897 = vrot.slane %v4800, %v4896
        %v4898 = vlaneseq
        %v4899 = vshrl.u32 %v4898, 7
        %v4900 = vsub.s32 2, %v4899
        %v4901 = vrot.slane %v4800, %v4900
        %v4904 = vsel %vm1971, %v4901, 0
        %4906 = vmatprep.subr.mxu0 %v4802
        %4907 = vmatpush1.msra.mxu0 %v4801
        %4908 = vmatprep.subr.mxu0 %v4804
        %4909 = vmatpush1.msra.mxu0 %v4803
        %4910 = vmatprep.subr.mxu0 %v4806
        %4911 = vmatpush1.msra.mxu0 %v4805
        %4912 = vmatprep.subr.mxu0 %v4808
        %4913 = vmatpush1.msra.mxu0 %v4807
        %4914 = vmatprep.subr.mxu0 %v4810
        %4915 = vmatpush1.msra.mxu0 %v4809
        %4916 = vmatprep.subr.mxu0 %v4812
        %4917 = vmatpush1.msra.mxu0 %v4811
        %4918 = vmatprep.subr.mxu0 %v4814
        %4919 = vmatpush1.msra.mxu0 %v4813
        %4920 = vmatprep.subr.mxu0 %v4816
        %4921 = vmatpush1.msra.mxu0 %v4815
        %4922 = vmatprep.subr.mxu0 %v4818
        %4923 = vmatpush1.msra.mxu0 %v4817
        %4924 = vmatprep.subr.mxu0 %v4820
        %4925 = vmatpush1.msra.mxu0 %v4819
        %4926 = vmatprep.subr.mxu0 %v4822
        %4927 = vmatpush1.msra.mxu0 %v4821
        %4928 = vmatprep.subr.mxu0 %v4824
        %4929 = vmatpush1.msra.mxu0 %v4823
        %4930 = vmatprep.subr.mxu0 %v4826
        %4931 = vmatpush1.msra.mxu0 %v4825
        %4932 = vmatprep.subr.mxu0 %v4828
        %4933 = vmatpush1.msra.mxu0 %v4827
        %4934 = vmatprep.subr.mxu0 %v4830
        %4935 = vmatpush1.msra.mxu0 %v4829
        %4936 = vmatprep.subr.mxu0 %v4832
        %4937 = vmatpush1.msra.mxu0 %v4831
        %4938 = vmatprep.subr.mxu0 %v4834
        %4939 = vmatpush1.msra.mxu0 %v4833
        %4940 = vmatprep.subr.mxu0 %v4836
        %4941 = vmatpush1.msra.mxu0 %v4835
        %4942 = vmatprep.subr.mxu0 %v4838
        %4943 = vmatpush1.msra.mxu0 %v4837
        %4944 = vmatprep.subr.mxu0 %v4840
        %4945 = vmatpush1.msra.mxu0 %v4839
        %4946 = vmatprep.subr.mxu0 %v4842
        %4947 = vmatpush1.msra.mxu0 %v4841
        %4948 = vmatprep.subr.mxu0 %v4844
        %4949 = vmatpush1.msra.mxu0 %v4843
        %4950 = vmatprep.subr.mxu0 %v4846
        %4951 = vmatpush1.msra.mxu0 %v4845
        %4952 = vmatprep.subr.mxu0 %v4848
        %4953 = vmatpush1.msra.mxu0 %v4847
        %4954 = vmatprep.subr.mxu0 %v4850
        %4955 = vmatpush1.msra.mxu0 %v4849
        %4956 = vmatprep.subr.mxu0 %v4852
        %4957 = vmatpush1.msra.mxu0 %v4851
        %4958 = vmatprep.subr.mxu0 %v4854
        %4959 = vmatpush1.msra.mxu0 %v4853
        %4960 = vmatprep.subr.mxu0 %v4856
        %4961 = vmatpush1.msra.mxu0 %v4855
        %4962 = vmatprep.subr.mxu0 %v4858
        %4963 = vmatpush1.msra.mxu0 %v4857
        %4964 = vmatprep.subr.mxu0 %v4860
        %4965 = vmatpush1.msra.mxu0 %v4859
        %4966 = vmatprep.subr.mxu0 %v4862
        %4967 = vmatpush1.msra.mxu0 %v4861
        %4968 = vmatprep.subr.mxu0 %v4864
        %4969 = vmatpush1.msra.mxu0 %v4863
        %4970 = vmatprep.mubr.f32.mxu0 %v4897
        %4971 = vmatmul.mubr.f32.gmra.mrb[0].mxu0 %v4893
        %v4972 = vpop.f32.mrb[0].mxu0
        %v4973 = vadd.f32 0.0, %v4972
        %v4974 = vpop.f32.mrb[0].mxu0
        %v4975 = vadd.f32 0.0, %v4974
        %4976 = vdwg.mxu0
        %4977 = vmatprep.subr.mxu0 %v4866
        %4978 = vmatpush1.msra.mxu0 %v4865
        %4979 = vmatprep.subr.mxu0 %v4868
        %4980 = vmatpush1.msra.mxu0 %v4867
        %4981 = vmatprep.subr.mxu0 %v4870
        %4982 = vmatpush1.msra.mxu0 %v4869
        %4983 = vmatprep.subr.mxu0 %v4872
        %4984 = vmatpush1.msra.mxu0 %v4871
        %4985 = vmatprep.subr.mxu0 %v4874
        %4986 = vmatpush1.msra.mxu0 %v4873
        %4987 = vmatprep.subr.mxu0 %v4876
        %4988 = vmatpush1.msra.mxu0 %v4875
        %4989 = vmatprep.subr.mxu0 %v4878
        %4990 = vmatpush1.msra.mxu0 %v4877
        %4991 = vmatprep.subr.mxu0 %v4880
        %4992 = vmatpush1.msra.mxu0 %v4879
        %4993 = vmatprep.subr.mxu0 %v4882
        %4994 = vmatpush1.msra.mxu0 %v4881
        %4995 = vmatprep.subr.mxu0 %v4884
        %4996 = vmatpush1.msra.mxu0 %v4883
        %4997 = vmatprep.subr.mxu0 %v4886
        %4998 = vmatpush1.msra.mxu0 %v4885
        %4999 = vmatprep.subr.mxu0 %v4888
        %5000 = vmatpush1.msra.mxu0 %v4887
        %5001 = vmatprep.subr.mxu0 0.0
        %5002 = vmatpush1.msra.mxu0 0.0
        %5003 = vmatprep.subr.mxu0 0.0
        %5004 = vmatpush1.msra.mxu0 0.0
        %5005 = vmatprep.subr.mxu0 0.0
        %5006 = vmatpush1.msra.mxu0 0.0
        %5007 = vmatprep.subr.mxu0 0.0
        %5008 = vmatpush1.msra.mxu0 0.0
        %5009 = vmatprep.subr.mxu0 0.0
        %5010 = vmatpush1.msra.mxu0 0.0
        %5011 = vmatprep.subr.mxu0 0.0
        %5012 = vmatpush1.msra.mxu0 0.0
        %5013 = vmatprep.subr.mxu0 0.0
        %5014 = vmatpush1.msra.mxu0 0.0
        %5015 = vmatprep.subr.mxu0 0.0
        %5016 = vmatpush1.msra.mxu0 0.0
        %5017 = vmatprep.subr.mxu0 0.0
        %5018 = vmatpush1.msra.mxu0 0.0
        %5019 = vmatprep.subr.mxu0 0.0
        %5020 = vmatpush1.msra.mxu0 0.0
        %5021 = vmatprep.subr.mxu0 0.0
        %5022 = vmatpush1.msra.mxu0 0.0
        %5023 = vmatprep.subr.mxu0 0.0
        %5024 = vmatpush1.msra.mxu0 0.0
        %5025 = vmatprep.subr.mxu0 0.0
        %5026 = vmatpush1.msra.mxu0 0.0
        %5027 = vmatprep.subr.mxu0 0.0
        %5028 = vmatpush1.msra.mxu0 0.0
        %5029 = vmatprep.subr.mxu0 0.0
        %5030 = vmatpush1.msra.mxu0 0.0
        %5031 = vmatprep.subr.mxu0 0.0
        %5032 = vmatpush1.msra.mxu0 0.0
        %5033 = vmatprep.subr.mxu0 0.0
        %5034 = vmatpush1.msra.mxu0 0.0
        %5035 = vmatprep.subr.mxu0 0.0
        %5036 = vmatpush1.msra.mxu0 0.0
        %5037 = vmatprep.subr.mxu0 0.0
        %5038 = vmatpush1.msra.mxu0 0.0
        %5039 = vmatprep.subr.mxu0 0.0
        %5040 = vmatpush1.msra.mxu0 0.0
        %5041 = vmatprep.mubr.f32.mxu0 0.0
        %5042 = vmatmul.mubr.f32.gmra.mrb[0].mxu0 %v4904
        %v5043 = vpop.f32.mrb[0].mxu0
        %v5044 = vadd.f32 %v4973, %v5043
        %v5045 = vpop.f32.mrb[0].mxu0
        %v5046 = vadd.f32 %v4975, %v5045
        %5047 = vdwg.mxu0
        %v5048 = vadd.f32 %v4797, %v5044
        %v5049 = vadd.f32 %v4798, %v5046
        %v5050 = vld [vmem:[%s4] sm:$0x3]
        %v5052 = vlaneseq
        %v5053 = vshrl.u32 %v5052, 7
        %v5054 = vsub.s32 0, %v5053
        %v5055 = vrot.slane %v5050, %v5054
        %v5056 = vlaneseq
        %v5057 = vshrl.u32 %v5056, 7
        %v5058 = vsub.s32 1, %v5057
        %v5059 = vrot.slane %v5050, %v5058
        %v5062 = vadd.f32 %v5048, %v5055
        %v5063 = vadd.f32 %v5049, %v5059
        %v5064 = vmax.f32 %v5062, 0.0
        %v5065 = vmax.f32 %v5063, 0.0
        %v5068 = vcombine.low %v5064, %v5065
        %v5070 = vunpack.c.l.s4 1966171168
        %v5071 = vunpack.c.0.s8 %v5070
        %v5072 = vlaneseq
        %v5073 = vshrl.u32 %v5072, 7
        %v5074 = vsub.s32 %v5071, %v5073
        %v5075 = vrot.slane %v5068, %v5074
        %v5077 = vunpack.c.l.s4 1966171168
        %v5078 = vunpack.c.0.s8 %v5077
        %v5079 = vlaneseq
        %v5080 = vshrl.u32 %v5079, 7
        %v5081 = vsub.s32 %v5078, %v5080
        %v5082 = vrot.slane %v5075, %v5081
        %s5084 = scalar_lea.vmem [#allocation3], 2
        %5085 = vst.msk [vmem:[%s5084] ss:$4 sm:$0x3] %vm3016, %v5082
        %v5086 = vld [vmem:[%s4548] ss:$8 sm:$0x7]
        %v5087 = vld [vmem:[%s3] sm:$0xff]
        %v5088 = vld [vmem:[%s3 + $0x8] sm:$0xff]
        %v5089 = vld [vmem:[%s3 + $0x10] sm:$0xff]
        %v5090 = vld [vmem:[%s3 + $0x18] sm:$0xff]
        %v5091 = vld [vmem:[%s3 + $0x20] sm:$0xff]
        %v5092 = vld [vmem:[%s3 + $0x28] sm:$0xff]
        %v5093 = vld [vmem:[%s3 + $0x30] sm:$0xff]
        %v5094 = vld [vmem:[%s3 + $0x38] sm:$0xff]
        %v5095 = vld [vmem:[%s3 + $0x40] sm:$0xff]
        %v5096 = vld [vmem:[%s3 + $0x48] sm:$0xff]
        %v5097 = vld [vmem:[%s3 + $0x50] sm:$0xff]
        %v5098 = vld [vmem:[%s3 + $0x58] sm:$0xff]
        %v5099 = vld [vmem:[%s3 + $0x60] sm:$0xff]
        %v5100 = vld [vmem:[%s3 + $0x68] sm:$0xff]
        %v5101 = vld [vmem:[%s3 + $0x70] sm:$0xff]
        %v5102 = vld [vmem:[%s3 + $0x78] sm:$0xff]
        %v5103 = vld [vmem:[%s3 + $0x80] sm:$0xff]
        %v5104 = vld [vmem:[%s3 + $0x88] sm:$0xff]
        %v5105 = vld [vmem:[%s3 + $0x90] sm:$0xff]
        %v5106 = vld [vmem:[%s3 + $0x98] sm:$0xff]
        %v5107 = vld [vmem:[%s3 + $0xa0] sm:$0xff]
        %v5108 = vld [vmem:[%s3 + $0xa8] sm:$0xff]
        %v5109 = vld [vmem:[%s3 + $0xb0] sm:$0xff]
        %v5110 = vld [vmem:[%s3 + $0xb8] sm:$0xff]
        %v5111 = vld [vmem:[%s3 + $0xc0] sm:$0xff]
        %v5112 = vld [vmem:[%s3 + $0xc8] sm:$0xff]
        %v5113 = vld [vmem:[%s3 + $0xd0] sm:$0xff]
        %v5114 = vld [vmem:[%s3 + $0xd8] sm:$0xff]
        %v5115 = vld [vmem:[%s3 + $0xe0] sm:$0xff]
        %v5116 = vld [vmem:[%s3 + $0xe8] sm:$0xff]
        %v5117 = vld [vmem:[%s3 + $0xf0] sm:$0xff]
        %v5118 = vld [vmem:[%s3 + $0xf8] sm:$0xff]
        %v5119 = vld [vmem:[%s3 + $0x100] sm:$0xff]
        %v5120 = vld [vmem:[%s3 + $0x108] sm:$0xff]
        %v5121 = vld [vmem:[%s3 + $0x110] sm:$0xff]
        %v5122 = vld [vmem:[%s3 + $0x118] sm:$0xff]
        %v5123 = vld [vmem:[%s3 + $0x120] sm:$0xff]
        %v5124 = vld [vmem:[%s3 + $0x128] sm:$0xff]
        %v5125 = vld [vmem:[%s3 + $0x130] sm:$0xff]
        %v5126 = vld [vmem:[%s3 + $0x138] sm:$0xff]
        %v5127 = vld [vmem:[%s3 + $0x140] sm:$0xff]
        %v5128 = vld [vmem:[%s3 + $0x148] sm:$0xff]
        %v5129 = vld [vmem:[%s3 + $0x150] sm:$0xff]
        %v5130 = vld [vmem:[%s3 + $0x158] sm:$0xff]
        %v5131 = vld [vmem:[%s3 + $0x160] sm:$0xff]
        %v5132 = vld [vmem:[%s3 + $0x168] sm:$0xff]
        %v5133 = vld [vmem:[%s3 + $0x170] sm:$0xff]
        %v5134 = vld [vmem:[%s3 + $0x178] sm:$0xff]
        %v5135 = vld [vmem:[%s3 + $0x180] sm:$0xff]
        %v5136 = vld [vmem:[%s3 + $0x188] sm:$0xff]
        %v5137 = vld [vmem:[%s3 + $0x190] sm:$0xff]
        %v5138 = vld [vmem:[%s3 + $0x198] sm:$0xff]
        %v5139 = vld [vmem:[%s3 + $0x1a0] sm:$0xff]
        %v5140 = vld [vmem:[%s3 + $0x1a8] sm:$0xff]
        %v5141 = vld [vmem:[%s3 + $0x1b0] sm:$0xff]
        %v5142 = vld [vmem:[%s3 + $0x1b8] sm:$0xff]
        %v5143 = vld [vmem:[%s3 + $0x1c0] sm:$0xff]
        %v5144 = vld [vmem:[%s3 + $0x1c8] sm:$0xff]
        %v5145 = vld [vmem:[%s3 + $0x1d0] sm:$0xff]
        %v5146 = vld [vmem:[%s3 + $0x1d8] sm:$0xff]
        %v5147 = vld [vmem:[%s3 + $0x1e0] sm:$0xff]
        %v5148 = vld [vmem:[%s3 + $0x1e8] sm:$0xff]
        %v5149 = vld [vmem:[%s3 + $0x1f0] sm:$0xff]
        %v5150 = vld [vmem:[%s3 + $0x1f8] sm:$0xff]
        %v5151 = vld [vmem:[%s3 + $0x200] sm:$0xff]
        %v5152 = vld [vmem:[%s3 + $0x208] sm:$0xff]
        %v5153 = vld [vmem:[%s3 + $0x210] sm:$0xff]
        %v5154 = vld [vmem:[%s3 + $0x218] sm:$0xff]
        %v5155 = vld [vmem:[%s3 + $0x220] sm:$0xff]
        %v5156 = vld [vmem:[%s3 + $0x228] sm:$0xff]
        %v5157 = vld [vmem:[%s3 + $0x230] sm:$0xff]
        %v5158 = vld [vmem:[%s3 + $0x238] sm:$0xff]
        %v5159 = vld [vmem:[%s3 + $0x240] sm:$0xff]
        %v5160 = vld [vmem:[%s3 + $0x248] sm:$0xff]
        %v5161 = vld [vmem:[%s3 + $0x250] sm:$0xff]
        %v5162 = vld [vmem:[%s3 + $0x258] sm:$0xff]
        %v5163 = vld [vmem:[%s3 + $0x260] sm:$0xff]
        %v5164 = vld [vmem:[%s3 + $0x268] sm:$0xff]
        %v5165 = vld [vmem:[%s3 + $0x270] sm:$0xff]
        %v5166 = vld [vmem:[%s3 + $0x278] sm:$0xff]
        %v5167 = vld [vmem:[%s3 + $0x280] sm:$0xff]
        %v5168 = vld [vmem:[%s3 + $0x288] sm:$0xff]
        %v5169 = vld [vmem:[%s3 + $0x290] sm:$0xff]
        %v5170 = vld [vmem:[%s3 + $0x298] sm:$0xff]
        %v5171 = vld [vmem:[%s3 + $0x2a0] sm:$0xff]
        %v5172 = vld [vmem:[%s3 + $0x2a8] sm:$0xff]
        %v5173 = vld [vmem:[%s3 + $0x2b0] sm:$0xff]
        %v5174 = vld [vmem:[%s3 + $0x2b8] sm:$0xff]
        %v5175 = vld [vmem:[%s4799] ss:$8 sm:$0x7]
        %v5176 = vld [vmem:[%s2068] sm:$0xff]
        %v5177 = vld [vmem:[%s2068 + $0x8] sm:$0xff]
        %v5178 = vld [vmem:[%s2068 + $0x10] sm:$0xff]
        %v5179 = vld [vmem:[%s2068 + $0x18] sm:$0xff]
        %v5180 = vld [vmem:[%s2068 + $0x20] sm:$0xff]
        %v5181 = vld [vmem:[%s2068 + $0x28] sm:$0xff]
        %v5182 = vld [vmem:[%s2068 + $0x30] sm:$0xff]
        %v5183 = vld [vmem:[%s2068 + $0x38] sm:$0xff]
        %v5184 = vld [vmem:[%s2068 + $0x40] sm:$0xff]
        %v5185 = vld [vmem:[%s2068 + $0x48] sm:$0xff]
        %v5186 = vld [vmem:[%s2068 + $0x50] sm:$0xff]
        %v5187 = vld [vmem:[%s2068 + $0x58] sm:$0xff]
        %v5188 = vld [vmem:[%s2068 + $0x60] sm:$0xff]
        %v5189 = vld [vmem:[%s2068 + $0x68] sm:$0xff]
        %v5190 = vld [vmem:[%s2068 + $0x70] sm:$0xff]
        %v5191 = vld [vmem:[%s2068 + $0x78] sm:$0xff]
        %v5192 = vld [vmem:[%s2068 + $0x80] sm:$0xff]
        %v5193 = vld [vmem:[%s2068 + $0x88] sm:$0xff]
        %v5194 = vld [vmem:[%s2068 + $0x90] sm:$0xff]
        %v5195 = vld [vmem:[%s2068 + $0x98] sm:$0xff]
        %v5196 = vld [vmem:[%s2068 + $0xa0] sm:$0xff]
        %v5197 = vld [vmem:[%s2068 + $0xa8] sm:$0xff]
        %v5198 = vld [vmem:[%s2068 + $0xb0] sm:$0xff]
        %v5199 = vld [vmem:[%s2068 + $0xb8] sm:$0xff]
        %v5200 = vld [vmem:[%s2068 + $0xc0] sm:$0xff]
        %v5201 = vld [vmem:[%s2068 + $0xc8] sm:$0xff]
        %v5202 = vld [vmem:[%s2068 + $0xd0] sm:$0xff]
        %v5203 = vld [vmem:[%s2068 + $0xd8] sm:$0xff]
        %v5204 = vld [vmem:[%s2068 + $0xe0] sm:$0xff]
        %v5205 = vld [vmem:[%s2068 + $0xe8] sm:$0xff]
        %v5206 = vld [vmem:[%s2068 + $0xf0] sm:$0xff]
        %v5207 = vld [vmem:[%s2068 + $0xf8] sm:$0xff]
        %v5208 = vld [vmem:[%s2068 + $0x100] sm:$0xff]
        %v5209 = vld [vmem:[%s2068 + $0x108] sm:$0xff]
        %v5210 = vld [vmem:[%s2068 + $0x110] sm:$0xff]
        %v5211 = vld [vmem:[%s2068 + $0x118] sm:$0xff]
        %v5212 = vld [vmem:[%s2068 + $0x120] sm:$0xff]
        %v5213 = vld [vmem:[%s2068 + $0x128] sm:$0xff]
        %v5214 = vld [vmem:[%s2068 + $0x130] sm:$0xff]
        %v5215 = vld [vmem:[%s2068 + $0x138] sm:$0xff]
        %v5216 = vld [vmem:[%s2068 + $0x140] sm:$0xff]
        %v5217 = vld [vmem:[%s2068 + $0x148] sm:$0xff]
        %v5218 = vld [vmem:[%s2068 + $0x150] sm:$0xff]
        %v5219 = vld [vmem:[%s2068 + $0x158] sm:$0xff]
        %v5220 = vld [vmem:[%s2068 + $0x160] sm:$0xff]
        %v5221 = vld [vmem:[%s2068 + $0x168] sm:$0xff]
        %v5222 = vld [vmem:[%s2068 + $0x170] sm:$0xff]
        %v5223 = vld [vmem:[%s2068 + $0x178] sm:$0xff]
        %v5224 = vld [vmem:[%s2068 + $0x180] sm:$0xff]
        %v5225 = vld [vmem:[%s2068 + $0x188] sm:$0xff]
        %v5226 = vld [vmem:[%s2068 + $0x190] sm:$0xff]
        %v5227 = vld [vmem:[%s2068 + $0x198] sm:$0xff]
        %v5228 = vld [vmem:[%s2068 + $0x1a0] sm:$0xff]
        %v5229 = vld [vmem:[%s2068 + $0x1a8] sm:$0xff]
        %v5230 = vld [vmem:[%s2068 + $0x1b0] sm:$0xff]
        %v5231 = vld [vmem:[%s2068 + $0x1b8] sm:$0xff]
        %v5232 = vld [vmem:[%s2068 + $0x1c0] sm:$0xff]
        %v5233 = vld [vmem:[%s2068 + $0x1c8] sm:$0xff]
        %v5234 = vld [vmem:[%s2068 + $0x1d0] sm:$0xff]
        %v5235 = vld [vmem:[%s2068 + $0x1d8] sm:$0xff]
        %v5236 = vld [vmem:[%s2068 + $0x1e0] sm:$0xff]
        %v5237 = vld [vmem:[%s2068 + $0x1e8] sm:$0xff]
        %v5238 = vld [vmem:[%s2068 + $0x1f0] sm:$0xff]
        %v5239 = vld [vmem:[%s2068 + $0x1f8] sm:$0xff]
        %v5240 = vld [vmem:[%s2068 + $0x200] sm:$0xff]
        %v5241 = vld [vmem:[%s2068 + $0x208] sm:$0xff]
        %v5242 = vld [vmem:[%s2068 + $0x210] sm:$0xff]
        %v5243 = vld [vmem:[%s2068 + $0x218] sm:$0xff]
        %v5244 = vld [vmem:[%s2068 + $0x220] sm:$0xff]
        %v5245 = vld [vmem:[%s2068 + $0x228] sm:$0xff]
        %v5246 = vld [vmem:[%s2068 + $0x230] sm:$0xff]
        %v5247 = vld [vmem:[%s2068 + $0x238] sm:$0xff]
        %v5248 = vld [vmem:[%s2068 + $0x240] sm:$0xff]
        %v5249 = vld [vmem:[%s2068 + $0x248] sm:$0xff]
        %v5250 = vld [vmem:[%s2068 + $0x250] sm:$0xff]
        %v5251 = vld [vmem:[%s2068 + $0x258] sm:$0xff]
        %v5252 = vld [vmem:[%s2068 + $0x260] sm:$0xff]
        %v5253 = vld [vmem:[%s2068 + $0x268] sm:$0xff]
        %v5254 = vld [vmem:[%s2068 + $0x270] sm:$0xff]
        %v5255 = vld [vmem:[%s2068 + $0x278] sm:$0xff]
        %v5256 = vld [vmem:[%s2068 + $0x280] sm:$0xff]
        %v5257 = vld [vmem:[%s2068 + $0x288] sm:$0xff]
        %v5258 = vld [vmem:[%s2068 + $0x290] sm:$0xff]
        %v5259 = vld [vmem:[%s2068 + $0x298] sm:$0xff]
        %v5260 = vld [vmem:[%s2068 + $0x2a0] sm:$0xff]
        %v5261 = vld [vmem:[%s2068 + $0x2a8] sm:$0xff]
        %v5262 = vld [vmem:[%s2068 + $0x2b0] sm:$0xff]
        %v5263 = vld [vmem:[%s2068 + $0x2b8] sm:$0xff]
        %v5265 = vlaneseq
        %v5266 = vshrl.u32 %v5265, 7
        %v5267 = vsub.s32 0, %v5266
        %v5268 = vrot.slane %v5175, %v5267
        %v5269 = vlaneseq
        %v5270 = vshrl.u32 %v5269, 7
        %v5271 = vsub.s32 1, %v5270
        %v5272 = vrot.slane %v5175, %v5271
        %v5273 = vlaneseq
        %v5274 = vshrl.u32 %v5273, 7
        %v5275 = vsub.s32 2, %v5274
        %v5276 = vrot.slane %v5175, %v5275
        %v5279 = vsel %vm1971, %v5276, 0
        %5281 = vmatprep.subr.mxu0 %v5177
        %5282 = vmatpush1.msra.mxu0 %v5176
        %5283 = vmatprep.subr.mxu0 %v5179
        %5284 = vmatpush1.msra.mxu0 %v5178
        %5285 = vmatprep.subr.mxu0 %v5181
        %5286 = vmatpush1.msra.mxu0 %v5180
        %5287 = vmatprep.subr.mxu0 %v5183
        %5288 = vmatpush1.msra.mxu0 %v5182
        %5289 = vmatprep.subr.mxu0 %v5185
        %5290 = vmatpush1.msra.mxu0 %v5184
        %5291 = vmatprep.subr.mxu0 %v5187
        %5292 = vmatpush1.msra.mxu0 %v5186
        %5293 = vmatprep.subr.mxu0 %v5189
        %5294 = vmatpush1.msra.mxu0 %v5188
        %5295 = vmatprep.subr.mxu0 %v5191
        %5296 = vmatpush1.msra.mxu0 %v5190
        %5297 = vmatprep.subr.mxu0 %v5193
        %5298 = vmatpush1.msra.mxu0 %v5192
        %5299 = vmatprep.subr.mxu0 %v5195
        %5300 = vmatpush1.msra.mxu0 %v5194
        %5301 = vmatprep.subr.mxu0 %v5197
        %5302 = vmatpush1.msra.mxu0 %v5196
        %5303 = vmatprep.subr.mxu0 %v5199
        %5304 = vmatpush1.msra.mxu0 %v5198
        %5305 = vmatprep.subr.mxu0 %v5201
        %5306 = vmatpush1.msra.mxu0 %v5200
        %5307 = vmatprep.subr.mxu0 %v5203
        %5308 = vmatpush1.msra.mxu0 %v5202
        %5309 = vmatprep.subr.mxu0 %v5205
        %5310 = vmatpush1.msra.mxu0 %v5204
        %5311 = vmatprep.subr.mxu0 %v5207
        %5312 = vmatpush1.msra.mxu0 %v5206
        %5313 = vmatprep.subr.mxu0 %v5209
        %5314 = vmatpush1.msra.mxu0 %v5208
        %5315 = vmatprep.subr.mxu0 %v5211
        %5316 = vmatpush1.msra.mxu0 %v5210
        %5317 = vmatprep.subr.mxu0 %v5213
        %5318 = vmatpush1.msra.mxu0 %v5212
        %5319 = vmatprep.subr.mxu0 %v5215
        %5320 = vmatpush1.msra.mxu0 %v5214
        %5321 = vmatprep.subr.mxu0 %v5217
        %5322 = vmatpush1.msra.mxu0 %v5216
        %5323 = vmatprep.subr.mxu0 %v5219
        %5324 = vmatpush1.msra.mxu0 %v5218
        %5325 = vmatprep.subr.mxu0 %v5221
        %5326 = vmatpush1.msra.mxu0 %v5220
        %5327 = vmatprep.subr.mxu0 %v5223
        %5328 = vmatpush1.msra.mxu0 %v5222
        %5329 = vmatprep.subr.mxu0 %v5225
        %5330 = vmatpush1.msra.mxu0 %v5224
        %5331 = vmatprep.subr.mxu0 %v5227
        %5332 = vmatpush1.msra.mxu0 %v5226
        %5333 = vmatprep.subr.mxu0 %v5229
        %5334 = vmatpush1.msra.mxu0 %v5228
        %5335 = vmatprep.subr.mxu0 %v5231
        %5336 = vmatpush1.msra.mxu0 %v5230
        %5337 = vmatprep.subr.mxu0 %v5233
        %5338 = vmatpush1.msra.mxu0 %v5232
        %5339 = vmatprep.subr.mxu0 %v5235
        %5340 = vmatpush1.msra.mxu0 %v5234
        %5341 = vmatprep.subr.mxu0 %v5237
        %5342 = vmatpush1.msra.mxu0 %v5236
        %5343 = vmatprep.subr.mxu0 %v5239
        %5344 = vmatpush1.msra.mxu0 %v5238
        %5345 = vmatprep.mubr.f32.mxu0 %v5272
        %5346 = vmatmul.mubr.f32.gmra.mrb[0].mxu0 %v5268
        %v5347 = vpop.f32.mrb[0].mxu0
        %v5348 = vadd.f32 0.0, %v5347
        %v5349 = vpop.f32.mrb[0].mxu0
        %v5350 = vadd.f32 0.0, %v5349
        %5351 = vdwg.mxu0
        %5352 = vmatprep.subr.mxu0 %v5241
        %5353 = vmatpush1.msra.mxu0 %v5240
        %5354 = vmatprep.subr.mxu0 %v5243
        %5355 = vmatpush1.msra.mxu0 %v5242
        %5356 = vmatprep.subr.mxu0 %v5245
        %5357 = vmatpush1.msra.mxu0 %v5244
        %5358 = vmatprep.subr.mxu0 %v5247
        %5359 = vmatpush1.msra.mxu0 %v5246
        %5360 = vmatprep.subr.mxu0 %v5249
        %5361 = vmatpush1.msra.mxu0 %v5248
        %5362 = vmatprep.subr.mxu0 %v5251
        %5363 = vmatpush1.msra.mxu0 %v5250
        %5364 = vmatprep.subr.mxu0 %v5253
        %5365 = vmatpush1.msra.mxu0 %v5252
        %5366 = vmatprep.subr.mxu0 %v5255
        %5367 = vmatpush1.msra.mxu0 %v5254
        %5368 = vmatprep.subr.mxu0 %v5257
        %5369 = vmatpush1.msra.mxu0 %v5256
        %5370 = vmatprep.subr.mxu0 %v5259
        %5371 = vmatpush1.msra.mxu0 %v5258
        %5372 = vmatprep.subr.mxu0 %v5261
        %5373 = vmatpush1.msra.mxu0 %v5260
        %5374 = vmatprep.subr.mxu0 %v5263
        %5375 = vmatpush1.msra.mxu0 %v5262
        %5376 = vmatprep.subr.mxu0 0.0
        %5377 = vmatpush1.msra.mxu0 0.0
        %5378 = vmatprep.subr.mxu0 0.0
        %5379 = vmatpush1.msra.mxu0 0.0
        %5380 = vmatprep.subr.mxu0 0.0
        %5381 = vmatpush1.msra.mxu0 0.0
        %5382 = vmatprep.subr.mxu0 0.0
        %5383 = vmatpush1.msra.mxu0 0.0
        %5384 = vmatprep.subr.mxu0 0.0
        %5385 = vmatpush1.msra.mxu0 0.0
        %5386 = vmatprep.subr.mxu0 0.0
        %5387 = vmatpush1.msra.mxu0 0.0
        %5388 = vmatprep.subr.mxu0 0.0
        %5389 = vmatpush1.msra.mxu0 0.0
        %5390 = vmatprep.subr.mxu0 0.0
        %5391 = vmatpush1.msra.mxu0 0.0
        %5392 = vmatprep.subr.mxu0 0.0
        %5393 = vmatpush1.msra.mxu0 0.0
        %5394 = vmatprep.subr.mxu0 0.0
        %5395 = vmatpush1.msra.mxu0 0.0
        %5396 = vmatprep.subr.mxu0 0.0
        %5397 = vmatpush1.msra.mxu0 0.0
        %5398 = vmatprep.subr.mxu0 0.0
        %5399 = vmatpush1.msra.mxu0 0.0
        %5400 = vmatprep.subr.mxu0 0.0
        %5401 = vmatpush1.msra.mxu0 0.0
        %5402 = vmatprep.subr.mxu0 0.0
        %5403 = vmatpush1.msra.mxu0 0.0
        %5404 = vmatprep.subr.mxu0 0.0
        %5405 = vmatpush1.msra.mxu0 0.0
        %5406 = vmatprep.subr.mxu0 0.0
        %5407 = vmatpush1.msra.mxu0 0.0
        %5408 = vmatprep.subr.mxu0 0.0
        %5409 = vmatpush1.msra.mxu0 0.0
        %5410 = vmatprep.subr.mxu0 0.0
        %5411 = vmatpush1.msra.mxu0 0.0
        %5412 = vmatprep.subr.mxu0 0.0
        %5413 = vmatpush1.msra.mxu0 0.0
        %5414 = vmatprep.subr.mxu0 0.0
        %5415 = vmatpush1.msra.mxu0 0.0
        %5416 = vmatprep.mubr.f32.mxu0 0.0
        %5417 = vmatmul.mubr.f32.gmra.mrb[0].mxu0 %v5279
        %v5418 = vpop.f32.mrb[0].mxu0
        %v5419 = vadd.f32 %v5348, %v5418
        %v5420 = vpop.f32.mrb[0].mxu0
        %v5421 = vadd.f32 %v5350, %v5420
        %5422 = vdwg.mxu0
        %v5424 = vlaneseq
        %v5425 = vshrl.u32 %v5424, 7
        %v5426 = vsub.s32 0, %v5425
        %v5427 = vrot.slane %v5086, %v5426
        %v5428 = vlaneseq
        %v5429 = vshrl.u32 %v5428, 7
        %v5430 = vsub.s32 1, %v5429
        %v5431 = vrot.slane %v5086, %v5430
        %v5432 = vlaneseq
        %v5433 = vshrl.u32 %v5432, 7
        %v5434 = vsub.s32 2, %v5433
        %v5435 = vrot.slane %v5086, %v5434
        %v5438 = vsel %vm1971, %v5435, 0
        %5440 = vmatprep.subr.mxu0 %v5088
        %5441 = vmatpush1.msra.mxu0 %v5087
        %5442 = vmatprep.subr.mxu0 %v5090
        %5443 = vmatpush1.msra.mxu0 %v5089
        %5444 = vmatprep.subr.mxu0 %v5092
        %5445 = vmatpush1.msra.mxu0 %v5091
        %5446 = vmatprep.subr.mxu0 %v5094
        %5447 = vmatpush1.msra.mxu0 %v5093
        %5448 = vmatprep.subr.mxu0 %v5096
        %5449 = vmatpush1.msra.mxu0 %v5095
        %5450 = vmatprep.subr.mxu0 %v5098
        %5451 = vmatpush1.msra.mxu0 %v5097
        %5452 = vmatprep.subr.mxu0 %v5100
        %5453 = vmatpush1.msra.mxu0 %v5099
        %5454 = vmatprep.subr.mxu0 %v5102
        %5455 = vmatpush1.msra.mxu0 %v5101
        %5456 = vmatprep.subr.mxu0 %v5104
        %5457 = vmatpush1.msra.mxu0 %v5103
        %5458 = vmatprep.subr.mxu0 %v5106
        %5459 = vmatpush1.msra.mxu0 %v5105
        %5460 = vmatprep.subr.mxu0 %v5108
        %5461 = vmatpush1.msra.mxu0 %v5107
        %5462 = vmatprep.subr.mxu0 %v5110
        %5463 = vmatpush1.msra.mxu0 %v5109
        %5464 = vmatprep.subr.mxu0 %v5112
        %5465 = vmatpush1.msra.mxu0 %v5111
        %5466 = vmatprep.subr.mxu0 %v5114
        %5467 = vmatpush1.msra.mxu0 %v5113
        %5468 = vmatprep.subr.mxu0 %v5116
        %5469 = vmatpush1.msra.mxu0 %v5115
        %5470 = vmatprep.subr.mxu0 %v5118
        %5471 = vmatpush1.msra.mxu0 %v5117
        %5472 = vmatprep.subr.mxu0 %v5120
        %5473 = vmatpush1.msra.mxu0 %v5119
        %5474 = vmatprep.subr.mxu0 %v5122
        %5475 = vmatpush1.msra.mxu0 %v5121
        %5476 = vmatprep.subr.mxu0 %v5124
        %5477 = vmatpush1.msra.mxu0 %v5123
        %5478 = vmatprep.subr.mxu0 %v5126
        %5479 = vmatpush1.msra.mxu0 %v5125
        %5480 = vmatprep.subr.mxu0 %v5128
        %5481 = vmatpush1.msra.mxu0 %v5127
        %5482 = vmatprep.subr.mxu0 %v5130
        %5483 = vmatpush1.msra.mxu0 %v5129
        %5484 = vmatprep.subr.mxu0 %v5132
        %5485 = vmatpush1.msra.mxu0 %v5131
        %5486 = vmatprep.subr.mxu0 %v5134
        %5487 = vmatpush1.msra.mxu0 %v5133
        %5488 = vmatprep.subr.mxu0 %v5136
        %5489 = vmatpush1.msra.mxu0 %v5135
        %5490 = vmatprep.subr.mxu0 %v5138
        %5491 = vmatpush1.msra.mxu0 %v5137
        %5492 = vmatprep.subr.mxu0 %v5140
        %5493 = vmatpush1.msra.mxu0 %v5139
        %5494 = vmatprep.subr.mxu0 %v5142
        %5495 = vmatpush1.msra.mxu0 %v5141
        %5496 = vmatprep.subr.mxu0 %v5144
        %5497 = vmatpush1.msra.mxu0 %v5143
        %5498 = vmatprep.subr.mxu0 %v5146
        %5499 = vmatpush1.msra.mxu0 %v5145
        %5500 = vmatprep.subr.mxu0 %v5148
        %5501 = vmatpush1.msra.mxu0 %v5147
        %5502 = vmatprep.subr.mxu0 %v5150
        %5503 = vmatpush1.msra.mxu0 %v5149
        %5504 = vmatprep.mubr.f32.mxu0 %v5431
        %5505 = vmatmul.mubr.f32.gmra.mrb[0].mxu0 %v5427
        %v5506 = vpop.f32.mrb[0].mxu0
        %v5507 = vadd.f32 %v5419, %v5506
        %v5508 = vpop.f32.mrb[0].mxu0
        %v5509 = vadd.f32 %v5421, %v5508
        %5510 = vdwg.mxu0
        %5511 = vmatprep.subr.mxu0 %v5152
        %5512 = vmatpush1.msra.mxu0 %v5151
        %5513 = vmatprep.subr.mxu0 %v5154
        %5514 = vmatpush1.msra.mxu0 %v5153
        %5515 = vmatprep.subr.mxu0 %v5156
        %5516 = vmatpush1.msra.mxu0 %v5155
        %5517 = vmatprep.subr.mxu0 %v5158
        %5518 = vmatpush1.msra.mxu0 %v5157
        %5519 = vmatprep.subr.mxu0 %v5160
        %5520 = vmatpush1.msra.mxu0 %v5159
        %5521 = vmatprep.subr.mxu0 %v5162
        %5522 = vmatpush1.msra.mxu0 %v5161
        %5523 = vmatprep.subr.mxu0 %v5164
        %5524 = vmatpush1.msra.mxu0 %v5163
        %5525 = vmatprep.subr.mxu0 %v5166
        %5526 = vmatpush1.msra.mxu0 %v5165
        %5527 = vmatprep.subr.mxu0 %v5168
        %5528 = vmatpush1.msra.mxu0 %v5167
        %5529 = vmatprep.subr.mxu0 %v5170
        %5530 = vmatpush1.msra.mxu0 %v5169
        %5531 = vmatprep.subr.mxu0 %v5172
        %5532 = vmatpush1.msra.mxu0 %v5171
        %5533 = vmatprep.subr.mxu0 %v5174
        %5534 = vmatpush1.msra.mxu0 %v5173
        %5535 = vmatprep.subr.mxu0 0.0
        %5536 = vmatpush1.msra.mxu0 0.0
        %5537 = vmatprep.subr.mxu0 0.0
        %5538 = vmatpush1.msra.mxu0 0.0
        %5539 = vmatprep.subr.mxu0 0.0
        %5540 = vmatpush1.msra.mxu0 0.0
        %5541 = vmatprep.subr.mxu0 0.0
        %5542 = vmatpush1.msra.mxu0 0.0
        %5543 = vmatprep.subr.mxu0 0.0
        %5544 = vmatpush1.msra.mxu0 0.0
        %5545 = vmatprep.subr.mxu0 0.0
        %5546 = vmatpush1.msra.mxu0 0.0
        %5547 = vmatprep.subr.mxu0 0.0
        %5548 = vmatpush1.msra.mxu0 0.0
        %5549 = vmatprep.subr.mxu0 0.0
        %5550 = vmatpush1.msra.mxu0 0.0
        %5551 = vmatprep.subr.mxu0 0.0
        %5552 = vmatpush1.msra.mxu0 0.0
        %5553 = vmatprep.subr.mxu0 0.0
        %5554 = vmatpush1.msra.mxu0 0.0
        %5555 = vmatprep.subr.mxu0 0.0
        %5556 = vmatpush1.msra.mxu0 0.0
        %5557 = vmatprep.subr.mxu0 0.0
        %5558 = vmatpush1.msra.mxu0 0.0
        %5559 = vmatprep.subr.mxu0 0.0
        %5560 = vmatpush1.msra.mxu0 0.0
        %5561 = vmatprep.subr.mxu0 0.0
        %5562 = vmatpush1.msra.mxu0 0.0
        %5563 = vmatprep.subr.mxu0 0.0
        %5564 = vmatpush1.msra.mxu0 0.0
        %5565 = vmatprep.subr.mxu0 0.0
        %5566 = vmatpush1.msra.mxu0 0.0
        %5567 = vmatprep.subr.mxu0 0.0
        %5568 = vmatpush1.msra.mxu0 0.0
        %5569 = vmatprep.subr.mxu0 0.0
        %5570 = vmatpush1.msra.mxu0 0.0
        %5571 = vmatprep.subr.mxu0 0.0
        %5572 = vmatpush1.msra.mxu0 0.0
        %5573 = vmatprep.subr.mxu0 0.0
        %5574 = vmatpush1.msra.mxu0 0.0
        %5575 = vmatprep.mubr.f32.mxu0 0.0
        %5576 = vmatmul.mubr.f32.gmra.mrb[0].mxu0 %v5438
        %v5577 = vpop.f32.mrb[0].mxu0
        %v5578 = vadd.f32 %v5507, %v5577
        %v5579 = vpop.f32.mrb[0].mxu0
        %v5580 = vadd.f32 %v5509, %v5579
        %5581 = vdwg.mxu0
        %s5582 = scalar_lea.vmem [#allocation2], 24
        %v5583 = vld [vmem:[%s5582] ss:$8 sm:$0x7]
        %v5584 = vld [vmem:[%s2477] sm:$0xff]
        %v5585 = vld [vmem:[%s2477 + $0x8] sm:$0xff]
        %v5586 = vld [vmem:[%s2477 + $0x10] sm:$0xff]
        %v5587 = vld [vmem:[%s2477 + $0x18] sm:$0xff]
        %v5588 = vld [vmem:[%s2477 + $0x20] sm:$0xff]
        %v5589 = vld [vmem:[%s2477 + $0x28] sm:$0xff]
        %v5590 = vld [vmem:[%s2477 + $0x30] sm:$0xff]
        %v5591 = vld [vmem:[%s2477 + $0x38] sm:$0xff]
        %v5592 = vld [vmem:[%s2477 + $0x40] sm:$0xff]
        %v5593 = vld [vmem:[%s2477 + $0x48] sm:$0xff]
        %v5594 = vld [vmem:[%s2477 + $0x50] sm:$0xff]
        %v5595 = vld [vmem:[%s2477 + $0x58] sm:$0xff]
        %v5596 = vld [vmem:[%s2477 + $0x60] sm:$0xff]
        %v5597 = vld [vmem:[%s2477 + $0x68] sm:$0xff]
        %v5598 = vld [vmem:[%s2477 + $0x70] sm:$0xff]
        %v5599 = vld [vmem:[%s2477 + $0x78] sm:$0xff]
        %v5600 = vld [vmem:[%s2477 + $0x80] sm:$0xff]
        %v5601 = vld [vmem:[%s2477 + $0x88] sm:$0xff]
        %v5602 = vld [vmem:[%s2477 + $0x90] sm:$0xff]
        %v5603 = vld [vmem:[%s2477 + $0x98] sm:$0xff]
        %v5604 = vld [vmem:[%s2477 + $0xa0] sm:$0xff]
        %v5605 = vld [vmem:[%s2477 + $0xa8] sm:$0xff]
        %v5606 = vld [vmem:[%s2477 + $0xb0] sm:$0xff]
        %v5607 = vld [vmem:[%s2477 + $0xb8] sm:$0xff]
        %v5608 = vld [vmem:[%s2477 + $0xc0] sm:$0xff]
        %v5609 = vld [vmem:[%s2477 + $0xc8] sm:$0xff]
        %v5610 = vld [vmem:[%s2477 + $0xd0] sm:$0xff]
        %v5611 = vld [vmem:[%s2477 + $0xd8] sm:$0xff]
        %v5612 = vld [vmem:[%s2477 + $0xe0] sm:$0xff]
        %v5613 = vld [vmem:[%s2477 + $0xe8] sm:$0xff]
        %v5614 = vld [vmem:[%s2477 + $0xf0] sm:$0xff]
        %v5615 = vld [vmem:[%s2477 + $0xf8] sm:$0xff]
        %v5616 = vld [vmem:[%s2477 + $0x100] sm:$0xff]
        %v5617 = vld [vmem:[%s2477 + $0x108] sm:$0xff]
        %v5618 = vld [vmem:[%s2477 + $0x110] sm:$0xff]
        %v5619 = vld [vmem:[%s2477 + $0x118] sm:$0xff]
        %v5620 = vld [vmem:[%s2477 + $0x120] sm:$0xff]
        %v5621 = vld [vmem:[%s2477 + $0x128] sm:$0xff]
        %v5622 = vld [vmem:[%s2477 + $0x130] sm:$0xff]
        %v5623 = vld [vmem:[%s2477 + $0x138] sm:$0xff]
        %v5624 = vld [vmem:[%s2477 + $0x140] sm:$0xff]
        %v5625 = vld [vmem:[%s2477 + $0x148] sm:$0xff]
        %v5626 = vld [vmem:[%s2477 + $0x150] sm:$0xff]
        %v5627 = vld [vmem:[%s2477 + $0x158] sm:$0xff]
        %v5628 = vld [vmem:[%s2477 + $0x160] sm:$0xff]
        %v5629 = vld [vmem:[%s2477 + $0x168] sm:$0xff]
        %v5630 = vld [vmem:[%s2477 + $0x170] sm:$0xff]
        %v5631 = vld [vmem:[%s2477 + $0x178] sm:$0xff]
        %v5632 = vld [vmem:[%s2477 + $0x180] sm:$0xff]
        %v5633 = vld [vmem:[%s2477 + $0x188] sm:$0xff]
        %v5634 = vld [vmem:[%s2477 + $0x190] sm:$0xff]
        %v5635 = vld [vmem:[%s2477 + $0x198] sm:$0xff]
        %v5636 = vld [vmem:[%s2477 + $0x1a0] sm:$0xff]
        %v5637 = vld [vmem:[%s2477 + $0x1a8] sm:$0xff]
        %v5638 = vld [vmem:[%s2477 + $0x1b0] sm:$0xff]
        %v5639 = vld [vmem:[%s2477 + $0x1b8] sm:$0xff]
        %v5640 = vld [vmem:[%s2477 + $0x1c0] sm:$0xff]
        %v5641 = vld [vmem:[%s2477 + $0x1c8] sm:$0xff]
        %v5642 = vld [vmem:[%s2477 + $0x1d0] sm:$0xff]
        %v5643 = vld [vmem:[%s2477 + $0x1d8] sm:$0xff]
        %v5644 = vld [vmem:[%s2477 + $0x1e0] sm:$0xff]
        %v5645 = vld [vmem:[%s2477 + $0x1e8] sm:$0xff]
        %v5646 = vld [vmem:[%s2477 + $0x1f0] sm:$0xff]
        %v5647 = vld [vmem:[%s2477 + $0x1f8] sm:$0xff]
        %v5648 = vld [vmem:[%s2477 + $0x200] sm:$0xff]
        %v5649 = vld [vmem:[%s2477 + $0x208] sm:$0xff]
        %v5650 = vld [vmem:[%s2477 + $0x210] sm:$0xff]
        %v5651 = vld [vmem:[%s2477 + $0x218] sm:$0xff]
        %v5652 = vld [vmem:[%s2477 + $0x220] sm:$0xff]
        %v5653 = vld [vmem:[%s2477 + $0x228] sm:$0xff]
        %v5654 = vld [vmem:[%s2477 + $0x230] sm:$0xff]
        %v5655 = vld [vmem:[%s2477 + $0x238] sm:$0xff]
        %v5656 = vld [vmem:[%s2477 + $0x240] sm:$0xff]
        %v5657 = vld [vmem:[%s2477 + $0x248] sm:$0xff]
        %v5658 = vld [vmem:[%s2477 + $0x250] sm:$0xff]
        %v5659 = vld [vmem:[%s2477 + $0x258] sm:$0xff]
        %v5660 = vld [vmem:[%s2477 + $0x260] sm:$0xff]
        %v5661 = vld [vmem:[%s2477 + $0x268] sm:$0xff]
        %v5662 = vld [vmem:[%s2477 + $0x270] sm:$0xff]
        %v5663 = vld [vmem:[%s2477 + $0x278] sm:$0xff]
        %v5664 = vld [vmem:[%s2477 + $0x280] sm:$0xff]
        %v5665 = vld [vmem:[%s2477 + $0x288] sm:$0xff]
        %v5666 = vld [vmem:[%s2477 + $0x290] sm:$0xff]
        %v5667 = vld [vmem:[%s2477 + $0x298] sm:$0xff]
        %v5668 = vld [vmem:[%s2477 + $0x2a0] sm:$0xff]
        %v5669 = vld [vmem:[%s2477 + $0x2a8] sm:$0xff]
        %v5670 = vld [vmem:[%s2477 + $0x2b0] sm:$0xff]
        %v5671 = vld [vmem:[%s2477 + $0x2b8] sm:$0xff]
        %v5673 = vlaneseq
        %v5674 = vshrl.u32 %v5673, 7
        %v5675 = vsub.s32 0, %v5674
        %v5676 = vrot.slane %v5583, %v5675
        %v5677 = vlaneseq
        %v5678 = vshrl.u32 %v5677, 7
        %v5679 = vsub.s32 1, %v5678
        %v5680 = vrot.slane %v5583, %v5679
        %v5681 = vlaneseq
        %v5682 = vshrl.u32 %v5681, 7
        %v5683 = vsub.s32 2, %v5682
        %v5684 = vrot.slane %v5583, %v5683
        %v5687 = vsel %vm1971, %v5684, 0
        %5689 = vmatprep.subr.mxu0 %v5585
        %5690 = vmatpush1.msra.mxu0 %v5584
        %5691 = vmatprep.subr.mxu0 %v5587
        %5692 = vmatpush1.msra.mxu0 %v5586
        %5693 = vmatprep.subr.mxu0 %v5589
        %5694 = vmatpush1.msra.mxu0 %v5588
        %5695 = vmatprep.subr.mxu0 %v5591
        %5696 = vmatpush1.msra.mxu0 %v5590
        %5697 = vmatprep.subr.mxu0 %v5593
        %5698 = vmatpush1.msra.mxu0 %v5592
        %5699 = vmatprep.subr.mxu0 %v5595
        %5700 = vmatpush1.msra.mxu0 %v5594
        %5701 = vmatprep.subr.mxu0 %v5597
        %5702 = vmatpush1.msra.mxu0 %v5596
        %5703 = vmatprep.subr.mxu0 %v5599
        %5704 = vmatpush1.msra.mxu0 %v5598
        %5705 = vmatprep.subr.mxu0 %v5601
        %5706 = vmatpush1.msra.mxu0 %v5600
        %5707 = vmatprep.subr.mxu0 %v5603
        %5708 = vmatpush1.msra.mxu0 %v5602
        %5709 = vmatprep.subr.mxu0 %v5605
        %5710 = vmatpush1.msra.mxu0 %v5604
        %5711 = vmatprep.subr.mxu0 %v5607
        %5712 = vmatpush1.msra.mxu0 %v5606
        %5713 = vmatprep.subr.mxu0 %v5609
        %5714 = vmatpush1.msra.mxu0 %v5608
        %5715 = vmatprep.subr.mxu0 %v5611
        %5716 = vmatpush1.msra.mxu0 %v5610
        %5717 = vmatprep.subr.mxu0 %v5613
        %5718 = vmatpush1.msra.mxu0 %v5612
        %5719 = vmatprep.subr.mxu0 %v5615
        %5720 = vmatpush1.msra.mxu0 %v5614
        %5721 = vmatprep.subr.mxu0 %v5617
        %5722 = vmatpush1.msra.mxu0 %v5616
        %5723 = vmatprep.subr.mxu0 %v5619
        %5724 = vmatpush1.msra.mxu0 %v5618
        %5725 = vmatprep.subr.mxu0 %v5621
        %5726 = vmatpush1.msra.mxu0 %v5620
        %5727 = vmatprep.subr.mxu0 %v5623
        %5728 = vmatpush1.msra.mxu0 %v5622
        %5729 = vmatprep.subr.mxu0 %v5625
        %5730 = vmatpush1.msra.mxu0 %v5624
        %5731 = vmatprep.subr.mxu0 %v5627
        %5732 = vmatpush1.msra.mxu0 %v5626
        %5733 = vmatprep.subr.mxu0 %v5629
        %5734 = vmatpush1.msra.mxu0 %v5628
        %5735 = vmatprep.subr.mxu0 %v5631
        %5736 = vmatpush1.msra.mxu0 %v5630
        %5737 = vmatprep.subr.mxu0 %v5633
        %5738 = vmatpush1.msra.mxu0 %v5632
        %5739 = vmatprep.subr.mxu0 %v5635
        %5740 = vmatpush1.msra.mxu0 %v5634
        %5741 = vmatprep.subr.mxu0 %v5637
        %5742 = vmatpush1.msra.mxu0 %v5636
        %5743 = vmatprep.subr.mxu0 %v5639
        %5744 = vmatpush1.msra.mxu0 %v5638
        %5745 = vmatprep.subr.mxu0 %v5641
        %5746 = vmatpush1.msra.mxu0 %v5640
        %5747 = vmatprep.subr.mxu0 %v5643
        %5748 = vmatpush1.msra.mxu0 %v5642
        %5749 = vmatprep.subr.mxu0 %v5645
        %5750 = vmatpush1.msra.mxu0 %v5644
        %5751 = vmatprep.subr.mxu0 %v5647
        %5752 = vmatpush1.msra.mxu0 %v5646
        %5753 = vmatprep.mubr.f32.mxu0 %v5680
        %5754 = vmatmul.mubr.f32.gmra.mrb[0].mxu0 %v5676
        %v5755 = vpop.f32.mrb[0].mxu0
        %v5756 = vadd.f32 0.0, %v5755
        %v5757 = vpop.f32.mrb[0].mxu0
        %v5758 = vadd.f32 0.0, %v5757
        %5759 = vdwg.mxu0
        %5760 = vmatprep.subr.mxu0 %v5649
        %5761 = vmatpush1.msra.mxu0 %v5648
        %5762 = vmatprep.subr.mxu0 %v5651
        %5763 = vmatpush1.msra.mxu0 %v5650
        %5764 = vmatprep.subr.mxu0 %v5653
        %5765 = vmatpush1.msra.mxu0 %v5652
        %5766 = vmatprep.subr.mxu0 %v5655
        %5767 = vmatpush1.msra.mxu0 %v5654
        %5768 = vmatprep.subr.mxu0 %v5657
        %5769 = vmatpush1.msra.mxu0 %v5656
        %5770 = vmatprep.subr.mxu0 %v5659
        %5771 = vmatpush1.msra.mxu0 %v5658
        %5772 = vmatprep.subr.mxu0 %v5661
        %5773 = vmatpush1.msra.mxu0 %v5660
        %5774 = vmatprep.subr.mxu0 %v5663
        %5775 = vmatpush1.msra.mxu0 %v5662
        %5776 = vmatprep.subr.mxu0 %v5665
        %5777 = vmatpush1.msra.mxu0 %v5664
        %5778 = vmatprep.subr.mxu0 %v5667
        %5779 = vmatpush1.msra.mxu0 %v5666
        %5780 = vmatprep.subr.mxu0 %v5669
        %5781 = vmatpush1.msra.mxu0 %v5668
        %5782 = vmatprep.subr.mxu0 %v5671
        %5783 = vmatpush1.msra.mxu0 %v5670
        %5784 = vmatprep.subr.mxu0 0.0
        %5785 = vmatpush1.msra.mxu0 0.0
        %5786 = vmatprep.subr.mxu0 0.0
        %5787 = vmatpush1.msra.mxu0 0.0
        %5788 = vmatprep.subr.mxu0 0.0
        %5789 = vmatpush1.msra.mxu0 0.0
        %5790 = vmatprep.subr.mxu0 0.0
        %5791 = vmatpush1.msra.mxu0 0.0
        %5792 = vmatprep.subr.mxu0 0.0
        %5793 = vmatpush1.msra.mxu0 0.0
        %5794 = vmatprep.subr.mxu0 0.0
        %5795 = vmatpush1.msra.mxu0 0.0
        %5796 = vmatprep.subr.mxu0 0.0
        %5797 = vmatpush1.msra.mxu0 0.0
        %5798 = vmatprep.subr.mxu0 0.0
        %5799 = vmatpush1.msra.mxu0 0.0
        %5800 = vmatprep.subr.mxu0 0.0
        %5801 = vmatpush1.msra.mxu0 0.0
        %5802 = vmatprep.subr.mxu0 0.0
        %5803 = vmatpush1.msra.mxu0 0.0
        %5804 = vmatprep.subr.mxu0 0.0
        %5805 = vmatpush1.msra.mxu0 0.0
        %5806 = vmatprep.subr.mxu0 0.0
        %5807 = vmatpush1.msra.mxu0 0.0
        %5808 = vmatprep.subr.mxu0 0.0
        %5809 = vmatpush1.msra.mxu0 0.0
        %5810 = vmatprep.subr.mxu0 0.0
        %5811 = vmatpush1.msra.mxu0 0.0
        %5812 = vmatprep.subr.mxu0 0.0
        %5813 = vmatpush1.msra.mxu0 0.0
        %5814 = vmatprep.subr.mxu0 0.0
        %5815 = vmatpush1.msra.mxu0 0.0
        %5816 = vmatprep.subr.mxu0 0.0
        %5817 = vmatpush1.msra.mxu0 0.0
        %5818 = vmatprep.subr.mxu0 0.0
        %5819 = vmatpush1.msra.mxu0 0.0
        %5820 = vmatprep.subr.mxu0 0.0
        %5821 = vmatpush1.msra.mxu0 0.0
        %5822 = vmatprep.subr.mxu0 0.0
        %5823 = vmatpush1.msra.mxu0 0.0
        %5824 = vmatprep.mubr.f32.mxu0 0.0
        %5825 = vmatmul.mubr.f32.gmra.mrb[0].mxu0 %v5687
        %v5826 = vpop.f32.mrb[0].mxu0
        %v5827 = vadd.f32 %v5756, %v5826
        %v5828 = vpop.f32.mrb[0].mxu0
        %v5829 = vadd.f32 %v5758, %v5828
        %5830 = vdwg.mxu0
        %v5831 = vadd.f32 %v5578, %v5827
        %v5832 = vadd.f32 %v5580, %v5829
        %s5833 = scalar_lea.vmem [#allocation2], 25
        %v5834 = vld [vmem:[%s5833] ss:$8 sm:$0x7]
        %v5835 = vld [vmem:[%s2729] sm:$0xff]
        %v5836 = vld [vmem:[%s2729 + $0x8] sm:$0xff]
        %v5837 = vld [vmem:[%s2729 + $0x10] sm:$0xff]
        %v5838 = vld [vmem:[%s2729 + $0x18] sm:$0xff]
        %v5839 = vld [vmem:[%s2729 + $0x20] sm:$0xff]
        %v5840 = vld [vmem:[%s2729 + $0x28] sm:$0xff]
        %v5841 = vld [vmem:[%s2729 + $0x30] sm:$0xff]
        %v5842 = vld [vmem:[%s2729 + $0x38] sm:$0xff]
        %v5843 = vld [vmem:[%s2729 + $0x40] sm:$0xff]
        %v5844 = vld [vmem:[%s2729 + $0x48] sm:$0xff]
        %v5845 = vld [vmem:[%s2729 + $0x50] sm:$0xff]
        %v5846 = vld [vmem:[%s2729 + $0x58] sm:$0xff]
        %v5847 = vld [vmem:[%s2729 + $0x60] sm:$0xff]
        %v5848 = vld [vmem:[%s2729 + $0x68] sm:$0xff]
        %v5849 = vld [vmem:[%s2729 + $0x70] sm:$0xff]
        %v5850 = vld [vmem:[%s2729 + $0x78] sm:$0xff]
        %v5851 = vld [vmem:[%s2729 + $0x80] sm:$0xff]
        %v5852 = vld [vmem:[%s2729 + $0x88] sm:$0xff]
        %v5853 = vld [vmem:[%s2729 + $0x90] sm:$0xff]
        %v5854 = vld [vmem:[%s2729 + $0x98] sm:$0xff]
        %v5855 = vld [vmem:[%s2729 + $0xa0] sm:$0xff]
        %v5856 = vld [vmem:[%s2729 + $0xa8] sm:$0xff]
        %v5857 = vld [vmem:[%s2729 + $0xb0] sm:$0xff]
        %v5858 = vld [vmem:[%s2729 + $0xb8] sm:$0xff]
        %v5859 = vld [vmem:[%s2729 + $0xc0] sm:$0xff]
        %v5860 = vld [vmem:[%s2729 + $0xc8] sm:$0xff]
        %v5861 = vld [vmem:[%s2729 + $0xd0] sm:$0xff]
        %v5862 = vld [vmem:[%s2729 + $0xd8] sm:$0xff]
        %v5863 = vld [vmem:[%s2729 + $0xe0] sm:$0xff]
        %v5864 = vld [vmem:[%s2729 + $0xe8] sm:$0xff]
        %v5865 = vld [vmem:[%s2729 + $0xf0] sm:$0xff]
        %v5866 = vld [vmem:[%s2729 + $0xf8] sm:$0xff]
        %v5867 = vld [vmem:[%s2729 + $0x100] sm:$0xff]
        %v5868 = vld [vmem:[%s2729 + $0x108] sm:$0xff]
        %v5869 = vld [vmem:[%s2729 + $0x110] sm:$0xff]
        %v5870 = vld [vmem:[%s2729 + $0x118] sm:$0xff]
        %v5871 = vld [vmem:[%s2729 + $0x120] sm:$0xff]
        %v5872 = vld [vmem:[%s2729 + $0x128] sm:$0xff]
        %v5873 = vld [vmem:[%s2729 + $0x130] sm:$0xff]
        %v5874 = vld [vmem:[%s2729 + $0x138] sm:$0xff]
        %v5875 = vld [vmem:[%s2729 + $0x140] sm:$0xff]
        %v5876 = vld [vmem:[%s2729 + $0x148] sm:$0xff]
        %v5877 = vld [vmem:[%s2729 + $0x150] sm:$0xff]
        %v5878 = vld [vmem:[%s2729 + $0x158] sm:$0xff]
        %v5879 = vld [vmem:[%s2729 + $0x160] sm:$0xff]
        %v5880 = vld [vmem:[%s2729 + $0x168] sm:$0xff]
        %v5881 = vld [vmem:[%s2729 + $0x170] sm:$0xff]
        %v5882 = vld [vmem:[%s2729 + $0x178] sm:$0xff]
        %v5883 = vld [vmem:[%s2729 + $0x180] sm:$0xff]
        %v5884 = vld [vmem:[%s2729 + $0x188] sm:$0xff]
        %v5885 = vld [vmem:[%s2729 + $0x190] sm:$0xff]
        %v5886 = vld [vmem:[%s2729 + $0x198] sm:$0xff]
        %v5887 = vld [vmem:[%s2729 + $0x1a0] sm:$0xff]
        %v5888 = vld [vmem:[%s2729 + $0x1a8] sm:$0xff]
        %v5889 = vld [vmem:[%s2729 + $0x1b0] sm:$0xff]
        %v5890 = vld [vmem:[%s2729 + $0x1b8] sm:$0xff]
        %v5891 = vld [vmem:[%s2729 + $0x1c0] sm:$0xff]
        %v5892 = vld [vmem:[%s2729 + $0x1c8] sm:$0xff]
        %v5893 = vld [vmem:[%s2729 + $0x1d0] sm:$0xff]
        %v5894 = vld [vmem:[%s2729 + $0x1d8] sm:$0xff]
        %v5895 = vld [vmem:[%s2729 + $0x1e0] sm:$0xff]
        %v5896 = vld [vmem:[%s2729 + $0x1e8] sm:$0xff]
        %v5897 = vld [vmem:[%s2729 + $0x1f0] sm:$0xff]
        %v5898 = vld [vmem:[%s2729 + $0x1f8] sm:$0xff]
        %v5899 = vld [vmem:[%s2729 + $0x200] sm:$0xff]
        %v5900 = vld [vmem:[%s2729 + $0x208] sm:$0xff]
        %v5901 = vld [vmem:[%s2729 + $0x210] sm:$0xff]
        %v5902 = vld [vmem:[%s2729 + $0x218] sm:$0xff]
        %v5903 = vld [vmem:[%s2729 + $0x220] sm:$0xff]
        %v5904 = vld [vmem:[%s2729 + $0x228] sm:$0xff]
        %v5905 = vld [vmem:[%s2729 + $0x230] sm:$0xff]
        %v5906 = vld [vmem:[%s2729 + $0x238] sm:$0xff]
        %v5907 = vld [vmem:[%s2729 + $0x240] sm:$0xff]
        %v5908 = vld [vmem:[%s2729 + $0x248] sm:$0xff]
        %v5909 = vld [vmem:[%s2729 + $0x250] sm:$0xff]
        %v5910 = vld [vmem:[%s2729 + $0x258] sm:$0xff]
        %v5911 = vld [vmem:[%s2729 + $0x260] sm:$0xff]
        %v5912 = vld [vmem:[%s2729 + $0x268] sm:$0xff]
        %v5913 = vld [vmem:[%s2729 + $0x270] sm:$0xff]
        %v5914 = vld [vmem:[%s2729 + $0x278] sm:$0xff]
        %v5915 = vld [vmem:[%s2729 + $0x280] sm:$0xff]
        %v5916 = vld [vmem:[%s2729 + $0x288] sm:$0xff]
        %v5917 = vld [vmem:[%s2729 + $0x290] sm:$0xff]
        %v5918 = vld [vmem:[%s2729 + $0x298] sm:$0xff]
        %v5919 = vld [vmem:[%s2729 + $0x2a0] sm:$0xff]
        %v5920 = vld [vmem:[%s2729 + $0x2a8] sm:$0xff]
        %v5921 = vld [vmem:[%s2729 + $0x2b0] sm:$0xff]
        %v5922 = vld [vmem:[%s2729 + $0x2b8] sm:$0xff]
        %v5924 = vlaneseq
        %v5925 = vshrl.u32 %v5924, 7
        %v5926 = vsub.s32 0, %v5925
        %v5927 = vrot.slane %v5834, %v5926
        %v5928 = vlaneseq
        %v5929 = vshrl.u32 %v5928, 7
        %v5930 = vsub.s32 1, %v5929
        %v5931 = vrot.slane %v5834, %v5930
        %v5932 = vlaneseq
        %v5933 = vshrl.u32 %v5932, 7
        %v5934 = vsub.s32 2, %v5933
        %v5935 = vrot.slane %v5834, %v5934
        %v5938 = vsel %vm1971, %v5935, 0
        %5940 = vmatprep.subr.mxu0 %v5836
        %5941 = vmatpush1.msra.mxu0 %v5835
        %5942 = vmatprep.subr.mxu0 %v5838
        %5943 = vmatpush1.msra.mxu0 %v5837
        %5944 = vmatprep.subr.mxu0 %v5840
        %5945 = vmatpush1.msra.mxu0 %v5839
        %5946 = vmatprep.subr.mxu0 %v5842
        %5947 = vmatpush1.msra.mxu0 %v5841
        %5948 = vmatprep.subr.mxu0 %v5844
        %5949 = vmatpush1.msra.mxu0 %v5843
        %5950 = vmatprep.subr.mxu0 %v5846
        %5951 = vmatpush1.msra.mxu0 %v5845
        %5952 = vmatprep.subr.mxu0 %v5848
        %5953 = vmatpush1.msra.mxu0 %v5847
        %5954 = vmatprep.subr.mxu0 %v5850
        %5955 = vmatpush1.msra.mxu0 %v5849
        %5956 = vmatprep.subr.mxu0 %v5852
        %5957 = vmatpush1.msra.mxu0 %v5851
        %5958 = vmatprep.subr.mxu0 %v5854
        %5959 = vmatpush1.msra.mxu0 %v5853
        %5960 = vmatprep.subr.mxu0 %v5856
        %5961 = vmatpush1.msra.mxu0 %v5855
        %5962 = vmatprep.subr.mxu0 %v5858
        %5963 = vmatpush1.msra.mxu0 %v5857
        %5964 = vmatprep.subr.mxu0 %v5860
        %5965 = vmatpush1.msra.mxu0 %v5859
        %5966 = vmatprep.subr.mxu0 %v5862
        %5967 = vmatpush1.msra.mxu0 %v5861
        %5968 = vmatprep.subr.mxu0 %v5864
        %5969 = vmatpush1.msra.mxu0 %v5863
        %5970 = vmatprep.subr.mxu0 %v5866
        %5971 = vmatpush1.msra.mxu0 %v5865
        %5972 = vmatprep.subr.mxu0 %v5868
        %5973 = vmatpush1.msra.mxu0 %v5867
        %5974 = vmatprep.subr.mxu0 %v5870
        %5975 = vmatpush1.msra.mxu0 %v5869
        %5976 = vmatprep.subr.mxu0 %v5872
        %5977 = vmatpush1.msra.mxu0 %v5871
        %5978 = vmatprep.subr.mxu0 %v5874
        %5979 = vmatpush1.msra.mxu0 %v5873
        %5980 = vmatprep.subr.mxu0 %v5876
        %5981 = vmatpush1.msra.mxu0 %v5875
        %5982 = vmatprep.subr.mxu0 %v5878
        %5983 = vmatpush1.msra.mxu0 %v5877
        %5984 = vmatprep.subr.mxu0 %v5880
        %5985 = vmatpush1.msra.mxu0 %v5879
        %5986 = vmatprep.subr.mxu0 %v5882
        %5987 = vmatpush1.msra.mxu0 %v5881
        %5988 = vmatprep.subr.mxu0 %v5884
        %5989 = vmatpush1.msra.mxu0 %v5883
        %5990 = vmatprep.subr.mxu0 %v5886
        %5991 = vmatpush1.msra.mxu0 %v5885
        %5992 = vmatprep.subr.mxu0 %v5888
        %5993 = vmatpush1.msra.mxu0 %v5887
        %5994 = vmatprep.subr.mxu0 %v5890
        %5995 = vmatpush1.msra.mxu0 %v5889
        %5996 = vmatprep.subr.mxu0 %v5892
        %5997 = vmatpush1.msra.mxu0 %v5891
        %5998 = vmatprep.subr.mxu0 %v5894
        %5999 = vmatpush1.msra.mxu0 %v5893
        %6000 = vmatprep.subr.mxu0 %v5896
        %6001 = vmatpush1.msra.mxu0 %v5895
        %6002 = vmatprep.subr.mxu0 %v5898
        %6003 = vmatpush1.msra.mxu0 %v5897
        %6004 = vmatprep.mubr.f32.mxu0 %v5931
        %6005 = vmatmul.mubr.f32.gmra.mrb[0].mxu0 %v5927
        %v6006 = vpop.f32.mrb[0].mxu0
        %v6007 = vadd.f32 0.0, %v6006
        %v6008 = vpop.f32.mrb[0].mxu0
        %v6009 = vadd.f32 0.0, %v6008
        %6010 = vdwg.mxu0
        %6011 = vmatprep.subr.mxu0 %v5900
        %6012 = vmatpush1.msra.mxu0 %v5899
        %6013 = vmatprep.subr.mxu0 %v5902
        %6014 = vmatpush1.msra.mxu0 %v5901
        %6015 = vmatprep.subr.mxu0 %v5904
        %6016 = vmatpush1.msra.mxu0 %v5903
        %6017 = vmatprep.subr.mxu0 %v5906
        %6018 = vmatpush1.msra.mxu0 %v5905
        %6019 = vmatprep.subr.mxu0 %v5908
        %6020 = vmatpush1.msra.mxu0 %v5907
        %6021 = vmatprep.subr.mxu0 %v5910
        %6022 = vmatpush1.msra.mxu0 %v5909
        %6023 = vmatprep.subr.mxu0 %v5912
        %6024 = vmatpush1.msra.mxu0 %v5911
        %6025 = vmatprep.subr.mxu0 %v5914
        %6026 = vmatpush1.msra.mxu0 %v5913
        %6027 = vmatprep.subr.mxu0 %v5916
        %6028 = vmatpush1.msra.mxu0 %v5915
        %6029 = vmatprep.subr.mxu0 %v5918
        %6030 = vmatpush1.msra.mxu0 %v5917
        %6031 = vmatprep.subr.mxu0 %v5920
        %6032 = vmatpush1.msra.mxu0 %v5919
        %6033 = vmatprep.subr.mxu0 %v5922
        %6034 = vmatpush1.msra.mxu0 %v5921
        %6035 = vmatprep.subr.mxu0 0.0
        %6036 = vmatpush1.msra.mxu0 0.0
        %6037 = vmatprep.subr.mxu0 0.0
        %6038 = vmatpush1.msra.mxu0 0.0
        %6039 = vmatprep.subr.mxu0 0.0
        %6040 = vmatpush1.msra.mxu0 0.0
        %6041 = vmatprep.subr.mxu0 0.0
        %6042 = vmatpush1.msra.mxu0 0.0
        %6043 = vmatprep.subr.mxu0 0.0
        %6044 = vmatpush1.msra.mxu0 0.0
        %6045 = vmatprep.subr.mxu0 0.0
        %6046 = vmatpush1.msra.mxu0 0.0
        %6047 = vmatprep.subr.mxu0 0.0
        %6048 = vmatpush1.msra.mxu0 0.0
        %6049 = vmatprep.subr.mxu0 0.0
        %6050 = vmatpush1.msra.mxu0 0.0
        %6051 = vmatprep.subr.mxu0 0.0
        %6052 = vmatpush1.msra.mxu0 0.0
        %6053 = vmatprep.subr.mxu0 0.0
        %6054 = vmatpush1.msra.mxu0 0.0
        %6055 = vmatprep.subr.mxu0 0.0
        %6056 = vmatpush1.msra.mxu0 0.0
        %6057 = vmatprep.subr.mxu0 0.0
        %6058 = vmatpush1.msra.mxu0 0.0
        %6059 = vmatprep.subr.mxu0 0.0
        %6060 = vmatpush1.msra.mxu0 0.0
        %6061 = vmatprep.subr.mxu0 0.0
        %6062 = vmatpush1.msra.mxu0 0.0
        %6063 = vmatprep.subr.mxu0 0.0
        %6064 = vmatpush1.msra.mxu0 0.0
        %6065 = vmatprep.subr.mxu0 0.0
        %6066 = vmatpush1.msra.mxu0 0.0
        %6067 = vmatprep.subr.mxu0 0.0
        %6068 = vmatpush1.msra.mxu0 0.0
        %6069 = vmatprep.subr.mxu0 0.0
        %6070 = vmatpush1.msra.mxu0 0.0
        %6071 = vmatprep.subr.mxu0 0.0
        %6072 = vmatpush1.msra.mxu0 0.0
        %6073 = vmatprep.subr.mxu0 0.0
        %6074 = vmatpush1.msra.mxu0 0.0
        %6075 = vmatprep.mubr.f32.mxu0 0.0
        %6076 = vmatmul.mubr.f32.gmra.mrb[0].mxu0 %v5938
        %v6077 = vpop.f32.mrb[0].mxu0
        %v6078 = vadd.f32 %v6007, %v6077
        %v6079 = vpop.f32.mrb[0].mxu0
        %v6080 = vadd.f32 %v6009, %v6079
        %6081 = vdwg.mxu0
        %v6082 = vadd.f32 %v5831, %v6078
        %v6083 = vadd.f32 %v5832, %v6080
        %v6084 = vld [vmem:[%s4] sm:$0x3]
        %v6086 = vlaneseq
        %v6087 = vshrl.u32 %v6086, 7
        %v6088 = vsub.s32 0, %v6087
        %v6089 = vrot.slane %v6084, %v6088
        %v6090 = vlaneseq
        %v6091 = vshrl.u32 %v6090, 7
        %v6092 = vsub.s32 1, %v6091
        %v6093 = vrot.slane %v6084, %v6092
        %v6096 = vadd.f32 %v6082, %v6089
        %v6097 = vadd.f32 %v6083, %v6093
        %v6098 = vmax.f32 %v6096, 0.0
        %v6099 = vmax.f32 %v6097, 0.0
        %v6102 = vcombine.low %v6098, %v6099
        %v6104 = vunpack.c.l.s4 1966171168
        %v6105 = vunpack.c.0.s8 %v6104
        %v6106 = vlaneseq
        %v6107 = vshrl.u32 %v6106, 7
        %v6108 = vsub.s32 %v6105, %v6107
        %v6109 = vrot.slane %v6102, %v6108
        %v6111 = vunpack.c.l.s4 1966171168
        %v6112 = vunpack.c.0.s8 %v6111
        %v6113 = vlaneseq
        %v6114 = vshrl.u32 %v6113, 7
        %v6115 = vsub.s32 %v6112, %v6114
        %v6116 = vrot.slane %v6109, %v6115
        %s6118 = scalar_lea.vmem [#allocation3], 3
        %6119 = vst.msk [vmem:[%s6118] ss:$4 sm:$0x3] %vm3016, %v6116
        %v6120 = vld [vmem:[#allocation3] sm:$0x33]
        %v6121 = vld [vmem:[%s5] sm:$0xff]
        %v6122 = vld [vmem:[%s5 + $0x8] sm:$0xff]
        %v6123 = vld [vmem:[%s5 + $0x10] sm:$0xff]
        %v6124 = vld [vmem:[%s5 + $0x18] sm:$0xff]
        %v6125 = vld [vmem:[%s5 + $0x20] sm:$0xff]
        %v6126 = vld [vmem:[%s5 + $0x28] sm:$0xff]
        %v6127 = vld [vmem:[%s5 + $0x30] sm:$0xff]
        %v6128 = vld [vmem:[%s5 + $0x38] sm:$0xff]
        %v6129 = vld [vmem:[%s5 + $0x40] sm:$0xff]
        %v6130 = vld [vmem:[%s5 + $0x48] sm:$0xff]
        %v6131 = vld [vmem:[%s5 + $0x50] sm:$0xff]
        %v6132 = vld [vmem:[%s5 + $0x58] sm:$0xff]
        %v6133 = vld [vmem:[%s5 + $0x60] sm:$0xff]
        %v6134 = vld [vmem:[%s5 + $0x68] sm:$0xff]
        %v6135 = vld [vmem:[%s5 + $0x70] sm:$0xff]
        %v6136 = vld [vmem:[%s5 + $0x78] sm:$0xff]
        %v6137 = vld [vmem:[%s5 + $0x80] sm:$0xff]
        %v6138 = vld [vmem:[%s5 + $0x88] sm:$0xff]
        %v6139 = vld [vmem:[%s5 + $0x90] sm:$0xff]
        %v6140 = vld [vmem:[%s5 + $0x98] sm:$0xff]
        %v6141 = vld [vmem:[%s5 + $0xa0] sm:$0xff]
        %v6142 = vld [vmem:[%s5 + $0xa8] sm:$0xff]
        %v6143 = vld [vmem:[%s5 + $0xb0] sm:$0xff]
        %v6144 = vld [vmem:[%s5 + $0xb8] sm:$0xff]
        %v6145 = vld [vmem:[%s5 + $0xc0] sm:$0xff]
        %v6146 = vld [vmem:[%s5 + $0xc8] sm:$0xff]
        %v6147 = vld [vmem:[%s5 + $0xd0] sm:$0xff]
        %v6148 = vld [vmem:[%s5 + $0xd8] sm:$0xff]
        %v6149 = vld [vmem:[%s5 + $0xe0] sm:$0xff]
        %v6150 = vld [vmem:[%s5 + $0xe8] sm:$0xff]
        %v6151 = vld [vmem:[%s5 + $0xf0] sm:$0xff]
        %v6152 = vld [vmem:[%s5 + $0xf8] sm:$0xff]
        %v6153 = vld [vmem:[#allocation3] sm:$0x66]
        %s6154 = scalar_lea.vmem %s5, 256
        %v6155 = vld [vmem:[%s6154] sm:$0xff]
        %v6156 = vld [vmem:[%s6154 + $0x8] sm:$0xff]
        %v6157 = vld [vmem:[%s6154 + $0x10] sm:$0xff]
        %v6158 = vld [vmem:[%s6154 + $0x18] sm:$0xff]
        %v6159 = vld [vmem:[%s6154 + $0x20] sm:$0xff]
        %v6160 = vld [vmem:[%s6154 + $0x28] sm:$0xff]
        %v6161 = vld [vmem:[%s6154 + $0x30] sm:$0xff]
        %v6162 = vld [vmem:[%s6154 + $0x38] sm:$0xff]
        %v6163 = vld [vmem:[%s6154 + $0x40] sm:$0xff]
        %v6164 = vld [vmem:[%s6154 + $0x48] sm:$0xff]
        %v6165 = vld [vmem:[%s6154 + $0x50] sm:$0xff]
        %v6166 = vld [vmem:[%s6154 + $0x58] sm:$0xff]
        %v6167 = vld [vmem:[%s6154 + $0x60] sm:$0xff]
        %v6168 = vld [vmem:[%s6154 + $0x68] sm:$0xff]
        %v6169 = vld [vmem:[%s6154 + $0x70] sm:$0xff]
        %v6170 = vld [vmem:[%s6154 + $0x78] sm:$0xff]
        %v6171 = vld [vmem:[%s6154 + $0x80] sm:$0xff]
        %v6172 = vld [vmem:[%s6154 + $0x88] sm:$0xff]
        %v6173 = vld [vmem:[%s6154 + $0x90] sm:$0xff]
        %v6174 = vld [vmem:[%s6154 + $0x98] sm:$0xff]
        %v6175 = vld [vmem:[%s6154 + $0xa0] sm:$0xff]
        %v6176 = vld [vmem:[%s6154 + $0xa8] sm:$0xff]
        %v6177 = vld [vmem:[%s6154 + $0xb0] sm:$0xff]
        %v6178 = vld [vmem:[%s6154 + $0xb8] sm:$0xff]
        %v6179 = vld [vmem:[%s6154 + $0xc0] sm:$0xff]
        %v6180 = vld [vmem:[%s6154 + $0xc8] sm:$0xff]
        %v6181 = vld [vmem:[%s6154 + $0xd0] sm:$0xff]
        %v6182 = vld [vmem:[%s6154 + $0xd8] sm:$0xff]
        %v6183 = vld [vmem:[%s6154 + $0xe0] sm:$0xff]
        %v6184 = vld [vmem:[%s6154 + $0xe8] sm:$0xff]
        %v6185 = vld [vmem:[%s6154 + $0xf0] sm:$0xff]
        %v6186 = vld [vmem:[%s6154 + $0xf8] sm:$0xff]
        %v6188 = vcombine.high %v6153, %v6153
        %v6189 = vrot.slane %v6153, 1
        %v6190 = vrot.slane %v6188, 1
        %6193 = vmatprep.subr.mxu0 0.0
        %6194 = vmatpush1.msra.mxu0 %v6155
        %6195 = vmatprep.subr.mxu0 0.0
        %6196 = vmatpush1.msra.mxu0 %v6156
        %6197 = vmatprep.subr.mxu0 0.0
        %6198 = vmatpush1.msra.mxu0 %v6157
        %6199 = vmatprep.subr.mxu0 0.0
        %6200 = vmatpush1.msra.mxu0 %v6158
        %6201 = vmatprep.subr.mxu0 0.0
        %6202 = vmatpush1.msra.mxu0 %v6159
        %6203 = vmatprep.subr.mxu0 0.0
        %6204 = vmatpush1.msra.mxu0 %v6160
        %6205 = vmatprep.subr.mxu0 0.0
        %6206 = vmatpush1.msra.mxu0 %v6161
        %6207 = vmatprep.subr.mxu0 0.0
        %6208 = vmatpush1.msra.mxu0 %v6162
        %6209 = vmatprep.subr.mxu0 0.0
        %6210 = vmatpush1.msra.mxu0 %v6163
        %6211 = vmatprep.subr.mxu0 0.0
        %6212 = vmatpush1.msra.mxu0 %v6164
        %6213 = vmatprep.subr.mxu0 0.0
        %6214 = vmatpush1.msra.mxu0 %v6165
        %6215 = vmatprep.subr.mxu0 0.0
        %6216 = vmatpush1.msra.mxu0 %v6166
        %6217 = vmatprep.subr.mxu0 0.0
        %6218 = vmatpush1.msra.mxu0 %v6167
        %6219 = vmatprep.subr.mxu0 0.0
        %6220 = vmatpush1.msra.mxu0 %v6168
        %6221 = vmatprep.subr.mxu0 0.0
        %6222 = vmatpush1.msra.mxu0 %v6169
        %6223 = vmatprep.subr.mxu0 0.0
        %6224 = vmatpush1.msra.mxu0 %v6170
        %6225 = vmatprep.subr.mxu0 0.0
        %6226 = vmatpush1.msra.mxu0 %v6171
        %6227 = vmatprep.subr.mxu0 0.0
        %6228 = vmatpush1.msra.mxu0 %v6172
        %6229 = vmatprep.subr.mxu0 0.0
        %6230 = vmatpush1.msra.mxu0 %v6173
        %6231 = vmatprep.subr.mxu0 0.0
        %6232 = vmatpush1.msra.mxu0 %v6174
        %6233 = vmatprep.subr.mxu0 0.0
        %6234 = vmatpush1.msra.mxu0 %v6175
        %6235 = vmatprep.subr.mxu0 0.0
        %6236 = vmatpush1.msra.mxu0 %v6176
        %6237 = vmatprep.subr.mxu0 0.0
        %6238 = vmatpush1.msra.mxu0 %v6177
        %6239 = vmatprep.subr.mxu0 0.0
        %6240 = vmatpush1.msra.mxu0 %v6178
        %6241 = vmatprep.subr.mxu0 0.0
        %6242 = vmatpush1.msra.mxu0 %v6179
        %6243 = vmatprep.subr.mxu0 0.0
        %6244 = vmatpush1.msra.mxu0 %v6180
        %6245 = vmatprep.subr.mxu0 0.0
        %6246 = vmatpush1.msra.mxu0 %v6181
        %6247 = vmatprep.subr.mxu0 0.0
        %6248 = vmatpush1.msra.mxu0 %v6182
        %6249 = vmatprep.subr.mxu0 0.0
        %6250 = vmatpush1.msra.mxu0 %v6183
        %6251 = vmatprep.subr.mxu0 0.0
        %6252 = vmatpush1.msra.mxu0 %v6184
        %6253 = vmatprep.subr.mxu0 0.0
        %6254 = vmatpush1.msra.mxu0 %v6185
        %6255 = vmatprep.subr.mxu0 0.0
        %6256 = vmatpush1.msra.mxu0 %v6186
        %6257 = vmatprep.mubr.f32.mxu0 %v6190
        %6258 = vmatmul.mubr.f32.gmra.mrb[0].mxu0 %v6189
        %v6259 = vpop.f32.mrb[0].mxu0
        %v6260 = vadd.f32 0.0, %v6259
        %v6261 = vpop.f32.mrb[0].mxu0
        %6262 = vdwg.mxu0
        %v6264 = vcombine.high %v6120, %v6120
        %6266 = vmatprep.subr.mxu0 0.0
        %6267 = vmatpush1.msra.mxu0 %v6121
        %6268 = vmatprep.subr.mxu0 0.0
        %6269 = vmatpush1.msra.mxu0 %v6122
        %6270 = vmatprep.subr.mxu0 0.0
        %6271 = vmatpush1.msra.mxu0 %v6123
        %6272 = vmatprep.subr.mxu0 0.0
        %6273 = vmatpush1.msra.mxu0 %v6124
        %6274 = vmatprep.subr.mxu0 0.0
        %6275 = vmatpush1.msra.mxu0 %v6125
        %6276 = vmatprep.subr.mxu0 0.0
        %6277 = vmatpush1.msra.mxu0 %v6126
        %6278 = vmatprep.subr.mxu0 0.0
        %6279 = vmatpush1.msra.mxu0 %v6127
        %6280 = vmatprep.subr.mxu0 0.0
        %6281 = vmatpush1.msra.mxu0 %v6128
        %6282 = vmatprep.subr.mxu0 0.0
        %6283 = vmatpush1.msra.mxu0 %v6129
        %6284 = vmatprep.subr.mxu0 0.0
        %6285 = vmatpush1.msra.mxu0 %v6130
        %6286 = vmatprep.subr.mxu0 0.0
        %6287 = vmatpush1.msra.mxu0 %v6131
        %6288 = vmatprep.subr.mxu0 0.0
        %6289 = vmatpush1.msra.mxu0 %v6132
        %6290 = vmatprep.subr.mxu0 0.0
        %6291 = vmatpush1.msra.mxu0 %v6133
        %6292 = vmatprep.subr.mxu0 0.0
        %6293 = vmatpush1.msra.mxu0 %v6134
        %6294 = vmatprep.subr.mxu0 0.0
        %6295 = vmatpush1.msra.mxu0 %v6135
        %6296 = vmatprep.subr.mxu0 0.0
        %6297 = vmatpush1.msra.mxu0 %v6136
        %6298 = vmatprep.subr.mxu0 0.0
        %6299 = vmatpush1.msra.mxu0 %v6137
        %6300 = vmatprep.subr.mxu0 0.0
        %6301 = vmatpush1.msra.mxu0 %v6138
        %6302 = vmatprep.subr.mxu0 0.0
        %6303 = vmatpush1.msra.mxu0 %v6139
        %6304 = vmatprep.subr.mxu0 0.0
        %6305 = vmatpush1.msra.mxu0 %v6140
        %6306 = vmatprep.subr.mxu0 0.0
        %6307 = vmatpush1.msra.mxu0 %v6141
        %6308 = vmatprep.subr.mxu0 0.0
        %6309 = vmatpush1.msra.mxu0 %v6142
        %6310 = vmatprep.subr.mxu0 0.0
        %6311 = vmatpush1.msra.mxu0 %v6143
        %6312 = vmatprep.subr.mxu0 0.0
        %6313 = vmatpush1.msra.mxu0 %v6144
        %6314 = vmatprep.subr.mxu0 0.0
        %6315 = vmatpush1.msra.mxu0 %v6145
        %6316 = vmatprep.subr.mxu0 0.0
        %6317 = vmatpush1.msra.mxu0 %v6146
        %6318 = vmatprep.subr.mxu0 0.0
        %6319 = vmatpush1.msra.mxu0 %v6147
        %6320 = vmatprep.subr.mxu0 0.0
        %6321 = vmatpush1.msra.mxu0 %v6148
        %6322 = vmatprep.subr.mxu0 0.0
        %6323 = vmatpush1.msra.mxu0 %v6149
        %6324 = vmatprep.subr.mxu0 0.0
        %6325 = vmatpush1.msra.mxu0 %v6150
        %6326 = vmatprep.subr.mxu0 0.0
        %6327 = vmatpush1.msra.mxu0 %v6151
        %6328 = vmatprep.subr.mxu0 0.0
        %6329 = vmatpush1.msra.mxu0 %v6152
        %6330 = vmatprep.mubr.f32.mxu0 %v6264
        %6331 = vmatmul.mubr.f32.gmra.mrb[0].mxu0 %v6120
        %v6332 = vpop.f32.mrb[0].mxu0
        %v6333 = vadd.f32 %v6260, %v6332
        %v6334 = vpop.f32.mrb[0].mxu0
        %6335 = vdwg.mxu0
        %v6336 = vld [vmem:[#allocation3] sm:$0xcc]
        %s6337 = scalar_lea.vmem %s5, 512
        %v6338 = vld [vmem:[%s6337] sm:$0xff]
        %v6339 = vld [vmem:[%s6337 + $0x8] sm:$0xff]
        %v6340 = vld [vmem:[%s6337 + $0x10] sm:$0xff]
        %v6341 = vld [vmem:[%s6337 + $0x18] sm:$0xff]
        %v6342 = vld [vmem:[%s6337 + $0x20] sm:$0xff]
        %v6343 = vld [vmem:[%s6337 + $0x28] sm:$0xff]
        %v6344 = vld [vmem:[%s6337 + $0x30] sm:$0xff]
        %v6345 = vld [vmem:[%s6337 + $0x38] sm:$0xff]
        %v6346 = vld [vmem:[%s6337 + $0x40] sm:$0xff]
        %v6347 = vld [vmem:[%s6337 + $0x48] sm:$0xff]
        %v6348 = vld [vmem:[%s6337 + $0x50] sm:$0xff]
        %v6349 = vld [vmem:[%s6337 + $0x58] sm:$0xff]
        %v6350 = vld [vmem:[%s6337 + $0x60] sm:$0xff]
        %v6351 = vld [vmem:[%s6337 + $0x68] sm:$0xff]
        %v6352 = vld [vmem:[%s6337 + $0x70] sm:$0xff]
        %v6353 = vld [vmem:[%s6337 + $0x78] sm:$0xff]
        %v6354 = vld [vmem:[%s6337 + $0x80] sm:$0xff]
        %v6355 = vld [vmem:[%s6337 + $0x88] sm:$0xff]
        %v6356 = vld [vmem:[%s6337 + $0x90] sm:$0xff]
        %v6357 = vld [vmem:[%s6337 + $0x98] sm:$0xff]
        %v6358 = vld [vmem:[%s6337 + $0xa0] sm:$0xff]
        %v6359 = vld [vmem:[%s6337 + $0xa8] sm:$0xff]
        %v6360 = vld [vmem:[%s6337 + $0xb0] sm:$0xff]
        %v6361 = vld [vmem:[%s6337 + $0xb8] sm:$0xff]
        %v6362 = vld [vmem:[%s6337 + $0xc0] sm:$0xff]
        %v6363 = vld [vmem:[%s6337 + $0xc8] sm:$0xff]
        %v6364 = vld [vmem:[%s6337 + $0xd0] sm:$0xff]
        %v6365 = vld [vmem:[%s6337 + $0xd8] sm:$0xff]
        %v6366 = vld [vmem:[%s6337 + $0xe0] sm:$0xff]
        %v6367 = vld [vmem:[%s6337 + $0xe8] sm:$0xff]
        %v6368 = vld [vmem:[%s6337 + $0xf0] sm:$0xff]
        %v6369 = vld [vmem:[%s6337 + $0xf8] sm:$0xff]
        %v6371 = vcombine.high %v6336, %v6336
        %v6372 = vrot.slane %v6336, 2
        %v6373 = vrot.slane %v6371, 2
        %6376 = vmatprep.subr.mxu0 0.0
        %6377 = vmatpush1.msra.mxu0 %v6338
        %6378 = vmatprep.subr.mxu0 0.0
        %6379 = vmatpush1.msra.mxu0 %v6339
        %6380 = vmatprep.subr.mxu0 0.0
        %6381 = vmatpush1.msra.mxu0 %v6340
        %6382 = vmatprep.subr.mxu0 0.0
        %6383 = vmatpush1.msra.mxu0 %v6341
        %6384 = vmatprep.subr.mxu0 0.0
        %6385 = vmatpush1.msra.mxu0 %v6342
        %6386 = vmatprep.subr.mxu0 0.0
        %6387 = vmatpush1.msra.mxu0 %v6343
        %6388 = vmatprep.subr.mxu0 0.0
        %6389 = vmatpush1.msra.mxu0 %v6344
        %6390 = vmatprep.subr.mxu0 0.0
        %6391 = vmatpush1.msra.mxu0 %v6345
        %6392 = vmatprep.subr.mxu0 0.0
        %6393 = vmatpush1.msra.mxu0 %v6346
        %6394 = vmatprep.subr.mxu0 0.0
        %6395 = vmatpush1.msra.mxu0 %v6347
        %6396 = vmatprep.subr.mxu0 0.0
        %6397 = vmatpush1.msra.mxu0 %v6348
        %6398 = vmatprep.subr.mxu0 0.0
        %6399 = vmatpush1.msra.mxu0 %v6349
        %6400 = vmatprep.subr.mxu0 0.0
        %6401 = vmatpush1.msra.mxu0 %v6350
        %6402 = vmatprep.subr.mxu0 0.0
        %6403 = vmatpush1.msra.mxu0 %v6351
        %6404 = vmatprep.subr.mxu0 0.0
        %6405 = vmatpush1.msra.mxu0 %v6352
        %6406 = vmatprep.subr.mxu0 0.0
        %6407 = vmatpush1.msra.mxu0 %v6353
        %6408 = vmatprep.subr.mxu0 0.0
        %6409 = vmatpush1.msra.mxu0 %v6354
        %6410 = vmatprep.subr.mxu0 0.0
        %6411 = vmatpush1.msra.mxu0 %v6355
        %6412 = vmatprep.subr.mxu0 0.0
        %6413 = vmatpush1.msra.mxu0 %v6356
        %6414 = vmatprep.subr.mxu0 0.0
        %6415 = vmatpush1.msra.mxu0 %v6357
        %6416 = vmatprep.subr.mxu0 0.0
        %6417 = vmatpush1.msra.mxu0 %v6358
        %6418 = vmatprep.subr.mxu0 0.0
        %6419 = vmatpush1.msra.mxu0 %v6359
        %6420 = vmatprep.subr.mxu0 0.0
        %6421 = vmatpush1.msra.mxu0 %v6360
        %6422 = vmatprep.subr.mxu0 0.0
        %6423 = vmatpush1.msra.mxu0 %v6361
        %6424 = vmatprep.subr.mxu0 0.0
        %6425 = vmatpush1.msra.mxu0 %v6362
        %6426 = vmatprep.subr.mxu0 0.0
        %6427 = vmatpush1.msra.mxu0 %v6363
        %6428 = vmatprep.subr.mxu0 0.0
        %6429 = vmatpush1.msra.mxu0 %v6364
        %6430 = vmatprep.subr.mxu0 0.0
        %6431 = vmatpush1.msra.mxu0 %v6365
        %6432 = vmatprep.subr.mxu0 0.0
        %6433 = vmatpush1.msra.mxu0 %v6366
        %6434 = vmatprep.subr.mxu0 0.0
        %6435 = vmatpush1.msra.mxu0 %v6367
        %6436 = vmatprep.subr.mxu0 0.0
        %6437 = vmatpush1.msra.mxu0 %v6368
        %6438 = vmatprep.subr.mxu0 0.0
        %6439 = vmatpush1.msra.mxu0 %v6369
        %6440 = vmatprep.mubr.f32.mxu0 %v6373
        %6441 = vmatmul.mubr.f32.gmra.mrb[0].mxu0 %v6372
        %v6442 = vpop.f32.mrb[0].mxu0
        %v6443 = vadd.f32 0.0, %v6442
        %v6444 = vpop.f32.mrb[0].mxu0
        %6445 = vdwg.mxu0
        %v6446 = vadd.f32 %v6333, %v6443
        %v6447 = vld [vmem:[%s6] sm:$0x1]
        %v6449 = vlaneseq
        %v6450 = vshrl.u32 %v6449, 7
        %v6451 = vsub.s32 0, %v6450
        %v6452 = vrot.slane %v6447, %v6451
        %v6454 = vadd.f32 %v6446, %v6452
        %v6455 = vmax.f32 %v6454, 0.0
        %vm6456 = vcmp.lt.s32.totalorder %v3013, 128
        %vm6457 = vmand %vm3014, %vm6456
        %6458 = vst.msk [vmem:[#allocation4] sm:$0x1] %vm6457, %v6455
        %v6461 = vunpack.c.l.s4 1966171168
        %v6462 = vunpack.c.0.s8 %v6461
        %v6463 = vlaneseq
        %v6464 = vshrl.u32 %v6463, 7
        %v6465 = vsub.s32 %v6462, %v6464
        %v6466 = vrot.slane %v6455, %v6465
        %v6467 = vcombine.high %v6466, %v6466
        %v6469 = vunpack.c.l.s4 1966171168
        %v6470 = vunpack.c.0.s8 %v6469
        %v6471 = vlaneseq
        %v6472 = vshrl.u32 %v6471, 7
        %v6473 = vsub.s32 %v6470, %v6472
        %v6474 = vrot.slane %v6467, %v6473
        %6476 = vst.msk [vmem:[#allocation4 + $0x1] sm:$0x1] %vm6457, %v6474
        %v6477 = vld [vmem:[#allocation4] sm:$0x3]
        %v6478 = vld [vmem:[%s7] sm:$0xff]
        %v6479 = vld [vmem:[%s7 + $0x8] sm:$0xff]
        %v6480 = vld [vmem:[%s7 + $0x10] sm:$0xff]
        %v6481 = vld [vmem:[%s7 + $0x18] sm:$0xff]
        %v6482 = vld [vmem:[%s7 + $0x20] sm:$0xff]
        %v6483 = vld [vmem:[%s7 + $0x28] sm:$0xff]
        %v6484 = vld [vmem:[%s7 + $0x30] sm:$0xff]
        %v6485 = vld [vmem:[%s7 + $0x38] sm:$0xff]
        %v6486 = vld [vmem:[%s7 + $0x40] sm:$0xff]
        %v6487 = vld [vmem:[%s7 + $0x48] sm:$0xff]
        %v6488 = vld [vmem:[%s7 + $0x50] sm:$0xff]
        %v6489 = vld [vmem:[%s7 + $0x58] sm:$0xff]
        %v6490 = vld [vmem:[%s7 + $0x60] sm:$0xff]
        %v6491 = vld [vmem:[%s7 + $0x68] sm:$0xff]
        %v6492 = vld [vmem:[%s7 + $0x70] sm:$0xff]
        %v6493 = vld [vmem:[%s7 + $0x78] sm:$0xff]
        %v6494 = vld [vmem:[%s7 + $0x80] sm:$0xff]
        %v6495 = vld [vmem:[%s7 + $0x88] sm:$0xff]
        %v6496 = vld [vmem:[%s7 + $0x90] sm:$0xff]
        %v6497 = vld [vmem:[%s7 + $0x98] sm:$0xff]
        %v6498 = vld [vmem:[%s7 + $0xa0] sm:$0xff]
        %v6499 = vld [vmem:[%s7 + $0xa8] sm:$0xff]
        %v6500 = vld [vmem:[%s7 + $0xb0] sm:$0xff]
        %v6501 = vld [vmem:[%s7 + $0xb8] sm:$0xff]
        %v6502 = vld [vmem:[%s7 + $0xc0] sm:$0xff]
        %v6503 = vld [vmem:[%s7 + $0xc8] sm:$0xff]
        %v6504 = vld [vmem:[%s7 + $0xd0] sm:$0xff]
        %v6505 = vld [vmem:[%s7 + $0xd8] sm:$0xff]
        %v6506 = vld [vmem:[%s7 + $0xe0] sm:$0xff]
        %v6507 = vld [vmem:[%s7 + $0xe8] sm:$0xff]
        %v6508 = vld [vmem:[%s7 + $0xf0] sm:$0xff]
        %v6509 = vld [vmem:[%s7 + $0xf8] sm:$0xff]
        %v6510 = vld [vmem:[%s7 + $0x100] sm:$0xff]
        %v6511 = vld [vmem:[%s7 + $0x108] sm:$0xff]
        %v6512 = vld [vmem:[%s7 + $0x110] sm:$0xff]
        %v6513 = vld [vmem:[%s7 + $0x118] sm:$0xff]
        %v6514 = vld [vmem:[%s7 + $0x120] sm:$0xff]
        %v6515 = vld [vmem:[%s7 + $0x128] sm:$0xff]
        %v6516 = vld [vmem:[%s7 + $0x130] sm:$0xff]
        %v6517 = vld [vmem:[%s7 + $0x138] sm:$0xff]
        %v6518 = vld [vmem:[%s7 + $0x140] sm:$0xff]
        %v6519 = vld [vmem:[%s7 + $0x148] sm:$0xff]
        %v6520 = vld [vmem:[%s7 + $0x150] sm:$0xff]
        %v6521 = vld [vmem:[%s7 + $0x158] sm:$0xff]
        %v6522 = vld [vmem:[%s7 + $0x160] sm:$0xff]
        %v6523 = vld [vmem:[%s7 + $0x168] sm:$0xff]
        %v6524 = vld [vmem:[%s7 + $0x170] sm:$0xff]
        %v6525 = vld [vmem:[%s7 + $0x178] sm:$0xff]
        %v6526 = vld [vmem:[%s7 + $0x180] sm:$0xff]
        %v6527 = vld [vmem:[%s7 + $0x188] sm:$0xff]
        %v6528 = vld [vmem:[%s7 + $0x190] sm:$0xff]
        %v6529 = vld [vmem:[%s7 + $0x198] sm:$0xff]
        %v6530 = vld [vmem:[%s7 + $0x1a0] sm:$0xff]
        %v6531 = vld [vmem:[%s7 + $0x1a8] sm:$0xff]
        %v6532 = vld [vmem:[%s7 + $0x1b0] sm:$0xff]
        %v6533 = vld [vmem:[%s7 + $0x1b8] sm:$0xff]
        %v6534 = vld [vmem:[%s7 + $0x1c0] sm:$0xff]
        %v6535 = vld [vmem:[%s7 + $0x1c8] sm:$0xff]
        %v6536 = vld [vmem:[%s7 + $0x1d0] sm:$0xff]
        %v6537 = vld [vmem:[%s7 + $0x1d8] sm:$0xff]
        %v6538 = vld [vmem:[%s7 + $0x1e0] sm:$0xff]
        %v6539 = vld [vmem:[%s7 + $0x1e8] sm:$0xff]
        %v6540 = vld [vmem:[%s7 + $0x1f0] sm:$0xff]
        %v6541 = vld [vmem:[%s7 + $0x1f8] sm:$0xff]
        %v6542 = vld [vmem:[%s7 + $0x200] sm:$0xff]
        %v6543 = vld [vmem:[%s7 + $0x208] sm:$0xff]
        %v6544 = vld [vmem:[%s7 + $0x210] sm:$0xff]
        %v6545 = vld [vmem:[%s7 + $0x218] sm:$0xff]
        %v6546 = vld [vmem:[%s7 + $0x220] sm:$0xff]
        %v6547 = vld [vmem:[%s7 + $0x228] sm:$0xff]
        %v6548 = vld [vmem:[%s7 + $0x230] sm:$0xff]
        %v6549 = vld [vmem:[%s7 + $0x238] sm:$0xff]
        %v6550 = vld [vmem:[%s7 + $0x240] sm:$0xff]
        %v6551 = vld [vmem:[%s7 + $0x248] sm:$0xff]
        %v6552 = vld [vmem:[%s7 + $0x250] sm:$0xff]
        %v6553 = vld [vmem:[%s7 + $0x258] sm:$0xff]
        %v6554 = vld [vmem:[%s7 + $0x260] sm:$0xff]
        %v6555 = vld [vmem:[%s7 + $0x268] sm:$0xff]
        %v6556 = vld [vmem:[%s7 + $0x270] sm:$0xff]
        %v6557 = vld [vmem:[%s7 + $0x278] sm:$0xff]
        %v6558 = vld [vmem:[%s7 + $0x280] sm:$0xff]
        %v6559 = vld [vmem:[%s7 + $0x288] sm:$0xff]
        %v6560 = vld [vmem:[%s7 + $0x290] sm:$0xff]
        %v6561 = vld [vmem:[%s7 + $0x298] sm:$0xff]
        %v6562 = vld [vmem:[%s7 + $0x2a0] sm:$0xff]
        %v6563 = vld [vmem:[%s7 + $0x2a8] sm:$0xff]
        %v6564 = vld [vmem:[%s7 + $0x2b0] sm:$0xff]
        %v6565 = vld [vmem:[%s7 + $0x2b8] sm:$0xff]
        %v6566 = vld [vmem:[%s7 + $0x2c0] sm:$0xff]
        %v6567 = vld [vmem:[%s7 + $0x2c8] sm:$0xff]
        %v6568 = vld [vmem:[%s7 + $0x2d0] sm:$0xff]
        %v6569 = vld [vmem:[%s7 + $0x2d8] sm:$0xff]
        %v6570 = vld [vmem:[%s7 + $0x2e0] sm:$0xff]
        %v6571 = vld [vmem:[%s7 + $0x2e8] sm:$0xff]
        %v6572 = vld [vmem:[%s7 + $0x2f0] sm:$0xff]
        %v6573 = vld [vmem:[%s7 + $0x2f8] sm:$0xff]
        %v6574 = vld [vmem:[%s7 + $0x300] sm:$0xff]
        %v6575 = vld [vmem:[%s7 + $0x308] sm:$0xff]
        %v6576 = vld [vmem:[%s7 + $0x310] sm:$0xff]
        %v6577 = vld [vmem:[%s7 + $0x318] sm:$0xff]
        %v6578 = vld [vmem:[%s7 + $0x320] sm:$0xff]
        %v6579 = vld [vmem:[%s7 + $0x328] sm:$0xff]
        %v6580 = vld [vmem:[%s7 + $0x330] sm:$0xff]
        %v6581 = vld [vmem:[%s7 + $0x338] sm:$0xff]
        %v6582 = vld [vmem:[%s7 + $0x340] sm:$0xff]
        %v6583 = vld [vmem:[%s7 + $0x348] sm:$0xff]
        %v6584 = vld [vmem:[%s7 + $0x350] sm:$0xff]
        %v6585 = vld [vmem:[%s7 + $0x358] sm:$0xff]
        %v6586 = vld [vmem:[%s7 + $0x360] sm:$0xff]
        %v6587 = vld [vmem:[%s7 + $0x368] sm:$0xff]
        %v6588 = vld [vmem:[%s7 + $0x370] sm:$0xff]
        %v6589 = vld [vmem:[%s7 + $0x378] sm:$0xff]
        %v6590 = vld [vmem:[%s7 + $0x380] sm:$0xff]
        %v6591 = vld [vmem:[%s7 + $0x388] sm:$0xff]
        %v6592 = vld [vmem:[%s7 + $0x390] sm:$0xff]
        %v6593 = vld [vmem:[%s7 + $0x398] sm:$0xff]
        %v6594 = vld [vmem:[%s7 + $0x3a0] sm:$0xff]
        %v6595 = vld [vmem:[%s7 + $0x3a8] sm:$0xff]
        %v6596 = vld [vmem:[%s7 + $0x3b0] sm:$0xff]
        %v6597 = vld [vmem:[%s7 + $0x3b8] sm:$0xff]
        %v6598 = vld [vmem:[%s7 + $0x3c0] sm:$0xff]
        %v6599 = vld [vmem:[%s7 + $0x3c8] sm:$0xff]
        %v6600 = vld [vmem:[%s7 + $0x3d0] sm:$0xff]
        %v6601 = vld [vmem:[%s7 + $0x3d8] sm:$0xff]
        %v6602 = vld [vmem:[%s7 + $0x3e0] sm:$0xff]
        %v6603 = vld [vmem:[%s7 + $0x3e8] sm:$0xff]
        %v6604 = vld [vmem:[%s7 + $0x3f0] sm:$0xff]
        %v6605 = vld [vmem:[%s7 + $0x3f8] sm:$0xff]
        %v6606 = vld [vmem:[%s7 + $0x400] sm:$0xff]
        %v6607 = vld [vmem:[%s7 + $0x408] sm:$0xff]
        %v6608 = vld [vmem:[%s7 + $0x410] sm:$0xff]
        %v6609 = vld [vmem:[%s7 + $0x418] sm:$0xff]
        %v6610 = vld [vmem:[%s7 + $0x420] sm:$0xff]
        %v6611 = vld [vmem:[%s7 + $0x428] sm:$0xff]
        %v6612 = vld [vmem:[%s7 + $0x430] sm:$0xff]
        %v6613 = vld [vmem:[%s7 + $0x438] sm:$0xff]
        %v6614 = vld [vmem:[%s7 + $0x440] sm:$0xff]
        %v6615 = vld [vmem:[%s7 + $0x448] sm:$0xff]
        %v6616 = vld [vmem:[%s7 + $0x450] sm:$0xff]
        %v6617 = vld [vmem:[%s7 + $0x458] sm:$0xff]
        %v6618 = vld [vmem:[%s7 + $0x460] sm:$0xff]
        %v6619 = vld [vmem:[%s7 + $0x468] sm:$0xff]
        %v6620 = vld [vmem:[%s7 + $0x470] sm:$0xff]
        %v6621 = vld [vmem:[%s7 + $0x478] sm:$0xff]
        %v6622 = vld [vmem:[%s7 + $0x480] sm:$0xff]
        %v6623 = vld [vmem:[%s7 + $0x488] sm:$0xff]
        %v6624 = vld [vmem:[%s7 + $0x490] sm:$0xff]
        %v6625 = vld [vmem:[%s7 + $0x498] sm:$0xff]
        %v6626 = vld [vmem:[%s7 + $0x4a0] sm:$0xff]
        %v6627 = vld [vmem:[%s7 + $0x4a8] sm:$0xff]
        %v6628 = vld [vmem:[%s7 + $0x4b0] sm:$0xff]
        %v6629 = vld [vmem:[%s7 + $0x4b8] sm:$0xff]
        %v6630 = vld [vmem:[%s7 + $0x4c0] sm:$0xff]
        %v6631 = vld [vmem:[%s7 + $0x4c8] sm:$0xff]
        %v6632 = vld [vmem:[%s7 + $0x4d0] sm:$0xff]
        %v6633 = vld [vmem:[%s7 + $0x4d8] sm:$0xff]
        %v6634 = vld [vmem:[%s7 + $0x4e0] sm:$0xff]
        %v6635 = vld [vmem:[%s7 + $0x4e8] sm:$0xff]
        %v6636 = vld [vmem:[%s7 + $0x4f0] sm:$0xff]
        %v6637 = vld [vmem:[%s7 + $0x4f8] sm:$0xff]
        %v6638 = vld [vmem:[%s7 + $0x500] sm:$0xff]
        %v6639 = vld [vmem:[%s7 + $0x508] sm:$0xff]
        %v6640 = vld [vmem:[%s7 + $0x510] sm:$0xff]
        %v6641 = vld [vmem:[%s7 + $0x518] sm:$0xff]
        %v6642 = vld [vmem:[%s7 + $0x520] sm:$0xff]
        %v6643 = vld [vmem:[%s7 + $0x528] sm:$0xff]
        %v6644 = vld [vmem:[%s7 + $0x530] sm:$0xff]
        %v6645 = vld [vmem:[%s7 + $0x538] sm:$0xff]
        %v6646 = vld [vmem:[%s7 + $0x540] sm:$0xff]
        %v6647 = vld [vmem:[%s7 + $0x548] sm:$0xff]
        %v6648 = vld [vmem:[%s7 + $0x550] sm:$0xff]
        %v6649 = vld [vmem:[%s7 + $0x558] sm:$0xff]
        %v6650 = vld [vmem:[%s7 + $0x560] sm:$0xff]
        %v6651 = vld [vmem:[%s7 + $0x568] sm:$0xff]
        %v6652 = vld [vmem:[%s7 + $0x570] sm:$0xff]
        %v6653 = vld [vmem:[%s7 + $0x578] sm:$0xff]
        %v6654 = vld [vmem:[%s7 + $0x580] sm:$0xff]
        %v6655 = vld [vmem:[%s7 + $0x588] sm:$0xff]
        %v6656 = vld [vmem:[%s7 + $0x590] sm:$0xff]
        %v6657 = vld [vmem:[%s7 + $0x598] sm:$0xff]
        %v6658 = vld [vmem:[%s7 + $0x5a0] sm:$0xff]
        %v6659 = vld [vmem:[%s7 + $0x5a8] sm:$0xff]
        %v6660 = vld [vmem:[%s7 + $0x5b0] sm:$0xff]
        %v6661 = vld [vmem:[%s7 + $0x5b8] sm:$0xff]
        %v6662 = vld [vmem:[%s7 + $0x5c0] sm:$0xff]
        %v6663 = vld [vmem:[%s7 + $0x5c8] sm:$0xff]
        %v6664 = vld [vmem:[%s7 + $0x5d0] sm:$0xff]
        %v6665 = vld [vmem:[%s7 + $0x5d8] sm:$0xff]
        %v6666 = vld [vmem:[%s7 + $0x5e0] sm:$0xff]
        %v6667 = vld [vmem:[%s7 + $0x5e8] sm:$0xff]
        %v6668 = vld [vmem:[%s7 + $0x5f0] sm:$0xff]
        %v6669 = vld [vmem:[%s7 + $0x5f8] sm:$0xff]
        %v6670 = vld [vmem:[%s7 + $0x600] sm:$0xff]
        %v6671 = vld [vmem:[%s7 + $0x608] sm:$0xff]
        %v6672 = vld [vmem:[%s7 + $0x610] sm:$0xff]
        %v6673 = vld [vmem:[%s7 + $0x618] sm:$0xff]
        %v6674 = vld [vmem:[%s7 + $0x620] sm:$0xff]
        %v6675 = vld [vmem:[%s7 + $0x628] sm:$0xff]
        %v6676 = vld [vmem:[%s7 + $0x630] sm:$0xff]
        %v6677 = vld [vmem:[%s7 + $0x638] sm:$0xff]
        %v6678 = vld [vmem:[%s7 + $0x640] sm:$0xff]
        %v6679 = vld [vmem:[%s7 + $0x648] sm:$0xff]
        %v6680 = vld [vmem:[%s7 + $0x650] sm:$0xff]
        %v6681 = vld [vmem:[%s7 + $0x658] sm:$0xff]
        %v6682 = vld [vmem:[%s7 + $0x660] sm:$0xff]
        %v6683 = vld [vmem:[%s7 + $0x668] sm:$0xff]
        %v6684 = vld [vmem:[%s7 + $0x670] sm:$0xff]
        %v6685 = vld [vmem:[%s7 + $0x678] sm:$0xff]
        %v6686 = vld [vmem:[%s7 + $0x680] sm:$0xff]
        %v6687 = vld [vmem:[%s7 + $0x688] sm:$0xff]
        %v6688 = vld [vmem:[%s7 + $0x690] sm:$0xff]
        %v6689 = vld [vmem:[%s7 + $0x698] sm:$0xff]
        %v6690 = vld [vmem:[%s7 + $0x6a0] sm:$0xff]
        %v6691 = vld [vmem:[%s7 + $0x6a8] sm:$0xff]
        %v6692 = vld [vmem:[%s7 + $0x6b0] sm:$0xff]
        %v6693 = vld [vmem:[%s7 + $0x6b8] sm:$0xff]
        %v6694 = vld [vmem:[%s7 + $0x6c0] sm:$0xff]
        %v6695 = vld [vmem:[%s7 + $0x6c8] sm:$0xff]
        %v6696 = vld [vmem:[%s7 + $0x6d0] sm:$0xff]
        %v6697 = vld [vmem:[%s7 + $0x6d8] sm:$0xff]
        %v6698 = vld [vmem:[%s7 + $0x6e0] sm:$0xff]
        %v6699 = vld [vmem:[%s7 + $0x6e8] sm:$0xff]
        %v6700 = vld [vmem:[%s7 + $0x6f0] sm:$0xff]
        %v6701 = vld [vmem:[%s7 + $0x6f8] sm:$0xff]
        %v6702 = vld [vmem:[%s7 + $0x700] sm:$0xff]
        %v6703 = vld [vmem:[%s7 + $0x708] sm:$0xff]
        %v6704 = vld [vmem:[%s7 + $0x710] sm:$0xff]
        %v6705 = vld [vmem:[%s7 + $0x718] sm:$0xff]
        %v6706 = vld [vmem:[%s7 + $0x720] sm:$0xff]
        %v6707 = vld [vmem:[%s7 + $0x728] sm:$0xff]
        %v6708 = vld [vmem:[%s7 + $0x730] sm:$0xff]
        %v6709 = vld [vmem:[%s7 + $0x738] sm:$0xff]
        %v6710 = vld [vmem:[%s7 + $0x740] sm:$0xff]
        %v6711 = vld [vmem:[%s7 + $0x748] sm:$0xff]
        %v6712 = vld [vmem:[%s7 + $0x750] sm:$0xff]
        %v6713 = vld [vmem:[%s7 + $0x758] sm:$0xff]
        %v6714 = vld [vmem:[%s7 + $0x760] sm:$0xff]
        %v6715 = vld [vmem:[%s7 + $0x768] sm:$0xff]
        %v6716 = vld [vmem:[%s7 + $0x770] sm:$0xff]
        %v6717 = vld [vmem:[%s7 + $0x778] sm:$0xff]
        %v6718 = vld [vmem:[%s7 + $0x780] sm:$0xff]
        %v6719 = vld [vmem:[%s7 + $0x788] sm:$0xff]
        %v6720 = vld [vmem:[%s7 + $0x790] sm:$0xff]
        %v6721 = vld [vmem:[%s7 + $0x798] sm:$0xff]
        %v6722 = vld [vmem:[%s7 + $0x7a0] sm:$0xff]
        %v6723 = vld [vmem:[%s7 + $0x7a8] sm:$0xff]
        %v6724 = vld [vmem:[%s7 + $0x7b0] sm:$0xff]
        %v6725 = vld [vmem:[%s7 + $0x7b8] sm:$0xff]
        %v6726 = vld [vmem:[%s7 + $0x7c0] sm:$0xff]
        %v6727 = vld [vmem:[%s7 + $0x7c8] sm:$0xff]
        %v6728 = vld [vmem:[%s7 + $0x7d0] sm:$0xff]
        %v6729 = vld [vmem:[%s7 + $0x7d8] sm:$0xff]
        %v6730 = vld [vmem:[%s7 + $0x7e0] sm:$0xff]
        %v6731 = vld [vmem:[%s7 + $0x7e8] sm:$0xff]
        %v6732 = vld [vmem:[%s7 + $0x7f0] sm:$0xff]
        %v6733 = vld [vmem:[%s7 + $0x7f8] sm:$0xff]
        %v6734 = vld [vmem:[%s8] sm:$0xff]
        %v6736 = vlaneseq
        %v6737 = vshrl.u32 %v6736, 7
        %v6738 = vsub.s32 0, %v6737
        %v6739 = vrot.slane %v6477, %v6738
        %v6740 = vlaneseq
        %v6741 = vshrl.u32 %v6740, 7
        %v6742 = vsub.s32 1, %v6741
        %v6743 = vrot.slane %v6477, %v6742
        %v6747 = vlaneseq
        %v6748 = vshrl.u32 %v6747, 7
        %v6749 = vsub.s32 0, %v6748
        %v6750 = vrot.slane %v6734, %v6749
        %v6751 = vlaneseq
        %v6752 = vshrl.u32 %v6751, 7
        %v6753 = vsub.s32 1, %v6752
        %v6754 = vrot.slane %v6734, %v6753
        %v6755 = vlaneseq
        %v6756 = vshrl.u32 %v6755, 7
        %v6757 = vsub.s32 2, %v6756
        %v6758 = vrot.slane %v6734, %v6757
        %v6759 = vlaneseq
        %v6760 = vshrl.u32 %v6759, 7
        %v6761 = vsub.s32 3, %v6760
        %v6762 = vrot.slane %v6734, %v6761
        %v6763 = vlaneseq
        %v6764 = vshrl.u32 %v6763, 7
        %v6765 = vsub.s32 4, %v6764
        %v6766 = vrot.slane %v6734, %v6765
        %v6767 = vlaneseq
        %v6768 = vshrl.u32 %v6767, 7
        %v6769 = vsub.s32 5, %v6768
        %v6770 = vrot.slane %v6734, %v6769
        %v6771 = vlaneseq
        %v6772 = vshrl.u32 %v6771, 7
        %v6773 = vsub.s32 6, %v6772
        %v6774 = vrot.slane %v6734, %v6773
        %v6775 = vlaneseq
        %v6776 = vshrl.u32 %v6775, 7
        %v6777 = vsub.s32 7, %v6776
        %v6778 = vrot.slane %v6734, %v6777
        %6787 = vmatprep.subr.mxu0 %v6479
        %6788 = vmatpush1.msra.mxu0 %v6478
        %6789 = vmatprep.subr.mxu0 %v6487
        %6790 = vmatpush1.msra.mxu0 %v6486
        %6791 = vmatprep.subr.mxu0 %v6495
        %6792 = vmatpush1.msra.mxu0 %v6494
        %6793 = vmatprep.subr.mxu0 %v6503
        %6794 = vmatpush1.msra.mxu0 %v6502
        %6795 = vmatprep.subr.mxu0 %v6511
        %6796 = vmatpush1.msra.mxu0 %v6510
        %6797 = vmatprep.subr.mxu0 %v6519
        %6798 = vmatpush1.msra.mxu0 %v6518
        %6799 = vmatprep.subr.mxu0 %v6527
        %6800 = vmatpush1.msra.mxu0 %v6526
        %6801 = vmatprep.subr.mxu0 %v6535
        %6802 = vmatpush1.msra.mxu0 %v6534
        %6803 = vmatprep.subr.mxu0 %v6543
        %6804 = vmatpush1.msra.mxu0 %v6542
        %6805 = vmatprep.subr.mxu0 %v6551
        %6806 = vmatpush1.msra.mxu0 %v6550
        %6807 = vmatprep.subr.mxu0 %v6559
        %6808 = vmatpush1.msra.mxu0 %v6558
        %6809 = vmatprep.subr.mxu0 %v6567
        %6810 = vmatpush1.msra.mxu0 %v6566
        %6811 = vmatprep.subr.mxu0 %v6575
        %6812 = vmatpush1.msra.mxu0 %v6574
        %6813 = vmatprep.subr.mxu0 %v6583
        %6814 = vmatpush1.msra.mxu0 %v6582
        %6815 = vmatprep.subr.mxu0 %v6591
        %6816 = vmatpush1.msra.mxu0 %v6590
        %6817 = vmatprep.subr.mxu0 %v6599
        %6818 = vmatpush1.msra.mxu0 %v6598
        %6819 = vmatprep.subr.mxu0 %v6607
        %6820 = vmatpush1.msra.mxu0 %v6606
        %6821 = vmatprep.subr.mxu0 %v6615
        %6822 = vmatpush1.msra.mxu0 %v6614
        %6823 = vmatprep.subr.mxu0 %v6623
        %6824 = vmatpush1.msra.mxu0 %v6622
        %6825 = vmatprep.subr.mxu0 %v6631
        %6826 = vmatpush1.msra.mxu0 %v6630
        %6827 = vmatprep.subr.mxu0 %v6639
        %6828 = vmatpush1.msra.mxu0 %v6638
        %6829 = vmatprep.subr.mxu0 %v6647
        %6830 = vmatpush1.msra.mxu0 %v6646
        %6831 = vmatprep.subr.mxu0 %v6655
        %6832 = vmatpush1.msra.mxu0 %v6654
        %6833 = vmatprep.subr.mxu0 %v6663
        %6834 = vmatpush1.msra.mxu0 %v6662
        %6835 = vmatprep.subr.mxu0 %v6671
        %6836 = vmatpush1.msra.mxu0 %v6670
        %6837 = vmatprep.subr.mxu0 %v6679
        %6838 = vmatpush1.msra.mxu0 %v6678
        %6839 = vmatprep.subr.mxu0 %v6687
        %6840 = vmatpush1.msra.mxu0 %v6686
        %6841 = vmatprep.subr.mxu0 %v6695
        %6842 = vmatpush1.msra.mxu0 %v6694
        %6843 = vmatprep.subr.mxu0 %v6703
        %6844 = vmatpush1.msra.mxu0 %v6702
        %6845 = vmatprep.subr.mxu0 %v6711
        %6846 = vmatpush1.msra.mxu0 %v6710
        %6847 = vmatprep.subr.mxu0 %v6719
        %6848 = vmatpush1.msra.mxu0 %v6718
        %6849 = vmatprep.subr.mxu0 %v6727
        %6850 = vmatpush1.msra.mxu0 %v6726
        %6851 = vmatprep.mubr.f32.mxu0 %v6743
        %6852 = vmatmul.mubr.f32.gmra.mrb[0].mxu0 %v6739
        %v6853 = vpop.f32.mrb[0].mxu0
        %v6854 = vadd.f32 %v6750, %v6853
        %v6855 = vpop.f32.mrb[0].mxu0
        %v6856 = vadd.f32 %v6754, %v6855
        %6857 = vdwg.mxu0
        %6858 = vmatprep.subr.mxu0 %v6481
        %6859 = vmatpush1.msra.mxu0 %v6480
        %6860 = vmatprep.subr.mxu0 %v6489
        %6861 = vmatpush1.msra.mxu0 %v6488
        %6862 = vmatprep.subr.mxu0 %v6497
        %6863 = vmatpush1.msra.mxu0 %v6496
        %6864 = vmatprep.subr.mxu0 %v6505
        %6865 = vmatpush1.msra.mxu0 %v6504
        %6866 = vmatprep.subr.mxu0 %v6513
        %6867 = vmatpush1.msra.mxu0 %v6512
        %6868 = vmatprep.subr.mxu0 %v6521
        %6869 = vmatpush1.msra.mxu0 %v6520
        %6870 = vmatprep.subr.mxu0 %v6529
        %6871 = vmatpush1.msra.mxu0 %v6528
        %6872 = vmatprep.subr.mxu0 %v6537
        %6873 = vmatpush1.msra.mxu0 %v6536
        %6874 = vmatprep.subr.mxu0 %v6545
        %6875 = vmatpush1.msra.mxu0 %v6544
        %6876 = vmatprep.subr.mxu0 %v6553
        %6877 = vmatpush1.msra.mxu0 %v6552
        %6878 = vmatprep.subr.mxu0 %v6561
        %6879 = vmatpush1.msra.mxu0 %v6560
        %6880 = vmatprep.subr.mxu0 %v6569
        %6881 = vmatpush1.msra.mxu0 %v6568
        %6882 = vmatprep.subr.mxu0 %v6577
        %6883 = vmatpush1.msra.mxu0 %v6576
        %6884 = vmatprep.subr.mxu0 %v6585
        %6885 = vmatpush1.msra.mxu0 %v6584
        %6886 = vmatprep.subr.mxu0 %v6593
        %6887 = vmatpush1.msra.mxu0 %v6592
        %6888 = vmatprep.subr.mxu0 %v6601
        %6889 = vmatpush1.msra.mxu0 %v6600
        %6890 = vmatprep.subr.mxu0 %v6609
        %6891 = vmatpush1.msra.mxu0 %v6608
        %6892 = vmatprep.subr.mxu0 %v6617
        %6893 = vmatpush1.msra.mxu0 %v6616
        %6894 = vmatprep.subr.mxu0 %v6625
        %6895 = vmatpush1.msra.mxu0 %v6624
        %6896 = vmatprep.subr.mxu0 %v6633
        %6897 = vmatpush1.msra.mxu0 %v6632
        %6898 = vmatprep.subr.mxu0 %v6641
        %6899 = vmatpush1.msra.mxu0 %v6640
        %6900 = vmatprep.subr.mxu0 %v6649
        %6901 = vmatpush1.msra.mxu0 %v6648
        %6902 = vmatprep.subr.mxu0 %v6657
        %6903 = vmatpush1.msra.mxu0 %v6656
        %6904 = vmatprep.subr.mxu0 %v6665
        %6905 = vmatpush1.msra.mxu0 %v6664
        %6906 = vmatprep.subr.mxu0 %v6673
        %6907 = vmatpush1.msra.mxu0 %v6672
        %6908 = vmatprep.subr.mxu0 %v6681
        %6909 = vmatpush1.msra.mxu0 %v6680
        %6910 = vmatprep.subr.mxu0 %v6689
        %6911 = vmatpush1.msra.mxu0 %v6688
        %6912 = vmatprep.subr.mxu0 %v6697
        %6913 = vmatpush1.msra.mxu0 %v6696
        %6914 = vmatprep.subr.mxu0 %v6705
        %6915 = vmatpush1.msra.mxu0 %v6704
        %6916 = vmatprep.subr.mxu0 %v6713
        %6917 = vmatpush1.msra.mxu0 %v6712
        %6918 = vmatprep.subr.mxu0 %v6721
        %6919 = vmatpush1.msra.mxu0 %v6720
        %6920 = vmatprep.subr.mxu0 %v6729
        %6921 = vmatpush1.msra.mxu0 %v6728
        %6922 = vmatprep.mubr.f32.mxu0 %v6743
        %6923 = vmatmul.mubr.f32.gmra.mrb[0].mxu0 %v6739
        %v6924 = vpop.f32.mrb[0].mxu0
        %v6925 = vadd.f32 %v6758, %v6924
        %v6926 = vpop.f32.mrb[0].mxu0
        %v6927 = vadd.f32 %v6762, %v6926
        %6928 = vdwg.mxu0
        %6929 = vmatprep.subr.mxu0 %v6483
        %6930 = vmatpush1.msra.mxu0 %v6482
        %6931 = vmatprep.subr.mxu0 %v6491
        %6932 = vmatpush1.msra.mxu0 %v6490
        %6933 = vmatprep.subr.mxu0 %v6499
        %6934 = vmatpush1.msra.mxu0 %v6498
        %6935 = vmatprep.subr.mxu0 %v6507
        %6936 = vmatpush1.msra.mxu0 %v6506
        %6937 = vmatprep.subr.mxu0 %v6515
        %6938 = vmatpush1.msra.mxu0 %v6514
        %6939 = vmatprep.subr.mxu0 %v6523
        %6940 = vmatpush1.msra.mxu0 %v6522
        %6941 = vmatprep.subr.mxu0 %v6531
        %6942 = vmatpush1.msra.mxu0 %v6530
        %6943 = vmatprep.subr.mxu0 %v6539
        %6944 = vmatpush1.msra.mxu0 %v6538
        %6945 = vmatprep.subr.mxu0 %v6547
        %6946 = vmatpush1.msra.mxu0 %v6546
        %6947 = vmatprep.subr.mxu0 %v6555
        %6948 = vmatpush1.msra.mxu0 %v6554
        %6949 = vmatprep.subr.mxu0 %v6563
        %6950 = vmatpush1.msra.mxu0 %v6562
        %6951 = vmatprep.subr.mxu0 %v6571
        %6952 = vmatpush1.msra.mxu0 %v6570
        %6953 = vmatprep.subr.mxu0 %v6579
        %6954 = vmatpush1.msra.mxu0 %v6578
        %6955 = vmatprep.subr.mxu0 %v6587
        %6956 = vmatpush1.msra.mxu0 %v6586
        %6957 = vmatprep.subr.mxu0 %v6595
        %6958 = vmatpush1.msra.mxu0 %v6594
        %6959 = vmatprep.subr.mxu0 %v6603
        %6960 = vmatpush1.msra.mxu0 %v6602
        %6961 = vmatprep.subr.mxu0 %v6611
        %6962 = vmatpush1.msra.mxu0 %v6610
        %6963 = vmatprep.subr.mxu0 %v6619
        %6964 = vmatpush1.msra.mxu0 %v6618
        %6965 = vmatprep.subr.mxu0 %v6627
        %6966 = vmatpush1.msra.mxu0 %v6626
        %6967 = vmatprep.subr.mxu0 %v6635
        %6968 = vmatpush1.msra.mxu0 %v6634
        %6969 = vmatprep.subr.mxu0 %v6643
        %6970 = vmatpush1.msra.mxu0 %v6642
        %6971 = vmatprep.subr.mxu0 %v6651
        %6972 = vmatpush1.msra.mxu0 %v6650
        %6973 = vmatprep.subr.mxu0 %v6659
        %6974 = vmatpush1.msra.mxu0 %v6658
        %6975 = vmatprep.subr.mxu0 %v6667
        %6976 = vmatpush1.msra.mxu0 %v6666
        %6977 = vmatprep.subr.mxu0 %v6675
        %6978 = vmatpush1.msra.mxu0 %v6674
        %6979 = vmatprep.subr.mxu0 %v6683
        %6980 = vmatpush1.msra.mxu0 %v6682
        %6981 = vmatprep.subr.mxu0 %v6691
        %6982 = vmatpush1.msra.mxu0 %v6690
        %6983 = vmatprep.subr.mxu0 %v6699
        %6984 = vmatpush1.msra.mxu0 %v6698
        %6985 = vmatprep.subr.mxu0 %v6707
        %6986 = vmatpush1.msra.mxu0 %v6706
        %6987 = vmatprep.subr.mxu0 %v6715
        %6988 = vmatpush1.msra.mxu0 %v6714
        %6989 = vmatprep.subr.mxu0 %v6723
        %6990 = vmatpush1.msra.mxu0 %v6722
        %6991 = vmatprep.subr.mxu0 %v6731
        %6992 = vmatpush1.msra.mxu0 %v6730
        %6993 = vmatprep.mubr.f32.mxu0 %v6743
        %6994 = vmatmul.mubr.f32.gmra.mrb[0].mxu0 %v6739
        %v6995 = vpop.f32.mrb[0].mxu0
        %v6996 = vadd.f32 %v6766, %v6995
        %v6997 = vpop.f32.mrb[0].mxu0
        %v6998 = vadd.f32 %v6770, %v6997
        %6999 = vdwg.mxu0
        %7000 = vmatprep.subr.mxu0 %v6485
        %7001 = vmatpush1.msra.mxu0 %v6484
        %7002 = vmatprep.subr.mxu0 %v6493
        %7003 = vmatpush1.msra.mxu0 %v6492
        %7004 = vmatprep.subr.mxu0 %v6501
        %7005 = vmatpush1.msra.mxu0 %v6500
        %7006 = vmatprep.subr.mxu0 %v6509
        %7007 = vmatpush1.msra.mxu0 %v6508
        %7008 = vmatprep.subr.mxu0 %v6517
        %7009 = vmatpush1.msra.mxu0 %v6516
        %7010 = vmatprep.subr.mxu0 %v6525
        %7011 = vmatpush1.msra.mxu0 %v6524
        %7012 = vmatprep.subr.mxu0 %v6533
        %7013 = vmatpush1.msra.mxu0 %v6532
        %7014 = vmatprep.subr.mxu0 %v6541
        %7015 = vmatpush1.msra.mxu0 %v6540
        %7016 = vmatprep.subr.mxu0 %v6549
        %7017 = vmatpush1.msra.mxu0 %v6548
        %7018 = vmatprep.subr.mxu0 %v6557
        %7019 = vmatpush1.msra.mxu0 %v6556
        %7020 = vmatprep.subr.mxu0 %v6565
        %7021 = vmatpush1.msra.mxu0 %v6564
        %7022 = vmatprep.subr.mxu0 %v6573
        %7023 = vmatpush1.msra.mxu0 %v6572
        %7024 = vmatprep.subr.mxu0 %v6581
        %7025 = vmatpush1.msra.mxu0 %v6580
        %7026 = vmatprep.subr.mxu0 %v6589
        %7027 = vmatpush1.msra.mxu0 %v6588
        %7028 = vmatprep.subr.mxu0 %v6597
        %7029 = vmatpush1.msra.mxu0 %v6596
        %7030 = vmatprep.subr.mxu0 %v6605
        %7031 = vmatpush1.msra.mxu0 %v6604
        %7032 = vmatprep.subr.mxu0 %v6613
        %7033 = vmatpush1.msra.mxu0 %v6612
        %7034 = vmatprep.subr.mxu0 %v6621
        %7035 = vmatpush1.msra.mxu0 %v6620
        %7036 = vmatprep.subr.mxu0 %v6629
        %7037 = vmatpush1.msra.mxu0 %v6628
        %7038 = vmatprep.subr.mxu0 %v6637
        %7039 = vmatpush1.msra.mxu0 %v6636
        %7040 = vmatprep.subr.mxu0 %v6645
        %7041 = vmatpush1.msra.mxu0 %v6644
        %7042 = vmatprep.subr.mxu0 %v6653
        %7043 = vmatpush1.msra.mxu0 %v6652
        %7044 = vmatprep.subr.mxu0 %v6661
        %7045 = vmatpush1.msra.mxu0 %v6660
        %7046 = vmatprep.subr.mxu0 %v6669
        %7047 = vmatpush1.msra.mxu0 %v6668
        %7048 = vmatprep.subr.mxu0 %v6677
        %7049 = vmatpush1.msra.mxu0 %v6676
        %7050 = vmatprep.subr.mxu0 %v6685
        %7051 = vmatpush1.msra.mxu0 %v6684
        %7052 = vmatprep.subr.mxu0 %v6693
        %7053 = vmatpush1.msra.mxu0 %v6692
        %7054 = vmatprep.subr.mxu0 %v6701
        %7055 = vmatpush1.msra.mxu0 %v6700
        %7056 = vmatprep.subr.mxu0 %v6709
        %7057 = vmatpush1.msra.mxu0 %v6708
        %7058 = vmatprep.subr.mxu0 %v6717
        %7059 = vmatpush1.msra.mxu0 %v6716
        %7060 = vmatprep.subr.mxu0 %v6725
        %7061 = vmatpush1.msra.mxu0 %v6724
        %7062 = vmatprep.subr.mxu0 %v6733
        %7063 = vmatpush1.msra.mxu0 %v6732
        %7064 = vmatprep.mubr.f32.mxu0 %v6743
        %7065 = vmatmul.mubr.f32.gmra.mrb[0].mxu0 %v6739
        %v7066 = vpop.f32.mrb[0].mxu0
        %v7067 = vadd.f32 %v6774, %v7066
        %v7068 = vpop.f32.mrb[0].mxu0
        %v7069 = vadd.f32 %v6778, %v7068
        %7070 = vdwg.mxu0
        %v7071 = vmax.f32 %v6854, 0.0
        %v7072 = vmax.f32 %v6856, 0.0
        %v7073 = vmax.f32 %v6925, 0.0
        %v7074 = vmax.f32 %v6927, 0.0
        %v7075 = vmax.f32 %v6996, 0.0
        %v7076 = vmax.f32 %v6998, 0.0
        %v7077 = vmax.f32 %v7067, 0.0
        %v7078 = vmax.f32 %v7069, 0.0
        %v7079 = vld [vmem:[%s9] sm:$0xff]
        %v7080 = vld [vmem:[%s9 + $0x8] sm:$0xff]
        %v7081 = vld [vmem:[%s9 + $0x10] sm:$0xff]
        %v7082 = vld [vmem:[%s9 + $0x18] sm:$0xff]
        %v7083 = vld [vmem:[%s9 + $0x20] sm:$0xff]
        %v7084 = vld [vmem:[%s9 + $0x28] sm:$0xff]
        %v7085 = vld [vmem:[%s9 + $0x30] sm:$0xff]
        %v7086 = vld [vmem:[%s9 + $0x38] sm:$0xff]
        %v7087 = vld [vmem:[%s9 + $0x40] sm:$0xff]
        %v7088 = vld [vmem:[%s9 + $0x48] sm:$0xff]
        %v7089 = vld [vmem:[%s9 + $0x50] sm:$0xff]
        %v7090 = vld [vmem:[%s9 + $0x58] sm:$0xff]
        %v7091 = vld [vmem:[%s9 + $0x60] sm:$0xff]
        %v7092 = vld [vmem:[%s9 + $0x68] sm:$0xff]
        %v7093 = vld [vmem:[%s9 + $0x70] sm:$0xff]
        %v7094 = vld [vmem:[%s9 + $0x78] sm:$0xff]
        %v7095 = vld [vmem:[%s9 + $0x80] sm:$0xff]
        %v7096 = vld [vmem:[%s9 + $0x88] sm:$0xff]
        %v7097 = vld [vmem:[%s9 + $0x90] sm:$0xff]
        %v7098 = vld [vmem:[%s9 + $0x98] sm:$0xff]
        %v7099 = vld [vmem:[%s9 + $0xa0] sm:$0xff]
        %v7100 = vld [vmem:[%s9 + $0xa8] sm:$0xff]
        %v7101 = vld [vmem:[%s9 + $0xb0] sm:$0xff]
        %v7102 = vld [vmem:[%s9 + $0xb8] sm:$0xff]
        %v7103 = vld [vmem:[%s9 + $0xc0] sm:$0xff]
        %v7104 = vld [vmem:[%s9 + $0xc8] sm:$0xff]
        %v7105 = vld [vmem:[%s9 + $0xd0] sm:$0xff]
        %v7106 = vld [vmem:[%s9 + $0xd8] sm:$0xff]
        %v7107 = vld [vmem:[%s9 + $0xe0] sm:$0xff]
        %v7108 = vld [vmem:[%s9 + $0xe8] sm:$0xff]
        %v7109 = vld [vmem:[%s9 + $0xf0] sm:$0xff]
        %v7110 = vld [vmem:[%s9 + $0xf8] sm:$0xff]
        %v7111 = vld [vmem:[%s9 + $0x100] sm:$0xff]
        %v7112 = vld [vmem:[%s9 + $0x108] sm:$0xff]
        %v7113 = vld [vmem:[%s9 + $0x110] sm:$0xff]
        %v7114 = vld [vmem:[%s9 + $0x118] sm:$0xff]
        %v7115 = vld [vmem:[%s9 + $0x120] sm:$0xff]
        %v7116 = vld [vmem:[%s9 + $0x128] sm:$0xff]
        %v7117 = vld [vmem:[%s9 + $0x130] sm:$0xff]
        %v7118 = vld [vmem:[%s9 + $0x138] sm:$0xff]
        %v7119 = vld [vmem:[%s9 + $0x140] sm:$0xff]
        %v7120 = vld [vmem:[%s9 + $0x148] sm:$0xff]
        %v7121 = vld [vmem:[%s9 + $0x150] sm:$0xff]
        %v7122 = vld [vmem:[%s9 + $0x158] sm:$0xff]
        %v7123 = vld [vmem:[%s9 + $0x160] sm:$0xff]
        %v7124 = vld [vmem:[%s9 + $0x168] sm:$0xff]
        %v7125 = vld [vmem:[%s9 + $0x170] sm:$0xff]
        %v7126 = vld [vmem:[%s9 + $0x178] sm:$0xff]
        %v7127 = vld [vmem:[%s9 + $0x180] sm:$0xff]
        %v7128 = vld [vmem:[%s9 + $0x188] sm:$0xff]
        %v7129 = vld [vmem:[%s9 + $0x190] sm:$0xff]
        %v7130 = vld [vmem:[%s9 + $0x198] sm:$0xff]
        %v7131 = vld [vmem:[%s9 + $0x1a0] sm:$0xff]
        %v7132 = vld [vmem:[%s9 + $0x1a8] sm:$0xff]
        %v7133 = vld [vmem:[%s9 + $0x1b0] sm:$0xff]
        %v7134 = vld [vmem:[%s9 + $0x1b8] sm:$0xff]
        %v7135 = vld [vmem:[%s9 + $0x1c0] sm:$0xff]
        %v7136 = vld [vmem:[%s9 + $0x1c8] sm:$0xff]
        %v7137 = vld [vmem:[%s9 + $0x1d0] sm:$0xff]
        %v7138 = vld [vmem:[%s9 + $0x1d8] sm:$0xff]
        %v7139 = vld [vmem:[%s9 + $0x1e0] sm:$0xff]
        %v7140 = vld [vmem:[%s9 + $0x1e8] sm:$0xff]
        %v7141 = vld [vmem:[%s9 + $0x1f0] sm:$0xff]
        %v7142 = vld [vmem:[%s9 + $0x1f8] sm:$0xff]
        %v7143 = vld [vmem:[%s9 + $0x200] sm:$0xff]
        %v7144 = vld [vmem:[%s9 + $0x208] sm:$0xff]
        %v7145 = vld [vmem:[%s9 + $0x210] sm:$0xff]
        %v7146 = vld [vmem:[%s9 + $0x218] sm:$0xff]
        %v7147 = vld [vmem:[%s9 + $0x220] sm:$0xff]
        %v7148 = vld [vmem:[%s9 + $0x228] sm:$0xff]
        %v7149 = vld [vmem:[%s9 + $0x230] sm:$0xff]
        %v7150 = vld [vmem:[%s9 + $0x238] sm:$0xff]
        %v7151 = vld [vmem:[%s9 + $0x240] sm:$0xff]
        %v7152 = vld [vmem:[%s9 + $0x248] sm:$0xff]
        %v7153 = vld [vmem:[%s9 + $0x250] sm:$0xff]
        %v7154 = vld [vmem:[%s9 + $0x258] sm:$0xff]
        %v7155 = vld [vmem:[%s9 + $0x260] sm:$0xff]
        %v7156 = vld [vmem:[%s9 + $0x268] sm:$0xff]
        %v7157 = vld [vmem:[%s9 + $0x270] sm:$0xff]
        %v7158 = vld [vmem:[%s9 + $0x278] sm:$0xff]
        %v7159 = vld [vmem:[%s9 + $0x280] sm:$0xff]
        %v7160 = vld [vmem:[%s9 + $0x288] sm:$0xff]
        %v7161 = vld [vmem:[%s9 + $0x290] sm:$0xff]
        %v7162 = vld [vmem:[%s9 + $0x298] sm:$0xff]
        %v7163 = vld [vmem:[%s9 + $0x2a0] sm:$0xff]
        %v7164 = vld [vmem:[%s9 + $0x2a8] sm:$0xff]
        %v7165 = vld [vmem:[%s9 + $0x2b0] sm:$0xff]
        %v7166 = vld [vmem:[%s9 + $0x2b8] sm:$0xff]
        %v7167 = vld [vmem:[%s9 + $0x2c0] sm:$0xff]
        %v7168 = vld [vmem:[%s9 + $0x2c8] sm:$0xff]
        %v7169 = vld [vmem:[%s9 + $0x2d0] sm:$0xff]
        %v7170 = vld [vmem:[%s9 + $0x2d8] sm:$0xff]
        %v7171 = vld [vmem:[%s9 + $0x2e0] sm:$0xff]
        %v7172 = vld [vmem:[%s9 + $0x2e8] sm:$0xff]
        %v7173 = vld [vmem:[%s9 + $0x2f0] sm:$0xff]
        %v7174 = vld [vmem:[%s9 + $0x2f8] sm:$0xff]
        %v7175 = vld [vmem:[%s9 + $0x300] sm:$0xff]
        %v7176 = vld [vmem:[%s9 + $0x308] sm:$0xff]
        %v7177 = vld [vmem:[%s9 + $0x310] sm:$0xff]
        %v7178 = vld [vmem:[%s9 + $0x318] sm:$0xff]
        %v7179 = vld [vmem:[%s9 + $0x320] sm:$0xff]
        %v7180 = vld [vmem:[%s9 + $0x328] sm:$0xff]
        %v7181 = vld [vmem:[%s9 + $0x330] sm:$0xff]
        %v7182 = vld [vmem:[%s9 + $0x338] sm:$0xff]
        %v7183 = vld [vmem:[%s9 + $0x340] sm:$0xff]
        %v7184 = vld [vmem:[%s9 + $0x348] sm:$0xff]
        %v7185 = vld [vmem:[%s9 + $0x350] sm:$0xff]
        %v7186 = vld [vmem:[%s9 + $0x358] sm:$0xff]
        %v7187 = vld [vmem:[%s9 + $0x360] sm:$0xff]
        %v7188 = vld [vmem:[%s9 + $0x368] sm:$0xff]
        %v7189 = vld [vmem:[%s9 + $0x370] sm:$0xff]
        %v7190 = vld [vmem:[%s9 + $0x378] sm:$0xff]
        %v7191 = vld [vmem:[%s9 + $0x380] sm:$0xff]
        %v7192 = vld [vmem:[%s9 + $0x388] sm:$0xff]
        %v7193 = vld [vmem:[%s9 + $0x390] sm:$0xff]
        %v7194 = vld [vmem:[%s9 + $0x398] sm:$0xff]
        %v7195 = vld [vmem:[%s9 + $0x3a0] sm:$0xff]
        %v7196 = vld [vmem:[%s9 + $0x3a8] sm:$0xff]
        %v7197 = vld [vmem:[%s9 + $0x3b0] sm:$0xff]
        %v7198 = vld [vmem:[%s9 + $0x3b8] sm:$0xff]
        %v7199 = vld [vmem:[%s9 + $0x3c0] sm:$0xff]
        %v7200 = vld [vmem:[%s9 + $0x3c8] sm:$0xff]
        %v7201 = vld [vmem:[%s9 + $0x3d0] sm:$0xff]
        %v7202 = vld [vmem:[%s9 + $0x3d8] sm:$0xff]
        %v7203 = vld [vmem:[%s9 + $0x3e0] sm:$0xff]
        %v7204 = vld [vmem:[%s9 + $0x3e8] sm:$0xff]
        %v7205 = vld [vmem:[%s9 + $0x3f0] sm:$0xff]
        %v7206 = vld [vmem:[%s9 + $0x3f8] sm:$0xff]
        %v7207 = vld [vmem:[%s10] sm:$0x1]
        %7208 = vmatprep.subr.mxu0 0.0
        %7209 = vmatpush1.msra.mxu0 %v7079
        %7210 = vmatprep.subr.mxu0 0.0
        %7211 = vmatpush1.msra.mxu0 %v7080
        %7212 = vmatprep.subr.mxu0 0.0
        %7213 = vmatpush1.msra.mxu0 %v7081
        %7214 = vmatprep.subr.mxu0 0.0
        %7215 = vmatpush1.msra.mxu0 %v7082
        %7216 = vmatprep.subr.mxu0 0.0
        %7217 = vmatpush1.msra.mxu0 %v7083
        %7218 = vmatprep.subr.mxu0 0.0
        %7219 = vmatpush1.msra.mxu0 %v7084
        %7220 = vmatprep.subr.mxu0 0.0
        %7221 = vmatpush1.msra.mxu0 %v7085
        %7222 = vmatprep.subr.mxu0 0.0
        %7223 = vmatpush1.msra.mxu0 %v7086
        %7224 = vmatprep.subr.mxu0 0.0
        %7225 = vmatpush1.msra.mxu0 %v7087
        %7226 = vmatprep.subr.mxu0 0.0
        %7227 = vmatpush1.msra.mxu0 %v7088
        %7228 = vmatprep.subr.mxu0 0.0
        %7229 = vmatpush1.msra.mxu0 %v7089
        %7230 = vmatprep.subr.mxu0 0.0
        %7231 = vmatpush1.msra.mxu0 %v7090
        %7232 = vmatprep.subr.mxu0 0.0
        %7233 = vmatpush1.msra.mxu0 %v7091
        %7234 = vmatprep.subr.mxu0 0.0
        %7235 = vmatpush1.msra.mxu0 %v7092
        %7236 = vmatprep.subr.mxu0 0.0
        %7237 = vmatpush1.msra.mxu0 %v7093
        %7238 = vmatprep.subr.mxu0 0.0
        %7239 = vmatpush1.msra.mxu0 %v7094
        %7240 = vmatprep.subr.mxu0 0.0
        %7241 = vmatpush1.msra.mxu0 %v7095
        %7242 = vmatprep.subr.mxu0 0.0
        %7243 = vmatpush1.msra.mxu0 %v7096
        %7244 = vmatprep.subr.mxu0 0.0
        %7245 = vmatpush1.msra.mxu0 %v7097
        %7246 = vmatprep.subr.mxu0 0.0
        %7247 = vmatpush1.msra.mxu0 %v7098
        %7248 = vmatprep.subr.mxu0 0.0
        %7249 = vmatpush1.msra.mxu0 %v7099
        %7250 = vmatprep.subr.mxu0 0.0
        %7251 = vmatpush1.msra.mxu0 %v7100
        %7252 = vmatprep.subr.mxu0 0.0
        %7253 = vmatpush1.msra.mxu0 %v7101
        %7254 = vmatprep.subr.mxu0 0.0
        %7255 = vmatpush1.msra.mxu0 %v7102
        %7256 = vmatprep.subr.mxu0 0.0
        %7257 = vmatpush1.msra.mxu0 %v7103
        %7258 = vmatprep.subr.mxu0 0.0
        %7259 = vmatpush1.msra.mxu0 %v7104
        %7260 = vmatprep.subr.mxu0 0.0
        %7261 = vmatpush1.msra.mxu0 %v7105
        %7262 = vmatprep.subr.mxu0 0.0
        %7263 = vmatpush1.msra.mxu0 %v7106
        %7264 = vmatprep.subr.mxu0 0.0
        %7265 = vmatpush1.msra.mxu0 %v7107
        %7266 = vmatprep.subr.mxu0 0.0
        %7267 = vmatpush1.msra.mxu0 %v7108
        %7268 = vmatprep.subr.mxu0 0.0
        %7269 = vmatpush1.msra.mxu0 %v7109
        %7270 = vmatprep.subr.mxu0 0.0
        %7271 = vmatpush1.msra.mxu0 %v7110
        %7272 = vmatprep.mubr.f32.mxu0 %v7072
        %7273 = vmatmul.mubr.f32.gmra.mrb[0].mxu0 %v7071
        %v7274 = vpop.f32.mrb[0].mxu0
        %v7275 = vadd.f32 %v7207, %v7274
        %v7276 = vpop.f32.mrb[0].mxu0
        %7277 = vdwg.mxu0
        %7278 = vmatprep.subr.mxu0 0.0
        %7279 = vmatpush1.msra.mxu0 %v7111
        %7280 = vmatprep.subr.mxu0 0.0
        %7281 = vmatpush1.msra.mxu0 %v7112
        %7282 = vmatprep.subr.mxu0 0.0
        %7283 = vmatpush1.msra.mxu0 %v7113
        %7284 = vmatprep.subr.mxu0 0.0
        %7285 = vmatpush1.msra.mxu0 %v7114
        %7286 = vmatprep.subr.mxu0 0.0
        %7287 = vmatpush1.msra.mxu0 %v7115
        %7288 = vmatprep.subr.mxu0 0.0
        %7289 = vmatpush1.msra.mxu0 %v7116
        %7290 = vmatprep.subr.mxu0 0.0
        %7291 = vmatpush1.msra.mxu0 %v7117
        %7292 = vmatprep.subr.mxu0 0.0
        %7293 = vmatpush1.msra.mxu0 %v7118
        %7294 = vmatprep.subr.mxu0 0.0
        %7295 = vmatpush1.msra.mxu0 %v7119
        %7296 = vmatprep.subr.mxu0 0.0
        %7297 = vmatpush1.msra.mxu0 %v7120
        %7298 = vmatprep.subr.mxu0 0.0
        %7299 = vmatpush1.msra.mxu0 %v7121
        %7300 = vmatprep.subr.mxu0 0.0
        %7301 = vmatpush1.msra.mxu0 %v7122
        %7302 = vmatprep.subr.mxu0 0.0
        %7303 = vmatpush1.msra.mxu0 %v7123
        %7304 = vmatprep.subr.mxu0 0.0
        %7305 = vmatpush1.msra.mxu0 %v7124
        %7306 = vmatprep.subr.mxu0 0.0
        %7307 = vmatpush1.msra.mxu0 %v7125
        %7308 = vmatprep.subr.mxu0 0.0
        %7309 = vmatpush1.msra.mxu0 %v7126
        %7310 = vmatprep.subr.mxu0 0.0
        %7311 = vmatpush1.msra.mxu0 %v7127
        %7312 = vmatprep.subr.mxu0 0.0
        %7313 = vmatpush1.msra.mxu0 %v7128
        %7314 = vmatprep.subr.mxu0 0.0
        %7315 = vmatpush1.msra.mxu0 %v7129
        %7316 = vmatprep.subr.mxu0 0.0
        %7317 = vmatpush1.msra.mxu0 %v7130
        %7318 = vmatprep.subr.mxu0 0.0
        %7319 = vmatpush1.msra.mxu0 %v7131
        %7320 = vmatprep.subr.mxu0 0.0
        %7321 = vmatpush1.msra.mxu0 %v7132
        %7322 = vmatprep.subr.mxu0 0.0
        %7323 = vmatpush1.msra.mxu0 %v7133
        %7324 = vmatprep.subr.mxu0 0.0
        %7325 = vmatpush1.msra.mxu0 %v7134
        %7326 = vmatprep.subr.mxu0 0.0
        %7327 = vmatpush1.msra.mxu0 %v7135
        %7328 = vmatprep.subr.mxu0 0.0
        %7329 = vmatpush1.msra.mxu0 %v7136
        %7330 = vmatprep.subr.mxu0 0.0
        %7331 = vmatpush1.msra.mxu0 %v7137
        %7332 = vmatprep.subr.mxu0 0.0
        %7333 = vmatpush1.msra.mxu0 %v7138
        %7334 = vmatprep.subr.mxu0 0.0
        %7335 = vmatpush1.msra.mxu0 %v7139
        %7336 = vmatprep.subr.mxu0 0.0
        %7337 = vmatpush1.msra.mxu0 %v7140
        %7338 = vmatprep.subr.mxu0 0.0
        %7339 = vmatpush1.msra.mxu0 %v7141
        %7340 = vmatprep.subr.mxu0 0.0
        %7341 = vmatpush1.msra.mxu0 %v7142
        %7342 = vmatprep.mubr.f32.mxu0 %v7074
        %7343 = vmatmul.mubr.f32.gmra.mrb[0].mxu0 %v7073
        %v7344 = vpop.f32.mrb[0].mxu0
        %v7345 = vadd.f32 %v7275, %v7344
        %v7346 = vpop.f32.mrb[0].mxu0
        %7347 = vdwg.mxu0
        %7348 = vmatprep.subr.mxu0 0.0
        %7349 = vmatpush1.msra.mxu0 %v7143
        %7350 = vmatprep.subr.mxu0 0.0
        %7351 = vmatpush1.msra.mxu0 %v7144
        %7352 = vmatprep.subr.mxu0 0.0
        %7353 = vmatpush1.msra.mxu0 %v7145
        %7354 = vmatprep.subr.mxu0 0.0
        %7355 = vmatpush1.msra.mxu0 %v7146
        %7356 = vmatprep.subr.mxu0 0.0
        %7357 = vmatpush1.msra.mxu0 %v7147
        %7358 = vmatprep.subr.mxu0 0.0
        %7359 = vmatpush1.msra.mxu0 %v7148
        %7360 = vmatprep.subr.mxu0 0.0
        %7361 = vmatpush1.msra.mxu0 %v7149
        %7362 = vmatprep.subr.mxu0 0.0
        %7363 = vmatpush1.msra.mxu0 %v7150
        %7364 = vmatprep.subr.mxu0 0.0
        %7365 = vmatpush1.msra.mxu0 %v7151
        %7366 = vmatprep.subr.mxu0 0.0
        %7367 = vmatpush1.msra.mxu0 %v7152
        %7368 = vmatprep.subr.mxu0 0.0
        %7369 = vmatpush1.msra.mxu0 %v7153
        %7370 = vmatprep.subr.mxu0 0.0
        %7371 = vmatpush1.msra.mxu0 %v7154
        %7372 = vmatprep.subr.mxu0 0.0
        %7373 = vmatpush1.msra.mxu0 %v7155
        %7374 = vmatprep.subr.mxu0 0.0
        %7375 = vmatpush1.msra.mxu0 %v7156
        %7376 = vmatprep.subr.mxu0 0.0
        %7377 = vmatpush1.msra.mxu0 %v7157
        %7378 = vmatprep.subr.mxu0 0.0
        %7379 = vmatpush1.msra.mxu0 %v7158
        %7380 = vmatprep.subr.mxu0 0.0
        %7381 = vmatpush1.msra.mxu0 %v7159
        %7382 = vmatprep.subr.mxu0 0.0
        %7383 = vmatpush1.msra.mxu0 %v7160
        %7384 = vmatprep.subr.mxu0 0.0
        %7385 = vmatpush1.msra.mxu0 %v7161
        %7386 = vmatprep.subr.mxu0 0.0
        %7387 = vmatpush1.msra.mxu0 %v7162
        %7388 = vmatprep.subr.mxu0 0.0
        %7389 = vmatpush1.msra.mxu0 %v7163
        %7390 = vmatprep.subr.mxu0 0.0
        %7391 = vmatpush1.msra.mxu0 %v7164
        %7392 = vmatprep.subr.mxu0 0.0
        %7393 = vmatpush1.msra.mxu0 %v7165
        %7394 = vmatprep.subr.mxu0 0.0
        %7395 = vmatpush1.msra.mxu0 %v7166
        %7396 = vmatprep.subr.mxu0 0.0
        %7397 = vmatpush1.msra.mxu0 %v7167
        %7398 = vmatprep.subr.mxu0 0.0
        %7399 = vmatpush1.msra.mxu0 %v7168
        %7400 = vmatprep.subr.mxu0 0.0
        %7401 = vmatpush1.msra.mxu0 %v7169
        %7402 = vmatprep.subr.mxu0 0.0
        %7403 = vmatpush1.msra.mxu0 %v7170
        %7404 = vmatprep.subr.mxu0 0.0
        %7405 = vmatpush1.msra.mxu0 %v7171
        %7406 = vmatprep.subr.mxu0 0.0
        %7407 = vmatpush1.msra.mxu0 %v7172
        %7408 = vmatprep.subr.mxu0 0.0
        %7409 = vmatpush1.msra.mxu0 %v7173
        %7410 = vmatprep.subr.mxu0 0.0
        %7411 = vmatpush1.msra.mxu0 %v7174
        %7412 = vmatprep.mubr.f32.mxu0 %v7076
        %7413 = vmatmul.mubr.f32.gmra.mrb[0].mxu0 %v7075
        %v7414 = vpop.f32.mrb[0].mxu0
        %v7415 = vadd.f32 %v7345, %v7414
        %v7416 = vpop.f32.mrb[0].mxu0
        %7417 = vdwg.mxu0
        %7418 = vmatprep.subr.mxu0 0.0
        %7419 = vmatpush1.msra.mxu0 %v7175
        %7420 = vmatprep.subr.mxu0 0.0
        %7421 = vmatpush1.msra.mxu0 %v7176
        %7422 = vmatprep.subr.mxu0 0.0
        %7423 = vmatpush1.msra.mxu0 %v7177
        %7424 = vmatprep.subr.mxu0 0.0
        %7425 = vmatpush1.msra.mxu0 %v7178
        %7426 = vmatprep.subr.mxu0 0.0
        %7427 = vmatpush1.msra.mxu0 %v7179
        %7428 = vmatprep.subr.mxu0 0.0
        %7429 = vmatpush1.msra.mxu0 %v7180
        %7430 = vmatprep.subr.mxu0 0.0
        %7431 = vmatpush1.msra.mxu0 %v7181
        %7432 = vmatprep.subr.mxu0 0.0
        %7433 = vmatpush1.msra.mxu0 %v7182
        %7434 = vmatprep.subr.mxu0 0.0
        %7435 = vmatpush1.msra.mxu0 %v7183
        %7436 = vmatprep.subr.mxu0 0.0
        %7437 = vmatpush1.msra.mxu0 %v7184
        %7438 = vmatprep.subr.mxu0 0.0
        %7439 = vmatpush1.msra.mxu0 %v7185
        %7440 = vmatprep.subr.mxu0 0.0
        %7441 = vmatpush1.msra.mxu0 %v7186
        %7442 = vmatprep.subr.mxu0 0.0
        %7443 = vmatpush1.msra.mxu0 %v7187
        %7444 = vmatprep.subr.mxu0 0.0
        %7445 = vmatpush1.msra.mxu0 %v7188
        %7446 = vmatprep.subr.mxu0 0.0
        %7447 = vmatpush1.msra.mxu0 %v7189
        %7448 = vmatprep.subr.mxu0 0.0
        %7449 = vmatpush1.msra.mxu0 %v7190
        %7450 = vmatprep.subr.mxu0 0.0
        %7451 = vmatpush1.msra.mxu0 %v7191
        %7452 = vmatprep.subr.mxu0 0.0
        %7453 = vmatpush1.msra.mxu0 %v7192
        %7454 = vmatprep.subr.mxu0 0.0
        %7455 = vmatpush1.msra.mxu0 %v7193
        %7456 = vmatprep.subr.mxu0 0.0
        %7457 = vmatpush1.msra.mxu0 %v7194
        %7458 = vmatprep.subr.mxu0 0.0
        %7459 = vmatpush1.msra.mxu0 %v7195
        %7460 = vmatprep.subr.mxu0 0.0
        %7461 = vmatpush1.msra.mxu0 %v7196
        %7462 = vmatprep.subr.mxu0 0.0
        %7463 = vmatpush1.msra.mxu0 %v7197
        %7464 = vmatprep.subr.mxu0 0.0
        %7465 = vmatpush1.msra.mxu0 %v7198
        %7466 = vmatprep.subr.mxu0 0.0
        %7467 = vmatpush1.msra.mxu0 %v7199
        %7468 = vmatprep.subr.mxu0 0.0
        %7469 = vmatpush1.msra.mxu0 %v7200
        %7470 = vmatprep.subr.mxu0 0.0
        %7471 = vmatpush1.msra.mxu0 %v7201
        %7472 = vmatprep.subr.mxu0 0.0
        %7473 = vmatpush1.msra.mxu0 %v7202
        %7474 = vmatprep.subr.mxu0 0.0
        %7475 = vmatpush1.msra.mxu0 %v7203
        %7476 = vmatprep.subr.mxu0 0.0
        %7477 = vmatpush1.msra.mxu0 %v7204
        %7478 = vmatprep.subr.mxu0 0.0
        %7479 = vmatpush1.msra.mxu0 %v7205
        %7480 = vmatprep.subr.mxu0 0.0
        %7481 = vmatpush1.msra.mxu0 %v7206
        %7482 = vmatprep.mubr.f32.mxu0 %v7078
        %7483 = vmatmul.mubr.f32.gmra.mrb[0].mxu0 %v7077
        %v7484 = vpop.f32.mrb[0].mxu0
        %v7485 = vadd.f32 %v7415, %v7484
        %v7486 = vpop.f32.mrb[0].mxu0
        %7487 = vdwg.mxu0
        %vm7488 = vcmask 40960
        %v7489 = vsel %vm7488, %v7485, 0.0
        %7490 = vadd.xlane.f32.xlu0 %v7489
        %v7491 = vpop.xlane.xlu0 %7490
        %v7492 = vmul.f32 %v7491, 0.16666667
        %v7493 = vsub.f32 %v7485, %v7492
        %7495 = vset.pattern.permute.xlu0 6
        %7496 = vperm.xlu0 %7495, %v7493
        %v7497 = vpop.permute.xlu0 %7496
        %v7499 = vadd.f32 %v7485, %v7497
        %7500 = vst [vmem:[%s378] sm:$0x1] %v7499
        %s7501 = sand.u32 %s269, 1
        %s7502 = scalar_lea.sflag [#allocation6], %s7501
        %s7503 = sand.u32 %s269, 1
        %s7504 = scalar_lea.vmem [#allocation5], %s7503
        // Predicated region
        $region65: #{forward.1} parent=63 // pred_check
          %p7505 = pneg %p279
        $region66: #{forward.1} parent=63 // pred_check_branch
          %7507 = sbr.rel (%p7505) target = $region68
        $region67: #{forward.1} parent=63 // pred_region
          %s7509 = ssub.s32 16, 16
          %7510 = vsyncadd %s7502, %s7509
          %s7511 = smul.addr %s25, 16
          %s7512 = scalar_lea.hbm %s11, %s7511
          %s7514 = sshll.u32 %s7504, 4
          %s7515 = int_to_ptr.vmem [resolvable:$true] %s7514
          %7517 = dma.vmem_to_hbm [thread:$0]  %s7515, 16, %s7512, %s7502
        $region68: #{forward.1} parent=63 // pred_fallthru
          _
      $region64: #{forward.1} parent=5 // pred_fallthru
        _
      %p7518 = scmp.le.s32.totalorder 2, %s20
      // Predicated region
      $region69: #{forward.1} parent=5 // pred_check
        %p7519 = pneg %p7518
      $region70: #{forward.1} parent=5 // pred_check_branch
        %7521 = sbr.rel (%p7519) target = $region72
      $region71: #{forward.1} parent=5 // pred_region
        %s7522 = ssub.s32 %s20, 2
        // Predicated region
        $region73: #{forward.1} parent=71 // pred_check
          %p7523 = pneg %p285
        $region74: #{forward.1} parent=71 // pred_check_branch
          %7525 = sbr.rel (%p7523) target = $region76
        $region75: #{forward.1} parent=71 // pred_region
          %s7526 = sand.u32 %s270, 1
          %s7527 = scalar_lea.sflag [#allocation6], %s7526
          %s7528 = sand.u32 %s270, 1
          %s7529 = scalar_lea.vmem [#allocation5], %s7528
          %7530 = dma.done %s7527, 16
        $region76: #{forward.1} parent=71 // pred_fallthru
          _
      $region72: #{forward.1} parent=5 // pred_fallthru
        _
    $region6: #{forward.1} parent=1 // loop_footer
      %s24 = sadd.s32 1, %s20
    $region7: #{forward.1} parent=1 // loop_footer_branch
      %19 = sbr.rel target = $region3
    $region8: #{forward.1} parent=1 // loop_exit
      _
    %7531 = vsyncpa [#allocation6], 1
    %s7532 = scalar_lea.sflag [#allocation6], 1
    %7533 = vsyncpa %s7532, 1

</llo_original>
